<compile_context>
chip_gen: v7x
topology: tpu7x:2x2x1
jax: 0.10.0
libtpu: 0.0.40
codegen_flags: <defaults>
</compile_context>

<pallas_src>
import math

import jax
import jax.numpy as jnp
from jax.experimental import pallas as pl
from jax.experimental.pallas import tpu as pltpu

# ----------------------- synthetic configs (small) -----------------------
BATCH = 2
IN_CH = 3
IMG = 16
PATCH = 4
PATCH_DIM = IN_CH * PATCH * PATCH          # 48
NUM_PATCHES = (IMG // PATCH) ** 2          # 16
ENC_TOKENS = NUM_PATCHES + 2               # + cls + dist token (DeiT)
ENC_DIM = 32                               # enc_config.embedding_dimension
ENC_HEADS = 4
ENC_HEAD_DIM = ENC_DIM // ENC_HEADS
ENC_MLP = 64
ENC_LAYERS = 2
DEC_DIM = 64                               # dec_config.embedding_dimension
DEC_HEADS = 4
DEC_HEAD_DIM = DEC_DIM // DEC_HEADS
DEC_MLP = 128
DEC_LAYERS = 2
VOCAB = 100
TGT_LEN = 8
MAX_TGT = 16
EPS = 1e-5
NEG_INF = -1e30


# ----------------------- in-kernel helpers -----------------------
def _layer_norm(x, gamma, beta):
    """LayerNorm over the feature (lane) axis; statistics kept in f32."""
    xf = x.astype(jnp.float32)
    mu = jnp.mean(xf, axis=-1, keepdims=True)
    var = jnp.mean(jnp.square(xf - mu), axis=-1, keepdims=True)
    return (xf - mu) * jax.lax.rsqrt(var + EPS) * gamma + beta


def _mha_core(q, k, v, wo16, bo, num_heads, head_dim, bias):
    """Multi-head attention core on full-width q/k/v (Lq,D)/(Lk,D) f32 activations.

    Q is already pre-scaled by 1/sqrt(head_dim) (folded into the projection weights at init).
    Casts to bf16 happen once per tensor; per-head work is just static lane slices + small MXU
    matmuls; the context is lane-concatenated and goes through ONE wide output projection.
    """
    q16 = q.astype(jnp.bfloat16)
    k16 = k.astype(jnp.bfloat16)
    v16 = v.astype(jnp.bfloat16)
    ctxs = []
    for h in range(num_heads):
        lo, hi = h * head_dim, (h + 1) * head_dim
        s = jax.lax.dot_general(q16[:, lo:hi], k16[:, lo:hi],
                                (((1,), (1,)), ((), ())),
                                preferred_element_type=jnp.float32)      # (Lq, Lk) f32
        if bias is not None:
            s = s + bias
        m = jnp.max(s, axis=-1, keepdims=True)
        p = jnp.exp(s - m)
        p = p * pl.reciprocal(jnp.sum(p, axis=-1, keepdims=True), approx=True)
        ctxs.append(jnp.dot(p.astype(jnp.bfloat16), v16[:, lo:hi],
                            preferred_element_type=jnp.float32))         # (Lq, Dh)
    ctx = jnp.concatenate(ctxs, axis=-1)                                 # (Lq, H*Dh)
    return jnp.dot(ctx.astype(jnp.bfloat16), wo16,
                   preferred_element_type=jnp.float32) + bo


def _self_attn(x16, qkv_w16, qkv_b, wo16, bo, num_heads, head_dim, bias):
    d = num_heads * head_dim
    qkv = jnp.dot(x16, qkv_w16, preferred_element_type=jnp.float32) + qkv_b   # (L, 3D)
    return _mha_core(qkv[:, :d], qkv[:, d:2 * d], qkv[:, 2 * d:],
                     wo16, bo, num_heads, head_dim, bias)


def _cross_attn(xq16, mem16, qkv_w16, qkv_b, wo16, bo, num_heads, head_dim):
    d = num_heads * head_dim
    q = jnp.dot(xq16, qkv_w16[:, :d], preferred_element_type=jnp.float32) + qkv_b[:, :d]
    kv = jnp.dot(mem16, qkv_w16[:, d:], preferred_element_type=jnp.float32) + qkv_b[:, d:]
    return _mha_core(q, kv[:, :d], kv[:, d:], wo16, bo, num_heads, head_dim, bias=None)


def _ffn(x16, w1_16, b1, w2_16, b2):
    # TODO(synk): jax.nn.gelu defaults to the tanh approximation; PyTorch nn.GELU uses exact erf.
    h = jax.nn.gelu(jnp.dot(x16, w1_16, preferred_element_type=jnp.float32) + b1)
    return jnp.dot(h.astype(jnp.bfloat16), w2_16,
                   preferred_element_type=jnp.float32) + b2


# ----------------------- fully fused encoder+decoder kernel -----------------------
def _ocr_kernel(patches_ref, patch_w_ref, base_ref,
                enc_vec_ref, enc_qkv_w_ref, enc_qkv_b_ref, enc_wo_ref,
                enc_w1_ref, enc_b1_ref, enc_w2_ref,
                enc_lnf_ref, e2d_w_ref,
                x_emb_ref, mask_ref, dec_head_ref, dec_vec_ref,
                dec_qkv_w_ref, dec_qkv_b_ref, dec_wo_ref,
                dec_w1_ref, dec_b1_ref, dec_w2_ref,
                out_ref):
    # -------- DeiT encoder (pre-LN), all layers unrolled, residual kept in vregs --------
    # Patch embedding (unfold+matmul == patch conv). The two leading padded (zero) rows only
    # receive the cls/dist rows of `base` (cls/dist tokens + patch bias + positions).
    x = jnp.dot(patches_ref[0], patch_w_ref[...],
                preferred_element_type=jnp.float32) + base_ref[...]      # (T, ENC_DIM) f32

    for l in range(ENC_LAYERS):
        vec = enc_vec_ref[l]                      # (6, E): ln1_g, ln1_b, ln2_g, ln2_b, bo, b2
        h16 = _layer_norm(x, vec[0:1], vec[1:2]).astype(jnp.bfloat16)
        x = x + _self_attn(h16, enc_qkv_w_ref[l], enc_qkv_b_ref[l],
                           enc_wo_ref[l], vec[4:5], ENC_HEADS, ENC_HEAD_DIM, bias=None)
        h16 = _layer_norm(x, vec[2:3], vec[3:4]).astype(jnp.bfloat16)
        x = x + _ffn(h16, enc_w1_ref[l], enc_b1_ref[l], enc_w2_ref[l], vec[5:6])

    # final encoder LayerNorm + enc->dec projection; memory stays in vregs as bf16 (cast once)
    lnf = enc_lnf_ref[...]                        # (2, E): gamma, beta
    dec_head = dec_head_ref[...]                  # (3, D): e2d_b, emb_ln_g, emb_ln_b
    xf16 = _layer_norm(x, lnf[0:1], lnf[1:2]).astype(jnp.bfloat16)
    mem16 = (jnp.dot(xf16, e2d_w_ref[...], preferred_element_type=jnp.float32)
             + dec_head[0:1]).astype(jnp.bfloat16)                       # (T, DEC_DIM) bf16

    # -------- Roberta-style decoder (post-LN), all layers unrolled --------
    y = _layer_norm(x_emb_ref[0], dec_head[1:2], dec_head[2:3])          # embedding LayerNorm
    bias = mask_ref[...]                                                 # additive causal mask

    for l in range(DEC_LAYERS):
        vec = dec_vec_ref[l]    # (9, D): ln1g, ln1b, ln2g, ln2b, ln3g, ln3b, self_bo, cross_bo, b2
        a = _self_attn(y.astype(jnp.bfloat16), dec_qkv_w_ref[l, 0], dec_qkv_b_ref[l, 0],
                       dec_wo_ref[l, 0], vec[6:7], DEC_HEADS, DEC_HEAD_DIM, bias=bias)
        y = _layer_norm(y + a, vec[0:1], vec[1:2])
        c = _cross_attn(y.astype(jnp.bfloat16), mem16, dec_qkv_w_ref[l, 1], dec_qkv_b_ref[l, 1],
                        dec_wo_ref[l, 1], vec[7:8], DEC_HEADS, DEC_HEAD_DIM)
        y = _layer_norm(y + c, vec[2:3], vec[3:4])
        f = _ffn(y.astype(jnp.bfloat16), dec_w1_ref[l], dec_b1_ref[l], dec_w2_ref[l], vec[8:9])
        y = _layer_norm(y + f, vec[4:5], vec[5:6])

    out_ref[0] = y.astype(out_ref.dtype)


# ----------------------- wrapper -----------------------
def transformer_ocr_forward(image, target_idx, params):
    B = image.shape[0]
    L = target_idx.shape[1]
    assert L <= MAX_TGT, (L, MAX_TGT)
    p = PATCH

    # NCHW image -> (B, num_patches, C*p*p) patches (plain-JAX unfold; patch conv == matmul);
    # two zero rows in front stand in for the cls/dist token slots.
    patches = image.reshape(B, IN_CH, IMG // p, p, IMG // p, p)
    patches = patches.transpose(0, 2, 4, 1, 3, 5).reshape(B, NUM_PATCHES, PATCH_DIM)
    patches = jnp.pad(patches, ((0, 0), (2, 0), (0, 0))).astype(jnp.bfloat16)

    # cls/dist tokens, patch bias and positional embeddings combined once into one base tensor
    base = jnp.concatenate(
        [params["cls_token"], params["dist_token"],
         jnp.broadcast_to(params["patch_b"], (NUM_PATCHES, ENC_DIM))], axis=0,
    ) + params["enc_pos"]

    # TODO(synk): token-embedding gather stays in plain JAX (a Pallas gather would need manual DMA).
    x_emb = jnp.take(params["tok_emb"], target_idx, axis=0) + params["dec_pos"][:L][None]
    # additive causal bias (== generate_square_mask(L)), built once outside the kernel
    causal = jnp.where(jnp.tril(jnp.ones((L, L), jnp.bool_)),
                       0.0, NEG_INF).astype(jnp.float32)

    b3 = lambda b: (b, 0, 0)
    s2 = lambda b: (0, 0)
    s3 = lambda b: (0, 0, 0)
    s4 = lambda b: (0, 0, 0, 0)

    in_specs = [
        pl.BlockSpec((1, ENC_TOKENS, PATCH_DIM), b3),              # patches (padded)     per-batch
        pl.BlockSpec((PATCH_DIM, ENC_DIM), s2),                    # patch_w              shared
        pl.BlockSpec((ENC_TOKENS, ENC_DIM), s2),                   # base                 shared
        pl.BlockSpec((ENC_LAYERS, 6, ENC_DIM), s3),                # enc LN/bias pack
        pl.BlockSpec((ENC_LAYERS, ENC_DIM, 3 * ENC_DIM), s3),      # enc fused qkv_w
        pl.BlockSpec((ENC_LAYERS, 1, 3 * ENC_DIM), s3),            # enc fused qkv_b
        pl.BlockSpec((ENC_LAYERS, ENC_DIM, ENC_DIM), s3),          # enc wo (heads concatenated)
        pl.BlockSpec((ENC_LAYERS, ENC_DIM, ENC_MLP), s3),          # enc w1
        pl.BlockSpec((ENC_LAYERS, 1, ENC_MLP), s3),                # enc b1
        pl.BlockSpec((ENC_LAYERS, ENC_MLP, ENC_DIM), s3),          # enc w2
        pl.BlockSpec((2, ENC_DIM), s2),                            # enc final LN (gamma, beta)
        pl.BlockSpec((ENC_DIM, DEC_DIM), s2),                      # e2d_w
        pl.BlockSpec((1, L, DEC_DIM), b3),                         # x_emb                per-batch
        pl.BlockSpec((L, L), s2),                                  # causal mask
        pl.BlockSpec((3, DEC_DIM), s2),                            # e2d_b + dec emb LN pack
        pl.BlockSpec((DEC_LAYERS, 9, DEC_DIM), s3),                # dec LN/bias pack
        pl.BlockSpec((DEC_LAYERS, 2, DEC_DIM, 3 * DEC_DIM), s4),   # dec [self,cross] fused qkv_w
        pl.BlockSpec((DEC_LAYERS, 2, 1, 3 * DEC_DIM), s4),         # dec [self,cross] fused qkv_b
        pl.BlockSpec((DEC_LAYERS, 2, DEC_DIM, DEC_DIM), s4),       # dec [self,cross] wo
        pl.BlockSpec((DEC_LAYERS, DEC_DIM, DEC_MLP), s3),          # dec w1
        pl.BlockSpec((DEC_LAYERS, 1, DEC_MLP), s3),                # dec b1
        pl.BlockSpec((DEC_LAYERS, DEC_MLP, DEC_DIM), s3),          # dec w2
    ]
    out_spec = pl.BlockSpec((1, L, DEC_DIM), b3)

    return pl.pallas_call(
        _ocr_kernel,
        out_shape=jax.ShapeDtypeStruct((B, L, DEC_DIM), jnp.float32),
        grid=(B,),
        in_specs=in_specs,
        out_specs=out_spec,
        compiler_params=pltpu.CompilerParams(dimension_semantics=("parallel",)),
    )(
        patches, params["patch_w"], base,
        params["enc_vec"], params["enc_qkv_w"], params["enc_qkv_b"], params["enc_wo"],
        params["enc_w1"], params["enc_b1"], params["enc_w2"],
        params["enc_lnf"], params["e2d_w"],
        x_emb, causal, params["dec_head"], params["dec_vec"],
        params["dec_qkv_w"], params["dec_qkv_b"], params["dec_wo"],
        params["dec_w1"], params["dec_b1"], params["dec_w2"],
    )


# ----------------------- deterministic parameter init (packed / fused layouts) -----------------
def init_params(key):
    ks = iter(jax.random.split(key, 20))
    f32, bf16 = jnp.float32, jnp.bfloat16

    def nrm(shape):
        return jax.random.normal(next(ks), shape, f32) * 0.02

    ones_e = jnp.ones((ENC_LAYERS, ENC_DIM), f32)
    zeros_e = jnp.zeros((ENC_LAYERS, ENC_DIM), f32)
    ones_d = jnp.ones((DEC_LAYERS, DEC_DIM), f32)
    zeros_d = jnp.zeros((DEC_LAYERS, DEC_DIM), f32)

    # Fold the 1/sqrt(head_dim) attention scale into the Q columns of the fused QKV weights/biases.
    enc_scale = jnp.concatenate([jnp.full((ENC_DIM,), 1.0 / math.sqrt(ENC_HEAD_DIM), f32),
                                 jnp.ones((2 * ENC_DIM,), f32)])
    dec_scale = jnp.concatenate([jnp.full((DEC_DIM,), 1.0 / math.sqrt(DEC_HEAD_DIM), f32),
                                 jnp.ones((2 * DEC_DIM,), f32)])

    return {
        # patch embedding / tokens / positions
        "patch_w": nrm((PATCH_DIM, ENC_DIM)).astype(bf16),
        "patch_b": jnp.zeros((1, ENC_DIM), f32),
        "cls_token": nrm((1, ENC_DIM)),
        "dist_token": nrm((1, ENC_DIM)),
        "enc_pos": nrm((ENC_TOKENS, ENC_DIM)),
        # encoder layers: [ln1_g, ln1_b, ln2_g, ln2_b, attn_out_b, mlp_b2] packed per layer
        "enc_vec": jnp.stack([ones_e, zeros_e, ones_e, zeros_e, zeros_e, zeros_e], axis=1),
        "enc_qkv_w": (nrm((ENC_LAYERS, ENC_DIM, 3 * ENC_DIM)) * enc_scale).astype(bf16),
        "enc_qkv_b": jnp.zeros((ENC_LAYERS, 1, 3 * ENC_DIM), f32) * enc_scale,
        "enc_wo": nrm((ENC_LAYERS, ENC_DIM, ENC_DIM)).astype(bf16),
        "enc_w1": nrm((ENC_LAYERS, ENC_DIM, ENC_MLP)).astype(bf16),
        "enc_b1": jnp.zeros((ENC_LAYERS, 1, ENC_MLP), f32),
        "enc_w2": nrm((ENC_LAYERS, ENC_MLP, ENC_DIM)).astype(bf16),
        "enc_lnf": jnp.stack([jnp.ones((ENC_DIM,), f32), jnp.zeros((ENC_DIM,), f32)], axis=0),
        # encoder -> decoder projection bias + decoder embedding LayerNorm, packed
        "e2d_w": nrm((ENC_DIM, DEC_DIM)).astype(bf16),
        "dec_head": jnp.stack([jnp.zeros((DEC_DIM,), f32), jnp.ones((DEC_DIM,), f32),
                               jnp.zeros((DEC_DIM,), f32)], axis=0),
        # decoder embedding tables
        "tok_emb": nrm((VOCAB, DEC_DIM)),
        "dec_pos": nrm((MAX_TGT, DEC_DIM)),
        # decoder layers: [ln1_g, ln1_b, ln2_g, ln2_b, ln3_g, ln3_b, self_out_b, cross_out_b, b2]
        "dec_vec": jnp.stack([ones_d, zeros_d, ones_d, zeros_d, ones_d, zeros_d,
                              zeros_d, zeros_d, zeros_d], axis=1),
        # fused QKV / concatenated-head out-proj weights, [self, cross] stacked on axis 1
        "dec_qkv_w": (nrm((DEC_LAYERS, 2, DEC_DIM, 3 * DEC_DIM)) * dec_scale).astype(bf16),
        "dec_qkv_b": jnp.zeros((DEC_LAYERS, 2, 1, 3 * DEC_DIM), f32) * dec_scale,
        "dec_wo": nrm((DEC_LAYERS, 2, DEC_DIM, DEC_DIM)).astype(bf16),
        "dec_w1": nrm((DEC_LAYERS, DEC_DIM, DEC_MLP)).astype(bf16),
        "dec_b1": jnp.zeros((DEC_LAYERS, 1, DEC_MLP), f32),
        "dec_w2": nrm((DEC_LAYERS, DEC_MLP, DEC_DIM)).astype(bf16),
    }


# ----------------------- main -----------------------
if __name__ == "__main__":
    root = jax.random.PRNGKey(0)
    k_img, k_tgt, k_par = jax.random.split(root, 3)

    image = jax.random.normal(k_img, (BATCH, IN_CH, IMG, IMG), jnp.float32)   # NCHW
    target_idx = jax.random.randint(k_tgt, (BATCH, TGT_LEN), 0, VOCAB)
    params = init_params(k_par)

    fwd = jax.jit(transformer_ocr_forward)
    out = jax.block_until_ready(fwd(image, target_idx, params))

    assert out.shape == (BATCH, TGT_LEN, DEC_DIM), out.shape
    assert bool(jnp.all(jnp.isfinite(out)))
    print("KERNEL_OK")
</pallas_src>

<mosaic_0001>
module attributes {stable_mosaic.version = 11 : i64} {
  func.func @_ocr_kernel(%arg0: i32, %arg1: memref<1x18x48xbf16, #tpu.memory_space<vmem>>, %arg2: memref<48x32xbf16, #tpu.memory_space<vmem>>, %arg3: memref<18x32xf32, #tpu.memory_space<vmem>>, %arg4: memref<2x6x32xf32, #tpu.memory_space<vmem>>, %arg5: memref<2x32x96xbf16, #tpu.memory_space<vmem>>, %arg6: memref<2x1x96xf32, #tpu.memory_space<vmem>>, %arg7: memref<2x32x32xbf16, #tpu.memory_space<vmem>>, %arg8: memref<2x32x64xbf16, #tpu.memory_space<vmem>>, %arg9: memref<2x1x64xf32, #tpu.memory_space<vmem>>, %arg10: memref<2x64x32xbf16, #tpu.memory_space<vmem>>, %arg11: memref<2x32xf32, #tpu.memory_space<vmem>>, %arg12: memref<32x64xbf16, #tpu.memory_space<vmem>>, %arg13: memref<1x8x64xf32, #tpu.memory_space<vmem>>, %arg14: memref<8x8xf32, #tpu.memory_space<vmem>>, %arg15: memref<3x64xf32, #tpu.memory_space<vmem>>, %arg16: memref<2x9x64xf32, #tpu.memory_space<vmem>>, %arg17: memref<2x2x64x192xbf16, #tpu.memory_space<vmem>>, %arg18: memref<2x2x1x192xf32, #tpu.memory_space<vmem>>, %arg19: memref<2x2x64x64xbf16, #tpu.memory_space<vmem>>, %arg20: memref<2x64x128xbf16, #tpu.memory_space<vmem>>, %arg21: memref<2x1x128xf32, #tpu.memory_space<vmem>>, %arg22: memref<2x128x64xbf16, #tpu.memory_space<vmem>>, %arg23: memref<1x8x64xf32, #tpu.memory_space<vmem>>) attributes {dimension_semantics = [#tpu.dimension_semantics<parallel>], iteration_bounds = array<i64: 2>, scalar_prefetch = 0 : i64, scratch_operands = 0 : i64, tpu.core_type = #tpu.core_type<tc>, window_params = [{transform_indices = @transform_0, window_bounds = array<i64: 1, 18, 48>}, {pipeline_mode = #tpu.pipeline_mode<synchronous>, transform_indices = @transform_1, window_bounds = array<i64: 48, 32>}, {pipeline_mode = #tpu.pipeline_mode<synchronous>, transform_indices = @transform_2, window_bounds = array<i64: 18, 32>}, {pipeline_mode = #tpu.pipeline_mode<synchronous>, transform_indices = @transform_3, window_bounds = array<i64: 2, 6, 32>}, {pipeline_mode = #tpu.pipeline_mode<synchronous>, transform_indices = @transform_4, window_bounds = array<i64: 2, 32, 96>}, {pipeline_mode = #tpu.pipeline_mode<synchronous>, transform_indices = @transform_5, window_bounds = array<i64: 2, 1, 96>}, {pipeline_mode = #tpu.pipeline_mode<synchronous>, transform_indices = @transform_6, window_bounds = array<i64: 2, 32, 32>}, {pipeline_mode = #tpu.pipeline_mode<synchronous>, transform_indices = @transform_7, window_bounds = array<i64: 2, 32, 64>}, {pipeline_mode = #tpu.pipeline_mode<synchronous>, transform_indices = @transform_8, window_bounds = array<i64: 2, 1, 64>}, {pipeline_mode = #tpu.pipeline_mode<synchronous>, transform_indices = @transform_9, window_bounds = array<i64: 2, 64, 32>}, {pipeline_mode = #tpu.pipeline_mode<synchronous>, transform_indices = @transform_10, window_bounds = array<i64: 2, 32>}, {pipeline_mode = #tpu.pipeline_mode<synchronous>, transform_indices = @transform_11, window_bounds = array<i64: 32, 64>}, {transform_indices = @transform_12, window_bounds = array<i64: 1, 8, 64>}, {pipeline_mode = #tpu.pipeline_mode<synchronous>, transform_indices = @transform_13, window_bounds = array<i64: 8, 8>}, {pipeline_mode = #tpu.pipeline_mode<synchronous>, transform_indices = @transform_14, window_bounds = array<i64: 3, 64>}, {pipeline_mode = #tpu.pipeline_mode<synchronous>, transform_indices = @transform_15, window_bounds = array<i64: 2, 9, 64>}, {pipeline_mode = #tpu.pipeline_mode<synchronous>, transform_indices = @transform_16, window_bounds = array<i64: 2, 2, 64, 192>}, {pipeline_mode = #tpu.pipeline_mode<synchronous>, transform_indices = @transform_17, window_bounds = array<i64: 2, 2, 1, 192>}, {pipeline_mode = #tpu.pipeline_mode<synchronous>, transform_indices = @transform_18, window_bounds = array<i64: 2, 2, 64, 64>}, {pipeline_mode = #tpu.pipeline_mode<synchronous>, transform_indices = @transform_19, window_bounds = array<i64: 2, 64, 128>}, {pipeline_mode = #tpu.pipeline_mode<synchronous>, transform_indices = @transform_20, window_bounds = array<i64: 2, 1, 128>}, {pipeline_mode = #tpu.pipeline_mode<synchronous>, transform_indices = @transform_21, window_bounds = array<i64: 2, 128, 64>}, {transform_indices = @transform_22, window_bounds = array<i64: 1, 8, 64>}]} {
    %c0 = arith.constant 0 : index
    %c0_0 = arith.constant 0 : index
    %c0_1 = arith.constant 0 : index
    %0 = vector.load %arg1[%c0, %c0_0, %c0_1] : memref<1x18x48xbf16, #tpu.memory_space<vmem>>, vector<1x18x48xbf16>
    %1 = vector.shape_cast %0 : vector<1x18x48xbf16> to vector<18x48xbf16>
    %c0_2 = arith.constant 0 : index
    %c0_3 = arith.constant 0 : index
    %2 = vector.load %arg2[%c0_2, %c0_3] : memref<48x32xbf16, #tpu.memory_space<vmem>>, vector<48x32xbf16>
    %cst = arith.constant dense<0.000000e+00> : vector<18x32xf32>
    %3 = tpu.matmul %1, %2, %cst {dimension_numbers = #tpu.dot_dimension_numbers<[1], [0], [0], [1], [0, 0, 1, 1], [], []>} : vector<18x48xbf16>, vector<48x32xbf16>, vector<18x32xf32> -> vector<18x32xf32>
    %c0_4 = arith.constant 0 : index
    %c0_5 = arith.constant 0 : index
    %4 = vector.load %arg3[%c0_4, %c0_5] : memref<18x32xf32, #tpu.memory_space<vmem>>, vector<18x32xf32>
    %5 = arith.addf %3, %4 : vector<18x32xf32>
    %c0_6 = arith.constant 0 : index
    %c0_7 = arith.constant 0 : index
    %c0_8 = arith.constant 0 : index
    %6 = vector.load %arg4[%c0_6, %c0_7, %c0_8] : memref<2x6x32xf32, #tpu.memory_space<vmem>>, vector<1x6x32xf32>
    %7 = vector.shape_cast %6 : vector<1x6x32xf32> to vector<6x32xf32>
    %8 = vector.extract_strided_slice %7 {offsets = [0, 0], sizes = [1, 32], strides = [1, 1]} : vector<6x32xf32> to vector<1x32xf32>
    %9 = vector.extract_strided_slice %7 {offsets = [1, 0], sizes = [1, 32], strides = [1, 1]} : vector<6x32xf32> to vector<1x32xf32>
    %cst_9 = arith.constant dense<0.000000e+00> : vector<18xf32>
    %10 = vector.multi_reduction <add>, %5, %cst_9 [1] : vector<18x32xf32> to vector<18xf32>
    %11 = vector.shape_cast %10 : vector<18xf32> to vector<18x1xf32>
    %cst_10 = arith.constant 3.200000e+01 : f32
    %12 = vector.broadcast %cst_10 : f32 to vector<18x1xf32>
    %13 = arith.divf %11, %12 : vector<18x1xf32>
    %14 = vector.broadcast %13 : vector<18x1xf32> to vector<18x32xf32>
    %15 = arith.subf %5, %14 : vector<18x32xf32>
    %16 = arith.mulf %15, %15 : vector<18x32xf32>
    %cst_11 = arith.constant dense<0.000000e+00> : vector<18xf32>
    %17 = vector.multi_reduction <add>, %16, %cst_11 [1] : vector<18x32xf32> to vector<18xf32>
    %18 = vector.shape_cast %17 : vector<18xf32> to vector<18x1xf32>
    %cst_12 = arith.constant 3.200000e+01 : f32
    %19 = vector.broadcast %cst_12 : f32 to vector<18x1xf32>
    %20 = arith.divf %18, %19 : vector<18x1xf32>
    %21 = vector.broadcast %13 : vector<18x1xf32> to vector<18x32xf32>
    %22 = arith.subf %5, %21 : vector<18x32xf32>
    %cst_13 = arith.constant 9.99999974E-6 : f32
    %23 = vector.broadcast %cst_13 : f32 to vector<18x1xf32>
    %24 = arith.addf %20, %23 : vector<18x1xf32>
    %25 = math.rsqrt %24 : vector<18x1xf32>
    %26 = vector.broadcast %25 : vector<18x1xf32> to vector<18x32xf32>
    %27 = arith.mulf %22, %26 : vector<18x32xf32>
    %28 = vector.broadcast %8 : vector<1x32xf32> to vector<18x32xf32>
    %29 = arith.mulf %27, %28 : vector<18x32xf32>
    %30 = vector.broadcast %9 : vector<1x32xf32> to vector<18x32xf32>
    %31 = arith.addf %29, %30 : vector<18x32xf32>
    %32 = arith.truncf %31 : vector<18x32xf32> to vector<18x32xbf16>
    %c0_14 = arith.constant 0 : index
    %c0_15 = arith.constant 0 : index
    %c0_16 = arith.constant 0 : index
    %33 = vector.load %arg5[%c0_14, %c0_15, %c0_16] : memref<2x32x96xbf16, #tpu.memory_space<vmem>>, vector<1x32x96xbf16>
    %34 = vector.shape_cast %33 : vector<1x32x96xbf16> to vector<32x96xbf16>
    %c0_17 = arith.constant 0 : index
    %c0_18 = arith.constant 0 : index
    %c0_19 = arith.constant 0 : index
    %35 = vector.load %arg6[%c0_17, %c0_18, %c0_19] : memref<2x1x96xf32, #tpu.memory_space<vmem>>, vector<1x1x96xf32>
    %36 = vector.shape_cast %35 : vector<1x1x96xf32> to vector<1x96xf32>
    %c0_20 = arith.constant 0 : index
    %c0_21 = arith.constant 0 : index
    %c0_22 = arith.constant 0 : index
    %37 = vector.load %arg7[%c0_20, %c0_21, %c0_22] : memref<2x32x32xbf16, #tpu.memory_space<vmem>>, vector<1x32x32xbf16>
    %38 = vector.shape_cast %37 : vector<1x32x32xbf16> to vector<32x32xbf16>
    %39 = vector.extract_strided_slice %7 {offsets = [4, 0], sizes = [1, 32], strides = [1, 1]} : vector<6x32xf32> to vector<1x32xf32>
    %cst_23 = arith.constant dense<0.000000e+00> : vector<18x96xf32>
    %40 = tpu.matmul %32, %34, %cst_23 {dimension_numbers = #tpu.dot_dimension_numbers<[1], [0], [0], [1], [0, 0, 1, 1], [], []>} : vector<18x32xbf16>, vector<32x96xbf16>, vector<18x96xf32> -> vector<18x96xf32>
    %41 = vector.broadcast %36 : vector<1x96xf32> to vector<18x96xf32>
    %42 = arith.addf %40, %41 : vector<18x96xf32>
    %43 = vector.extract_strided_slice %42 {offsets = [0, 0], sizes = [18, 32], strides = [1, 1]} : vector<18x96xf32> to vector<18x32xf32>
    %44 = vector.extract_strided_slice %42 {offsets = [0, 32], sizes = [18, 32], strides = [1, 1]} : vector<18x96xf32> to vector<18x32xf32>
    %45 = vector.extract_strided_slice %42 {offsets = [0, 64], sizes = [18, 32], strides = [1, 1]} : vector<18x96xf32> to vector<18x32xf32>
    %46 = arith.truncf %43 : vector<18x32xf32> to vector<18x32xbf16>
    %47 = arith.truncf %44 : vector<18x32xf32> to vector<18x32xbf16>
    %48 = arith.truncf %45 : vector<18x32xf32> to vector<18x32xbf16>
    %49 = vector.extract_strided_slice %46 {offsets = [0, 0], sizes = [18, 8], strides = [1, 1]} : vector<18x32xbf16> to vector<18x8xbf16>
    %50 = vector.extract_strided_slice %47 {offsets = [0, 0], sizes = [18, 8], strides = [1, 1]} : vector<18x32xbf16> to vector<18x8xbf16>
    %cst_24 = arith.constant dense<0.000000e+00> : vector<18x18xf32>
    %51 = tpu.matmul %49, %50, %cst_24 {dimension_numbers = #tpu.dot_dimension_numbers<[1], [1], [0], [0], [0, 0, 1, 0], [], []>} : vector<18x8xbf16>, vector<18x8xbf16>, vector<18x18xf32> -> vector<18x18xf32>
    %cst_25 = arith.constant dense<0xFF800000> : vector<18xf32>
    %52 = vector.multi_reduction <maximumf>, %51, %cst_25 [1] : vector<18x18xf32> to vector<18xf32>
    %53 = vector.shape_cast %52 : vector<18xf32> to vector<18x1xf32>
    %54 = vector.broadcast %53 : vector<18x1xf32> to vector<18x18xf32>
    %55 = arith.subf %51, %54 : vector<18x18xf32>
    %56 = math.exp %55 : vector<18x18xf32>
    %cst_26 = arith.constant dense<0.000000e+00> : vector<18xf32>
    %57 = vector.multi_reduction <add>, %56, %cst_26 [1] : vector<18x18xf32> to vector<18xf32>
    %58 = vector.shape_cast %57 : vector<18xf32> to vector<18x1xf32>
    %59 = tpu.reciprocal %58 {approx = true} : vector<18x1xf32> -> vector<18x1xf32>
    %60 = vector.broadcast %59 : vector<18x1xf32> to vector<18x18xf32>
    %61 = arith.mulf %56, %60 : vector<18x18xf32>
    %62 = arith.truncf %61 : vector<18x18xf32> to vector<18x18xbf16>
    %63 = vector.extract_strided_slice %48 {offsets = [0, 0], sizes = [18, 8], strides = [1, 1]} : vector<18x32xbf16> to vector<18x8xbf16>
    %cst_27 = arith.constant dense<0.000000e+00> : vector<18x8xf32>
    %64 = tpu.matmul %62, %63, %cst_27 {dimension_numbers = #tpu.dot_dimension_numbers<[1], [0], [0], [1], [0, 0, 1, 1], [], []>} : vector<18x18xbf16>, vector<18x8xbf16>, vector<18x8xf32> -> vector<18x8xf32>
    %65 = vector.extract_strided_slice %46 {offsets = [0, 8], sizes = [18, 8], strides = [1, 1]} : vector<18x32xbf16> to vector<18x8xbf16>
    %66 = vector.extract_strided_slice %47 {offsets = [0, 8], sizes = [18, 8], strides = [1, 1]} : vector<18x32xbf16> to vector<18x8xbf16>
    %cst_28 = arith.constant dense<0.000000e+00> : vector<18x18xf32>
    %67 = tpu.matmul %65, %66, %cst_28 {dimension_numbers = #tpu.dot_dimension_numbers<[1], [1], [0], [0], [0, 0, 1, 0], [], []>} : vector<18x8xbf16>, vector<18x8xbf16>, vector<18x18xf32> -> vector<18x18xf32>
    %cst_29 = arith.constant dense<0xFF800000> : vector<18xf32>
    %68 = vector.multi_reduction <maximumf>, %67, %cst_29 [1] : vector<18x18xf32> to vector<18xf32>
    %69 = vector.shape_cast %68 : vector<18xf32> to vector<18x1xf32>
    %70 = vector.broadcast %69 : vector<18x1xf32> to vector<18x18xf32>
    %71 = arith.subf %67, %70 : vector<18x18xf32>
    %72 = math.exp %71 : vector<18x18xf32>
    %cst_30 = arith.constant dense<0.000000e+00> : vector<18xf32>
    %73 = vector.multi_reduction <add>, %72, %cst_30 [1] : vector<18x18xf32> to vector<18xf32>
    %74 = vector.shape_cast %73 : vector<18xf32> to vector<18x1xf32>
    %75 = tpu.reciprocal %74 {approx = true} : vector<18x1xf32> -> vector<18x1xf32>
    %76 = vector.broadcast %75 : vector<18x1xf32> to vector<18x18xf32>
    %77 = arith.mulf %72, %76 : vector<18x18xf32>
    %78 = arith.truncf %77 : vector<18x18xf32> to vector<18x18xbf16>
    %79 = vector.extract_strided_slice %48 {offsets = [0, 8], sizes = [18, 8], strides = [1, 1]} : vector<18x32xbf16> to vector<18x8xbf16>
    %cst_31 = arith.constant dense<0.000000e+00> : vector<18x8xf32>
    %80 = tpu.matmul %78, %79, %cst_31 {dimension_numbers = #tpu.dot_dimension_numbers<[1], [0], [0], [1], [0, 0, 1, 1], [], []>} : vector<18x18xbf16>, vector<18x8xbf16>, vector<18x8xf32> -> vector<18x8xf32>
    %81 = vector.extract_strided_slice %46 {offsets = [0, 16], sizes = [18, 8], strides = [1, 1]} : vector<18x32xbf16> to vector<18x8xbf16>
    %82 = vector.extract_strided_slice %47 {offsets = [0, 16], sizes = [18, 8], strides = [1, 1]} : vector<18x32xbf16> to vector<18x8xbf16>
    %cst_32 = arith.constant dense<0.000000e+00> : vector<18x18xf32>
    %83 = tpu.matmul %81, %82, %cst_32 {dimension_numbers = #tpu.dot_dimension_numbers<[1], [1], [0], [0], [0, 0, 1, 0], [], []>} : vector<18x8xbf16>, vector<18x8xbf16>, vector<18x18xf32> -> vector<18x18xf32>
    %cst_33 = arith.constant dense<0xFF800000> : vector<18xf32>
    %84 = vector.multi_reduction <maximumf>, %83, %cst_33 [1] : vector<18x18xf32> to vector<18xf32>
    %85 = vector.shape_cast %84 : vector<18xf32> to vector<18x1xf32>
    %86 = vector.broadcast %85 : vector<18x1xf32> to vector<18x18xf32>
    %87 = arith.subf %83, %86 : vector<18x18xf32>
    %88 = math.exp %87 : vector<18x18xf32>
    %cst_34 = arith.constant dense<0.000000e+00> : vector<18xf32>
    %89 = vector.multi_reduction <add>, %88, %cst_34 [1] : vector<18x18xf32> to vector<18xf32>
    %90 = vector.shape_cast %89 : vector<18xf32> to vector<18x1xf32>
    %91 = tpu.reciprocal %90 {approx = true} : vector<18x1xf32> -> vector<18x1xf32>
    %92 = vector.broadcast %91 : vector<18x1xf32> to vector<18x18xf32>
    %93 = arith.mulf %88, %92 : vector<18x18xf32>
    %94 = arith.truncf %93 : vector<18x18xf32> to vector<18x18xbf16>
    %95 = vector.extract_strided_slice %48 {offsets = [0, 16], sizes = [18, 8], strides = [1, 1]} : vector<18x32xbf16> to vector<18x8xbf16>
    %cst_35 = arith.constant dense<0.000000e+00> : vector<18x8xf32>
    %96 = tpu.matmul %94, %95, %cst_35 {dimension_numbers = #tpu.dot_dimension_numbers<[1], [0], [0], [1], [0, 0, 1, 1], [], []>} : vector<18x18xbf16>, vector<18x8xbf16>, vector<18x8xf32> -> vector<18x8xf32>
    %97 = vector.extract_strided_slice %46 {offsets = [0, 24], sizes = [18, 8], strides = [1, 1]} : vector<18x32xbf16> to vector<18x8xbf16>
    %98 = vector.extract_strided_slice %47 {offsets = [0, 24], sizes = [18, 8], strides = [1, 1]} : vector<18x32xbf16> to vector<18x8xbf16>
    %cst_36 = arith.constant dense<0.000000e+00> : vector<18x18xf32>
    %99 = tpu.matmul %97, %98, %cst_36 {dimension_numbers = #tpu.dot_dimension_numbers<[1], [1], [0], [0], [0, 0, 1, 0], [], []>} : vector<18x8xbf16>, vector<18x8xbf16>, vector<18x18xf32> -> vector<18x18xf32>
    %cst_37 = arith.constant dense<0xFF800000> : vector<18xf32>
    %100 = vector.multi_reduction <maximumf>, %99, %cst_37 [1] : vector<18x18xf32> to vector<18xf32>
    %101 = vector.shape_cast %100 : vector<18xf32> to vector<18x1xf32>
    %102 = vector.broadcast %101 : vector<18x1xf32> to vector<18x18xf32>
    %103 = arith.subf %99, %102 : vector<18x18xf32>
    %104 = math.exp %103 : vector<18x18xf32>
    %cst_38 = arith.constant dense<0.000000e+00> : vector<18xf32>
    %105 = vector.multi_reduction <add>, %104, %cst_38 [1] : vector<18x18xf32> to vector<18xf32>
    %106 = vector.shape_cast %105 : vector<18xf32> to vector<18x1xf32>
    %107 = tpu.reciprocal %106 {approx = true} : vector<18x1xf32> -> vector<18x1xf32>
    %108 = vector.broadcast %107 : vector<18x1xf32> to vector<18x18xf32>
    %109 = arith.mulf %104, %108 : vector<18x18xf32>
    %110 = arith.truncf %109 : vector<18x18xf32> to vector<18x18xbf16>
    %111 = vector.extract_strided_slice %48 {offsets = [0, 24], sizes = [18, 8], strides = [1, 1]} : vector<18x32xbf16> to vector<18x8xbf16>
    %cst_39 = arith.constant dense<0.000000e+00> : vector<18x8xf32>
    %112 = tpu.matmul %110, %111, %cst_39 {dimension_numbers = #tpu.dot_dimension_numbers<[1], [0], [0], [1], [0, 0, 1, 1], [], []>} : vector<18x18xbf16>, vector<18x8xbf16>, vector<18x8xf32> -> vector<18x8xf32>
    %113 = tpu.concatenate %64, %80, %96, %112 in 1 : vector<18x8xf32>, vector<18x8xf32>, vector<18x8xf32>, vector<18x8xf32> -> vector<18x32xf32>
    %114 = arith.truncf %113 : vector<18x32xf32> to vector<18x32xbf16>
    %cst_40 = arith.constant dense<0.000000e+00> : vector<18x32xf32>
    %115 = tpu.matmul %114, %38, %cst_40 {dimension_numbers = #tpu.dot_dimension_numbers<[1], [0], [0], [1], [0, 0, 1, 1], [], []>} : vector<18x32xbf16>, vector<32x32xbf16>, vector<18x32xf32> -> vector<18x32xf32>
    %116 = vector.broadcast %39 : vector<1x32xf32> to vector<18x32xf32>
    %117 = arith.addf %115, %116 : vector<18x32xf32>
    %118 = arith.addf %5, %117 : vector<18x32xf32>
    %119 = vector.extract_strided_slice %7 {offsets = [2, 0], sizes = [1, 32], strides = [1, 1]} : vector<6x32xf32> to vector<1x32xf32>
    %120 = vector.extract_strided_slice %7 {offsets = [3, 0], sizes = [1, 32], strides = [1, 1]} : vector<6x32xf32> to vector<1x32xf32>
    %cst_41 = arith.constant dense<0.000000e+00> : vector<18xf32>
    %121 = vector.multi_reduction <add>, %118, %cst_41 [1] : vector<18x32xf32> to vector<18xf32>
    %122 = vector.shape_cast %121 : vector<18xf32> to vector<18x1xf32>
    %cst_42 = arith.constant 3.200000e+01 : f32
    %123 = vector.broadcast %cst_42 : f32 to vector<18x1xf32>
    %124 = arith.divf %122, %123 : vector<18x1xf32>
    %125 = vector.broadcast %124 : vector<18x1xf32> to vector<18x32xf32>
    %126 = arith.subf %118, %125 : vector<18x32xf32>
    %127 = arith.mulf %126, %126 : vector<18x32xf32>
    %cst_43 = arith.constant dense<0.000000e+00> : vector<18xf32>
    %128 = vector.multi_reduction <add>, %127, %cst_43 [1] : vector<18x32xf32> to vector<18xf32>
    %129 = vector.shape_cast %128 : vector<18xf32> to vector<18x1xf32>
    %cst_44 = arith.constant 3.200000e+01 : f32
    %130 = vector.broadcast %cst_44 : f32 to vector<18x1xf32>
    %131 = arith.divf %129, %130 : vector<18x1xf32>
    %132 = vector.broadcast %124 : vector<18x1xf32> to vector<18x32xf32>
    %133 = arith.subf %118, %132 : vector<18x32xf32>
    %cst_45 = arith.constant 9.99999974E-6 : f32
    %134 = vector.broadcast %cst_45 : f32 to vector<18x1xf32>
    %135 = arith.addf %131, %134 : vector<18x1xf32>
    %136 = math.rsqrt %135 : vector<18x1xf32>
    %137 = vector.broadcast %136 : vector<18x1xf32> to vector<18x32xf32>
    %138 = arith.mulf %133, %137 : vector<18x32xf32>
    %139 = vector.broadcast %119 : vector<1x32xf32> to vector<18x32xf32>
    %140 = arith.mulf %138, %139 : vector<18x32xf32>
    %141 = vector.broadcast %120 : vector<1x32xf32> to vector<18x32xf32>
    %142 = arith.addf %140, %141 : vector<18x32xf32>
    %143 = arith.truncf %142 : vector<18x32xf32> to vector<18x32xbf16>
    %c0_46 = arith.constant 0 : index
    %c0_47 = arith.constant 0 : index
    %c0_48 = arith.constant 0 : index
    %144 = vector.load %arg8[%c0_46, %c0_47, %c0_48] : memref<2x32x64xbf16, #tpu.memory_space<vmem>>, vector<1x32x64xbf16>
    %145 = vector.shape_cast %144 : vector<1x32x64xbf16> to vector<32x64xbf16>
    %c0_49 = arith.constant 0 : index
    %c0_50 = arith.constant 0 : index
    %c0_51 = arith.constant 0 : index
    %146 = vector.load %arg9[%c0_49, %c0_50, %c0_51] : memref<2x1x64xf32, #tpu.memory_space<vmem>>, vector<1x1x64xf32>
    %147 = vector.shape_cast %146 : vector<1x1x64xf32> to vector<1x64xf32>
    %c0_52 = arith.constant 0 : index
    %c0_53 = arith.constant 0 : index
    %c0_54 = arith.constant 0 : index
    %148 = vector.load %arg10[%c0_52, %c0_53, %c0_54] : memref<2x64x32xbf16, #tpu.memory_space<vmem>>, vector<1x64x32xbf16>
    %149 = vector.shape_cast %148 : vector<1x64x32xbf16> to vector<64x32xbf16>
    %150 = vector.extract_strided_slice %7 {offsets = [5, 0], sizes = [1, 32], strides = [1, 1]} : vector<6x32xf32> to vector<1x32xf32>
    %cst_55 = arith.constant dense<0.000000e+00> : vector<18x64xf32>
    %151 = tpu.matmul %143, %145, %cst_55 {dimension_numbers = #tpu.dot_dimension_numbers<[1], [0], [0], [1], [0, 0, 1, 1], [], []>} : vector<18x32xbf16>, vector<32x64xbf16>, vector<18x64xf32> -> vector<18x64xf32>
    %152 = vector.broadcast %147 : vector<1x64xf32> to vector<18x64xf32>
    %153 = arith.addf %151, %152 : vector<18x64xf32>
    %154 = arith.mulf %153, %153 : vector<18x64xf32>
    %155 = arith.mulf %153, %154 : vector<18x64xf32>
    %cst_56 = arith.constant 4.471500e-02 : f32
    %156 = vector.broadcast %cst_56 : f32 to vector<18x64xf32>
    %157 = arith.mulf %156, %155 : vector<18x64xf32>
    %158 = arith.addf %153, %157 : vector<18x64xf32>
    %cst_57 = arith.constant 0.797884583 : f32
    %159 = vector.broadcast %cst_57 : f32 to vector<18x64xf32>
    %160 = arith.mulf %159, %158 : vector<18x64xf32>
    %161 = math.tanh %160 : vector<18x64xf32>
    %cst_58 = arith.constant 1.000000e+00 : f32
    %162 = vector.broadcast %cst_58 : f32 to vector<18x64xf32>
    %163 = arith.addf %162, %161 : vector<18x64xf32>
    %cst_59 = arith.constant 5.000000e-01 : f32
    %164 = vector.broadcast %cst_59 : f32 to vector<18x64xf32>
    %165 = arith.mulf %164, %163 : vector<18x64xf32>
    %166 = arith.mulf %153, %165 : vector<18x64xf32>
    %167 = arith.truncf %166 : vector<18x64xf32> to vector<18x64xbf16>
    %cst_60 = arith.constant dense<0.000000e+00> : vector<18x32xf32>
    %168 = tpu.matmul %167, %149, %cst_60 {dimension_numbers = #tpu.dot_dimension_numbers<[1], [0], [0], [1], [0, 0, 1, 1], [], []>} : vector<18x64xbf16>, vector<64x32xbf16>, vector<18x32xf32> -> vector<18x32xf32>
    %169 = vector.broadcast %150 : vector<1x32xf32> to vector<18x32xf32>
    %170 = arith.addf %168, %169 : vector<18x32xf32>
    %171 = arith.addf %118, %170 : vector<18x32xf32>
    %c1 = arith.constant 1 : index
    %c0_61 = arith.constant 0 : index
    %c0_62 = arith.constant 0 : index
    %172 = vector.load %arg4[%c1, %c0_61, %c0_62] : memref<2x6x32xf32, #tpu.memory_space<vmem>>, vector<1x6x32xf32>
    %173 = vector.shape_cast %172 : vector<1x6x32xf32> to vector<6x32xf32>
    %174 = vector.extract_strided_slice %173 {offsets = [0, 0], sizes = [1, 32], strides = [1, 1]} : vector<6x32xf32> to vector<1x32xf32>
    %175 = vector.extract_strided_slice %173 {offsets = [1, 0], sizes = [1, 32], strides = [1, 1]} : vector<6x32xf32> to vector<1x32xf32>
    %cst_63 = arith.constant dense<0.000000e+00> : vector<18xf32>
    %176 = vector.multi_reduction <add>, %171, %cst_63 [1] : vector<18x32xf32> to vector<18xf32>
    %177 = vector.shape_cast %176 : vector<18xf32> to vector<18x1xf32>
    %cst_64 = arith.constant 3.200000e+01 : f32
    %178 = vector.broadcast %cst_64 : f32 to vector<18x1xf32>
    %179 = arith.divf %177, %178 : vector<18x1xf32>
    %180 = vector.broadcast %179 : vector<18x1xf32> to vector<18x32xf32>
    %181 = arith.subf %171, %180 : vector<18x32xf32>
    %182 = arith.mulf %181, %181 : vector<18x32xf32>
    %cst_65 = arith.constant dense<0.000000e+00> : vector<18xf32>
    %183 = vector.multi_reduction <add>, %182, %cst_65 [1] : vector<18x32xf32> to vector<18xf32>
    %184 = vector.shape_cast %183 : vector<18xf32> to vector<18x1xf32>
    %cst_66 = arith.constant 3.200000e+01 : f32
    %185 = vector.broadcast %cst_66 : f32 to vector<18x1xf32>
    %186 = arith.divf %184, %185 : vector<18x1xf32>
    %187 = vector.broadcast %179 : vector<18x1xf32> to vector<18x32xf32>
    %188 = arith.subf %171, %187 : vector<18x32xf32>
    %cst_67 = arith.constant 9.99999974E-6 : f32
    %189 = vector.broadcast %cst_67 : f32 to vector<18x1xf32>
    %190 = arith.addf %186, %189 : vector<18x1xf32>
    %191 = math.rsqrt %190 : vector<18x1xf32>
    %192 = vector.broadcast %191 : vector<18x1xf32> to vector<18x32xf32>
    %193 = arith.mulf %188, %192 : vector<18x32xf32>
    %194 = vector.broadcast %174 : vector<1x32xf32> to vector<18x32xf32>
    %195 = arith.mulf %193, %194 : vector<18x32xf32>
    %196 = vector.broadcast %175 : vector<1x32xf32> to vector<18x32xf32>
    %197 = arith.addf %195, %196 : vector<18x32xf32>
    %198 = arith.truncf %197 : vector<18x32xf32> to vector<18x32xbf16>
    %c1_68 = arith.constant 1 : index
    %c0_69 = arith.constant 0 : index
    %c0_70 = arith.constant 0 : index
    %199 = vector.load %arg5[%c1_68, %c0_69, %c0_70] : memref<2x32x96xbf16, #tpu.memory_space<vmem>>, vector<1x32x96xbf16>
    %200 = vector.shape_cast %199 : vector<1x32x96xbf16> to vector<32x96xbf16>
    %c1_71 = arith.constant 1 : index
    %c0_72 = arith.constant 0 : index
    %c0_73 = arith.constant 0 : index
    %201 = vector.load %arg6[%c1_71, %c0_72, %c0_73] : memref<2x1x96xf32, #tpu.memory_space<vmem>>, vector<1x1x96xf32>
    %202 = vector.shape_cast %201 : vector<1x1x96xf32> to vector<1x96xf32>
    %c1_74 = arith.constant 1 : index
    %c0_75 = arith.constant 0 : index
    %c0_76 = arith.constant 0 : index
    %203 = vector.load %arg7[%c1_74, %c0_75, %c0_76] : memref<2x32x32xbf16, #tpu.memory_space<vmem>>, vector<1x32x32xbf16>
    %204 = vector.shape_cast %203 : vector<1x32x32xbf16> to vector<32x32xbf16>
    %205 = vector.extract_strided_slice %173 {offsets = [4, 0], sizes = [1, 32], strides = [1, 1]} : vector<6x32xf32> to vector<1x32xf32>
    %cst_77 = arith.constant dense<0.000000e+00> : vector<18x96xf32>
    %206 = tpu.matmul %198, %200, %cst_77 {dimension_numbers = #tpu.dot_dimension_numbers<[1], [0], [0], [1], [0, 0, 1, 1], [], []>} : vector<18x32xbf16>, vector<32x96xbf16>, vector<18x96xf32> -> vector<18x96xf32>
    %207 = vector.broadcast %202 : vector<1x96xf32> to vector<18x96xf32>
    %208 = arith.addf %206, %207 : vector<18x96xf32>
    %209 = vector.extract_strided_slice %208 {offsets = [0, 0], sizes = [18, 32], strides = [1, 1]} : vector<18x96xf32> to vector<18x32xf32>
    %210 = vector.extract_strided_slice %208 {offsets = [0, 32], sizes = [18, 32], strides = [1, 1]} : vector<18x96xf32> to vector<18x32xf32>
    %211 = vector.extract_strided_slice %208 {offsets = [0, 64], sizes = [18, 32], strides = [1, 1]} : vector<18x96xf32> to vector<18x32xf32>
    %212 = arith.truncf %209 : vector<18x32xf32> to vector<18x32xbf16>
    %213 = arith.truncf %210 : vector<18x32xf32> to vector<18x32xbf16>
    %214 = arith.truncf %211 : vector<18x32xf32> to vector<18x32xbf16>
    %215 = vector.extract_strided_slice %212 {offsets = [0, 0], sizes = [18, 8], strides = [1, 1]} : vector<18x32xbf16> to vector<18x8xbf16>
    %216 = vector.extract_strided_slice %213 {offsets = [0, 0], sizes = [18, 8], strides = [1, 1]} : vector<18x32xbf16> to vector<18x8xbf16>
    %cst_78 = arith.constant dense<0.000000e+00> : vector<18x18xf32>
    %217 = tpu.matmul %215, %216, %cst_78 {dimension_numbers = #tpu.dot_dimension_numbers<[1], [1], [0], [0], [0, 0, 1, 0], [], []>} : vector<18x8xbf16>, vector<18x8xbf16>, vector<18x18xf32> -> vector<18x18xf32>
    %cst_79 = arith.constant dense<0xFF800000> : vector<18xf32>
    %218 = vector.multi_reduction <maximumf>, %217, %cst_79 [1] : vector<18x18xf32> to vector<18xf32>
    %219 = vector.shape_cast %218 : vector<18xf32> to vector<18x1xf32>
    %220 = vector.broadcast %219 : vector<18x1xf32> to vector<18x18xf32>
    %221 = arith.subf %217, %220 : vector<18x18xf32>
    %222 = math.exp %221 : vector<18x18xf32>
    %cst_80 = arith.constant dense<0.000000e+00> : vector<18xf32>
    %223 = vector.multi_reduction <add>, %222, %cst_80 [1] : vector<18x18xf32> to vector<18xf32>
    %224 = vector.shape_cast %223 : vector<18xf32> to vector<18x1xf32>
    %225 = tpu.reciprocal %224 {approx = true} : vector<18x1xf32> -> vector<18x1xf32>
    %226 = vector.broadcast %225 : vector<18x1xf32> to vector<18x18xf32>
    %227 = arith.mulf %222, %226 : vector<18x18xf32>
    %228 = arith.truncf %227 : vector<18x18xf32> to vector<18x18xbf16>
    %229 = vector.extract_strided_slice %214 {offsets = [0, 0], sizes = [18, 8], strides = [1, 1]} : vector<18x32xbf16> to vector<18x8xbf16>
    %cst_81 = arith.constant dense<0.000000e+00> : vector<18x8xf32>
    %230 = tpu.matmul %228, %229, %cst_81 {dimension_numbers = #tpu.dot_dimension_numbers<[1], [0], [0], [1], [0, 0, 1, 1], [], []>} : vector<18x18xbf16>, vector<18x8xbf16>, vector<18x8xf32> -> vector<18x8xf32>
    %231 = vector.extract_strided_slice %212 {offsets = [0, 8], sizes = [18, 8], strides = [1, 1]} : vector<18x32xbf16> to vector<18x8xbf16>
    %232 = vector.extract_strided_slice %213 {offsets = [0, 8], sizes = [18, 8], strides = [1, 1]} : vector<18x32xbf16> to vector<18x8xbf16>
    %cst_82 = arith.constant dense<0.000000e+00> : vector<18x18xf32>
    %233 = tpu.matmul %231, %232, %cst_82 {dimension_numbers = #tpu.dot_dimension_numbers<[1], [1], [0], [0], [0, 0, 1, 0], [], []>} : vector<18x8xbf16>, vector<18x8xbf16>, vector<18x18xf32> -> vector<18x18xf32>
    %cst_83 = arith.constant dense<0xFF800000> : vector<18xf32>
    %234 = vector.multi_reduction <maximumf>, %233, %cst_83 [1] : vector<18x18xf32> to vector<18xf32>
    %235 = vector.shape_cast %234 : vector<18xf32> to vector<18x1xf32>
    %236 = vector.broadcast %235 : vector<18x1xf32> to vector<18x18xf32>
    %237 = arith.subf %233, %236 : vector<18x18xf32>
    %238 = math.exp %237 : vector<18x18xf32>
    %cst_84 = arith.constant dense<0.000000e+00> : vector<18xf32>
    %239 = vector.multi_reduction <add>, %238, %cst_84 [1] : vector<18x18xf32> to vector<18xf32>
    %240 = vector.shape_cast %239 : vector<18xf32> to vector<18x1xf32>
    %241 = tpu.reciprocal %240 {approx = true} : vector<18x1xf32> -> vector<18x1xf32>
    %242 = vector.broadcast %241 : vector<18x1xf32> to vector<18x18xf32>
    %243 = arith.mulf %238, %242 : vector<18x18xf32>
    %244 = arith.truncf %243 : vector<18x18xf32> to vector<18x18xbf16>
    %245 = vector.extract_strided_slice %214 {offsets = [0, 8], sizes = [18, 8], strides = [1, 1]} : vector<18x32xbf16> to vector<18x8xbf16>
    %cst_85 = arith.constant dense<0.000000e+00> : vector<18x8xf32>
    %246 = tpu.matmul %244, %245, %cst_85 {dimension_numbers = #tpu.dot_dimension_numbers<[1], [0], [0], [1], [0, 0, 1, 1], [], []>} : vector<18x18xbf16>, vector<18x8xbf16>, vector<18x8xf32> -> vector<18x8xf32>
    %247 = vector.extract_strided_slice %212 {offsets = [0, 16], sizes = [18, 8], strides = [1, 1]} : vector<18x32xbf16> to vector<18x8xbf16>
    %248 = vector.extract_strided_slice %213 {offsets = [0, 16], sizes = [18, 8], strides = [1, 1]} : vector<18x32xbf16> to vector<18x8xbf16>
    %cst_86 = arith.constant dense<0.000000e+00> : vector<18x18xf32>
    %249 = tpu.matmul %247, %248, %cst_86 {dimension_numbers = #tpu.dot_dimension_numbers<[1], [1], [0], [0], [0, 0, 1, 0], [], []>} : vector<18x8xbf16>, vector<18x8xbf16>, vector<18x18xf32> -> vector<18x18xf32>
    %cst_87 = arith.constant dense<0xFF800000> : vector<18xf32>
    %250 = vector.multi_reduction <maximumf>, %249, %cst_87 [1] : vector<18x18xf32> to vector<18xf32>
    %251 = vector.shape_cast %250 : vector<18xf32> to vector<18x1xf32>
    %252 = vector.broadcast %251 : vector<18x1xf32> to vector<18x18xf32>
    %253 = arith.subf %249, %252 : vector<18x18xf32>
    %254 = math.exp %253 : vector<18x18xf32>
    %cst_88 = arith.constant dense<0.000000e+00> : vector<18xf32>
    %255 = vector.multi_reduction <add>, %254, %cst_88 [1] : vector<18x18xf32> to vector<18xf32>
    %256 = vector.shape_cast %255 : vector<18xf32> to vector<18x1xf32>
    %257 = tpu.reciprocal %256 {approx = true} : vector<18x1xf32> -> vector<18x1xf32>
    %258 = vector.broadcast %257 : vector<18x1xf32> to vector<18x18xf32>
    %259 = arith.mulf %254, %258 : vector<18x18xf32>
    %260 = arith.truncf %259 : vector<18x18xf32> to vector<18x18xbf16>
    %261 = vector.extract_strided_slice %214 {offsets = [0, 16], sizes = [18, 8], strides = [1, 1]} : vector<18x32xbf16> to vector<18x8xbf16>
    %cst_89 = arith.constant dense<0.000000e+00> : vector<18x8xf32>
    %262 = tpu.matmul %260, %261, %cst_89 {dimension_numbers = #tpu.dot_dimension_numbers<[1], [0], [0], [1], [0, 0, 1, 1], [], []>} : vector<18x18xbf16>, vector<18x8xbf16>, vector<18x8xf32> -> vector<18x8xf32>
    %263 = vector.extract_strided_slice %212 {offsets = [0, 24], sizes = [18, 8], strides = [1, 1]} : vector<18x32xbf16> to vector<18x8xbf16>
    %264 = vector.extract_strided_slice %213 {offsets = [0, 24], sizes = [18, 8], strides = [1, 1]} : vector<18x32xbf16> to vector<18x8xbf16>
    %cst_90 = arith.constant dense<0.000000e+00> : vector<18x18xf32>
    %265 = tpu.matmul %263, %264, %cst_90 {dimension_numbers = #tpu.dot_dimension_numbers<[1], [1], [0], [0], [0, 0, 1, 0], [], []>} : vector<18x8xbf16>, vector<18x8xbf16>, vector<18x18xf32> -> vector<18x18xf32>
    %cst_91 = arith.constant dense<0xFF800000> : vector<18xf32>
    %266 = vector.multi_reduction <maximumf>, %265, %cst_91 [1] : vector<18x18xf32> to vector<18xf32>
    %267 = vector.shape_cast %266 : vector<18xf32> to vector<18x1xf32>
    %268 = vector.broadcast %267 : vector<18x1xf32> to vector<18x18xf32>
    %269 = arith.subf %265, %268 : vector<18x18xf32>
    %270 = math.exp %269 : vector<18x18xf32>
    %cst_92 = arith.constant dense<0.000000e+00> : vector<18xf32>
    %271 = vector.multi_reduction <add>, %270, %cst_92 [1] : vector<18x18xf32> to vector<18xf32>
    %272 = vector.shape_cast %271 : vector<18xf32> to vector<18x1xf32>
    %273 = tpu.reciprocal %272 {approx = true} : vector<18x1xf32> -> vector<18x1xf32>
    %274 = vector.broadcast %273 : vector<18x1xf32> to vector<18x18xf32>
    %275 = arith.mulf %270, %274 : vector<18x18xf32>
    %276 = arith.truncf %275 : vector<18x18xf32> to vector<18x18xbf16>
    %277 = vector.extract_strided_slice %214 {offsets = [0, 24], sizes = [18, 8], strides = [1, 1]} : vector<18x32xbf16> to vector<18x8xbf16>
    %cst_93 = arith.constant dense<0.000000e+00> : vector<18x8xf32>
    %278 = tpu.matmul %276, %277, %cst_93 {dimension_numbers = #tpu.dot_dimension_numbers<[1], [0], [0], [1], [0, 0, 1, 1], [], []>} : vector<18x18xbf16>, vector<18x8xbf16>, vector<18x8xf32> -> vector<18x8xf32>
    %279 = tpu.concatenate %230, %246, %262, %278 in 1 : vector<18x8xf32>, vector<18x8xf32>, vector<18x8xf32>, vector<18x8xf32> -> vector<18x32xf32>
    %280 = arith.truncf %279 : vector<18x32xf32> to vector<18x32xbf16>
    %cst_94 = arith.constant dense<0.000000e+00> : vector<18x32xf32>
    %281 = tpu.matmul %280, %204, %cst_94 {dimension_numbers = #tpu.dot_dimension_numbers<[1], [0], [0], [1], [0, 0, 1, 1], [], []>} : vector<18x32xbf16>, vector<32x32xbf16>, vector<18x32xf32> -> vector<18x32xf32>
    %282 = vector.broadcast %205 : vector<1x32xf32> to vector<18x32xf32>
    %283 = arith.addf %281, %282 : vector<18x32xf32>
    %284 = arith.addf %171, %283 : vector<18x32xf32>
    %285 = vector.extract_strided_slice %173 {offsets = [2, 0], sizes = [1, 32], strides = [1, 1]} : vector<6x32xf32> to vector<1x32xf32>
    %286 = vector.extract_strided_slice %173 {offsets = [3, 0], sizes = [1, 32], strides = [1, 1]} : vector<6x32xf32> to vector<1x32xf32>
    %cst_95 = arith.constant dense<0.000000e+00> : vector<18xf32>
    %287 = vector.multi_reduction <add>, %284, %cst_95 [1] : vector<18x32xf32> to vector<18xf32>
    %288 = vector.shape_cast %287 : vector<18xf32> to vector<18x1xf32>
    %cst_96 = arith.constant 3.200000e+01 : f32
    %289 = vector.broadcast %cst_96 : f32 to vector<18x1xf32>
    %290 = arith.divf %288, %289 : vector<18x1xf32>
    %291 = vector.broadcast %290 : vector<18x1xf32> to vector<18x32xf32>
    %292 = arith.subf %284, %291 : vector<18x32xf32>
    %293 = arith.mulf %292, %292 : vector<18x32xf32>
    %cst_97 = arith.constant dense<0.000000e+00> : vector<18xf32>
    %294 = vector.multi_reduction <add>, %293, %cst_97 [1] : vector<18x32xf32> to vector<18xf32>
    %295 = vector.shape_cast %294 : vector<18xf32> to vector<18x1xf32>
    %cst_98 = arith.constant 3.200000e+01 : f32
    %296 = vector.broadcast %cst_98 : f32 to vector<18x1xf32>
    %297 = arith.divf %295, %296 : vector<18x1xf32>
    %298 = vector.broadcast %290 : vector<18x1xf32> to vector<18x32xf32>
    %299 = arith.subf %284, %298 : vector<18x32xf32>
    %cst_99 = arith.constant 9.99999974E-6 : f32
    %300 = vector.broadcast %cst_99 : f32 to vector<18x1xf32>
    %301 = arith.addf %297, %300 : vector<18x1xf32>
    %302 = math.rsqrt %301 : vector<18x1xf32>
    %303 = vector.broadcast %302 : vector<18x1xf32> to vector<18x32xf32>
    %304 = arith.mulf %299, %303 : vector<18x32xf32>
    %305 = vector.broadcast %285 : vector<1x32xf32> to vector<18x32xf32>
    %306 = arith.mulf %304, %305 : vector<18x32xf32>
    %307 = vector.broadcast %286 : vector<1x32xf32> to vector<18x32xf32>
    %308 = arith.addf %306, %307 : vector<18x32xf32>
    %309 = arith.truncf %308 : vector<18x32xf32> to vector<18x32xbf16>
    %c1_100 = arith.constant 1 : index
    %c0_101 = arith.constant 0 : index
    %c0_102 = arith.constant 0 : index
    %310 = vector.load %arg8[%c1_100, %c0_101, %c0_102] : memref<2x32x64xbf16, #tpu.memory_space<vmem>>, vector<1x32x64xbf16>
    %311 = vector.shape_cast %310 : vector<1x32x64xbf16> to vector<32x64xbf16>
    %c1_103 = arith.constant 1 : index
    %c0_104 = arith.constant 0 : index
    %c0_105 = arith.constant 0 : index
    %312 = vector.load %arg9[%c1_103, %c0_104, %c0_105] : memref<2x1x64xf32, #tpu.memory_space<vmem>>, vector<1x1x64xf32>
    %313 = vector.shape_cast %312 : vector<1x1x64xf32> to vector<1x64xf32>
    %c1_106 = arith.constant 1 : index
    %c0_107 = arith.constant 0 : index
    %c0_108 = arith.constant 0 : index
    %314 = vector.load %arg10[%c1_106, %c0_107, %c0_108] : memref<2x64x32xbf16, #tpu.memory_space<vmem>>, vector<1x64x32xbf16>
    %315 = vector.shape_cast %314 : vector<1x64x32xbf16> to vector<64x32xbf16>
    %316 = vector.extract_strided_slice %173 {offsets = [5, 0], sizes = [1, 32], strides = [1, 1]} : vector<6x32xf32> to vector<1x32xf32>
    %cst_109 = arith.constant dense<0.000000e+00> : vector<18x64xf32>
    %317 = tpu.matmul %309, %311, %cst_109 {dimension_numbers = #tpu.dot_dimension_numbers<[1], [0], [0], [1], [0, 0, 1, 1], [], []>} : vector<18x32xbf16>, vector<32x64xbf16>, vector<18x64xf32> -> vector<18x64xf32>
    %318 = vector.broadcast %313 : vector<1x64xf32> to vector<18x64xf32>
    %319 = arith.addf %317, %318 : vector<18x64xf32>
    %320 = arith.mulf %319, %319 : vector<18x64xf32>
    %321 = arith.mulf %319, %320 : vector<18x64xf32>
    %cst_110 = arith.constant 4.471500e-02 : f32
    %322 = vector.broadcast %cst_110 : f32 to vector<18x64xf32>
    %323 = arith.mulf %322, %321 : vector<18x64xf32>
    %324 = arith.addf %319, %323 : vector<18x64xf32>
    %cst_111 = arith.constant 0.797884583 : f32
    %325 = vector.broadcast %cst_111 : f32 to vector<18x64xf32>
    %326 = arith.mulf %325, %324 : vector<18x64xf32>
    %327 = math.tanh %326 : vector<18x64xf32>
    %cst_112 = arith.constant 1.000000e+00 : f32
    %328 = vector.broadcast %cst_112 : f32 to vector<18x64xf32>
    %329 = arith.addf %328, %327 : vector<18x64xf32>
    %cst_113 = arith.constant 5.000000e-01 : f32
    %330 = vector.broadcast %cst_113 : f32 to vector<18x64xf32>
    %331 = arith.mulf %330, %329 : vector<18x64xf32>
    %332 = arith.mulf %319, %331 : vector<18x64xf32>
    %333 = arith.truncf %332 : vector<18x64xf32> to vector<18x64xbf16>
    %cst_114 = arith.constant dense<0.000000e+00> : vector<18x32xf32>
    %334 = tpu.matmul %333, %315, %cst_114 {dimension_numbers = #tpu.dot_dimension_numbers<[1], [0], [0], [1], [0, 0, 1, 1], [], []>} : vector<18x64xbf16>, vector<64x32xbf16>, vector<18x32xf32> -> vector<18x32xf32>
    %335 = vector.broadcast %316 : vector<1x32xf32> to vector<18x32xf32>
    %336 = arith.addf %334, %335 : vector<18x32xf32>
    %337 = arith.addf %284, %336 : vector<18x32xf32>
    %c0_115 = arith.constant 0 : index
    %c0_116 = arith.constant 0 : index
    %338 = vector.load %arg11[%c0_115, %c0_116] : memref<2x32xf32, #tpu.memory_space<vmem>>, vector<2x32xf32>
    %c0_117 = arith.constant 0 : index
    %c0_118 = arith.constant 0 : index
    %339 = vector.load %arg15[%c0_117, %c0_118] : memref<3x64xf32, #tpu.memory_space<vmem>>, vector<3x64xf32>
    %340 = vector.extract_strided_slice %338 {offsets = [0, 0], sizes = [1, 32], strides = [1, 1]} : vector<2x32xf32> to vector<1x32xf32>
    %341 = vector.extract_strided_slice %338 {offsets = [1, 0], sizes = [1, 32], strides = [1, 1]} : vector<2x32xf32> to vector<1x32xf32>
    %cst_119 = arith.constant dense<0.000000e+00> : vector<18xf32>
    %342 = vector.multi_reduction <add>, %337, %cst_119 [1] : vector<18x32xf32> to vector<18xf32>
    %343 = vector.shape_cast %342 : vector<18xf32> to vector<18x1xf32>
    %cst_120 = arith.constant 3.200000e+01 : f32
    %344 = vector.broadcast %cst_120 : f32 to vector<18x1xf32>
    %345 = arith.divf %343, %344 : vector<18x1xf32>
    %346 = vector.broadcast %345 : vector<18x1xf32> to vector<18x32xf32>
    %347 = arith.subf %337, %346 : vector<18x32xf32>
    %348 = arith.mulf %347, %347 : vector<18x32xf32>
    %cst_121 = arith.constant dense<0.000000e+00> : vector<18xf32>
    %349 = vector.multi_reduction <add>, %348, %cst_121 [1] : vector<18x32xf32> to vector<18xf32>
    %350 = vector.shape_cast %349 : vector<18xf32> to vector<18x1xf32>
    %cst_122 = arith.constant 3.200000e+01 : f32
    %351 = vector.broadcast %cst_122 : f32 to vector<18x1xf32>
    %352 = arith.divf %350, %351 : vector<18x1xf32>
    %353 = vector.broadcast %345 : vector<18x1xf32> to vector<18x32xf32>
    %354 = arith.subf %337, %353 : vector<18x32xf32>
    %cst_123 = arith.constant 9.99999974E-6 : f32
    %355 = vector.broadcast %cst_123 : f32 to vector<18x1xf32>
    %356 = arith.addf %352, %355 : vector<18x1xf32>
    %357 = math.rsqrt %356 : vector<18x1xf32>
    %358 = vector.broadcast %357 : vector<18x1xf32> to vector<18x32xf32>
    %359 = arith.mulf %354, %358 : vector<18x32xf32>
    %360 = vector.broadcast %340 : vector<1x32xf32> to vector<18x32xf32>
    %361 = arith.mulf %359, %360 : vector<18x32xf32>
    %362 = vector.broadcast %341 : vector<1x32xf32> to vector<18x32xf32>
    %363 = arith.addf %361, %362 : vector<18x32xf32>
    %364 = arith.truncf %363 : vector<18x32xf32> to vector<18x32xbf16>
    %c0_124 = arith.constant 0 : index
    %c0_125 = arith.constant 0 : index
    %365 = vector.load %arg12[%c0_124, %c0_125] : memref<32x64xbf16, #tpu.memory_space<vmem>>, vector<32x64xbf16>
    %cst_126 = arith.constant dense<0.000000e+00> : vector<18x64xf32>
    %366 = tpu.matmul %364, %365, %cst_126 {dimension_numbers = #tpu.dot_dimension_numbers<[1], [0], [0], [1], [0, 0, 1, 1], [], []>} : vector<18x32xbf16>, vector<32x64xbf16>, vector<18x64xf32> -> vector<18x64xf32>
    %367 = vector.extract_strided_slice %339 {offsets = [0, 0], sizes = [1, 64], strides = [1, 1]} : vector<3x64xf32> to vector<1x64xf32>
    %368 = vector.broadcast %367 : vector<1x64xf32> to vector<18x64xf32>
    %369 = arith.addf %366, %368 : vector<18x64xf32>
    %370 = arith.truncf %369 : vector<18x64xf32> to vector<18x64xbf16>
    %c0_127 = arith.constant 0 : index
    %c0_128 = arith.constant 0 : index
    %c0_129 = arith.constant 0 : index
    %371 = vector.load %arg13[%c0_127, %c0_128, %c0_129] : memref<1x8x64xf32, #tpu.memory_space<vmem>>, vector<1x8x64xf32>
    %372 = vector.shape_cast %371 : vector<1x8x64xf32> to vector<8x64xf32>
    %373 = vector.extract_strided_slice %339 {offsets = [1, 0], sizes = [1, 64], strides = [1, 1]} : vector<3x64xf32> to vector<1x64xf32>
    %374 = vector.extract_strided_slice %339 {offsets = [2, 0], sizes = [1, 64], strides = [1, 1]} : vector<3x64xf32> to vector<1x64xf32>
    %cst_130 = arith.constant dense<0.000000e+00> : vector<8xf32>
    %375 = vector.multi_reduction <add>, %372, %cst_130 [1] : vector<8x64xf32> to vector<8xf32>
    %376 = vector.shape_cast %375 : vector<8xf32> to vector<8x1xf32>
    %cst_131 = arith.constant 6.400000e+01 : f32
    %377 = vector.broadcast %cst_131 : f32 to vector<8x1xf32>
    %378 = arith.divf %376, %377 : vector<8x1xf32>
    %379 = vector.broadcast %378 : vector<8x1xf32> to vector<8x64xf32>
    %380 = arith.subf %372, %379 : vector<8x64xf32>
    %381 = arith.mulf %380, %380 : vector<8x64xf32>
    %cst_132 = arith.constant dense<0.000000e+00> : vector<8xf32>
    %382 = vector.multi_reduction <add>, %381, %cst_132 [1] : vector<8x64xf32> to vector<8xf32>
    %383 = vector.shape_cast %382 : vector<8xf32> to vector<8x1xf32>
    %cst_133 = arith.constant 6.400000e+01 : f32
    %384 = vector.broadcast %cst_133 : f32 to vector<8x1xf32>
    %385 = arith.divf %383, %384 : vector<8x1xf32>
    %386 = vector.broadcast %378 : vector<8x1xf32> to vector<8x64xf32>
    %387 = arith.subf %372, %386 : vector<8x64xf32>
    %cst_134 = arith.constant 9.99999974E-6 : f32
    %388 = vector.broadcast %cst_134 : f32 to vector<8x1xf32>
    %389 = arith.addf %385, %388 : vector<8x1xf32>
    %390 = math.rsqrt %389 : vector<8x1xf32>
    %391 = vector.broadcast %390 : vector<8x1xf32> to vector<8x64xf32>
    %392 = arith.mulf %387, %391 : vector<8x64xf32>
    %393 = vector.broadcast %373 : vector<1x64xf32> to vector<8x64xf32>
    %394 = arith.mulf %392, %393 : vector<8x64xf32>
    %395 = vector.broadcast %374 : vector<1x64xf32> to vector<8x64xf32>
    %396 = arith.addf %394, %395 : vector<8x64xf32>
    %c0_135 = arith.constant 0 : index
    %c0_136 = arith.constant 0 : index
    %397 = vector.load %arg14[%c0_135, %c0_136] : memref<8x8xf32, #tpu.memory_space<vmem>>, vector<8x8xf32>
    %c0_137 = arith.constant 0 : index
    %c0_138 = arith.constant 0 : index
    %c0_139 = arith.constant 0 : index
    %398 = vector.load %arg16[%c0_137, %c0_138, %c0_139] : memref<2x9x64xf32, #tpu.memory_space<vmem>>, vector<1x9x64xf32>
    %399 = vector.shape_cast %398 : vector<1x9x64xf32> to vector<9x64xf32>
    %400 = arith.truncf %396 : vector<8x64xf32> to vector<8x64xbf16>
    %c0_140 = arith.constant 0 : index
    %c0_141 = arith.constant 0 : index
    %c0_142 = arith.constant 0 : index
    %c0_143 = arith.constant 0 : index
    %401 = vector.load %arg17[%c0_140, %c0_141, %c0_142, %c0_143] : memref<2x2x64x192xbf16, #tpu.memory_space<vmem>>, vector<1x1x64x192xbf16>
    %402 = vector.shape_cast %401 : vector<1x1x64x192xbf16> to vector<64x192xbf16>
    %c0_144 = arith.constant 0 : index
    %c0_145 = arith.constant 0 : index
    %c0_146 = arith.constant 0 : index
    %c0_147 = arith.constant 0 : index
    %403 = vector.load %arg18[%c0_144, %c0_145, %c0_146, %c0_147] : memref<2x2x1x192xf32, #tpu.memory_space<vmem>>, vector<1x1x1x192xf32>
    %404 = vector.shape_cast %403 : vector<1x1x1x192xf32> to vector<1x192xf32>
    %c0_148 = arith.constant 0 : index
    %c0_149 = arith.constant 0 : index
    %c0_150 = arith.constant 0 : index
    %c0_151 = arith.constant 0 : index
    %405 = vector.load %arg19[%c0_148, %c0_149, %c0_150, %c0_151] : memref<2x2x64x64xbf16, #tpu.memory_space<vmem>>, vector<1x1x64x64xbf16>
    %406 = vector.shape_cast %405 : vector<1x1x64x64xbf16> to vector<64x64xbf16>
    %407 = vector.extract_strided_slice %399 {offsets = [6, 0], sizes = [1, 64], strides = [1, 1]} : vector<9x64xf32> to vector<1x64xf32>
    %cst_152 = arith.constant dense<0.000000e+00> : vector<8x192xf32>
    %408 = tpu.matmul %400, %402, %cst_152 {dimension_numbers = #tpu.dot_dimension_numbers<[1], [0], [0], [1], [0, 0, 1, 1], [], []>} : vector<8x64xbf16>, vector<64x192xbf16>, vector<8x192xf32> -> vector<8x192xf32>
    %409 = vector.broadcast %404 : vector<1x192xf32> to vector<8x192xf32>
    %410 = arith.addf %408, %409 : vector<8x192xf32>
    %411 = vector.extract_strided_slice %410 {offsets = [0, 0], sizes = [8, 64], strides = [1, 1]} : vector<8x192xf32> to vector<8x64xf32>
    %412 = vector.extract_strided_slice %410 {offsets = [0, 64], sizes = [8, 64], strides = [1, 1]} : vector<8x192xf32> to vector<8x64xf32>
    %413 = vector.extract_strided_slice %410 {offsets = [0, 128], sizes = [8, 64], strides = [1, 1]} : vector<8x192xf32> to vector<8x64xf32>
    %414 = arith.truncf %411 : vector<8x64xf32> to vector<8x64xbf16>
    %415 = arith.truncf %412 : vector<8x64xf32> to vector<8x64xbf16>
    %416 = arith.truncf %413 : vector<8x64xf32> to vector<8x64xbf16>
    %417 = vector.extract_strided_slice %414 {offsets = [0, 0], sizes = [8, 16], strides = [1, 1]} : vector<8x64xbf16> to vector<8x16xbf16>
    %418 = vector.extract_strided_slice %415 {offsets = [0, 0], sizes = [8, 16], strides = [1, 1]} : vector<8x64xbf16> to vector<8x16xbf16>
    %cst_153 = arith.constant dense<0.000000e+00> : vector<8x8xf32>
    %419 = tpu.matmul %417, %418, %cst_153 {dimension_numbers = #tpu.dot_dimension_numbers<[1], [1], [0], [0], [0, 0, 1, 0], [], []>} : vector<8x16xbf16>, vector<8x16xbf16>, vector<8x8xf32> -> vector<8x8xf32>
    %420 = arith.addf %419, %397 : vector<8x8xf32>
    %cst_154 = arith.constant dense<0xFF800000> : vector<8xf32>
    %421 = vector.multi_reduction <maximumf>, %420, %cst_154 [1] : vector<8x8xf32> to vector<8xf32>
    %422 = vector.shape_cast %421 : vector<8xf32> to vector<8x1xf32>
    %423 = vector.broadcast %422 : vector<8x1xf32> to vector<8x8xf32>
    %424 = arith.subf %420, %423 : vector<8x8xf32>
    %425 = math.exp %424 : vector<8x8xf32>
    %cst_155 = arith.constant dense<0.000000e+00> : vector<8xf32>
    %426 = vector.multi_reduction <add>, %425, %cst_155 [1] : vector<8x8xf32> to vector<8xf32>
    %427 = vector.shape_cast %426 : vector<8xf32> to vector<8x1xf32>
    %428 = tpu.reciprocal %427 {approx = true} : vector<8x1xf32> -> vector<8x1xf32>
    %429 = vector.broadcast %428 : vector<8x1xf32> to vector<8x8xf32>
    %430 = arith.mulf %425, %429 : vector<8x8xf32>
    %431 = arith.truncf %430 : vector<8x8xf32> to vector<8x8xbf16>
    %432 = vector.extract_strided_slice %416 {offsets = [0, 0], sizes = [8, 16], strides = [1, 1]} : vector<8x64xbf16> to vector<8x16xbf16>
    %cst_156 = arith.constant dense<0.000000e+00> : vector<8x16xf32>
    %433 = tpu.matmul %431, %432, %cst_156 {dimension_numbers = #tpu.dot_dimension_numbers<[1], [0], [0], [1], [0, 0, 1, 1], [], []>} : vector<8x8xbf16>, vector<8x16xbf16>, vector<8x16xf32> -> vector<8x16xf32>
    %434 = vector.extract_strided_slice %414 {offsets = [0, 16], sizes = [8, 16], strides = [1, 1]} : vector<8x64xbf16> to vector<8x16xbf16>
    %435 = vector.extract_strided_slice %415 {offsets = [0, 16], sizes = [8, 16], strides = [1, 1]} : vector<8x64xbf16> to vector<8x16xbf16>
    %cst_157 = arith.constant dense<0.000000e+00> : vector<8x8xf32>
    %436 = tpu.matmul %434, %435, %cst_157 {dimension_numbers = #tpu.dot_dimension_numbers<[1], [1], [0], [0], [0, 0, 1, 0], [], []>} : vector<8x16xbf16>, vector<8x16xbf16>, vector<8x8xf32> -> vector<8x8xf32>
    %437 = arith.addf %436, %397 : vector<8x8xf32>
    %cst_158 = arith.constant dense<0xFF800000> : vector<8xf32>
    %438 = vector.multi_reduction <maximumf>, %437, %cst_158 [1] : vector<8x8xf32> to vector<8xf32>
    %439 = vector.shape_cast %438 : vector<8xf32> to vector<8x1xf32>
    %440 = vector.broadcast %439 : vector<8x1xf32> to vector<8x8xf32>
    %441 = arith.subf %437, %440 : vector<8x8xf32>
    %442 = math.exp %441 : vector<8x8xf32>
    %cst_159 = arith.constant dense<0.000000e+00> : vector<8xf32>
    %443 = vector.multi_reduction <add>, %442, %cst_159 [1] : vector<8x8xf32> to vector<8xf32>
    %444 = vector.shape_cast %443 : vector<8xf32> to vector<8x1xf32>
    %445 = tpu.reciprocal %444 {approx = true} : vector<8x1xf32> -> vector<8x1xf32>
    %446 = vector.broadcast %445 : vector<8x1xf32> to vector<8x8xf32>
    %447 = arith.mulf %442, %446 : vector<8x8xf32>
    %448 = arith.truncf %447 : vector<8x8xf32> to vector<8x8xbf16>
    %449 = vector.extract_strided_slice %416 {offsets = [0, 16], sizes = [8, 16], strides = [1, 1]} : vector<8x64xbf16> to vector<8x16xbf16>
    %cst_160 = arith.constant dense<0.000000e+00> : vector<8x16xf32>
    %450 = tpu.matmul %448, %449, %cst_160 {dimension_numbers = #tpu.dot_dimension_numbers<[1], [0], [0], [1], [0, 0, 1, 1], [], []>} : vector<8x8xbf16>, vector<8x16xbf16>, vector<8x16xf32> -> vector<8x16xf32>
    %451 = vector.extract_strided_slice %414 {offsets = [0, 32], sizes = [8, 16], strides = [1, 1]} : vector<8x64xbf16> to vector<8x16xbf16>
    %452 = vector.extract_strided_slice %415 {offsets = [0, 32], sizes = [8, 16], strides = [1, 1]} : vector<8x64xbf16> to vector<8x16xbf16>
    %cst_161 = arith.constant dense<0.000000e+00> : vector<8x8xf32>
    %453 = tpu.matmul %451, %452, %cst_161 {dimension_numbers = #tpu.dot_dimension_numbers<[1], [1], [0], [0], [0, 0, 1, 0], [], []>} : vector<8x16xbf16>, vector<8x16xbf16>, vector<8x8xf32> -> vector<8x8xf32>
    %454 = arith.addf %453, %397 : vector<8x8xf32>
    %cst_162 = arith.constant dense<0xFF800000> : vector<8xf32>
    %455 = vector.multi_reduction <maximumf>, %454, %cst_162 [1] : vector<8x8xf32> to vector<8xf32>
    %456 = vector.shape_cast %455 : vector<8xf32> to vector<8x1xf32>
    %457 = vector.broadcast %456 : vector<8x1xf32> to vector<8x8xf32>
    %458 = arith.subf %454, %457 : vector<8x8xf32>
    %459 = math.exp %458 : vector<8x8xf32>
    %cst_163 = arith.constant dense<0.000000e+00> : vector<8xf32>
    %460 = vector.multi_reduction <add>, %459, %cst_163 [1] : vector<8x8xf32> to vector<8xf32>
    %461 = vector.shape_cast %460 : vector<8xf32> to vector<8x1xf32>
    %462 = tpu.reciprocal %461 {approx = true} : vector<8x1xf32> -> vector<8x1xf32>
    %463 = vector.broadcast %462 : vector<8x1xf32> to vector<8x8xf32>
    %464 = arith.mulf %459, %463 : vector<8x8xf32>
    %465 = arith.truncf %464 : vector<8x8xf32> to vector<8x8xbf16>
    %466 = vector.extract_strided_slice %416 {offsets = [0, 32], sizes = [8, 16], strides = [1, 1]} : vector<8x64xbf16> to vector<8x16xbf16>
    %cst_164 = arith.constant dense<0.000000e+00> : vector<8x16xf32>
    %467 = tpu.matmul %465, %466, %cst_164 {dimension_numbers = #tpu.dot_dimension_numbers<[1], [0], [0], [1], [0, 0, 1, 1], [], []>} : vector<8x8xbf16>, vector<8x16xbf16>, vector<8x16xf32> -> vector<8x16xf32>
    %468 = vector.extract_strided_slice %414 {offsets = [0, 48], sizes = [8, 16], strides = [1, 1]} : vector<8x64xbf16> to vector<8x16xbf16>
    %469 = vector.extract_strided_slice %415 {offsets = [0, 48], sizes = [8, 16], strides = [1, 1]} : vector<8x64xbf16> to vector<8x16xbf16>
    %cst_165 = arith.constant dense<0.000000e+00> : vector<8x8xf32>
    %470 = tpu.matmul %468, %469, %cst_165 {dimension_numbers = #tpu.dot_dimension_numbers<[1], [1], [0], [0], [0, 0, 1, 0], [], []>} : vector<8x16xbf16>, vector<8x16xbf16>, vector<8x8xf32> -> vector<8x8xf32>
    %471 = arith.addf %470, %397 : vector<8x8xf32>
    %cst_166 = arith.constant dense<0xFF800000> : vector<8xf32>
    %472 = vector.multi_reduction <maximumf>, %471, %cst_166 [1] : vector<8x8xf32> to vector<8xf32>
    %473 = vector.shape_cast %472 : vector<8xf32> to vector<8x1xf32>
    %474 = vector.broadcast %473 : vector<8x1xf32> to vector<8x8xf32>
    %475 = arith.subf %471, %474 : vector<8x8xf32>
    %476 = math.exp %475 : vector<8x8xf32>
    %cst_167 = arith.constant dense<0.000000e+00> : vector<8xf32>
    %477 = vector.multi_reduction <add>, %476, %cst_167 [1] : vector<8x8xf32> to vector<8xf32>
    %478 = vector.shape_cast %477 : vector<8xf32> to vector<8x1xf32>
    %479 = tpu.reciprocal %478 {approx = true} : vector<8x1xf32> -> vector<8x1xf32>
    %480 = vector.broadcast %479 : vector<8x1xf32> to vector<8x8xf32>
    %481 = arith.mulf %476, %480 : vector<8x8xf32>
    %482 = arith.truncf %481 : vector<8x8xf32> to vector<8x8xbf16>
    %483 = vector.extract_strided_slice %416 {offsets = [0, 48], sizes = [8, 16], strides = [1, 1]} : vector<8x64xbf16> to vector<8x16xbf16>
    %cst_168 = arith.constant dense<0.000000e+00> : vector<8x16xf32>
    %484 = tpu.matmul %482, %483, %cst_168 {dimension_numbers = #tpu.dot_dimension_numbers<[1], [0], [0], [1], [0, 0, 1, 1], [], []>} : vector<8x8xbf16>, vector<8x16xbf16>, vector<8x16xf32> -> vector<8x16xf32>
    %485 = tpu.concatenate %433, %450, %467, %484 in 1 : vector<8x16xf32>, vector<8x16xf32>, vector<8x16xf32>, vector<8x16xf32> -> vector<8x64xf32>
    %486 = arith.truncf %485 : vector<8x64xf32> to vector<8x64xbf16>
    %cst_169 = arith.constant dense<0.000000e+00> : vector<8x64xf32>
    %487 = tpu.matmul %486, %406, %cst_169 {dimension_numbers = #tpu.dot_dimension_numbers<[1], [0], [0], [1], [0, 0, 1, 1], [], []>} : vector<8x64xbf16>, vector<64x64xbf16>, vector<8x64xf32> -> vector<8x64xf32>
    %488 = vector.broadcast %407 : vector<1x64xf32> to vector<8x64xf32>
    %489 = arith.addf %487, %488 : vector<8x64xf32>
    %490 = arith.addf %396, %489 : vector<8x64xf32>
    %491 = vector.extract_strided_slice %399 {offsets = [0, 0], sizes = [1, 64], strides = [1, 1]} : vector<9x64xf32> to vector<1x64xf32>
    %492 = vector.extract_strided_slice %399 {offsets = [1, 0], sizes = [1, 64], strides = [1, 1]} : vector<9x64xf32> to vector<1x64xf32>
    %cst_170 = arith.constant dense<0.000000e+00> : vector<8xf32>
    %493 = vector.multi_reduction <add>, %490, %cst_170 [1] : vector<8x64xf32> to vector<8xf32>
    %494 = vector.shape_cast %493 : vector<8xf32> to vector<8x1xf32>
    %cst_171 = arith.constant 6.400000e+01 : f32
    %495 = vector.broadcast %cst_171 : f32 to vector<8x1xf32>
    %496 = arith.divf %494, %495 : vector<8x1xf32>
    %497 = vector.broadcast %496 : vector<8x1xf32> to vector<8x64xf32>
    %498 = arith.subf %490, %497 : vector<8x64xf32>
    %499 = arith.mulf %498, %498 : vector<8x64xf32>
    %cst_172 = arith.constant dense<0.000000e+00> : vector<8xf32>
    %500 = vector.multi_reduction <add>, %499, %cst_172 [1] : vector<8x64xf32> to vector<8xf32>
    %501 = vector.shape_cast %500 : vector<8xf32> to vector<8x1xf32>
    %cst_173 = arith.constant 6.400000e+01 : f32
    %502 = vector.broadcast %cst_173 : f32 to vector<8x1xf32>
    %503 = arith.divf %501, %502 : vector<8x1xf32>
    %504 = vector.broadcast %496 : vector<8x1xf32> to vector<8x64xf32>
    %505 = arith.subf %490, %504 : vector<8x64xf32>
    %cst_174 = arith.constant 9.99999974E-6 : f32
    %506 = vector.broadcast %cst_174 : f32 to vector<8x1xf32>
    %507 = arith.addf %503, %506 : vector<8x1xf32>
    %508 = math.rsqrt %507 : vector<8x1xf32>
    %509 = vector.broadcast %508 : vector<8x1xf32> to vector<8x64xf32>
    %510 = arith.mulf %505, %509 : vector<8x64xf32>
    %511 = vector.broadcast %491 : vector<1x64xf32> to vector<8x64xf32>
    %512 = arith.mulf %510, %511 : vector<8x64xf32>
    %513 = vector.broadcast %492 : vector<1x64xf32> to vector<8x64xf32>
    %514 = arith.addf %512, %513 : vector<8x64xf32>
    %515 = arith.truncf %514 : vector<8x64xf32> to vector<8x64xbf16>
    %c0_175 = arith.constant 0 : index
    %c1_176 = arith.constant 1 : index
    %c0_177 = arith.constant 0 : index
    %c0_178 = arith.constant 0 : index
    %516 = vector.load %arg17[%c0_175, %c1_176, %c0_177, %c0_178] : memref<2x2x64x192xbf16, #tpu.memory_space<vmem>>, vector<1x1x64x192xbf16>
    %517 = vector.shape_cast %516 : vector<1x1x64x192xbf16> to vector<64x192xbf16>
    %c0_179 = arith.constant 0 : index
    %c1_180 = arith.constant 1 : index
    %c0_181 = arith.constant 0 : index
    %c0_182 = arith.constant 0 : index
    %518 = vector.load %arg18[%c0_179, %c1_180, %c0_181, %c0_182] : memref<2x2x1x192xf32, #tpu.memory_space<vmem>>, vector<1x1x1x192xf32>
    %519 = vector.shape_cast %518 : vector<1x1x1x192xf32> to vector<1x192xf32>
    %c0_183 = arith.constant 0 : index
    %c1_184 = arith.constant 1 : index
    %c0_185 = arith.constant 0 : index
    %c0_186 = arith.constant 0 : index
    %520 = vector.load %arg19[%c0_183, %c1_184, %c0_185, %c0_186] : memref<2x2x64x64xbf16, #tpu.memory_space<vmem>>, vector<1x1x64x64xbf16>
    %521 = vector.shape_cast %520 : vector<1x1x64x64xbf16> to vector<64x64xbf16>
    %522 = vector.extract_strided_slice %399 {offsets = [7, 0], sizes = [1, 64], strides = [1, 1]} : vector<9x64xf32> to vector<1x64xf32>
    %523 = vector.extract_strided_slice %517 {offsets = [0, 0], sizes = [64, 64], strides = [1, 1]} : vector<64x192xbf16> to vector<64x64xbf16>
    %cst_187 = arith.constant dense<0.000000e+00> : vector<8x64xf32>
    %524 = tpu.matmul %515, %523, %cst_187 {dimension_numbers = #tpu.dot_dimension_numbers<[1], [0], [0], [1], [0, 0, 1, 1], [], []>} : vector<8x64xbf16>, vector<64x64xbf16>, vector<8x64xf32> -> vector<8x64xf32>
    %525 = vector.extract_strided_slice %519 {offsets = [0, 0], sizes = [1, 64], strides = [1, 1]} : vector<1x192xf32> to vector<1x64xf32>
    %526 = vector.broadcast %525 : vector<1x64xf32> to vector<8x64xf32>
    %527 = arith.addf %524, %526 : vector<8x64xf32>
    %528 = vector.extract_strided_slice %517 {offsets = [0, 64], sizes = [64, 128], strides = [1, 1]} : vector<64x192xbf16> to vector<64x128xbf16>
    %cst_188 = arith.constant dense<0.000000e+00> : vector<18x128xf32>
    %529 = tpu.matmul %370, %528, %cst_188 {dimension_numbers = #tpu.dot_dimension_numbers<[1], [0], [0], [1], [0, 0, 1, 1], [], []>} : vector<18x64xbf16>, vector<64x128xbf16>, vector<18x128xf32> -> vector<18x128xf32>
    %530 = vector.extract_strided_slice %519 {offsets = [0, 64], sizes = [1, 128], strides = [1, 1]} : vector<1x192xf32> to vector<1x128xf32>
    %531 = vector.broadcast %530 : vector<1x128xf32> to vector<18x128xf32>
    %532 = arith.addf %529, %531 : vector<18x128xf32>
    %533 = vector.extract_strided_slice %532 {offsets = [0, 0], sizes = [18, 64], strides = [1, 1]} : vector<18x128xf32> to vector<18x64xf32>
    %534 = vector.extract_strided_slice %532 {offsets = [0, 64], sizes = [18, 64], strides = [1, 1]} : vector<18x128xf32> to vector<18x64xf32>
    %535 = arith.truncf %527 : vector<8x64xf32> to vector<8x64xbf16>
    %536 = arith.truncf %533 : vector<18x64xf32> to vector<18x64xbf16>
    %537 = arith.truncf %534 : vector<18x64xf32> to vector<18x64xbf16>
    %538 = vector.extract_strided_slice %535 {offsets = [0, 0], sizes = [8, 16], strides = [1, 1]} : vector<8x64xbf16> to vector<8x16xbf16>
    %539 = vector.extract_strided_slice %536 {offsets = [0, 0], sizes = [18, 16], strides = [1, 1]} : vector<18x64xbf16> to vector<18x16xbf16>
    %cst_189 = arith.constant dense<0.000000e+00> : vector<8x18xf32>
    %540 = tpu.matmul %538, %539, %cst_189 {dimension_numbers = #tpu.dot_dimension_numbers<[1], [1], [0], [0], [0, 0, 1, 0], [], []>} : vector<8x16xbf16>, vector<18x16xbf16>, vector<8x18xf32> -> vector<8x18xf32>
    %cst_190 = arith.constant dense<0xFF800000> : vector<8xf32>
    %541 = vector.multi_reduction <maximumf>, %540, %cst_190 [1] : vector<8x18xf32> to vector<8xf32>
    %542 = vector.shape_cast %541 : vector<8xf32> to vector<8x1xf32>
    %543 = vector.broadcast %542 : vector<8x1xf32> to vector<8x18xf32>
    %544 = arith.subf %540, %543 : vector<8x18xf32>
    %545 = math.exp %544 : vector<8x18xf32>
    %cst_191 = arith.constant dense<0.000000e+00> : vector<8xf32>
    %546 = vector.multi_reduction <add>, %545, %cst_191 [1] : vector<8x18xf32> to vector<8xf32>
    %547 = vector.shape_cast %546 : vector<8xf32> to vector<8x1xf32>
    %548 = tpu.reciprocal %547 {approx = true} : vector<8x1xf32> -> vector<8x1xf32>
    %549 = vector.broadcast %548 : vector<8x1xf32> to vector<8x18xf32>
    %550 = arith.mulf %545, %549 : vector<8x18xf32>
    %551 = arith.truncf %550 : vector<8x18xf32> to vector<8x18xbf16>
    %552 = vector.extract_strided_slice %537 {offsets = [0, 0], sizes = [18, 16], strides = [1, 1]} : vector<18x64xbf16> to vector<18x16xbf16>
    %cst_192 = arith.constant dense<0.000000e+00> : vector<8x16xf32>
    %553 = tpu.matmul %551, %552, %cst_192 {dimension_numbers = #tpu.dot_dimension_numbers<[1], [0], [0], [1], [0, 0, 1, 1], [], []>} : vector<8x18xbf16>, vector<18x16xbf16>, vector<8x16xf32> -> vector<8x16xf32>
    %554 = vector.extract_strided_slice %535 {offsets = [0, 16], sizes = [8, 16], strides = [1, 1]} : vector<8x64xbf16> to vector<8x16xbf16>
    %555 = vector.extract_strided_slice %536 {offsets = [0, 16], sizes = [18, 16], strides = [1, 1]} : vector<18x64xbf16> to vector<18x16xbf16>
    %cst_193 = arith.constant dense<0.000000e+00> : vector<8x18xf32>
    %556 = tpu.matmul %554, %555, %cst_193 {dimension_numbers = #tpu.dot_dimension_numbers<[1], [1], [0], [0], [0, 0, 1, 0], [], []>} : vector<8x16xbf16>, vector<18x16xbf16>, vector<8x18xf32> -> vector<8x18xf32>
    %cst_194 = arith.constant dense<0xFF800000> : vector<8xf32>
    %557 = vector.multi_reduction <maximumf>, %556, %cst_194 [1] : vector<8x18xf32> to vector<8xf32>
    %558 = vector.shape_cast %557 : vector<8xf32> to vector<8x1xf32>
    %559 = vector.broadcast %558 : vector<8x1xf32> to vector<8x18xf32>
    %560 = arith.subf %556, %559 : vector<8x18xf32>
    %561 = math.exp %560 : vector<8x18xf32>
    %cst_195 = arith.constant dense<0.000000e+00> : vector<8xf32>
    %562 = vector.multi_reduction <add>, %561, %cst_195 [1] : vector<8x18xf32> to vector<8xf32>
    %563 = vector.shape_cast %562 : vector<8xf32> to vector<8x1xf32>
    %564 = tpu.reciprocal %563 {approx = true} : vector<8x1xf32> -> vector<8x1xf32>
    %565 = vector.broadcast %564 : vector<8x1xf32> to vector<8x18xf32>
    %566 = arith.mulf %561, %565 : vector<8x18xf32>
    %567 = arith.truncf %566 : vector<8x18xf32> to vector<8x18xbf16>
    %568 = vector.extract_strided_slice %537 {offsets = [0, 16], sizes = [18, 16], strides = [1, 1]} : vector<18x64xbf16> to vector<18x16xbf16>
    %cst_196 = arith.constant dense<0.000000e+00> : vector<8x16xf32>
    %569 = tpu.matmul %567, %568, %cst_196 {dimension_numbers = #tpu.dot_dimension_numbers<[1], [0], [0], [1], [0, 0, 1, 1], [], []>} : vector<8x18xbf16>, vector<18x16xbf16>, vector<8x16xf32> -> vector<8x16xf32>
    %570 = vector.extract_strided_slice %535 {offsets = [0, 32], sizes = [8, 16], strides = [1, 1]} : vector<8x64xbf16> to vector<8x16xbf16>
    %571 = vector.extract_strided_slice %536 {offsets = [0, 32], sizes = [18, 16], strides = [1, 1]} : vector<18x64xbf16> to vector<18x16xbf16>
    %cst_197 = arith.constant dense<0.000000e+00> : vector<8x18xf32>
    %572 = tpu.matmul %570, %571, %cst_197 {dimension_numbers = #tpu.dot_dimension_numbers<[1], [1], [0], [0], [0, 0, 1, 0], [], []>} : vector<8x16xbf16>, vector<18x16xbf16>, vector<8x18xf32> -> vector<8x18xf32>
    %cst_198 = arith.constant dense<0xFF800000> : vector<8xf32>
    %573 = vector.multi_reduction <maximumf>, %572, %cst_198 [1] : vector<8x18xf32> to vector<8xf32>
    %574 = vector.shape_cast %573 : vector<8xf32> to vector<8x1xf32>
    %575 = vector.broadcast %574 : vector<8x1xf32> to vector<8x18xf32>
    %576 = arith.subf %572, %575 : vector<8x18xf32>
    %577 = math.exp %576 : vector<8x18xf32>
    %cst_199 = arith.constant dense<0.000000e+00> : vector<8xf32>
    %578 = vector.multi_reduction <add>, %577, %cst_199 [1] : vector<8x18xf32> to vector<8xf32>
    %579 = vector.shape_cast %578 : vector<8xf32> to vector<8x1xf32>
    %580 = tpu.reciprocal %579 {approx = true} : vector<8x1xf32> -> vector<8x1xf32>
    %581 = vector.broadcast %580 : vector<8x1xf32> to vector<8x18xf32>
    %582 = arith.mulf %577, %581 : vector<8x18xf32>
    %583 = arith.truncf %582 : vector<8x18xf32> to vector<8x18xbf16>
    %584 = vector.extract_strided_slice %537 {offsets = [0, 32], sizes = [18, 16], strides = [1, 1]} : vector<18x64xbf16> to vector<18x16xbf16>
    %cst_200 = arith.constant dense<0.000000e+00> : vector<8x16xf32>
    %585 = tpu.matmul %583, %584, %cst_200 {dimension_numbers = #tpu.dot_dimension_numbers<[1], [0], [0], [1], [0, 0, 1, 1], [], []>} : vector<8x18xbf16>, vector<18x16xbf16>, vector<8x16xf32> -> vector<8x16xf32>
    %586 = vector.extract_strided_slice %535 {offsets = [0, 48], sizes = [8, 16], strides = [1, 1]} : vector<8x64xbf16> to vector<8x16xbf16>
    %587 = vector.extract_strided_slice %536 {offsets = [0, 48], sizes = [18, 16], strides = [1, 1]} : vector<18x64xbf16> to vector<18x16xbf16>
    %cst_201 = arith.constant dense<0.000000e+00> : vector<8x18xf32>
    %588 = tpu.matmul %586, %587, %cst_201 {dimension_numbers = #tpu.dot_dimension_numbers<[1], [1], [0], [0], [0, 0, 1, 0], [], []>} : vector<8x16xbf16>, vector<18x16xbf16>, vector<8x18xf32> -> vector<8x18xf32>
    %cst_202 = arith.constant dense<0xFF800000> : vector<8xf32>
    %589 = vector.multi_reduction <maximumf>, %588, %cst_202 [1] : vector<8x18xf32> to vector<8xf32>
    %590 = vector.shape_cast %589 : vector<8xf32> to vector<8x1xf32>
    %591 = vector.broadcast %590 : vector<8x1xf32> to vector<8x18xf32>
    %592 = arith.subf %588, %591 : vector<8x18xf32>
    %593 = math.exp %592 : vector<8x18xf32>
    %cst_203 = arith.constant dense<0.000000e+00> : vector<8xf32>
    %594 = vector.multi_reduction <add>, %593, %cst_203 [1] : vector<8x18xf32> to vector<8xf32>
    %595 = vector.shape_cast %594 : vector<8xf32> to vector<8x1xf32>
    %596 = tpu.reciprocal %595 {approx = true} : vector<8x1xf32> -> vector<8x1xf32>
    %597 = vector.broadcast %596 : vector<8x1xf32> to vector<8x18xf32>
    %598 = arith.mulf %593, %597 : vector<8x18xf32>
    %599 = arith.truncf %598 : vector<8x18xf32> to vector<8x18xbf16>
    %600 = vector.extract_strided_slice %537 {offsets = [0, 48], sizes = [18, 16], strides = [1, 1]} : vector<18x64xbf16> to vector<18x16xbf16>
    %cst_204 = arith.constant dense<0.000000e+00> : vector<8x16xf32>
    %601 = tpu.matmul %599, %600, %cst_204 {dimension_numbers = #tpu.dot_dimension_numbers<[1], [0], [0], [1], [0, 0, 1, 1], [], []>} : vector<8x18xbf16>, vector<18x16xbf16>, vector<8x16xf32> -> vector<8x16xf32>
    %602 = tpu.concatenate %553, %569, %585, %601 in 1 : vector<8x16xf32>, vector<8x16xf32>, vector<8x16xf32>, vector<8x16xf32> -> vector<8x64xf32>
    %603 = arith.truncf %602 : vector<8x64xf32> to vector<8x64xbf16>
    %cst_205 = arith.constant dense<0.000000e+00> : vector<8x64xf32>
    %604 = tpu.matmul %603, %521, %cst_205 {dimension_numbers = #tpu.dot_dimension_numbers<[1], [0], [0], [1], [0, 0, 1, 1], [], []>} : vector<8x64xbf16>, vector<64x64xbf16>, vector<8x64xf32> -> vector<8x64xf32>
    %605 = vector.broadcast %522 : vector<1x64xf32> to vector<8x64xf32>
    %606 = arith.addf %604, %605 : vector<8x64xf32>
    %607 = arith.addf %514, %606 : vector<8x64xf32>
    %608 = vector.extract_strided_slice %399 {offsets = [2, 0], sizes = [1, 64], strides = [1, 1]} : vector<9x64xf32> to vector<1x64xf32>
    %609 = vector.extract_strided_slice %399 {offsets = [3, 0], sizes = [1, 64], strides = [1, 1]} : vector<9x64xf32> to vector<1x64xf32>
    %cst_206 = arith.constant dense<0.000000e+00> : vector<8xf32>
    %610 = vector.multi_reduction <add>, %607, %cst_206 [1] : vector<8x64xf32> to vector<8xf32>
    %611 = vector.shape_cast %610 : vector<8xf32> to vector<8x1xf32>
    %cst_207 = arith.constant 6.400000e+01 : f32
    %612 = vector.broadcast %cst_207 : f32 to vector<8x1xf32>
    %613 = arith.divf %611, %612 : vector<8x1xf32>
    %614 = vector.broadcast %613 : vector<8x1xf32> to vector<8x64xf32>
    %615 = arith.subf %607, %614 : vector<8x64xf32>
    %616 = arith.mulf %615, %615 : vector<8x64xf32>
    %cst_208 = arith.constant dense<0.000000e+00> : vector<8xf32>
    %617 = vector.multi_reduction <add>, %616, %cst_208 [1] : vector<8x64xf32> to vector<8xf32>
    %618 = vector.shape_cast %617 : vector<8xf32> to vector<8x1xf32>
    %cst_209 = arith.constant 6.400000e+01 : f32
    %619 = vector.broadcast %cst_209 : f32 to vector<8x1xf32>
    %620 = arith.divf %618, %619 : vector<8x1xf32>
    %621 = vector.broadcast %613 : vector<8x1xf32> to vector<8x64xf32>
    %622 = arith.subf %607, %621 : vector<8x64xf32>
    %cst_210 = arith.constant 9.99999974E-6 : f32
    %623 = vector.broadcast %cst_210 : f32 to vector<8x1xf32>
    %624 = arith.addf %620, %623 : vector<8x1xf32>
    %625 = math.rsqrt %624 : vector<8x1xf32>
    %626 = vector.broadcast %625 : vector<8x1xf32> to vector<8x64xf32>
    %627 = arith.mulf %622, %626 : vector<8x64xf32>
    %628 = vector.broadcast %608 : vector<1x64xf32> to vector<8x64xf32>
    %629 = arith.mulf %627, %628 : vector<8x64xf32>
    %630 = vector.broadcast %609 : vector<1x64xf32> to vector<8x64xf32>
    %631 = arith.addf %629, %630 : vector<8x64xf32>
    %632 = arith.truncf %631 : vector<8x64xf32> to vector<8x64xbf16>
    %c0_211 = arith.constant 0 : index
    %c0_212 = arith.constant 0 : index
    %c0_213 = arith.constant 0 : index
    %633 = vector.load %arg20[%c0_211, %c0_212, %c0_213] : memref<2x64x128xbf16, #tpu.memory_space<vmem>>, vector<1x64x128xbf16>
    %634 = vector.shape_cast %633 : vector<1x64x128xbf16> to vector<64x128xbf16>
    %c0_214 = arith.constant 0 : index
    %c0_215 = arith.constant 0 : index
    %c0_216 = arith.constant 0 : index
    %635 = vector.load %arg21[%c0_214, %c0_215, %c0_216] : memref<2x1x128xf32, #tpu.memory_space<vmem>>, vector<1x1x128xf32>
    %636 = vector.shape_cast %635 : vector<1x1x128xf32> to vector<1x128xf32>
    %c0_217 = arith.constant 0 : index
    %c0_218 = arith.constant 0 : index
    %c0_219 = arith.constant 0 : index
    %637 = vector.load %arg22[%c0_217, %c0_218, %c0_219] : memref<2x128x64xbf16, #tpu.memory_space<vmem>>, vector<1x128x64xbf16>
    %638 = vector.shape_cast %637 : vector<1x128x64xbf16> to vector<128x64xbf16>
    %639 = vector.extract_strided_slice %399 {offsets = [8, 0], sizes = [1, 64], strides = [1, 1]} : vector<9x64xf32> to vector<1x64xf32>
    %cst_220 = arith.constant dense<0.000000e+00> : vector<8x128xf32>
    %640 = tpu.matmul %632, %634, %cst_220 {dimension_numbers = #tpu.dot_dimension_numbers<[1], [0], [0], [1], [0, 0, 1, 1], [], []>} : vector<8x64xbf16>, vector<64x128xbf16>, vector<8x128xf32> -> vector<8x128xf32>
    %641 = vector.broadcast %636 : vector<1x128xf32> to vector<8x128xf32>
    %642 = arith.addf %640, %641 : vector<8x128xf32>
    %643 = arith.mulf %642, %642 : vector<8x128xf32>
    %644 = arith.mulf %642, %643 : vector<8x128xf32>
    %cst_221 = arith.constant 4.471500e-02 : f32
    %645 = vector.broadcast %cst_221 : f32 to vector<8x128xf32>
    %646 = arith.mulf %645, %644 : vector<8x128xf32>
    %647 = arith.addf %642, %646 : vector<8x128xf32>
    %cst_222 = arith.constant 0.797884583 : f32
    %648 = vector.broadcast %cst_222 : f32 to vector<8x128xf32>
    %649 = arith.mulf %648, %647 : vector<8x128xf32>
    %650 = math.tanh %649 : vector<8x128xf32>
    %cst_223 = arith.constant 1.000000e+00 : f32
    %651 = vector.broadcast %cst_223 : f32 to vector<8x128xf32>
    %652 = arith.addf %651, %650 : vector<8x128xf32>
    %cst_224 = arith.constant 5.000000e-01 : f32
    %653 = vector.broadcast %cst_224 : f32 to vector<8x128xf32>
    %654 = arith.mulf %653, %652 : vector<8x128xf32>
    %655 = arith.mulf %642, %654 : vector<8x128xf32>
    %656 = arith.truncf %655 : vector<8x128xf32> to vector<8x128xbf16>
    %cst_225 = arith.constant dense<0.000000e+00> : vector<8x64xf32>
    %657 = tpu.matmul %656, %638, %cst_225 {dimension_numbers = #tpu.dot_dimension_numbers<[1], [0], [0], [1], [0, 0, 1, 1], [], []>} : vector<8x128xbf16>, vector<128x64xbf16>, vector<8x64xf32> -> vector<8x64xf32>
    %658 = vector.broadcast %639 : vector<1x64xf32> to vector<8x64xf32>
    %659 = arith.addf %657, %658 : vector<8x64xf32>
    %660 = arith.addf %631, %659 : vector<8x64xf32>
    %661 = vector.extract_strided_slice %399 {offsets = [4, 0], sizes = [1, 64], strides = [1, 1]} : vector<9x64xf32> to vector<1x64xf32>
    %662 = vector.extract_strided_slice %399 {offsets = [5, 0], sizes = [1, 64], strides = [1, 1]} : vector<9x64xf32> to vector<1x64xf32>
    %cst_226 = arith.constant dense<0.000000e+00> : vector<8xf32>
    %663 = vector.multi_reduction <add>, %660, %cst_226 [1] : vector<8x64xf32> to vector<8xf32>
    %664 = vector.shape_cast %663 : vector<8xf32> to vector<8x1xf32>
    %cst_227 = arith.constant 6.400000e+01 : f32
    %665 = vector.broadcast %cst_227 : f32 to vector<8x1xf32>
    %666 = arith.divf %664, %665 : vector<8x1xf32>
    %667 = vector.broadcast %666 : vector<8x1xf32> to vector<8x64xf32>
    %668 = arith.subf %660, %667 : vector<8x64xf32>
    %669 = arith.mulf %668, %668 : vector<8x64xf32>
    %cst_228 = arith.constant dense<0.000000e+00> : vector<8xf32>
    %670 = vector.multi_reduction <add>, %669, %cst_228 [1] : vector<8x64xf32> to vector<8xf32>
    %671 = vector.shape_cast %670 : vector<8xf32> to vector<8x1xf32>
    %cst_229 = arith.constant 6.400000e+01 : f32
    %672 = vector.broadcast %cst_229 : f32 to vector<8x1xf32>
    %673 = arith.divf %671, %672 : vector<8x1xf32>
    %674 = vector.broadcast %666 : vector<8x1xf32> to vector<8x64xf32>
    %675 = arith.subf %660, %674 : vector<8x64xf32>
    %cst_230 = arith.constant 9.99999974E-6 : f32
    %676 = vector.broadcast %cst_230 : f32 to vector<8x1xf32>
    %677 = arith.addf %673, %676 : vector<8x1xf32>
    %678 = math.rsqrt %677 : vector<8x1xf32>
    %679 = vector.broadcast %678 : vector<8x1xf32> to vector<8x64xf32>
    %680 = arith.mulf %675, %679 : vector<8x64xf32>
    %681 = vector.broadcast %661 : vector<1x64xf32> to vector<8x64xf32>
    %682 = arith.mulf %680, %681 : vector<8x64xf32>
    %683 = vector.broadcast %662 : vector<1x64xf32> to vector<8x64xf32>
    %684 = arith.addf %682, %683 : vector<8x64xf32>
    %c1_231 = arith.constant 1 : index
    %c0_232 = arith.constant 0 : index
    %c0_233 = arith.constant 0 : index
    %685 = vector.load %arg16[%c1_231, %c0_232, %c0_233] : memref<2x9x64xf32, #tpu.memory_space<vmem>>, vector<1x9x64xf32>
    %686 = vector.shape_cast %685 : vector<1x9x64xf32> to vector<9x64xf32>
    %687 = arith.truncf %684 : vector<8x64xf32> to vector<8x64xbf16>
    %c1_234 = arith.constant 1 : index
    %c0_235 = arith.constant 0 : index
    %c0_236 = arith.constant 0 : index
    %c0_237 = arith.constant 0 : index
    %688 = vector.load %arg17[%c1_234, %c0_235, %c0_236, %c0_237] : memref<2x2x64x192xbf16, #tpu.memory_space<vmem>>, vector<1x1x64x192xbf16>
    %689 = vector.shape_cast %688 : vector<1x1x64x192xbf16> to vector<64x192xbf16>
    %c1_238 = arith.constant 1 : index
    %c0_239 = arith.constant 0 : index
    %c0_240 = arith.constant 0 : index
    %c0_241 = arith.constant 0 : index
    %690 = vector.load %arg18[%c1_238, %c0_239, %c0_240, %c0_241] : memref<2x2x1x192xf32, #tpu.memory_space<vmem>>, vector<1x1x1x192xf32>
    %691 = vector.shape_cast %690 : vector<1x1x1x192xf32> to vector<1x192xf32>
    %c1_242 = arith.constant 1 : index
    %c0_243 = arith.constant 0 : index
    %c0_244 = arith.constant 0 : index
    %c0_245 = arith.constant 0 : index
    %692 = vector.load %arg19[%c1_242, %c0_243, %c0_244, %c0_245] : memref<2x2x64x64xbf16, #tpu.memory_space<vmem>>, vector<1x1x64x64xbf16>
    %693 = vector.shape_cast %692 : vector<1x1x64x64xbf16> to vector<64x64xbf16>
    %694 = vector.extract_strided_slice %686 {offsets = [6, 0], sizes = [1, 64], strides = [1, 1]} : vector<9x64xf32> to vector<1x64xf32>
    %cst_246 = arith.constant dense<0.000000e+00> : vector<8x192xf32>
    %695 = tpu.matmul %687, %689, %cst_246 {dimension_numbers = #tpu.dot_dimension_numbers<[1], [0], [0], [1], [0, 0, 1, 1], [], []>} : vector<8x64xbf16>, vector<64x192xbf16>, vector<8x192xf32> -> vector<8x192xf32>
    %696 = vector.broadcast %691 : vector<1x192xf32> to vector<8x192xf32>
    %697 = arith.addf %695, %696 : vector<8x192xf32>
    %698 = vector.extract_strided_slice %697 {offsets = [0, 0], sizes = [8, 64], strides = [1, 1]} : vector<8x192xf32> to vector<8x64xf32>
    %699 = vector.extract_strided_slice %697 {offsets = [0, 64], sizes = [8, 64], strides = [1, 1]} : vector<8x192xf32> to vector<8x64xf32>
    %700 = vector.extract_strided_slice %697 {offsets = [0, 128], sizes = [8, 64], strides = [1, 1]} : vector<8x192xf32> to vector<8x64xf32>
    %701 = arith.truncf %698 : vector<8x64xf32> to vector<8x64xbf16>
    %702 = arith.truncf %699 : vector<8x64xf32> to vector<8x64xbf16>
    %703 = arith.truncf %700 : vector<8x64xf32> to vector<8x64xbf16>
    %704 = vector.extract_strided_slice %701 {offsets = [0, 0], sizes = [8, 16], strides = [1, 1]} : vector<8x64xbf16> to vector<8x16xbf16>
    %705 = vector.extract_strided_slice %702 {offsets = [0, 0], sizes = [8, 16], strides = [1, 1]} : vector<8x64xbf16> to vector<8x16xbf16>
    %cst_247 = arith.constant dense<0.000000e+00> : vector<8x8xf32>
    %706 = tpu.matmul %704, %705, %cst_247 {dimension_numbers = #tpu.dot_dimension_numbers<[1], [1], [0], [0], [0, 0, 1, 0], [], []>} : vector<8x16xbf16>, vector<8x16xbf16>, vector<8x8xf32> -> vector<8x8xf32>
    %707 = arith.addf %706, %397 : vector<8x8xf32>
    %cst_248 = arith.constant dense<0xFF800000> : vector<8xf32>
    %708 = vector.multi_reduction <maximumf>, %707, %cst_248 [1] : vector<8x8xf32> to vector<8xf32>
    %709 = vector.shape_cast %708 : vector<8xf32> to vector<8x1xf32>
    %710 = vector.broadcast %709 : vector<8x1xf32> to vector<8x8xf32>
    %711 = arith.subf %707, %710 : vector<8x8xf32>
    %712 = math.exp %711 : vector<8x8xf32>
    %cst_249 = arith.constant dense<0.000000e+00> : vector<8xf32>
    %713 = vector.multi_reduction <add>, %712, %cst_249 [1] : vector<8x8xf32> to vector<8xf32>
    %714 = vector.shape_cast %713 : vector<8xf32> to vector<8x1xf32>
    %715 = tpu.reciprocal %714 {approx = true} : vector<8x1xf32> -> vector<8x1xf32>
    %716 = vector.broadcast %715 : vector<8x1xf32> to vector<8x8xf32>
    %717 = arith.mulf %712, %716 : vector<8x8xf32>
    %718 = arith.truncf %717 : vector<8x8xf32> to vector<8x8xbf16>
    %719 = vector.extract_strided_slice %703 {offsets = [0, 0], sizes = [8, 16], strides = [1, 1]} : vector<8x64xbf16> to vector<8x16xbf16>
    %cst_250 = arith.constant dense<0.000000e+00> : vector<8x16xf32>
    %720 = tpu.matmul %718, %719, %cst_250 {dimension_numbers = #tpu.dot_dimension_numbers<[1], [0], [0], [1], [0, 0, 1, 1], [], []>} : vector<8x8xbf16>, vector<8x16xbf16>, vector<8x16xf32> -> vector<8x16xf32>
    %721 = vector.extract_strided_slice %701 {offsets = [0, 16], sizes = [8, 16], strides = [1, 1]} : vector<8x64xbf16> to vector<8x16xbf16>
    %722 = vector.extract_strided_slice %702 {offsets = [0, 16], sizes = [8, 16], strides = [1, 1]} : vector<8x64xbf16> to vector<8x16xbf16>
    %cst_251 = arith.constant dense<0.000000e+00> : vector<8x8xf32>
    %723 = tpu.matmul %721, %722, %cst_251 {dimension_numbers = #tpu.dot_dimension_numbers<[1], [1], [0], [0], [0, 0, 1, 0], [], []>} : vector<8x16xbf16>, vector<8x16xbf16>, vector<8x8xf32> -> vector<8x8xf32>
    %724 = arith.addf %723, %397 : vector<8x8xf32>
    %cst_252 = arith.constant dense<0xFF800000> : vector<8xf32>
    %725 = vector.multi_reduction <maximumf>, %724, %cst_252 [1] : vector<8x8xf32> to vector<8xf32>
    %726 = vector.shape_cast %725 : vector<8xf32> to vector<8x1xf32>
    %727 = vector.broadcast %726 : vector<8x1xf32> to vector<8x8xf32>
    %728 = arith.subf %724, %727 : vector<8x8xf32>
    %729 = math.exp %728 : vector<8x8xf32>
    %cst_253 = arith.constant dense<0.000000e+00> : vector<8xf32>
    %730 = vector.multi_reduction <add>, %729, %cst_253 [1] : vector<8x8xf32> to vector<8xf32>
    %731 = vector.shape_cast %730 : vector<8xf32> to vector<8x1xf32>
    %732 = tpu.reciprocal %731 {approx = true} : vector<8x1xf32> -> vector<8x1xf32>
    %733 = vector.broadcast %732 : vector<8x1xf32> to vector<8x8xf32>
    %734 = arith.mulf %729, %733 : vector<8x8xf32>
    %735 = arith.truncf %734 : vector<8x8xf32> to vector<8x8xbf16>
    %736 = vector.extract_strided_slice %703 {offsets = [0, 16], sizes = [8, 16], strides = [1, 1]} : vector<8x64xbf16> to vector<8x16xbf16>
    %cst_254 = arith.constant dense<0.000000e+00> : vector<8x16xf32>
    %737 = tpu.matmul %735, %736, %cst_254 {dimension_numbers = #tpu.dot_dimension_numbers<[1], [0], [0], [1], [0, 0, 1, 1], [], []>} : vector<8x8xbf16>, vector<8x16xbf16>, vector<8x16xf32> -> vector<8x16xf32>
    %738 = vector.extract_strided_slice %701 {offsets = [0, 32], sizes = [8, 16], strides = [1, 1]} : vector<8x64xbf16> to vector<8x16xbf16>
    %739 = vector.extract_strided_slice %702 {offsets = [0, 32], sizes = [8, 16], strides = [1, 1]} : vector<8x64xbf16> to vector<8x16xbf16>
    %cst_255 = arith.constant dense<0.000000e+00> : vector<8x8xf32>
    %740 = tpu.matmul %738, %739, %cst_255 {dimension_numbers = #tpu.dot_dimension_numbers<[1], [1], [0], [0], [0, 0, 1, 0], [], []>} : vector<8x16xbf16>, vector<8x16xbf16>, vector<8x8xf32> -> vector<8x8xf32>
    %741 = arith.addf %740, %397 : vector<8x8xf32>
    %cst_256 = arith.constant dense<0xFF800000> : vector<8xf32>
    %742 = vector.multi_reduction <maximumf>, %741, %cst_256 [1] : vector<8x8xf32> to vector<8xf32>
    %743 = vector.shape_cast %742 : vector<8xf32> to vector<8x1xf32>
    %744 = vector.broadcast %743 : vector<8x1xf32> to vector<8x8xf32>
    %745 = arith.subf %741, %744 : vector<8x8xf32>
    %746 = math.exp %745 : vector<8x8xf32>
    %cst_257 = arith.constant dense<0.000000e+00> : vector<8xf32>
    %747 = vector.multi_reduction <add>, %746, %cst_257 [1] : vector<8x8xf32> to vector<8xf32>
    %748 = vector.shape_cast %747 : vector<8xf32> to vector<8x1xf32>
    %749 = tpu.reciprocal %748 {approx = true} : vector<8x1xf32> -> vector<8x1xf32>
    %750 = vector.broadcast %749 : vector<8x1xf32> to vector<8x8xf32>
    %751 = arith.mulf %746, %750 : vector<8x8xf32>
    %752 = arith.truncf %751 : vector<8x8xf32> to vector<8x8xbf16>
    %753 = vector.extract_strided_slice %703 {offsets = [0, 32], sizes = [8, 16], strides = [1, 1]} : vector<8x64xbf16> to vector<8x16xbf16>
    %cst_258 = arith.constant dense<0.000000e+00> : vector<8x16xf32>
    %754 = tpu.matmul %752, %753, %cst_258 {dimension_numbers = #tpu.dot_dimension_numbers<[1], [0], [0], [1], [0, 0, 1, 1], [], []>} : vector<8x8xbf16>, vector<8x16xbf16>, vector<8x16xf32> -> vector<8x16xf32>
    %755 = vector.extract_strided_slice %701 {offsets = [0, 48], sizes = [8, 16], strides = [1, 1]} : vector<8x64xbf16> to vector<8x16xbf16>
    %756 = vector.extract_strided_slice %702 {offsets = [0, 48], sizes = [8, 16], strides = [1, 1]} : vector<8x64xbf16> to vector<8x16xbf16>
    %cst_259 = arith.constant dense<0.000000e+00> : vector<8x8xf32>
    %757 = tpu.matmul %755, %756, %cst_259 {dimension_numbers = #tpu.dot_dimension_numbers<[1], [1], [0], [0], [0, 0, 1, 0], [], []>} : vector<8x16xbf16>, vector<8x16xbf16>, vector<8x8xf32> -> vector<8x8xf32>
    %758 = arith.addf %757, %397 : vector<8x8xf32>
    %cst_260 = arith.constant dense<0xFF800000> : vector<8xf32>
    %759 = vector.multi_reduction <maximumf>, %758, %cst_260 [1] : vector<8x8xf32> to vector<8xf32>
    %760 = vector.shape_cast %759 : vector<8xf32> to vector<8x1xf32>
    %761 = vector.broadcast %760 : vector<8x1xf32> to vector<8x8xf32>
    %762 = arith.subf %758, %761 : vector<8x8xf32>
    %763 = math.exp %762 : vector<8x8xf32>
    %cst_261 = arith.constant dense<0.000000e+00> : vector<8xf32>
    %764 = vector.multi_reduction <add>, %763, %cst_261 [1] : vector<8x8xf32> to vector<8xf32>
    %765 = vector.shape_cast %764 : vector<8xf32> to vector<8x1xf32>
    %766 = tpu.reciprocal %765 {approx = true} : vector<8x1xf32> -> vector<8x1xf32>
    %767 = vector.broadcast %766 : vector<8x1xf32> to vector<8x8xf32>
    %768 = arith.mulf %763, %767 : vector<8x8xf32>
    %769 = arith.truncf %768 : vector<8x8xf32> to vector<8x8xbf16>
    %770 = vector.extract_strided_slice %703 {offsets = [0, 48], sizes = [8, 16], strides = [1, 1]} : vector<8x64xbf16> to vector<8x16xbf16>
    %cst_262 = arith.constant dense<0.000000e+00> : vector<8x16xf32>
    %771 = tpu.matmul %769, %770, %cst_262 {dimension_numbers = #tpu.dot_dimension_numbers<[1], [0], [0], [1], [0, 0, 1, 1], [], []>} : vector<8x8xbf16>, vector<8x16xbf16>, vector<8x16xf32> -> vector<8x16xf32>
    %772 = tpu.concatenate %720, %737, %754, %771 in 1 : vector<8x16xf32>, vector<8x16xf32>, vector<8x16xf32>, vector<8x16xf32> -> vector<8x64xf32>
    %773 = arith.truncf %772 : vector<8x64xf32> to vector<8x64xbf16>
    %cst_263 = arith.constant dense<0.000000e+00> : vector<8x64xf32>
    %774 = tpu.matmul %773, %693, %cst_263 {dimension_numbers = #tpu.dot_dimension_numbers<[1], [0], [0], [1], [0, 0, 1, 1], [], []>} : vector<8x64xbf16>, vector<64x64xbf16>, vector<8x64xf32> -> vector<8x64xf32>
    %775 = vector.broadcast %694 : vector<1x64xf32> to vector<8x64xf32>
    %776 = arith.addf %774, %775 : vector<8x64xf32>
    %777 = arith.addf %684, %776 : vector<8x64xf32>
    %778 = vector.extract_strided_slice %686 {offsets = [0, 0], sizes = [1, 64], strides = [1, 1]} : vector<9x64xf32> to vector<1x64xf32>
    %779 = vector.extract_strided_slice %686 {offsets = [1, 0], sizes = [1, 64], strides = [1, 1]} : vector<9x64xf32> to vector<1x64xf32>
    %cst_264 = arith.constant dense<0.000000e+00> : vector<8xf32>
    %780 = vector.multi_reduction <add>, %777, %cst_264 [1] : vector<8x64xf32> to vector<8xf32>
    %781 = vector.shape_cast %780 : vector<8xf32> to vector<8x1xf32>
    %cst_265 = arith.constant 6.400000e+01 : f32
    %782 = vector.broadcast %cst_265 : f32 to vector<8x1xf32>
    %783 = arith.divf %781, %782 : vector<8x1xf32>
    %784 = vector.broadcast %783 : vector<8x1xf32> to vector<8x64xf32>
    %785 = arith.subf %777, %784 : vector<8x64xf32>
    %786 = arith.mulf %785, %785 : vector<8x64xf32>
    %cst_266 = arith.constant dense<0.000000e+00> : vector<8xf32>
    %787 = vector.multi_reduction <add>, %786, %cst_266 [1] : vector<8x64xf32> to vector<8xf32>
    %788 = vector.shape_cast %787 : vector<8xf32> to vector<8x1xf32>
    %cst_267 = arith.constant 6.400000e+01 : f32
    %789 = vector.broadcast %cst_267 : f32 to vector<8x1xf32>
    %790 = arith.divf %788, %789 : vector<8x1xf32>
    %791 = vector.broadcast %783 : vector<8x1xf32> to vector<8x64xf32>
    %792 = arith.subf %777, %791 : vector<8x64xf32>
    %cst_268 = arith.constant 9.99999974E-6 : f32
    %793 = vector.broadcast %cst_268 : f32 to vector<8x1xf32>
    %794 = arith.addf %790, %793 : vector<8x1xf32>
    %795 = math.rsqrt %794 : vector<8x1xf32>
    %796 = vector.broadcast %795 : vector<8x1xf32> to vector<8x64xf32>
    %797 = arith.mulf %792, %796 : vector<8x64xf32>
    %798 = vector.broadcast %778 : vector<1x64xf32> to vector<8x64xf32>
    %799 = arith.mulf %797, %798 : vector<8x64xf32>
    %800 = vector.broadcast %779 : vector<1x64xf32> to vector<8x64xf32>
    %801 = arith.addf %799, %800 : vector<8x64xf32>
    %802 = arith.truncf %801 : vector<8x64xf32> to vector<8x64xbf16>
    %c1_269 = arith.constant 1 : index
    %c1_270 = arith.constant 1 : index
    %c0_271 = arith.constant 0 : index
    %c0_272 = arith.constant 0 : index
    %803 = vector.load %arg17[%c1_269, %c1_270, %c0_271, %c0_272] : memref<2x2x64x192xbf16, #tpu.memory_space<vmem>>, vector<1x1x64x192xbf16>
    %804 = vector.shape_cast %803 : vector<1x1x64x192xbf16> to vector<64x192xbf16>
    %c1_273 = arith.constant 1 : index
    %c1_274 = arith.constant 1 : index
    %c0_275 = arith.constant 0 : index
    %c0_276 = arith.constant 0 : index
    %805 = vector.load %arg18[%c1_273, %c1_274, %c0_275, %c0_276] : memref<2x2x1x192xf32, #tpu.memory_space<vmem>>, vector<1x1x1x192xf32>
    %806 = vector.shape_cast %805 : vector<1x1x1x192xf32> to vector<1x192xf32>
    %c1_277 = arith.constant 1 : index
    %c1_278 = arith.constant 1 : index
    %c0_279 = arith.constant 0 : index
    %c0_280 = arith.constant 0 : index
    %807 = vector.load %arg19[%c1_277, %c1_278, %c0_279, %c0_280] : memref<2x2x64x64xbf16, #tpu.memory_space<vmem>>, vector<1x1x64x64xbf16>
    %808 = vector.shape_cast %807 : vector<1x1x64x64xbf16> to vector<64x64xbf16>
    %809 = vector.extract_strided_slice %686 {offsets = [7, 0], sizes = [1, 64], strides = [1, 1]} : vector<9x64xf32> to vector<1x64xf32>
    %810 = vector.extract_strided_slice %804 {offsets = [0, 0], sizes = [64, 64], strides = [1, 1]} : vector<64x192xbf16> to vector<64x64xbf16>
    %cst_281 = arith.constant dense<0.000000e+00> : vector<8x64xf32>
    %811 = tpu.matmul %802, %810, %cst_281 {dimension_numbers = #tpu.dot_dimension_numbers<[1], [0], [0], [1], [0, 0, 1, 1], [], []>} : vector<8x64xbf16>, vector<64x64xbf16>, vector<8x64xf32> -> vector<8x64xf32>
    %812 = vector.extract_strided_slice %806 {offsets = [0, 0], sizes = [1, 64], strides = [1, 1]} : vector<1x192xf32> to vector<1x64xf32>
    %813 = vector.broadcast %812 : vector<1x64xf32> to vector<8x64xf32>
    %814 = arith.addf %811, %813 : vector<8x64xf32>
    %815 = vector.extract_strided_slice %804 {offsets = [0, 64], sizes = [64, 128], strides = [1, 1]} : vector<64x192xbf16> to vector<64x128xbf16>
    %cst_282 = arith.constant dense<0.000000e+00> : vector<18x128xf32>
    %816 = tpu.matmul %370, %815, %cst_282 {dimension_numbers = #tpu.dot_dimension_numbers<[1], [0], [0], [1], [0, 0, 1, 1], [], []>} : vector<18x64xbf16>, vector<64x128xbf16>, vector<18x128xf32> -> vector<18x128xf32>
    %817 = vector.extract_strided_slice %806 {offsets = [0, 64], sizes = [1, 128], strides = [1, 1]} : vector<1x192xf32> to vector<1x128xf32>
    %818 = vector.broadcast %817 : vector<1x128xf32> to vector<18x128xf32>
    %819 = arith.addf %816, %818 : vector<18x128xf32>
    %820 = vector.extract_strided_slice %819 {offsets = [0, 0], sizes = [18, 64], strides = [1, 1]} : vector<18x128xf32> to vector<18x64xf32>
    %821 = vector.extract_strided_slice %819 {offsets = [0, 64], sizes = [18, 64], strides = [1, 1]} : vector<18x128xf32> to vector<18x64xf32>
    %822 = arith.truncf %814 : vector<8x64xf32> to vector<8x64xbf16>
    %823 = arith.truncf %820 : vector<18x64xf32> to vector<18x64xbf16>
    %824 = arith.truncf %821 : vector<18x64xf32> to vector<18x64xbf16>
    %825 = vector.extract_strided_slice %822 {offsets = [0, 0], sizes = [8, 16], strides = [1, 1]} : vector<8x64xbf16> to vector<8x16xbf16>
    %826 = vector.extract_strided_slice %823 {offsets = [0, 0], sizes = [18, 16], strides = [1, 1]} : vector<18x64xbf16> to vector<18x16xbf16>
    %cst_283 = arith.constant dense<0.000000e+00> : vector<8x18xf32>
    %827 = tpu.matmul %825, %826, %cst_283 {dimension_numbers = #tpu.dot_dimension_numbers<[1], [1], [0], [0], [0, 0, 1, 0], [], []>} : vector<8x16xbf16>, vector<18x16xbf16>, vector<8x18xf32> -> vector<8x18xf32>
    %cst_284 = arith.constant dense<0xFF800000> : vector<8xf32>
    %828 = vector.multi_reduction <maximumf>, %827, %cst_284 [1] : vector<8x18xf32> to vector<8xf32>
    %829 = vector.shape_cast %828 : vector<8xf32> to vector<8x1xf32>
    %830 = vector.broadcast %829 : vector<8x1xf32> to vector<8x18xf32>
    %831 = arith.subf %827, %830 : vector<8x18xf32>
    %832 = math.exp %831 : vector<8x18xf32>
    %cst_285 = arith.constant dense<0.000000e+00> : vector<8xf32>
    %833 = vector.multi_reduction <add>, %832, %cst_285 [1] : vector<8x18xf32> to vector<8xf32>
    %834 = vector.shape_cast %833 : vector<8xf32> to vector<8x1xf32>
    %835 = tpu.reciprocal %834 {approx = true} : vector<8x1xf32> -> vector<8x1xf32>
    %836 = vector.broadcast %835 : vector<8x1xf32> to vector<8x18xf32>
    %837 = arith.mulf %832, %836 : vector<8x18xf32>
    %838 = arith.truncf %837 : vector<8x18xf32> to vector<8x18xbf16>
    %839 = vector.extract_strided_slice %824 {offsets = [0, 0], sizes = [18, 16], strides = [1, 1]} : vector<18x64xbf16> to vector<18x16xbf16>
    %cst_286 = arith.constant dense<0.000000e+00> : vector<8x16xf32>
    %840 = tpu.matmul %838, %839, %cst_286 {dimension_numbers = #tpu.dot_dimension_numbers<[1], [0], [0], [1], [0, 0, 1, 1], [], []>} : vector<8x18xbf16>, vector<18x16xbf16>, vector<8x16xf32> -> vector<8x16xf32>
    %841 = vector.extract_strided_slice %822 {offsets = [0, 16], sizes = [8, 16], strides = [1, 1]} : vector<8x64xbf16> to vector<8x16xbf16>
    %842 = vector.extract_strided_slice %823 {offsets = [0, 16], sizes = [18, 16], strides = [1, 1]} : vector<18x64xbf16> to vector<18x16xbf16>
    %cst_287 = arith.constant dense<0.000000e+00> : vector<8x18xf32>
    %843 = tpu.matmul %841, %842, %cst_287 {dimension_numbers = #tpu.dot_dimension_numbers<[1], [1], [0], [0], [0, 0, 1, 0], [], []>} : vector<8x16xbf16>, vector<18x16xbf16>, vector<8x18xf32> -> vector<8x18xf32>
    %cst_288 = arith.constant dense<0xFF800000> : vector<8xf32>
    %844 = vector.multi_reduction <maximumf>, %843, %cst_288 [1] : vector<8x18xf32> to vector<8xf32>
    %845 = vector.shape_cast %844 : vector<8xf32> to vector<8x1xf32>
    %846 = vector.broadcast %845 : vector<8x1xf32> to vector<8x18xf32>
    %847 = arith.subf %843, %846 : vector<8x18xf32>
    %848 = math.exp %847 : vector<8x18xf32>
    %cst_289 = arith.constant dense<0.000000e+00> : vector<8xf32>
    %849 = vector.multi_reduction <add>, %848, %cst_289 [1] : vector<8x18xf32> to vector<8xf32>
    %850 = vector.shape_cast %849 : vector<8xf32> to vector<8x1xf32>
    %851 = tpu.reciprocal %850 {approx = true} : vector<8x1xf32> -> vector<8x1xf32>
    %852 = vector.broadcast %851 : vector<8x1xf32> to vector<8x18xf32>
    %853 = arith.mulf %848, %852 : vector<8x18xf32>
    %854 = arith.truncf %853 : vector<8x18xf32> to vector<8x18xbf16>
    %855 = vector.extract_strided_slice %824 {offsets = [0, 16], sizes = [18, 16], strides = [1, 1]} : vector<18x64xbf16> to vector<18x16xbf16>
    %cst_290 = arith.constant dense<0.000000e+00> : vector<8x16xf32>
    %856 = tpu.matmul %854, %855, %cst_290 {dimension_numbers = #tpu.dot_dimension_numbers<[1], [0], [0], [1], [0, 0, 1, 1], [], []>} : vector<8x18xbf16>, vector<18x16xbf16>, vector<8x16xf32> -> vector<8x16xf32>
    %857 = vector.extract_strided_slice %822 {offsets = [0, 32], sizes = [8, 16], strides = [1, 1]} : vector<8x64xbf16> to vector<8x16xbf16>
    %858 = vector.extract_strided_slice %823 {offsets = [0, 32], sizes = [18, 16], strides = [1, 1]} : vector<18x64xbf16> to vector<18x16xbf16>
    %cst_291 = arith.constant dense<0.000000e+00> : vector<8x18xf32>
    %859 = tpu.matmul %857, %858, %cst_291 {dimension_numbers = #tpu.dot_dimension_numbers<[1], [1], [0], [0], [0, 0, 1, 0], [], []>} : vector<8x16xbf16>, vector<18x16xbf16>, vector<8x18xf32> -> vector<8x18xf32>
    %cst_292 = arith.constant dense<0xFF800000> : vector<8xf32>
    %860 = vector.multi_reduction <maximumf>, %859, %cst_292 [1] : vector<8x18xf32> to vector<8xf32>
    %861 = vector.shape_cast %860 : vector<8xf32> to vector<8x1xf32>
    %862 = vector.broadcast %861 : vector<8x1xf32> to vector<8x18xf32>
    %863 = arith.subf %859, %862 : vector<8x18xf32>
    %864 = math.exp %863 : vector<8x18xf32>
    %cst_293 = arith.constant dense<0.000000e+00> : vector<8xf32>
    %865 = vector.multi_reduction <add>, %864, %cst_293 [1] : vector<8x18xf32> to vector<8xf32>
    %866 = vector.shape_cast %865 : vector<8xf32> to vector<8x1xf32>
    %867 = tpu.reciprocal %866 {approx = true} : vector<8x1xf32> -> vector<8x1xf32>
    %868 = vector.broadcast %867 : vector<8x1xf32> to vector<8x18xf32>
    %869 = arith.mulf %864, %868 : vector<8x18xf32>
    %870 = arith.truncf %869 : vector<8x18xf32> to vector<8x18xbf16>
    %871 = vector.extract_strided_slice %824 {offsets = [0, 32], sizes = [18, 16], strides = [1, 1]} : vector<18x64xbf16> to vector<18x16xbf16>
    %cst_294 = arith.constant dense<0.000000e+00> : vector<8x16xf32>
    %872 = tpu.matmul %870, %871, %cst_294 {dimension_numbers = #tpu.dot_dimension_numbers<[1], [0], [0], [1], [0, 0, 1, 1], [], []>} : vector<8x18xbf16>, vector<18x16xbf16>, vector<8x16xf32> -> vector<8x16xf32>
    %873 = vector.extract_strided_slice %822 {offsets = [0, 48], sizes = [8, 16], strides = [1, 1]} : vector<8x64xbf16> to vector<8x16xbf16>
    %874 = vector.extract_strided_slice %823 {offsets = [0, 48], sizes = [18, 16], strides = [1, 1]} : vector<18x64xbf16> to vector<18x16xbf16>
    %cst_295 = arith.constant dense<0.000000e+00> : vector<8x18xf32>
    %875 = tpu.matmul %873, %874, %cst_295 {dimension_numbers = #tpu.dot_dimension_numbers<[1], [1], [0], [0], [0, 0, 1, 0], [], []>} : vector<8x16xbf16>, vector<18x16xbf16>, vector<8x18xf32> -> vector<8x18xf32>
    %cst_296 = arith.constant dense<0xFF800000> : vector<8xf32>
    %876 = vector.multi_reduction <maximumf>, %875, %cst_296 [1] : vector<8x18xf32> to vector<8xf32>
    %877 = vector.shape_cast %876 : vector<8xf32> to vector<8x1xf32>
    %878 = vector.broadcast %877 : vector<8x1xf32> to vector<8x18xf32>
    %879 = arith.subf %875, %878 : vector<8x18xf32>
    %880 = math.exp %879 : vector<8x18xf32>
    %cst_297 = arith.constant dense<0.000000e+00> : vector<8xf32>
    %881 = vector.multi_reduction <add>, %880, %cst_297 [1] : vector<8x18xf32> to vector<8xf32>
    %882 = vector.shape_cast %881 : vector<8xf32> to vector<8x1xf32>
    %883 = tpu.reciprocal %882 {approx = true} : vector<8x1xf32> -> vector<8x1xf32>
    %884 = vector.broadcast %883 : vector<8x1xf32> to vector<8x18xf32>
    %885 = arith.mulf %880, %884 : vector<8x18xf32>
    %886 = arith.truncf %885 : vector<8x18xf32> to vector<8x18xbf16>
    %887 = vector.extract_strided_slice %824 {offsets = [0, 48], sizes = [18, 16], strides = [1, 1]} : vector<18x64xbf16> to vector<18x16xbf16>
    %cst_298 = arith.constant dense<0.000000e+00> : vector<8x16xf32>
    %888 = tpu.matmul %886, %887, %cst_298 {dimension_numbers = #tpu.dot_dimension_numbers<[1], [0], [0], [1], [0, 0, 1, 1], [], []>} : vector<8x18xbf16>, vector<18x16xbf16>, vector<8x16xf32> -> vector<8x16xf32>
    %889 = tpu.concatenate %840, %856, %872, %888 in 1 : vector<8x16xf32>, vector<8x16xf32>, vector<8x16xf32>, vector<8x16xf32> -> vector<8x64xf32>
    %890 = arith.truncf %889 : vector<8x64xf32> to vector<8x64xbf16>
    %cst_299 = arith.constant dense<0.000000e+00> : vector<8x64xf32>
    %891 = tpu.matmul %890, %808, %cst_299 {dimension_numbers = #tpu.dot_dimension_numbers<[1], [0], [0], [1], [0, 0, 1, 1], [], []>} : vector<8x64xbf16>, vector<64x64xbf16>, vector<8x64xf32> -> vector<8x64xf32>
    %892 = vector.broadcast %809 : vector<1x64xf32> to vector<8x64xf32>
    %893 = arith.addf %891, %892 : vector<8x64xf32>
    %894 = arith.addf %801, %893 : vector<8x64xf32>
    %895 = vector.extract_strided_slice %686 {offsets = [2, 0], sizes = [1, 64], strides = [1, 1]} : vector<9x64xf32> to vector<1x64xf32>
    %896 = vector.extract_strided_slice %686 {offsets = [3, 0], sizes = [1, 64], strides = [1, 1]} : vector<9x64xf32> to vector<1x64xf32>
    %cst_300 = arith.constant dense<0.000000e+00> : vector<8xf32>
    %897 = vector.multi_reduction <add>, %894, %cst_300 [1] : vector<8x64xf32> to vector<8xf32>
    %898 = vector.shape_cast %897 : vector<8xf32> to vector<8x1xf32>
    %cst_301 = arith.constant 6.400000e+01 : f32
    %899 = vector.broadcast %cst_301 : f32 to vector<8x1xf32>
    %900 = arith.divf %898, %899 : vector<8x1xf32>
    %901 = vector.broadcast %900 : vector<8x1xf32> to vector<8x64xf32>
    %902 = arith.subf %894, %901 : vector<8x64xf32>
    %903 = arith.mulf %902, %902 : vector<8x64xf32>
    %cst_302 = arith.constant dense<0.000000e+00> : vector<8xf32>
    %904 = vector.multi_reduction <add>, %903, %cst_302 [1] : vector<8x64xf32> to vector<8xf32>
    %905 = vector.shape_cast %904 : vector<8xf32> to vector<8x1xf32>
    %cst_303 = arith.constant 6.400000e+01 : f32
    %906 = vector.broadcast %cst_303 : f32 to vector<8x1xf32>
    %907 = arith.divf %905, %906 : vector<8x1xf32>
    %908 = vector.broadcast %900 : vector<8x1xf32> to vector<8x64xf32>
    %909 = arith.subf %894, %908 : vector<8x64xf32>
    %cst_304 = arith.constant 9.99999974E-6 : f32
    %910 = vector.broadcast %cst_304 : f32 to vector<8x1xf32>
    %911 = arith.addf %907, %910 : vector<8x1xf32>
    %912 = math.rsqrt %911 : vector<8x1xf32>
    %913 = vector.broadcast %912 : vector<8x1xf32> to vector<8x64xf32>
    %914 = arith.mulf %909, %913 : vector<8x64xf32>
    %915 = vector.broadcast %895 : vector<1x64xf32> to vector<8x64xf32>
    %916 = arith.mulf %914, %915 : vector<8x64xf32>
    %917 = vector.broadcast %896 : vector<1x64xf32> to vector<8x64xf32>
    %918 = arith.addf %916, %917 : vector<8x64xf32>
    %919 = arith.truncf %918 : vector<8x64xf32> to vector<8x64xbf16>
    %c1_305 = arith.constant 1 : index
    %c0_306 = arith.constant 0 : index
    %c0_307 = arith.constant 0 : index
    %920 = vector.load %arg20[%c1_305, %c0_306, %c0_307] : memref<2x64x128xbf16, #tpu.memory_space<vmem>>, vector<1x64x128xbf16>
    %921 = vector.shape_cast %920 : vector<1x64x128xbf16> to vector<64x128xbf16>
    %c1_308 = arith.constant 1 : index
    %c0_309 = arith.constant 0 : index
    %c0_310 = arith.constant 0 : index
    %922 = vector.load %arg21[%c1_308, %c0_309, %c0_310] : memref<2x1x128xf32, #tpu.memory_space<vmem>>, vector<1x1x128xf32>
    %923 = vector.shape_cast %922 : vector<1x1x128xf32> to vector<1x128xf32>
    %c1_311 = arith.constant 1 : index
    %c0_312 = arith.constant 0 : index
    %c0_313 = arith.constant 0 : index
    %924 = vector.load %arg22[%c1_311, %c0_312, %c0_313] : memref<2x128x64xbf16, #tpu.memory_space<vmem>>, vector<1x128x64xbf16>
    %925 = vector.shape_cast %924 : vector<1x128x64xbf16> to vector<128x64xbf16>
    %926 = vector.extract_strided_slice %686 {offsets = [8, 0], sizes = [1, 64], strides = [1, 1]} : vector<9x64xf32> to vector<1x64xf32>
    %cst_314 = arith.constant dense<0.000000e+00> : vector<8x128xf32>
    %927 = tpu.matmul %919, %921, %cst_314 {dimension_numbers = #tpu.dot_dimension_numbers<[1], [0], [0], [1], [0, 0, 1, 1], [], []>} : vector<8x64xbf16>, vector<64x128xbf16>, vector<8x128xf32> -> vector<8x128xf32>
    %928 = vector.broadcast %923 : vector<1x128xf32> to vector<8x128xf32>
    %929 = arith.addf %927, %928 : vector<8x128xf32>
    %930 = arith.mulf %929, %929 : vector<8x128xf32>
    %931 = arith.mulf %929, %930 : vector<8x128xf32>
    %cst_315 = arith.constant 4.471500e-02 : f32
    %932 = vector.broadcast %cst_315 : f32 to vector<8x128xf32>
    %933 = arith.mulf %932, %931 : vector<8x128xf32>
    %934 = arith.addf %929, %933 : vector<8x128xf32>
    %cst_316 = arith.constant 0.797884583 : f32
    %935 = vector.broadcast %cst_316 : f32 to vector<8x128xf32>
    %936 = arith.mulf %935, %934 : vector<8x128xf32>
    %937 = math.tanh %936 : vector<8x128xf32>
    %cst_317 = arith.constant 1.000000e+00 : f32
    %938 = vector.broadcast %cst_317 : f32 to vector<8x128xf32>
    %939 = arith.addf %938, %937 : vector<8x128xf32>
    %cst_318 = arith.constant 5.000000e-01 : f32
    %940 = vector.broadcast %cst_318 : f32 to vector<8x128xf32>
    %941 = arith.mulf %940, %939 : vector<8x128xf32>
    %942 = arith.mulf %929, %941 : vector<8x128xf32>
    %943 = arith.truncf %942 : vector<8x128xf32> to vector<8x128xbf16>
    %cst_319 = arith.constant dense<0.000000e+00> : vector<8x64xf32>
    %944 = tpu.matmul %943, %925, %cst_319 {dimension_numbers = #tpu.dot_dimension_numbers<[1], [0], [0], [1], [0, 0, 1, 1], [], []>} : vector<8x128xbf16>, vector<128x64xbf16>, vector<8x64xf32> -> vector<8x64xf32>
    %945 = vector.broadcast %926 : vector<1x64xf32> to vector<8x64xf32>
    %946 = arith.addf %944, %945 : vector<8x64xf32>
    %947 = arith.addf %918, %946 : vector<8x64xf32>
    %948 = vector.extract_strided_slice %686 {offsets = [4, 0], sizes = [1, 64], strides = [1, 1]} : vector<9x64xf32> to vector<1x64xf32>
    %949 = vector.extract_strided_slice %686 {offsets = [5, 0], sizes = [1, 64], strides = [1, 1]} : vector<9x64xf32> to vector<1x64xf32>
    %cst_320 = arith.constant dense<0.000000e+00> : vector<8xf32>
    %950 = vector.multi_reduction <add>, %947, %cst_320 [1] : vector<8x64xf32> to vector<8xf32>
    %951 = vector.shape_cast %950 : vector<8xf32> to vector<8x1xf32>
    %cst_321 = arith.constant 6.400000e+01 : f32
    %952 = vector.broadcast %cst_321 : f32 to vector<8x1xf32>
    %953 = arith.divf %951, %952 : vector<8x1xf32>
    %954 = vector.broadcast %953 : vector<8x1xf32> to vector<8x64xf32>
    %955 = arith.subf %947, %954 : vector<8x64xf32>
    %956 = arith.mulf %955, %955 : vector<8x64xf32>
    %cst_322 = arith.constant dense<0.000000e+00> : vector<8xf32>
    %957 = vector.multi_reduction <add>, %956, %cst_322 [1] : vector<8x64xf32> to vector<8xf32>
    %958 = vector.shape_cast %957 : vector<8xf32> to vector<8x1xf32>
    %cst_323 = arith.constant 6.400000e+01 : f32
    %959 = vector.broadcast %cst_323 : f32 to vector<8x1xf32>
    %960 = arith.divf %958, %959 : vector<8x1xf32>
    %961 = vector.broadcast %953 : vector<8x1xf32> to vector<8x64xf32>
    %962 = arith.subf %947, %961 : vector<8x64xf32>
    %cst_324 = arith.constant 9.99999974E-6 : f32
    %963 = vector.broadcast %cst_324 : f32 to vector<8x1xf32>
    %964 = arith.addf %960, %963 : vector<8x1xf32>
    %965 = math.rsqrt %964 : vector<8x1xf32>
    %966 = vector.broadcast %965 : vector<8x1xf32> to vector<8x64xf32>
    %967 = arith.mulf %962, %966 : vector<8x64xf32>
    %968 = vector.broadcast %948 : vector<1x64xf32> to vector<8x64xf32>
    %969 = arith.mulf %967, %968 : vector<8x64xf32>
    %970 = vector.broadcast %949 : vector<1x64xf32> to vector<8x64xf32>
    %971 = arith.addf %969, %970 : vector<8x64xf32>
    %c0_325 = arith.constant 0 : index
    %c0_326 = arith.constant 0 : index
    %c0_327 = arith.constant 0 : index
    %972 = vector.load %arg23[%c0_325, %c0_326, %c0_327] : memref<1x8x64xf32, #tpu.memory_space<vmem>>, vector<1x8x64xf32>
    %973 = vector.shape_cast %972 : vector<1x8x64xf32> to vector<8x64xf32>
    %974 = vector.shape_cast %971 : vector<8x64xf32> to vector<1x8x64xf32>
    tpu.vector_store %arg23[%c0_325, %c0_326, %c0_327], %974 {strides = array<i32>} : memref<1x8x64xf32, #tpu.memory_space<vmem>>, vector<1x8x64xf32>,
    return
  }
  func.func @transform_0(%arg0: i32) -> (i32, i32, i32) {
    %c0_i32 = arith.constant 0 : i32
    %c0_i32_0 = arith.constant 0 : i32
    %c0_i32_1 = arith.constant 0 : i32
    return %arg0, %c0_i32, %c0_i32_0 : i32, i32, i32
  }
  func.func @transform_1(%arg0: i32) -> (i32, i32) {
    %c0_i32 = arith.constant 0 : i32
    %c0_i32_0 = arith.constant 0 : i32
    %c0_i32_1 = arith.constant 0 : i32
    return %c0_i32, %c0_i32_0 : i32, i32
  }
  func.func @transform_2(%arg0: i32) -> (i32, i32) {
    %c0_i32 = arith.constant 0 : i32
    %c0_i32_0 = arith.constant 0 : i32
    %c0_i32_1 = arith.constant 0 : i32
    return %c0_i32, %c0_i32_0 : i32, i32
  }
  func.func @transform_3(%arg0: i32) -> (i32, i32, i32) {
    %c0_i32 = arith.constant 0 : i32
    %c0_i32_0 = arith.constant 0 : i32
    %c0_i32_1 = arith.constant 0 : i32
    %c0_i32_2 = arith.constant 0 : i32
    return %c0_i32, %c0_i32_0, %c0_i32_1 : i32, i32, i32
  }
  func.func @transform_4(%arg0: i32) -> (i32, i32, i32) {
    %c0_i32 = arith.constant 0 : i32
    %c0_i32_0 = arith.constant 0 : i32
    %c0_i32_1 = arith.constant 0 : i32
    %c0_i32_2 = arith.constant 0 : i32
    return %c0_i32, %c0_i32_0, %c0_i32_1 : i32, i32, i32
  }
  func.func @transform_5(%arg0: i32) -> (i32, i32, i32) {
    %c0_i32 = arith.constant 0 : i32
    %c0_i32_0 = arith.constant 0 : i32
    %c0_i32_1 = arith.constant 0 : i32
    %c0_i32_2 = arith.constant 0 : i32
    return %c0_i32, %c0_i32_0, %c0_i32_1 : i32, i32, i32
  }
  func.func @transform_6(%arg0: i32) -> (i32, i32, i32) {
    %c0_i32 = arith.constant 0 : i32
    %c0_i32_0 = arith.constant 0 : i32
    %c0_i32_1 = arith.constant 0 : i32
    %c0_i32_2 = arith.constant 0 : i32
    return %c0_i32, %c0_i32_0, %c0_i32_1 : i32, i32, i32
  }
  func.func @transform_7(%arg0: i32) -> (i32, i32, i32) {
    %c0_i32 = arith.constant 0 : i32
    %c0_i32_0 = arith.constant 0 : i32
    %c0_i32_1 = arith.constant 0 : i32
    %c0_i32_2 = arith.constant 0 : i32
    return %c0_i32, %c0_i32_0, %c0_i32_1 : i32, i32, i32
  }
  func.func @transform_8(%arg0: i32) -> (i32, i32, i32) {
    %c0_i32 = arith.constant 0 : i32
    %c0_i32_0 = arith.constant 0 : i32
    %c0_i32_1 = arith.constant 0 : i32
    %c0_i32_2 = arith.constant 0 : i32
    return %c0_i32, %c0_i32_0, %c0_i32_1 : i32, i32, i32
  }
  func.func @transform_9(%arg0: i32) -> (i32, i32, i32) {
    %c0_i32 = arith.constant 0 : i32
    %c0_i32_0 = arith.constant 0 : i32
    %c0_i32_1 = arith.constant 0 : i32
    %c0_i32_2 = arith.constant 0 : i32
    return %c0_i32, %c0_i32_0, %c0_i32_1 : i32, i32, i32
  }
  func.func @transform_10(%arg0: i32) -> (i32, i32) {
    %c0_i32 = arith.constant 0 : i32
    %c0_i32_0 = arith.constant 0 : i32
    %c0_i32_1 = arith.constant 0 : i32
    return %c0_i32, %c0_i32_0 : i32, i32
  }
  func.func @transform_11(%arg0: i32) -> (i32, i32) {
    %c0_i32 = arith.constant 0 : i32
    %c0_i32_0 = arith.constant 0 : i32
    %c0_i32_1 = arith.constant 0 : i32
    return %c0_i32, %c0_i32_0 : i32, i32
  }
  func.func @transform_12(%arg0: i32) -> (i32, i32, i32) {
    %c0_i32 = arith.constant 0 : i32
    %c0_i32_0 = arith.constant 0 : i32
    %c0_i32_1 = arith.constant 0 : i32
    return %arg0, %c0_i32, %c0_i32_0 : i32, i32, i32
  }
  func.func @transform_13(%arg0: i32) -> (i32, i32) {
    %c0_i32 = arith.constant 0 : i32
    %c0_i32_0 = arith.constant 0 : i32
    %c0_i32_1 = arith.constant 0 : i32
    return %c0_i32, %c0_i32_0 : i32, i32
  }
  func.func @transform_14(%arg0: i32) -> (i32, i32) {
    %c0_i32 = arith.constant 0 : i32
    %c0_i32_0 = arith.constant 0 : i32
    %c0_i32_1 = arith.constant 0 : i32
    return %c0_i32, %c0_i32_0 : i32, i32
  }
  func.func @transform_15(%arg0: i32) -> (i32, i32, i32) {
    %c0_i32 = arith.constant 0 : i32
    %c0_i32_0 = arith.constant 0 : i32
    %c0_i32_1 = arith.constant 0 : i32
    %c0_i32_2 = arith.constant 0 : i32
    return %c0_i32, %c0_i32_0, %c0_i32_1 : i32, i32, i32
  }
  func.func @transform_16(%arg0: i32) -> (i32, i32, i32, i32) {
    %c0_i32 = arith.constant 0 : i32
    %c0_i32_0 = arith.constant 0 : i32
    %c0_i32_1 = arith.constant 0 : i32
    %c0_i32_2 = arith.constant 0 : i32
    %c0_i32_3 = arith.constant 0 : i32
    return %c0_i32, %c0_i32_0, %c0_i32_1, %c0_i32_2 : i32, i32, i32, i32
  }
  func.func @transform_17(%arg0: i32) -> (i32, i32, i32, i32) {
    %c0_i32 = arith.constant 0 : i32
    %c0_i32_0 = arith.constant 0 : i32
    %c0_i32_1 = arith.constant 0 : i32
    %c0_i32_2 = arith.constant 0 : i32
    %c0_i32_3 = arith.constant 0 : i32
    return %c0_i32, %c0_i32_0, %c0_i32_1, %c0_i32_2 : i32, i32, i32, i32
  }
  func.func @transform_18(%arg0: i32) -> (i32, i32, i32, i32) {
    %c0_i32 = arith.constant 0 : i32
    %c0_i32_0 = arith.constant 0 : i32
    %c0_i32_1 = arith.constant 0 : i32
    %c0_i32_2 = arith.constant 0 : i32
    %c0_i32_3 = arith.constant 0 : i32
    return %c0_i32, %c0_i32_0, %c0_i32_1, %c0_i32_2 : i32, i32, i32, i32
  }
  func.func @transform_19(%arg0: i32) -> (i32, i32, i32) {
    %c0_i32 = arith.constant 0 : i32
    %c0_i32_0 = arith.constant 0 : i32
    %c0_i32_1 = arith.constant 0 : i32
    %c0_i32_2 = arith.constant 0 : i32
    return %c0_i32, %c0_i32_0, %c0_i32_1 : i32, i32, i32
  }
  func.func @transform_20(%arg0: i32) -> (i32, i32, i32) {
    %c0_i32 = arith.constant 0 : i32
    %c0_i32_0 = arith.constant 0 : i32
    %c0_i32_1 = arith.constant 0 : i32
    %c0_i32_2 = arith.constant 0 : i32
    return %c0_i32, %c0_i32_0, %c0_i32_1 : i32, i32, i32
  }
  func.func @transform_21(%arg0: i32) -> (i32, i32, i32) {
    %c0_i32 = arith.constant 0 : i32
    %c0_i32_0 = arith.constant 0 : i32
    %c0_i32_1 = arith.constant 0 : i32
    %c0_i32_2 = arith.constant 0 : i32
    return %c0_i32, %c0_i32_0, %c0_i32_1 : i32, i32, i32
  }
  func.func @transform_22(%arg0: i32) -> (i32, i32, i32) {
    %c0_i32 = arith.constant 0 : i32
    %c0_i32_0 = arith.constant 0 : i32
    %c0_i32_1 = arith.constant 0 : i32
    return %arg0, %c0_i32, %c0_i32_0 : i32, i32, i32
  }
}

</mosaic_0001>

<llo_original>
// kernel: transformer_ocr_forward.1
$region0: #{transformer_ocr_forward.1}
  #allocation0 [shape = 'u32[]', space=smem, size = 0x4, offset = 0x4, fixed_abs, tag = 'smem constant byte address 0x4 - core index']
  #allocation1 [shape = 'u32[144,128]{1,0:T(1,128)}', space=vmem, size = 0x12000, scoped, tag = 'internal scratch']
  %s0 = inlined_call_operand.vmem [shape: bf16[2,18,48], index: 0, kind: input, shape index: {}]
  %s1 = inlined_call_operand.vmem [shape: bf16[48,32], index: 1, kind: input, shape index: {}]
  %s2 = inlined_call_operand.vmem [shape: f32[18,32], index: 2, kind: input, shape index: {}]
  %s3 = inlined_call_operand.vmem [shape: f32[2,6,32], index: 3, kind: input, shape index: {}]
  %s4 = inlined_call_operand.vmem [shape: bf16[2,32,96], index: 4, kind: input, shape index: {}]
  %s5 = inlined_call_operand.vmem [shape: f32[2,1,96], index: 5, kind: input, shape index: {}]
  %s6 = inlined_call_operand.vmem [shape: bf16[2,32,32], index: 6, kind: input, shape index: {}]
  %s7 = inlined_call_operand.vmem [shape: bf16[2,32,64], index: 7, kind: input, shape index: {}]
  %s8 = inlined_call_operand.vmem [shape: f32[2,1,64], index: 8, kind: input, shape index: {}]
  %s9 = inlined_call_operand.vmem [shape: bf16[2,64,32], index: 9, kind: input, shape index: {}]
  %s10 = inlined_call_operand.vmem [shape: f32[2,32], index: 10, kind: input, shape index: {}]
  %s11 = inlined_call_operand.vmem [shape: bf16[32,64], index: 11, kind: input, shape index: {}]
  %s12 = inlined_call_operand.vmem [shape: f32[2,8,64], index: 12, kind: input, shape index: {}]
  %s13 = inlined_call_operand.vmem [shape: f32[8,8], index: 13, kind: input, shape index: {}]
  %s14 = inlined_call_operand.vmem [shape: f32[3,64], index: 14, kind: input, shape index: {}]
  %s15 = inlined_call_operand.vmem [shape: f32[2,9,64], index: 15, kind: input, shape index: {}]
  %s16 = inlined_call_operand.vmem [shape: bf16[2,2,64,192], index: 16, kind: input, shape index: {}]
  %s17 = inlined_call_operand.vmem [shape: f32[2,2,1,192], index: 17, kind: input, shape index: {}]
  %s18 = inlined_call_operand.vmem [shape: bf16[2,2,64,64], index: 18, kind: input, shape index: {}]
  %s19 = inlined_call_operand.vmem [shape: bf16[2,64,128], index: 19, kind: input, shape index: {}]
  %s20 = inlined_call_operand.vmem [shape: f32[2,1,128], index: 20, kind: input, shape index: {}]
  %s21 = inlined_call_operand.vmem [shape: bf16[2,128,64], index: 21, kind: input, shape index: {}]
  %s22 = inlined_call_operand.hbm [shape: f32[2,8,64], index: 22, kind: output, shape index: {}]
  %s23 = sld [smem:[#allocation0]]
  $region121: #{transformer_ocr_forward.1} parent=0
    _
  %s25 = ssub.s32 1, %s23
  %s26 = scalar_select 0, %s25, %s23
  $region1: #{transformer_ocr_forward.1} parent=0
    #allocation2 [shape = 'u8[8192]{0}', space=vmem, size = 0x2000, scoped, tag = 'output window, operand 0']
    #allocation3 [shape = 's32[2]{0}', space=sflag, size = 0x8, scoped, tag = 'scoped memory for transformer_ocr_forward.1']
    %27 = vsyncpa [#allocation3], 0
    %s28 = scalar_lea.sflag [#allocation3], 1
    %29 = vsyncpa %s28, 0
    loop: start=0, step=1, limit=4
    $region2: #{transformer_ocr_forward.1} parent=1 // loop_pre_header
      _
    $region3: #{transformer_ocr_forward.1} parent=1 // loop_header
      %s31 = sphi 0, %s35
      %p32 = scmp.ge.s32.totalorder %s31, 4
      %s41 = sphi 0, %s43
      %s44 = sphi 0, %s41
      %s45 = sphi 0, %s44
      %s61 = sphi 0, %s45
      %s65 = sphi 0, %s65
      %s67 = sphi 0, %s65
      %s68 = sphi 0, %s67
      %s82 = sphi 0, %s68
      %s86 = sphi 0, %s86
      %s88 = sphi 0, %s86
      %s89 = sphi 0, %s88
      %s103 = sphi 0, %s89
      %s107 = sphi 0, %s107
      %s109 = sphi 0, %s107
      %s110 = sphi 0, %s109
      %s124 = sphi 0, %s110
      %s128 = sphi 0, %s128
      %s130 = sphi 0, %s128
      %s131 = sphi 0, %s130
      %s145 = sphi 0, %s131
      %s149 = sphi 0, %s149
      %s151 = sphi 0, %s149
      %s152 = sphi 0, %s151
      %s166 = sphi 0, %s152
      %s170 = sphi 0, %s170
      %s172 = sphi 0, %s170
      %s173 = sphi 0, %s172
      %s187 = sphi 0, %s173
      %s191 = sphi 0, %s191
      %s193 = sphi 0, %s191
      %s194 = sphi 0, %s193
      %s208 = sphi 0, %s194
      %s212 = sphi 0, %s212
      %s214 = sphi 0, %s212
      %s215 = sphi 0, %s214
      %s229 = sphi 0, %s215
      %s233 = sphi 0, %s233
      %s235 = sphi 0, %s233
      %s236 = sphi 0, %s235
      %s250 = sphi 0, %s236
      %s254 = sphi 0, %s254
      %s256 = sphi 0, %s254
      %s257 = sphi 0, %s256
      %s271 = sphi 0, %s257
      %s275 = sphi 0, %s275
      %s277 = sphi 0, %s275
      %s278 = sphi 0, %s277
      %s292 = sphi 0, %s278
      %s298 = sphi 0, %s300
      %s301 = sphi 0, %s298
      %s302 = sphi 0, %s301
      %s318 = sphi 0, %s302
      %s322 = sphi 0, %s322
      %s324 = sphi 0, %s322
      %s325 = sphi 0, %s324
      %s339 = sphi 0, %s325
      %s343 = sphi 0, %s343
      %s345 = sphi 0, %s343
      %s346 = sphi 0, %s345
      %s360 = sphi 0, %s346
      %s364 = sphi 0, %s364
      %s366 = sphi 0, %s364
      %s367 = sphi 0, %s366
      %s381 = sphi 0, %s367
      %s385 = sphi 0, %s385
      %s387 = sphi 0, %s385
      %s388 = sphi 0, %s387
      %s402 = sphi 0, %s388
      %s406 = sphi 0, %s406
      %s408 = sphi 0, %s406
      %s409 = sphi 0, %s408
      %s423 = sphi 0, %s409
      %s427 = sphi 0, %s427
      %s429 = sphi 0, %s427
      %s430 = sphi 0, %s429
      %s444 = sphi 0, %s430
      %s448 = sphi 0, %s448
      %s450 = sphi 0, %s448
      %s451 = sphi 0, %s450
      %s465 = sphi 0, %s451
      %s469 = sphi 0, %s469
      %s471 = sphi 0, %s469
      %s472 = sphi 0, %s471
      %s486 = sphi 0, %s472
      %s490 = sphi 0, %s490
      %s492 = sphi 0, %s490
      %s493 = sphi 0, %s492
      %s507 = sphi 0, %s493
      %s513 = sphi 0, %s515
      %s516 = sphi 0, %s513
      %s517 = sphi 0, %s516
      %s533 = sphi 0, %s517
    $region4: #{transformer_ocr_forward.1} parent=1 // loop_header_branch
      %34 = sbr.rel (%p32) target = $region8
    $region5: #{transformer_ocr_forward.1} parent=1 // loop_body
      %s36 = ssub.s32 %s31, 1
      %s37 = ssub.s32 %s31, 2
      %s38 = sadd.s32 %s31, 1
      %s39 = ssub.s32 %s31, %s38
      %p40 = scmp.eq.s32.totalorder %s39, 0
      %s42 = sadd.s32 %s41, 1
      %s43 = scalar_select %p40, %s41, %s42
      %p46 = pneg %p40
      %p47 = scmp.eq.s32.totalorder %s31, 1
      %p48 = por %p46, %p47
      %p49 = scmp.ne.s32.totalorder %s41, %s44
      %p50 = scmp.eq.s32.totalorder %s31, 0
      %p51 = por %p49, %p50
      %p52 = scmp.ne.s32.totalorder %s41, %s44
      %p53 = scmp.eq.s32.totalorder %s36, 1
      %p54 = por %p52, %p53
      %p55 = scmp.ne.s32.totalorder %s44, %s45
      %p56 = scmp.eq.s32.totalorder %s36, 0
      %p57 = por %p55, %p56
      %p58 = scmp.ne.s32.totalorder %s44, %s45
      %p59 = scmp.eq.s32.totalorder %s37, 1
      %p60 = por %p58, %p59
      %p62 = scmp.ne.s32.totalorder %s45, %s61
      %p63 = scmp.eq.s32.totalorder %s37, 0
      %p64 = por %p62, %p63
      %s66 = sadd.s32 %s65, 1
      %p69 = scmp.eq.s32.totalorder %s31, 1
      %p70 = scmp.ne.s32.totalorder %s65, %s67
      %p71 = scmp.eq.s32.totalorder %s31, 0
      %p72 = por %p70, %p71
      %p73 = scmp.ne.s32.totalorder %s65, %s67
      %p74 = scmp.eq.s32.totalorder %s36, 1
      %p75 = por %p73, %p74
      %p76 = scmp.ne.s32.totalorder %s67, %s68
      %p77 = scmp.eq.s32.totalorder %s36, 0
      %p78 = por %p76, %p77
      %p79 = scmp.ne.s32.totalorder %s67, %s68
      %p80 = scmp.eq.s32.totalorder %s37, 1
      %p81 = por %p79, %p80
      %p83 = scmp.ne.s32.totalorder %s68, %s82
      %p84 = scmp.eq.s32.totalorder %s37, 0
      %p85 = por %p83, %p84
      %s87 = sadd.s32 %s86, 1
      %p90 = scmp.eq.s32.totalorder %s31, 1
      %p91 = scmp.ne.s32.totalorder %s86, %s88
      %p92 = scmp.eq.s32.totalorder %s31, 0
      %p93 = por %p91, %p92
      %p94 = scmp.ne.s32.totalorder %s86, %s88
      %p95 = scmp.eq.s32.totalorder %s36, 1
      %p96 = por %p94, %p95
      %p97 = scmp.ne.s32.totalorder %s88, %s89
      %p98 = scmp.eq.s32.totalorder %s36, 0
      %p99 = por %p97, %p98
      %p100 = scmp.ne.s32.totalorder %s88, %s89
      %p101 = scmp.eq.s32.totalorder %s37, 1
      %p102 = por %p100, %p101
      %p104 = scmp.ne.s32.totalorder %s89, %s103
      %p105 = scmp.eq.s32.totalorder %s37, 0
      %p106 = por %p104, %p105
      %s108 = sadd.s32 %s107, 1
      %p111 = scmp.eq.s32.totalorder %s31, 1
      %p112 = scmp.ne.s32.totalorder %s107, %s109
      %p113 = scmp.eq.s32.totalorder %s31, 0
      %p114 = por %p112, %p113
      %p115 = scmp.ne.s32.totalorder %s107, %s109
      %p116 = scmp.eq.s32.totalorder %s36, 1
      %p117 = por %p115, %p116
      %p118 = scmp.ne.s32.totalorder %s109, %s110
      %p119 = scmp.eq.s32.totalorder %s36, 0
      %p120 = por %p118, %p119
      %p121 = scmp.ne.s32.totalorder %s109, %s110
      %p122 = scmp.eq.s32.totalorder %s37, 1
      %p123 = por %p121, %p122
      %p125 = scmp.ne.s32.totalorder %s110, %s124
      %p126 = scmp.eq.s32.totalorder %s37, 0
      %p127 = por %p125, %p126
      %s129 = sadd.s32 %s128, 1
      %p132 = scmp.eq.s32.totalorder %s31, 1
      %p133 = scmp.ne.s32.totalorder %s128, %s130
      %p134 = scmp.eq.s32.totalorder %s31, 0
      %p135 = por %p133, %p134
      %p136 = scmp.ne.s32.totalorder %s128, %s130
      %p137 = scmp.eq.s32.totalorder %s36, 1
      %p138 = por %p136, %p137
      %p139 = scmp.ne.s32.totalorder %s130, %s131
      %p140 = scmp.eq.s32.totalorder %s36, 0
      %p141 = por %p139, %p140
      %p142 = scmp.ne.s32.totalorder %s130, %s131
      %p143 = scmp.eq.s32.totalorder %s37, 1
      %p144 = por %p142, %p143
      %p146 = scmp.ne.s32.totalorder %s131, %s145
      %p147 = scmp.eq.s32.totalorder %s37, 0
      %p148 = por %p146, %p147
      %s150 = sadd.s32 %s149, 1
      %p153 = scmp.eq.s32.totalorder %s31, 1
      %p154 = scmp.ne.s32.totalorder %s149, %s151
      %p155 = scmp.eq.s32.totalorder %s31, 0
      %p156 = por %p154, %p155
      %p157 = scmp.ne.s32.totalorder %s149, %s151
      %p158 = scmp.eq.s32.totalorder %s36, 1
      %p159 = por %p157, %p158
      %p160 = scmp.ne.s32.totalorder %s151, %s152
      %p161 = scmp.eq.s32.totalorder %s36, 0
      %p162 = por %p160, %p161
      %p163 = scmp.ne.s32.totalorder %s151, %s152
      %p164 = scmp.eq.s32.totalorder %s37, 1
      %p165 = por %p163, %p164
      %p167 = scmp.ne.s32.totalorder %s152, %s166
      %p168 = scmp.eq.s32.totalorder %s37, 0
      %p169 = por %p167, %p168
      %s171 = sadd.s32 %s170, 1
      %p174 = scmp.eq.s32.totalorder %s31, 1
      %p175 = scmp.ne.s32.totalorder %s170, %s172
      %p176 = scmp.eq.s32.totalorder %s31, 0
      %p177 = por %p175, %p176
      %p178 = scmp.ne.s32.totalorder %s170, %s172
      %p179 = scmp.eq.s32.totalorder %s36, 1
      %p180 = por %p178, %p179
      %p181 = scmp.ne.s32.totalorder %s172, %s173
      %p182 = scmp.eq.s32.totalorder %s36, 0
      %p183 = por %p181, %p182
      %p184 = scmp.ne.s32.totalorder %s172, %s173
      %p185 = scmp.eq.s32.totalorder %s37, 1
      %p186 = por %p184, %p185
      %p188 = scmp.ne.s32.totalorder %s173, %s187
      %p189 = scmp.eq.s32.totalorder %s37, 0
      %p190 = por %p188, %p189
      %s192 = sadd.s32 %s191, 1
      %p195 = scmp.eq.s32.totalorder %s31, 1
      %p196 = scmp.ne.s32.totalorder %s191, %s193
      %p197 = scmp.eq.s32.totalorder %s31, 0
      %p198 = por %p196, %p197
      %p199 = scmp.ne.s32.totalorder %s191, %s193
      %p200 = scmp.eq.s32.totalorder %s36, 1
      %p201 = por %p199, %p200
      %p202 = scmp.ne.s32.totalorder %s193, %s194
      %p203 = scmp.eq.s32.totalorder %s36, 0
      %p204 = por %p202, %p203
      %p205 = scmp.ne.s32.totalorder %s193, %s194
      %p206 = scmp.eq.s32.totalorder %s37, 1
      %p207 = por %p205, %p206
      %p209 = scmp.ne.s32.totalorder %s194, %s208
      %p210 = scmp.eq.s32.totalorder %s37, 0
      %p211 = por %p209, %p210
      %s213 = sadd.s32 %s212, 1
      %p216 = scmp.eq.s32.totalorder %s31, 1
      %p217 = scmp.ne.s32.totalorder %s212, %s214
      %p218 = scmp.eq.s32.totalorder %s31, 0
      %p219 = por %p217, %p218
      %p220 = scmp.ne.s32.totalorder %s212, %s214
      %p221 = scmp.eq.s32.totalorder %s36, 1
      %p222 = por %p220, %p221
      %p223 = scmp.ne.s32.totalorder %s214, %s215
      %p224 = scmp.eq.s32.totalorder %s36, 0
      %p225 = por %p223, %p224
      %p226 = scmp.ne.s32.totalorder %s214, %s215
      %p227 = scmp.eq.s32.totalorder %s37, 1
      %p228 = por %p226, %p227
      %p230 = scmp.ne.s32.totalorder %s215, %s229
      %p231 = scmp.eq.s32.totalorder %s37, 0
      %p232 = por %p230, %p231
      %s234 = sadd.s32 %s233, 1
      %p237 = scmp.eq.s32.totalorder %s31, 1
      %p238 = scmp.ne.s32.totalorder %s233, %s235
      %p239 = scmp.eq.s32.totalorder %s31, 0
      %p240 = por %p238, %p239
      %p241 = scmp.ne.s32.totalorder %s233, %s235
      %p242 = scmp.eq.s32.totalorder %s36, 1
      %p243 = por %p241, %p242
      %p244 = scmp.ne.s32.totalorder %s235, %s236
      %p245 = scmp.eq.s32.totalorder %s36, 0
      %p246 = por %p244, %p245
      %p247 = scmp.ne.s32.totalorder %s235, %s236
      %p248 = scmp.eq.s32.totalorder %s37, 1
      %p249 = por %p247, %p248
      %p251 = scmp.ne.s32.totalorder %s236, %s250
      %p252 = scmp.eq.s32.totalorder %s37, 0
      %p253 = por %p251, %p252
      %s255 = sadd.s32 %s254, 1
      %p258 = scmp.eq.s32.totalorder %s31, 1
      %p259 = scmp.ne.s32.totalorder %s254, %s256
      %p260 = scmp.eq.s32.totalorder %s31, 0
      %p261 = por %p259, %p260
      %p262 = scmp.ne.s32.totalorder %s254, %s256
      %p263 = scmp.eq.s32.totalorder %s36, 1
      %p264 = por %p262, %p263
      %p265 = scmp.ne.s32.totalorder %s256, %s257
      %p266 = scmp.eq.s32.totalorder %s36, 0
      %p267 = por %p265, %p266
      %p268 = scmp.ne.s32.totalorder %s256, %s257
      %p269 = scmp.eq.s32.totalorder %s37, 1
      %p270 = por %p268, %p269
      %p272 = scmp.ne.s32.totalorder %s257, %s271
      %p273 = scmp.eq.s32.totalorder %s37, 0
      %p274 = por %p272, %p273
      %s276 = sadd.s32 %s275, 1
      %p279 = scmp.eq.s32.totalorder %s31, 1
      %p280 = scmp.ne.s32.totalorder %s275, %s277
      %p281 = scmp.eq.s32.totalorder %s31, 0
      %p282 = por %p280, %p281
      %p283 = scmp.ne.s32.totalorder %s275, %s277
      %p284 = scmp.eq.s32.totalorder %s36, 1
      %p285 = por %p283, %p284
      %p286 = scmp.ne.s32.totalorder %s277, %s278
      %p287 = scmp.eq.s32.totalorder %s36, 0
      %p288 = por %p286, %p287
      %p289 = scmp.ne.s32.totalorder %s277, %s278
      %p290 = scmp.eq.s32.totalorder %s37, 1
      %p291 = por %p289, %p290
      %p293 = scmp.ne.s32.totalorder %s278, %s292
      %p294 = scmp.eq.s32.totalorder %s37, 0
      %p295 = por %p293, %p294
      %s296 = ssub.s32 %s31, %s38
      %p297 = scmp.eq.s32.totalorder %s296, 0
      %s299 = sadd.s32 %s298, 1
      %s300 = scalar_select %p297, %s298, %s299
      %p303 = pneg %p297
      %p304 = scmp.eq.s32.totalorder %s31, 1
      %p305 = por %p303, %p304
      %p306 = scmp.ne.s32.totalorder %s298, %s301
      %p307 = scmp.eq.s32.totalorder %s31, 0
      %p308 = por %p306, %p307
      %p309 = scmp.ne.s32.totalorder %s298, %s301
      %p310 = scmp.eq.s32.totalorder %s36, 1
      %p311 = por %p309, %p310
      %p312 = scmp.ne.s32.totalorder %s301, %s302
      %p313 = scmp.eq.s32.totalorder %s36, 0
      %p314 = por %p312, %p313
      %p315 = scmp.ne.s32.totalorder %s301, %s302
      %p316 = scmp.eq.s32.totalorder %s37, 1
      %p317 = por %p315, %p316
      %p319 = scmp.ne.s32.totalorder %s302, %s318
      %p320 = scmp.eq.s32.totalorder %s37, 0
      %p321 = por %p319, %p320
      %s323 = sadd.s32 %s322, 1
      %p326 = scmp.eq.s32.totalorder %s31, 1
      %p327 = scmp.ne.s32.totalorder %s322, %s324
      %p328 = scmp.eq.s32.totalorder %s31, 0
      %p329 = por %p327, %p328
      %p330 = scmp.ne.s32.totalorder %s322, %s324
      %p331 = scmp.eq.s32.totalorder %s36, 1
      %p332 = por %p330, %p331
      %p333 = scmp.ne.s32.totalorder %s324, %s325
      %p334 = scmp.eq.s32.totalorder %s36, 0
      %p335 = por %p333, %p334
      %p336 = scmp.ne.s32.totalorder %s324, %s325
      %p337 = scmp.eq.s32.totalorder %s37, 1
      %p338 = por %p336, %p337
      %p340 = scmp.ne.s32.totalorder %s325, %s339
      %p341 = scmp.eq.s32.totalorder %s37, 0
      %p342 = por %p340, %p341
      %s344 = sadd.s32 %s343, 1
      %p347 = scmp.eq.s32.totalorder %s31, 1
      %p348 = scmp.ne.s32.totalorder %s343, %s345
      %p349 = scmp.eq.s32.totalorder %s31, 0
      %p350 = por %p348, %p349
      %p351 = scmp.ne.s32.totalorder %s343, %s345
      %p352 = scmp.eq.s32.totalorder %s36, 1
      %p353 = por %p351, %p352
      %p354 = scmp.ne.s32.totalorder %s345, %s346
      %p355 = scmp.eq.s32.totalorder %s36, 0
      %p356 = por %p354, %p355
      %p357 = scmp.ne.s32.totalorder %s345, %s346
      %p358 = scmp.eq.s32.totalorder %s37, 1
      %p359 = por %p357, %p358
      %p361 = scmp.ne.s32.totalorder %s346, %s360
      %p362 = scmp.eq.s32.totalorder %s37, 0
      %p363 = por %p361, %p362
      %s365 = sadd.s32 %s364, 1
      %p368 = scmp.eq.s32.totalorder %s31, 1
      %p369 = scmp.ne.s32.totalorder %s364, %s366
      %p370 = scmp.eq.s32.totalorder %s31, 0
      %p371 = por %p369, %p370
      %p372 = scmp.ne.s32.totalorder %s364, %s366
      %p373 = scmp.eq.s32.totalorder %s36, 1
      %p374 = por %p372, %p373
      %p375 = scmp.ne.s32.totalorder %s366, %s367
      %p376 = scmp.eq.s32.totalorder %s36, 0
      %p377 = por %p375, %p376
      %p378 = scmp.ne.s32.totalorder %s366, %s367
      %p379 = scmp.eq.s32.totalorder %s37, 1
      %p380 = por %p378, %p379
      %p382 = scmp.ne.s32.totalorder %s367, %s381
      %p383 = scmp.eq.s32.totalorder %s37, 0
      %p384 = por %p382, %p383
      %s386 = sadd.s32 %s385, 1
      %p389 = scmp.eq.s32.totalorder %s31, 1
      %p390 = scmp.ne.s32.totalorder %s385, %s387
      %p391 = scmp.eq.s32.totalorder %s31, 0
      %p392 = por %p390, %p391
      %p393 = scmp.ne.s32.totalorder %s385, %s387
      %p394 = scmp.eq.s32.totalorder %s36, 1
      %p395 = por %p393, %p394
      %p396 = scmp.ne.s32.totalorder %s387, %s388
      %p397 = scmp.eq.s32.totalorder %s36, 0
      %p398 = por %p396, %p397
      %p399 = scmp.ne.s32.totalorder %s387, %s388
      %p400 = scmp.eq.s32.totalorder %s37, 1
      %p401 = por %p399, %p400
      %p403 = scmp.ne.s32.totalorder %s388, %s402
      %p404 = scmp.eq.s32.totalorder %s37, 0
      %p405 = por %p403, %p404
      %s407 = sadd.s32 %s406, 1
      %p410 = scmp.eq.s32.totalorder %s31, 1
      %p411 = scmp.ne.s32.totalorder %s406, %s408
      %p412 = scmp.eq.s32.totalorder %s31, 0
      %p413 = por %p411, %p412
      %p414 = scmp.ne.s32.totalorder %s406, %s408
      %p415 = scmp.eq.s32.totalorder %s36, 1
      %p416 = por %p414, %p415
      %p417 = scmp.ne.s32.totalorder %s408, %s409
      %p418 = scmp.eq.s32.totalorder %s36, 0
      %p419 = por %p417, %p418
      %p420 = scmp.ne.s32.totalorder %s408, %s409
      %p421 = scmp.eq.s32.totalorder %s37, 1
      %p422 = por %p420, %p421
      %p424 = scmp.ne.s32.totalorder %s409, %s423
      %p425 = scmp.eq.s32.totalorder %s37, 0
      %p426 = por %p424, %p425
      %s428 = sadd.s32 %s427, 1
      %p431 = scmp.eq.s32.totalorder %s31, 1
      %p432 = scmp.ne.s32.totalorder %s427, %s429
      %p433 = scmp.eq.s32.totalorder %s31, 0
      %p434 = por %p432, %p433
      %p435 = scmp.ne.s32.totalorder %s427, %s429
      %p436 = scmp.eq.s32.totalorder %s36, 1
      %p437 = por %p435, %p436
      %p438 = scmp.ne.s32.totalorder %s429, %s430
      %p439 = scmp.eq.s32.totalorder %s36, 0
      %p440 = por %p438, %p439
      %p441 = scmp.ne.s32.totalorder %s429, %s430
      %p442 = scmp.eq.s32.totalorder %s37, 1
      %p443 = por %p441, %p442
      %p445 = scmp.ne.s32.totalorder %s430, %s444
      %p446 = scmp.eq.s32.totalorder %s37, 0
      %p447 = por %p445, %p446
      %s449 = sadd.s32 %s448, 1
      %p452 = scmp.eq.s32.totalorder %s31, 1
      %p453 = scmp.ne.s32.totalorder %s448, %s450
      %p454 = scmp.eq.s32.totalorder %s31, 0
      %p455 = por %p453, %p454
      %p456 = scmp.ne.s32.totalorder %s448, %s450
      %p457 = scmp.eq.s32.totalorder %s36, 1
      %p458 = por %p456, %p457
      %p459 = scmp.ne.s32.totalorder %s450, %s451
      %p460 = scmp.eq.s32.totalorder %s36, 0
      %p461 = por %p459, %p460
      %p462 = scmp.ne.s32.totalorder %s450, %s451
      %p463 = scmp.eq.s32.totalorder %s37, 1
      %p464 = por %p462, %p463
      %p466 = scmp.ne.s32.totalorder %s451, %s465
      %p467 = scmp.eq.s32.totalorder %s37, 0
      %p468 = por %p466, %p467
      %s470 = sadd.s32 %s469, 1
      %p473 = scmp.eq.s32.totalorder %s31, 1
      %p474 = scmp.ne.s32.totalorder %s469, %s471
      %p475 = scmp.eq.s32.totalorder %s31, 0
      %p476 = por %p474, %p475
      %p477 = scmp.ne.s32.totalorder %s469, %s471
      %p478 = scmp.eq.s32.totalorder %s36, 1
      %p479 = por %p477, %p478
      %p480 = scmp.ne.s32.totalorder %s471, %s472
      %p481 = scmp.eq.s32.totalorder %s36, 0
      %p482 = por %p480, %p481
      %p483 = scmp.ne.s32.totalorder %s471, %s472
      %p484 = scmp.eq.s32.totalorder %s37, 1
      %p485 = por %p483, %p484
      %p487 = scmp.ne.s32.totalorder %s472, %s486
      %p488 = scmp.eq.s32.totalorder %s37, 0
      %p489 = por %p487, %p488
      %s491 = sadd.s32 %s490, 1
      %p494 = scmp.eq.s32.totalorder %s31, 1
      %p495 = scmp.ne.s32.totalorder %s490, %s492
      %p496 = scmp.eq.s32.totalorder %s31, 0
      %p497 = por %p495, %p496
      %p498 = scmp.ne.s32.totalorder %s490, %s492
      %p499 = scmp.eq.s32.totalorder %s36, 1
      %p500 = por %p498, %p499
      %p501 = scmp.ne.s32.totalorder %s492, %s493
      %p502 = scmp.eq.s32.totalorder %s36, 0
      %p503 = por %p501, %p502
      %p504 = scmp.ne.s32.totalorder %s492, %s493
      %p505 = scmp.eq.s32.totalorder %s37, 1
      %p506 = por %p504, %p505
      %p508 = scmp.ne.s32.totalorder %s493, %s507
      %p509 = scmp.eq.s32.totalorder %s37, 0
      %p510 = por %p508, %p509
      %s511 = ssub.s32 %s31, %s38
      %p512 = scmp.eq.s32.totalorder %s511, 0
      %s514 = sadd.s32 %s513, 1
      %s515 = scalar_select %p512, %s513, %s514
      %p518 = pneg %p512
      %p519 = scmp.eq.s32.totalorder %s31, 1
      %p520 = por %p518, %p519
      %p521 = scmp.ne.s32.totalorder %s513, %s516
      %p522 = scmp.eq.s32.totalorder %s31, 0
      %p523 = por %p521, %p522
      %p524 = scmp.ne.s32.totalorder %s513, %s516
      %p525 = scmp.eq.s32.totalorder %s36, 1
      %p526 = por %p524, %p525
      %p527 = scmp.ne.s32.totalorder %s516, %s517
      %p528 = scmp.eq.s32.totalorder %s36, 0
      %p529 = por %p527, %p528
      %p530 = scmp.ne.s32.totalorder %s516, %s517
      %p531 = scmp.eq.s32.totalorder %s37, 1
      %p532 = por %p530, %p531
      %p534 = scmp.ne.s32.totalorder %s517, %s533
      %p535 = scmp.eq.s32.totalorder %s37, 0
      %p536 = por %p534, %p535
      %p537 = scmp.le.s32.totalorder 1, %s31
      %p538 = scmp.lt.s32.totalorder %s31, 3
      %p539 = pnand %p537, %p538
      %p540 = pneg %p539
      // Predicated region
      $region9: #{transformer_ocr_forward.1} parent=5 // pred_check
        _
      $region10: #{transformer_ocr_forward.1} parent=5 // pred_check_branch
        %542 = sbr.rel (%p539) target = $region12
      $region11: #{transformer_ocr_forward.1} parent=5 // pred_region
        %s543 = ssub.s32 %s31, 1
        // Predicated region
        $region13: #{transformer_ocr_forward.1} parent=11 // pred_check
          %p544 = pneg %p78
        $region14: #{transformer_ocr_forward.1} parent=11 // pred_check_branch
          %546 = sbr.rel (%p544) target = $region16
        $region15: #{transformer_ocr_forward.1} parent=11 // pred_region
          _
        $region16: #{transformer_ocr_forward.1} parent=11 // pred_fallthru
          _
        // Predicated region
        $region17: #{transformer_ocr_forward.1} parent=11 // pred_check
          %p547 = pneg %p99
        $region18: #{transformer_ocr_forward.1} parent=11 // pred_check_branch
          %549 = sbr.rel (%p547) target = $region20
        $region19: #{transformer_ocr_forward.1} parent=11 // pred_region
          _
        $region20: #{transformer_ocr_forward.1} parent=11 // pred_fallthru
          _
        // Predicated region
        $region21: #{transformer_ocr_forward.1} parent=11 // pred_check
          %p550 = pneg %p120
        $region22: #{transformer_ocr_forward.1} parent=11 // pred_check_branch
          %552 = sbr.rel (%p550) target = $region24
        $region23: #{transformer_ocr_forward.1} parent=11 // pred_region
          _
        $region24: #{transformer_ocr_forward.1} parent=11 // pred_fallthru
          _
        // Predicated region
        $region25: #{transformer_ocr_forward.1} parent=11 // pred_check
          %p553 = pneg %p141
        $region26: #{transformer_ocr_forward.1} parent=11 // pred_check_branch
          %555 = sbr.rel (%p553) target = $region28
        $region27: #{transformer_ocr_forward.1} parent=11 // pred_region
          _
        $region28: #{transformer_ocr_forward.1} parent=11 // pred_fallthru
          _
        // Predicated region
        $region29: #{transformer_ocr_forward.1} parent=11 // pred_check
          %p556 = pneg %p162
        $region30: #{transformer_ocr_forward.1} parent=11 // pred_check_branch
          %558 = sbr.rel (%p556) target = $region32
        $region31: #{transformer_ocr_forward.1} parent=11 // pred_region
          _
        $region32: #{transformer_ocr_forward.1} parent=11 // pred_fallthru
          _
        // Predicated region
        $region33: #{transformer_ocr_forward.1} parent=11 // pred_check
          %p559 = pneg %p183
        $region34: #{transformer_ocr_forward.1} parent=11 // pred_check_branch
          %561 = sbr.rel (%p559) target = $region36
        $region35: #{transformer_ocr_forward.1} parent=11 // pred_region
          _
        $region36: #{transformer_ocr_forward.1} parent=11 // pred_fallthru
          _
        // Predicated region
        $region37: #{transformer_ocr_forward.1} parent=11 // pred_check
          %p562 = pneg %p204
        $region38: #{transformer_ocr_forward.1} parent=11 // pred_check_branch
          %564 = sbr.rel (%p562) target = $region40
        $region39: #{transformer_ocr_forward.1} parent=11 // pred_region
          _
        $region40: #{transformer_ocr_forward.1} parent=11 // pred_fallthru
          _
        // Predicated region
        $region41: #{transformer_ocr_forward.1} parent=11 // pred_check
          %p565 = pneg %p225
        $region42: #{transformer_ocr_forward.1} parent=11 // pred_check_branch
          %567 = sbr.rel (%p565) target = $region44
        $region43: #{transformer_ocr_forward.1} parent=11 // pred_region
          _
        $region44: #{transformer_ocr_forward.1} parent=11 // pred_fallthru
          _
        // Predicated region
        $region45: #{transformer_ocr_forward.1} parent=11 // pred_check
          %p568 = pneg %p246
        $region46: #{transformer_ocr_forward.1} parent=11 // pred_check_branch
          %570 = sbr.rel (%p568) target = $region48
        $region47: #{transformer_ocr_forward.1} parent=11 // pred_region
          _
        $region48: #{transformer_ocr_forward.1} parent=11 // pred_fallthru
          _
        // Predicated region
        $region49: #{transformer_ocr_forward.1} parent=11 // pred_check
          %p571 = pneg %p267
        $region50: #{transformer_ocr_forward.1} parent=11 // pred_check_branch
          %573 = sbr.rel (%p571) target = $region52
        $region51: #{transformer_ocr_forward.1} parent=11 // pred_region
          _
        $region52: #{transformer_ocr_forward.1} parent=11 // pred_fallthru
          _
        // Predicated region
        $region53: #{transformer_ocr_forward.1} parent=11 // pred_check
          %p574 = pneg %p288
        $region54: #{transformer_ocr_forward.1} parent=11 // pred_check_branch
          %576 = sbr.rel (%p574) target = $region56
        $region55: #{transformer_ocr_forward.1} parent=11 // pred_region
          _
        $region56: #{transformer_ocr_forward.1} parent=11 // pred_fallthru
          _
        // Predicated region
        $region57: #{transformer_ocr_forward.1} parent=11 // pred_check
          %p577 = pneg %p335
        $region58: #{transformer_ocr_forward.1} parent=11 // pred_check_branch
          %579 = sbr.rel (%p577) target = $region60
        $region59: #{transformer_ocr_forward.1} parent=11 // pred_region
          _
        $region60: #{transformer_ocr_forward.1} parent=11 // pred_fallthru
          _
        // Predicated region
        $region61: #{transformer_ocr_forward.1} parent=11 // pred_check
          %p580 = pneg %p356
        $region62: #{transformer_ocr_forward.1} parent=11 // pred_check_branch
          %582 = sbr.rel (%p580) target = $region64
        $region63: #{transformer_ocr_forward.1} parent=11 // pred_region
          _
        $region64: #{transformer_ocr_forward.1} parent=11 // pred_fallthru
          _
        // Predicated region
        $region65: #{transformer_ocr_forward.1} parent=11 // pred_check
          %p583 = pneg %p377
        $region66: #{transformer_ocr_forward.1} parent=11 // pred_check_branch
          %585 = sbr.rel (%p583) target = $region68
        $region67: #{transformer_ocr_forward.1} parent=11 // pred_region
          _
        $region68: #{transformer_ocr_forward.1} parent=11 // pred_fallthru
          _
        // Predicated region
        $region69: #{transformer_ocr_forward.1} parent=11 // pred_check
          %p586 = pneg %p398
        $region70: #{transformer_ocr_forward.1} parent=11 // pred_check_branch
          %588 = sbr.rel (%p586) target = $region72
        $region71: #{transformer_ocr_forward.1} parent=11 // pred_region
          _
        $region72: #{transformer_ocr_forward.1} parent=11 // pred_fallthru
          _
        // Predicated region
        $region73: #{transformer_ocr_forward.1} parent=11 // pred_check
          %p589 = pneg %p419
        $region74: #{transformer_ocr_forward.1} parent=11 // pred_check_branch
          %591 = sbr.rel (%p589) target = $region76
        $region75: #{transformer_ocr_forward.1} parent=11 // pred_region
          _
        $region76: #{transformer_ocr_forward.1} parent=11 // pred_fallthru
          _
        // Predicated region
        $region77: #{transformer_ocr_forward.1} parent=11 // pred_check
          %p592 = pneg %p440
        $region78: #{transformer_ocr_forward.1} parent=11 // pred_check_branch
          %594 = sbr.rel (%p592) target = $region80
        $region79: #{transformer_ocr_forward.1} parent=11 // pred_region
          _
        $region80: #{transformer_ocr_forward.1} parent=11 // pred_fallthru
          _
        // Predicated region
        $region81: #{transformer_ocr_forward.1} parent=11 // pred_check
          %p595 = pneg %p461
        $region82: #{transformer_ocr_forward.1} parent=11 // pred_check_branch
          %597 = sbr.rel (%p595) target = $region84
        $region83: #{transformer_ocr_forward.1} parent=11 // pred_region
          _
        $region84: #{transformer_ocr_forward.1} parent=11 // pred_fallthru
          _
        // Predicated region
        $region85: #{transformer_ocr_forward.1} parent=11 // pred_check
          %p598 = pneg %p482
        $region86: #{transformer_ocr_forward.1} parent=11 // pred_check_branch
          %600 = sbr.rel (%p598) target = $region88
        $region87: #{transformer_ocr_forward.1} parent=11 // pred_region
          _
        $region88: #{transformer_ocr_forward.1} parent=11 // pred_fallthru
          _
        // Predicated region
        $region89: #{transformer_ocr_forward.1} parent=11 // pred_check
          %p601 = pneg %p503
        $region90: #{transformer_ocr_forward.1} parent=11 // pred_check_branch
          %603 = sbr.rel (%p601) target = $region92
        $region91: #{transformer_ocr_forward.1} parent=11 // pred_region
          _
        $region92: #{transformer_ocr_forward.1} parent=11 // pred_fallthru
          _
      $region12: #{transformer_ocr_forward.1} parent=5 // pred_fallthru
        _
      %p604 = scmp.lt.s32.totalorder %s31, 2
      // Predicated region
      $region93: #{transformer_ocr_forward.1} parent=5 // pred_check
        %p605 = pneg %p604
      $region94: #{transformer_ocr_forward.1} parent=5 // pred_check_branch
        %607 = sbr.rel (%p605) target = $region96
      $region95: #{transformer_ocr_forward.1} parent=5 // pred_region
        // Predicated region
        $region97: #{transformer_ocr_forward.1} parent=95 // pred_check
          %p608 = pneg %p51
        $region98: #{transformer_ocr_forward.1} parent=95 // pred_check_branch
          %610 = sbr.rel (%p608) target = $region100
        $region99: #{transformer_ocr_forward.1} parent=95 // pred_region
          %p611 = scmp.lt.s32.totalorder %s31, 1
          %s612 = scalar_select %p611, %s31, 1
          %s613 = smul.addr %s612, 3
          %s614 = smul.addr %s613, 4
          %s615 = scalar_lea.vmem %s0, %s614
        $region100: #{transformer_ocr_forward.1} parent=95 // pred_fallthru
          _
        // Predicated region
        $region101: #{transformer_ocr_forward.1} parent=95 // pred_check
          %p616 = pneg %p308
        $region102: #{transformer_ocr_forward.1} parent=95 // pred_check_branch
          %618 = sbr.rel (%p616) target = $region104
        $region103: #{transformer_ocr_forward.1} parent=95 // pred_region
          %p619 = scmp.lt.s32.totalorder %s31, 1
          %s620 = scalar_select %p619, %s31, 1
          %s621 = smul.addr %s620, 8
          %s622 = scalar_lea.vmem %s12, %s621
        $region104: #{transformer_ocr_forward.1} parent=95 // pred_fallthru
          _
      $region96: #{transformer_ocr_forward.1} parent=5 // pred_fallthru
        _
      %p623 = scmp.le.s32.totalorder 1, %s31
      %p624 = scmp.lt.s32.totalorder %s31, 3
      %p625 = pnand %p623, %p624
      %p626 = pneg %p625
      // Predicated region
      $region105: #{transformer_ocr_forward.1} parent=5 // pred_check
        _
      $region106: #{transformer_ocr_forward.1} parent=5 // pred_check_branch
        %628 = sbr.rel (%p625) target = $region108
      $region107: #{transformer_ocr_forward.1} parent=5 // pred_region
        %s629 = ssub.s32 %s31, 1
        %p630 = scmp.lt.s32.totalorder %s36, 1
        %s631 = scalar_select %p630, %s36, 1
        %s632 = smul.addr %s631, 3
        %s633 = smul.addr %s632, 4
        %s634 = scalar_lea.vmem %s0, %s633
        %p635 = pneg %p57
        %p636 = pneg %p54
        %p637 = pneg %p78
        %p638 = pneg %p75
        %p639 = pneg %p99
        %p640 = pneg %p96
        %p641 = pneg %p120
        %p642 = pneg %p117
        %p643 = pneg %p141
        %p644 = pneg %p138
        %p645 = pneg %p162
        %p646 = pneg %p159
        %p647 = pneg %p183
        %p648 = pneg %p180
        %p649 = pneg %p204
        %p650 = pneg %p201
        %p651 = pneg %p225
        %p652 = pneg %p222
        %p653 = pneg %p246
        %p654 = pneg %p243
        %p655 = pneg %p267
        %p656 = pneg %p264
        %p657 = pneg %p288
        %p658 = pneg %p285
        %p659 = scmp.lt.s32.totalorder %s36, 1
        %s660 = scalar_select %p659, %s36, 1
        %s661 = smul.addr %s660, 8
        %s662 = scalar_lea.vmem %s12, %s661
        %p663 = pneg %p314
        %p664 = pneg %p311
        %p665 = pneg %p335
        %p666 = pneg %p332
        %p667 = pneg %p356
        %p668 = pneg %p353
        %p669 = pneg %p377
        %p670 = pneg %p374
        %p671 = pneg %p398
        %p672 = pneg %p395
        %p673 = pneg %p419
        %p674 = pneg %p416
        %p675 = pneg %p440
        %p676 = pneg %p437
        %p677 = pneg %p461
        %p678 = pneg %p458
        %p679 = pneg %p482
        %p680 = pneg %p479
        %p681 = pneg %p503
        %p682 = pneg %p500
        %p683 = pneg %p529
        %p684 = pneg %p526
        %s685 = sand.u32 %s516, 1
        %s686 = scalar_lea.sflag [#allocation3], %s685
        %s687 = sand.u32 %s516, 1
        %s688 = smul.addr %s687, 8
        %s689 = scalar_lea.vmem [#allocation2], %s688
        %p690 = scmp.lt.s32.totalorder %s36, 1
        %s691 = scalar_select %p690, %s36, 1
        %s692 = smul.addr %s691, 3
        %s693 = smul.addr %s692, 4
        %s694 = scalar_lea.vmem %s0, %s693
        %p695 = scmp.lt.s32.totalorder %s36, 1
        %s696 = scalar_select %p695, %s36, 1
        %s697 = smul.addr %s696, 8
        %s698 = scalar_lea.vmem %s12, %s697
        %v700 = vld [vmem:[%s694] sm:$0xf]
        %v701 = vld [vmem:[%s694 + $0x4] sm:$0xf]
        %v702 = vld [vmem:[%s694 + $0x8] sm:$0x1]
        %v703 = vld [vmem:[%s1] sm:$0xf]
        %v704 = vld [vmem:[%s1 + $0x4] sm:$0xf]
        %v705 = vld [vmem:[%s1 + $0x8] sm:$0xf]
        %v706 = vld [vmem:[%s1 + $0xc] sm:$0xf]
        %v707 = vld [vmem:[%s1 + $0x10] sm:$0xf]
        %v708 = vld [vmem:[%s1 + $0x14] sm:$0xf]
        %v709 = vld [vmem:[%s2] sm:$0xff]
        %v710 = vld [vmem:[%s2 + $0x8] sm:$0xff]
        %v711 = vld [vmem:[%s2 + $0x10] sm:$0x3]
        %v715 = vunpack.c.l.b16 %v700
        %v716 = vunpack.c.l.b16 %v701
        %v717 = vunpack.c.l.b16 %v702
        %v718 = vpack.c.b16 %v716, %v715
        %v719 = vpack.c.b16 %v717, %v717
        %v726 = vunpack.c.l.b16 %v703
        %v727 = vunpack.c.l.b16 %v704
        %v728 = vunpack.c.l.b16 %v705
        %v729 = vunpack.c.l.b16 %v706
        %v730 = vunpack.c.l.b16 %v707
        %v731 = vunpack.c.l.b16 %v708
        %v732 = vpack.c.b16 %v727, %v726
        %v733 = vpack.c.b16 %v729, %v728
        %v734 = vpack.c.b16 %v731, %v730
        %vm738 = vcmask 392192
        %v740 = vsel %vm738, %v718, 0
        %v743 = vsel %vm738, %v719, 0
        %745 = vmatprep.subr.bf16.mxu0 0
        %746 = vmatpush1.bf16.msra.mxu0 %v732
        %747 = vmatprep.subr.bf16.mxu0 0
        %748 = vmatpush1.bf16.msra.mxu0 %v733
        %749 = vmatprep.subr.bf16.mxu0 0
        %750 = vmatpush1.bf16.msra.mxu0 %v734
        %751 = vmatprep.subr.bf16.mxu0 0
        %752 = vmatpush1.bf16.msra.mxu0 0
        %753 = vmatprep.subr.bf16.mxu0 0
        %754 = vmatpush1.bf16.msra.mxu0 0
        %755 = vmatprep.subr.bf16.mxu0 0
        %756 = vmatpush1.bf16.msra.mxu0 0
        %757 = vmatprep.subr.bf16.mxu0 0
        %758 = vmatpush1.bf16.msra.mxu0 0
        %759 = vmatprep.subr.bf16.mxu0 0
        %760 = vmatpush1.bf16.msra.mxu0 0
        %761 = vmatprep.subr.bf16.mxu0 0
        %762 = vmatpush1.bf16.msra.mxu0 0
        %763 = vmatprep.subr.bf16.mxu0 0
        %764 = vmatpush1.bf16.msra.mxu0 0
        %765 = vmatprep.subr.bf16.mxu0 0
        %766 = vmatpush1.bf16.msra.mxu0 0
        %767 = vmatprep.subr.bf16.mxu0 0
        %768 = vmatpush1.bf16.msra.mxu0 0
        %769 = vmatprep.subr.bf16.mxu0 0
        %770 = vmatpush1.bf16.msra.mxu0 0
        %771 = vmatprep.subr.bf16.mxu0 0
        %772 = vmatpush1.bf16.msra.mxu0 0
        %773 = vmatprep.subr.bf16.mxu0 0
        %774 = vmatpush1.bf16.msra.mxu0 0
        %775 = vmatprep.subr.bf16.mxu0 0
        %776 = vmatpush1.bf16.msra.mxu0 0
        %777 = vmatprep.mubr.bf16.mxu0 0
        %778 = vmatmul.mubr.bf16.gmra.mrb[0].mxu0 %v740
        %v779 = vpop.f32.mrb[0].mxu0
        %v780 = vadd.f32 %v709, %v779
        %v781 = vpop.f32.mrb[0].mxu0
        %v782 = vpop.f32.mrb[0].mxu0
        %v783 = vadd.f32 %v710, %v782
        %v784 = vpop.f32.mrb[0].mxu0
        %785 = vmatprep.mubr.bf16.mxu0 0
        %786 = vmatmul.mubr.bf16.gmra.mrb[0].mxu0 %v743
        %v787 = vpop.f32.mrb[0].mxu0
        %v788 = vadd.f32 %v711, %v787
        %v789 = vpop.f32.mrb[0].mxu0
        %v790 = vpop.f32.mrb[0].mxu0
        %v791 = vpop.f32.mrb[0].mxu0
        %792 = vdwg.mxu0
        %v793 = vld [vmem:[%s3] sm:$0x3f]
        %vm794 = vcmask 261120
        %v795 = vsel %vm794, %v780, 0.0
        %796 = vadd.xlane.f32.xlu0 %v795
        %v797 = vpop.xlane.xlu0 %796
        %v798 = vsel %vm794, %v783, 0.0
        %799 = vadd.xlane.f32.xlu0 %v798
        %v800 = vpop.xlane.xlu0 %799
        %vm801 = vcmask 254976
        %v802 = vsel %vm801, %v788, 0.0
        %803 = vadd.xlane.f32.xlu0 %v802
        %v804 = vpop.xlane.xlu0 %803
        %v805 = vrcp.pop 32.0
        %v806 = vmul.f32 %v797, %v805
        %v807 = vmul.f32 %v800, %v805
        %v808 = vmul.f32 %v804, %v805
        %v809 = vsub.f32 %v780, %v806
        %v810 = vsub.f32 %v783, %v807
        %v811 = vsub.f32 %v788, %v808
        %v812 = vmul.f32 %v809, %v809
        %v813 = vmul.f32 %v810, %v810
        %v814 = vmul.f32 %v811, %v811
        %v815 = vsel %vm794, %v812, 0.0
        %816 = vadd.xlane.f32.xlu0 %v815
        %v817 = vpop.xlane.xlu0 %816
        %v818 = vsel %vm794, %v813, 0.0
        %819 = vadd.xlane.f32.xlu0 %v818
        %v820 = vpop.xlane.xlu0 %819
        %v821 = vsel %vm801, %v814, 0.0
        %822 = vadd.xlane.f32.xlu0 %v821
        %v823 = vpop.xlane.xlu0 %822
        %v824 = vmul.f32 %v817, %v805
        %v825 = vmul.f32 %v820, %v805
        %v826 = vmul.f32 %v823, %v805
        %v827 = vadd.f32 %v824, 1e-05
        %v828 = vadd.f32 %v825, 1e-05
        %v829 = vadd.f32 %v826, 1e-05
        %v830 = vrsqrt.pop %v827
        %v831 = vrsqrt.pop %v828
        %v832 = vrsqrt.pop %v829
        %v833 = vmul.f32 %v809, %v830
        %v834 = vmul.f32 %v810, %v831
        %v835 = vmul.f32 %v811, %v832
        %v836 = vlaneseq
        %v837 = vshrl.u32 %v836, 7
        %v838 = vsub.s32 0, %v837
        %v839 = vrot.slane %v793, %v838
        %v840 = vmul.f32 %v833, %v839
        %v841 = vmul.f32 %v834, %v839
        %v842 = vmul.f32 %v835, %v839
        %v843 = vlaneseq
        %v844 = vshrl.u32 %v843, 7
        %v845 = vsub.s32 1, %v844
        %v846 = vrot.slane %v793, %v845
        %v847 = vadd.f32 %v840, %v846
        %v848 = vadd.f32 %v841, %v846
        %v849 = vadd.f32 %v842, %v846
        %v850 = vpack.c.bf16 %v848, %v847
        %v851 = vpack.c.bf16 %v849, %v849
        %v852 = vld [vmem:[%s4] sm:$0xf]
        %v853 = vld [vmem:[%s4 + $0x4] sm:$0xf]
        %v854 = vld [vmem:[%s4 + $0x8] sm:$0xf]
        %v855 = vld [vmem:[%s4 + $0xc] sm:$0xf]
        %v856 = vld [vmem:[%s5] sm:$0x1]
        %v857 = vld [vmem:[%s6] sm:$0xf]
        %v858 = vld [vmem:[%s6 + $0x4] sm:$0xf]
        %v859 = vld [vmem:[%s6 + $0x8] sm:$0xf]
        %v860 = vld [vmem:[%s6 + $0xc] sm:$0xf]
        %v862 = vlaneseq
        %v863 = vshrl.u32 %v862, 7
        %v864 = vsub.s32 0, %v863
        %v865 = vrot.slane %v856, %v864
        %v871 = vunpack.c.l.b16 %v852
        %v872 = vunpack.c.l.b16 %v853
        %v873 = vunpack.c.l.b16 %v854
        %v874 = vunpack.c.l.b16 %v855
        %v875 = vpack.c.b16 %v872, %v871
        %v876 = vpack.c.b16 %v874, %v873
        %v880 = vsel %vm794, %v850, 0
        %v883 = vsel %vm794, %v851, 0
        %885 = vmatprep.subr.bf16.mxu0 0
        %886 = vmatpush1.bf16.msra.mxu0 %v875
        %887 = vmatprep.subr.bf16.mxu0 0
        %888 = vmatpush1.bf16.msra.mxu0 %v876
        %889 = vmatprep.subr.bf16.mxu0 0
        %890 = vmatpush1.bf16.msra.mxu0 0
        %891 = vmatprep.subr.bf16.mxu0 0
        %892 = vmatpush1.bf16.msra.mxu0 0
        %893 = vmatprep.subr.bf16.mxu0 0
        %894 = vmatpush1.bf16.msra.mxu0 0
        %895 = vmatprep.subr.bf16.mxu0 0
        %896 = vmatpush1.bf16.msra.mxu0 0
        %897 = vmatprep.subr.bf16.mxu0 0
        %898 = vmatpush1.bf16.msra.mxu0 0
        %899 = vmatprep.subr.bf16.mxu0 0
        %900 = vmatpush1.bf16.msra.mxu0 0
        %901 = vmatprep.subr.bf16.mxu0 0
        %902 = vmatpush1.bf16.msra.mxu0 0
        %903 = vmatprep.subr.bf16.mxu0 0
        %904 = vmatpush1.bf16.msra.mxu0 0
        %905 = vmatprep.subr.bf16.mxu0 0
        %906 = vmatpush1.bf16.msra.mxu0 0
        %907 = vmatprep.subr.bf16.mxu0 0
        %908 = vmatpush1.bf16.msra.mxu0 0
        %909 = vmatprep.subr.bf16.mxu0 0
        %910 = vmatpush1.bf16.msra.mxu0 0
        %911 = vmatprep.subr.bf16.mxu0 0
        %912 = vmatpush1.bf16.msra.mxu0 0
        %913 = vmatprep.subr.bf16.mxu0 0
        %914 = vmatpush1.bf16.msra.mxu0 0
        %915 = vmatprep.subr.bf16.mxu0 0
        %916 = vmatpush1.bf16.msra.mxu0 0
        %917 = vmatprep.mubr.bf16.mxu0 0
        %918 = vmatmul.mubr.bf16.gmra.mrb[0].mxu0 %v880
        %v919 = vpop.f32.mrb[0].mxu0
        %v920 = vadd.f32 %v865, %v919
        %v921 = vpop.f32.mrb[0].mxu0
        %v922 = vpop.f32.mrb[0].mxu0
        %v923 = vadd.f32 %v865, %v922
        %v924 = vpop.f32.mrb[0].mxu0
        %925 = vmatprep.mubr.bf16.mxu0 0
        %926 = vmatmul.mubr.bf16.gmra.mrb[0].mxu0 %v883
        %v927 = vpop.f32.mrb[0].mxu0
        %v928 = vadd.f32 %v865, %v927
        %v929 = vpop.f32.mrb[0].mxu0
        %v930 = vpop.f32.mrb[0].mxu0
        %v931 = vpop.f32.mrb[0].mxu0
        %932 = vdwg.mxu0
        %v933 = vpack.c.bf16 %v923, %v920
        %v934 = vpack.c.bf16 %v928, %v928
        %937 = vrot.lane.b32.xlu0 %v933, 96
        %v938 = vpop.permute.xlu0 %937
        %939 = vrot.lane.b32.xlu0 %v934, 96
        %v940 = vpop.permute.xlu0 %939
        %vm941 = vcmask 64512
        %v943 = vsel %vm941, %v933, 0
        %v946 = vsel %vm941, %v934, 0
        %v949 = vsel %vm941, %v938, 0
        %v952 = vsel %vm941, %v940, 0
        %954 = vmatprep.subr.bf16.mxu0 0
        %955 = vmatpush1.bf16.xpose.msra.mxu0 %v949
        %956 = vmatprep.subr.bf16.mxu0 0
        %957 = vmatpush1.bf16.xpose.msra.mxu0 %v952
        %958 = vmatprep.subr.bf16.mxu0 0
        %959 = vmatpush1.bf16.xpose.msra.mxu0 0
        %960 = vmatprep.subr.bf16.mxu0 0
        %961 = vmatpush1.bf16.xpose.msra.mxu0 0
        %962 = vmatprep.subr.bf16.mxu0 0
        %963 = vmatpush1.bf16.xpose.msra.mxu0 0
        %964 = vmatprep.subr.bf16.mxu0 0
        %965 = vmatpush1.bf16.xpose.msra.mxu0 0
        %966 = vmatprep.subr.bf16.mxu0 0
        %967 = vmatpush1.bf16.xpose.msra.mxu0 0
        %968 = vmatprep.subr.bf16.mxu0 0
        %969 = vmatpush1.bf16.xpose.msra.mxu0 0
        %970 = vmatprep.subr.bf16.mxu0 0
        %971 = vmatpush1.bf16.xpose.msra.mxu0 0
        %972 = vmatprep.subr.bf16.mxu0 0
        %973 = vmatpush1.bf16.xpose.msra.mxu0 0
        %974 = vmatprep.subr.bf16.mxu0 0
        %975 = vmatpush1.bf16.xpose.msra.mxu0 0
        %976 = vmatprep.subr.bf16.mxu0 0
        %977 = vmatpush1.bf16.xpose.msra.mxu0 0
        %978 = vmatprep.subr.bf16.mxu0 0
        %979 = vmatpush1.bf16.xpose.msra.mxu0 0
        %980 = vmatprep.subr.bf16.mxu0 0
        %981 = vmatpush1.bf16.xpose.msra.mxu0 0
        %982 = vmatprep.subr.bf16.mxu0 0
        %983 = vmatpush1.bf16.xpose.msra.mxu0 0
        %984 = vmatprep.subr.bf16.mxu0 0
        %985 = vmatpush1.bf16.xpose.msra.mxu0 0
        %986 = vmatprep.mubr.bf16.mxu0 0
        %987 = vmatmul.mubr.bf16.gmra.mrb[0].mxu0 %v943
        %v988 = vpop.f32.mrb[0].mxu0
        %v989 = vadd.f32 0.0, %v988
        %v990 = vpop.f32.mrb[0].mxu0
        %v991 = vpop.f32.mrb[0].mxu0
        %v992 = vadd.f32 0.0, %v991
        %v993 = vpop.f32.mrb[0].mxu0
        %994 = vmatprep.mubr.bf16.mxu0 0
        %995 = vmatmul.mubr.bf16.gmra.mrb[0].mxu0 %v946
        %v996 = vpop.f32.mrb[0].mxu0
        %v997 = vadd.f32 0.0, %v996
        %v998 = vpop.f32.mrb[0].mxu0
        %v999 = vpop.f32.mrb[0].mxu0
        %v1000 = vpop.f32.mrb[0].mxu0
        %1001 = vdwg.mxu0
        %vm1002 = vcmask 146432
        %v1003 = vsel %vm1002, %v989, -inf
        %1004 = vmax.xlane.f32.xlu0 %v1003
        %v1005 = vpop.xlane.xlu0 %1004
        %v1006 = vsel %vm1002, %v992, -inf
        %1007 = vmax.xlane.f32.xlu0 %v1006
        %v1008 = vpop.xlane.xlu0 %1007
        %vm1009 = vcmask 140288
        %v1010 = vsel %vm1009, %v997, -inf
        %1011 = vmax.xlane.f32.xlu0 %v1010
        %v1012 = vpop.xlane.xlu0 %1011
        %v1013 = vsub.f32 %v989, %v1005
        %v1014 = vsub.f32 %v992, %v1008
        %v1015 = vsub.f32 %v997, %v1012
        %v1016 = vmul.f32 %v1013, 1.442695
        %v1017 = vpow.pop %v1016
        %v1018 = vmul.f32 %v1014, 1.442695
        %v1019 = vpow.pop %v1018
        %v1020 = vmul.f32 %v1015, 1.442695
        %v1021 = vpow.pop %v1020
        %v1022 = vsel %vm1002, %v1017, 0.0
        %1023 = vadd.xlane.f32.xlu0 %v1022
        %v1024 = vpop.xlane.xlu0 %1023
        %v1025 = vsel %vm1002, %v1019, 0.0
        %1026 = vadd.xlane.f32.xlu0 %v1025
        %v1027 = vpop.xlane.xlu0 %1026
        %v1028 = vsel %vm1009, %v1021, 0.0
        %1029 = vadd.xlane.f32.xlu0 %v1028
        %v1030 = vpop.xlane.xlu0 %1029
        %v1031 = vrcp.pop %v1024
        %v1032 = vrcp.pop %v1027
        %v1033 = vrcp.pop %v1030
        %v1034 = vmul.f32 %v1017, %v1031
        %v1035 = vmul.f32 %v1019, %v1032
        %v1036 = vmul.f32 %v1021, %v1033
        %v1037 = vpack.c.bf16 %v1035, %v1034
        %v1038 = vpack.c.bf16 %v1036, %v1036
        %1039 = vrot.lane.b32.xlu0 %v933, 64
        %v1040 = vpop.permute.xlu0 %1039
        %1041 = vrot.lane.b32.xlu0 %v934, 64
        %v1042 = vpop.permute.xlu0 %1041
        %v1045 = vsel %vm1002, %v1037, 0
        %v1048 = vsel %vm1002, %v1038, 0
        %vm1050 = vcmask 1040384
        %v1052 = vsel %vm1050, %v1042, 0
        %1054 = vmatprep.subr.bf16.mxu0 0
        %1055 = vmatpush1.bf16.msra.mxu0 %v1040
        %1056 = vmatprep.subr.bf16.mxu0 0
        %1057 = vmatpush1.bf16.msra.mxu0 %v1052
        %1058 = vmatprep.subr.bf16.mxu0 0
        %1059 = vmatpush1.bf16.msra.mxu0 0
        %1060 = vmatprep.subr.bf16.mxu0 0
        %1061 = vmatpush1.bf16.msra.mxu0 0
        %1062 = vmatprep.subr.bf16.mxu0 0
        %1063 = vmatpush1.bf16.msra.mxu0 0
        %1064 = vmatprep.subr.bf16.mxu0 0
        %1065 = vmatpush1.bf16.msra.mxu0 0
        %1066 = vmatprep.subr.bf16.mxu0 0
        %1067 = vmatpush1.bf16.msra.mxu0 0
        %1068 = vmatprep.subr.bf16.mxu0 0
        %1069 = vmatpush1.bf16.msra.mxu0 0
        %1070 = vmatprep.subr.bf16.mxu0 0
        %1071 = vmatpush1.bf16.msra.mxu0 0
        %1072 = vmatprep.subr.bf16.mxu0 0
        %1073 = vmatpush1.bf16.msra.mxu0 0
        %1074 = vmatprep.subr.bf16.mxu0 0
        %1075 = vmatpush1.bf16.msra.mxu0 0
        %1076 = vmatprep.subr.bf16.mxu0 0
        %1077 = vmatpush1.bf16.msra.mxu0 0
        %1078 = vmatprep.subr.bf16.mxu0 0
        %1079 = vmatpush1.bf16.msra.mxu0 0
        %1080 = vmatprep.subr.bf16.mxu0 0
        %1081 = vmatpush1.bf16.msra.mxu0 0
        %1082 = vmatprep.subr.bf16.mxu0 0
        %1083 = vmatpush1.bf16.msra.mxu0 0
        %1084 = vmatprep.subr.bf16.mxu0 0
        %1085 = vmatpush1.bf16.msra.mxu0 0
        %1086 = vmatprep.mubr.bf16.mxu0 0
        %1087 = vmatmul.mubr.bf16.gmra.mrb[0].mxu0 %v1045
        %v1088 = vpop.f32.mrb[0].mxu0
        %v1089 = vadd.f32 0.0, %v1088
        %v1090 = vpop.f32.mrb[0].mxu0
        %v1091 = vpop.f32.mrb[0].mxu0
        %v1092 = vadd.f32 0.0, %v1091
        %v1093 = vpop.f32.mrb[0].mxu0
        %1094 = vmatprep.mubr.bf16.mxu0 0
        %1095 = vmatmul.mubr.bf16.gmra.mrb[0].mxu0 %v1048
        %v1096 = vpop.f32.mrb[0].mxu0
        %v1097 = vadd.f32 0.0, %v1096
        %v1098 = vpop.f32.mrb[0].mxu0
        %v1099 = vpop.f32.mrb[0].mxu0
        %v1100 = vpop.f32.mrb[0].mxu0
        %1101 = vdwg.mxu0
        %1102 = vrot.lane.b32.xlu0 %v933, 120
        %v1103 = vpop.permute.xlu0 %1102
        %1104 = vrot.lane.b32.xlu0 %v934, 120
        %v1105 = vpop.permute.xlu0 %1104
        %1106 = vrot.lane.b32.xlu0 %v933, 88
        %v1107 = vpop.permute.xlu0 %1106
        %1108 = vrot.lane.b32.xlu0 %v934, 88
        %v1109 = vpop.permute.xlu0 %1108
        %v1111 = vsel %vm941, %v1103, 0
        %v1114 = vsel %vm941, %v1105, 0
        %v1117 = vsel %vm941, %v1107, 0
        %v1120 = vsel %vm941, %v1109, 0
        %1122 = vmatprep.subr.bf16.mxu0 0
        %1123 = vmatpush1.bf16.xpose.msra.mxu0 %v1117
        %1124 = vmatprep.subr.bf16.mxu0 0
        %1125 = vmatpush1.bf16.xpose.msra.mxu0 %v1120
        %1126 = vmatprep.subr.bf16.mxu0 0
        %1127 = vmatpush1.bf16.xpose.msra.mxu0 0
        %1128 = vmatprep.subr.bf16.mxu0 0
        %1129 = vmatpush1.bf16.xpose.msra.mxu0 0
        %1130 = vmatprep.subr.bf16.mxu0 0
        %1131 = vmatpush1.bf16.xpose.msra.mxu0 0
        %1132 = vmatprep.subr.bf16.mxu0 0
        %1133 = vmatpush1.bf16.xpose.msra.mxu0 0
        %1134 = vmatprep.subr.bf16.mxu0 0
        %1135 = vmatpush1.bf16.xpose.msra.mxu0 0
        %1136 = vmatprep.subr.bf16.mxu0 0
        %1137 = vmatpush1.bf16.xpose.msra.mxu0 0
        %1138 = vmatprep.subr.bf16.mxu0 0
        %1139 = vmatpush1.bf16.xpose.msra.mxu0 0
        %1140 = vmatprep.subr.bf16.mxu0 0
        %1141 = vmatpush1.bf16.xpose.msra.mxu0 0
        %1142 = vmatprep.subr.bf16.mxu0 0
        %1143 = vmatpush1.bf16.xpose.msra.mxu0 0
        %1144 = vmatprep.subr.bf16.mxu0 0
        %1145 = vmatpush1.bf16.xpose.msra.mxu0 0
        %1146 = vmatprep.subr.bf16.mxu0 0
        %1147 = vmatpush1.bf16.xpose.msra.mxu0 0
        %1148 = vmatprep.subr.bf16.mxu0 0
        %1149 = vmatpush1.bf16.xpose.msra.mxu0 0
        %1150 = vmatprep.subr.bf16.mxu0 0
        %1151 = vmatpush1.bf16.xpose.msra.mxu0 0
        %1152 = vmatprep.subr.bf16.mxu0 0
        %1153 = vmatpush1.bf16.xpose.msra.mxu0 0
        %1154 = vmatprep.mubr.bf16.mxu0 0
        %1155 = vmatmul.mubr.bf16.gmra.mrb[0].mxu0 %v1111
        %v1156 = vpop.f32.mrb[0].mxu0
        %v1157 = vadd.f32 0.0, %v1156
        %v1158 = vpop.f32.mrb[0].mxu0
        %v1159 = vpop.f32.mrb[0].mxu0
        %v1160 = vadd.f32 0.0, %v1159
        %v1161 = vpop.f32.mrb[0].mxu0
        %1162 = vmatprep.mubr.bf16.mxu0 0
        %1163 = vmatmul.mubr.bf16.gmra.mrb[0].mxu0 %v1114
        %v1164 = vpop.f32.mrb[0].mxu0
        %v1165 = vadd.f32 0.0, %v1164
        %v1166 = vpop.f32.mrb[0].mxu0
        %v1167 = vpop.f32.mrb[0].mxu0
        %v1168 = vpop.f32.mrb[0].mxu0
        %1169 = vdwg.mxu0
        %v1170 = vsel %vm1002, %v1157, -inf
        %1171 = vmax.xlane.f32.xlu0 %v1170
        %v1172 = vpop.xlane.xlu0 %1171
        %v1173 = vsel %vm1002, %v1160, -inf
        %1174 = vmax.xlane.f32.xlu0 %v1173
        %v1175 = vpop.xlane.xlu0 %1174
        %v1176 = vsel %vm1009, %v1165, -inf
        %1177 = vmax.xlane.f32.xlu0 %v1176
        %v1178 = vpop.xlane.xlu0 %1177
        %v1179 = vsub.f32 %v1157, %v1172
        %v1180 = vsub.f32 %v1160, %v1175
        %v1181 = vsub.f32 %v1165, %v1178
        %v1182 = vmul.f32 %v1179, 1.442695
        %v1183 = vpow.pop %v1182
        %v1184 = vmul.f32 %v1180, 1.442695
        %v1185 = vpow.pop %v1184
        %v1186 = vmul.f32 %v1181, 1.442695
        %v1187 = vpow.pop %v1186
        %v1188 = vsel %vm1002, %v1183, 0.0
        %1189 = vadd.xlane.f32.xlu0 %v1188
        %v1190 = vpop.xlane.xlu0 %1189
        %v1191 = vsel %vm1002, %v1185, 0.0
        %1192 = vadd.xlane.f32.xlu0 %v1191
        %v1193 = vpop.xlane.xlu0 %1192
        %v1194 = vsel %vm1009, %v1187, 0.0
        %1195 = vadd.xlane.f32.xlu0 %v1194
        %v1196 = vpop.xlane.xlu0 %1195
        %v1197 = vrcp.pop %v1190
        %v1198 = vrcp.pop %v1193
        %v1199 = vrcp.pop %v1196
        %v1200 = vmul.f32 %v1183, %v1197
        %v1201 = vmul.f32 %v1185, %v1198
        %v1202 = vmul.f32 %v1187, %v1199
        %v1203 = vpack.c.bf16 %v1201, %v1200
        %v1204 = vpack.c.bf16 %v1202, %v1202
        %1205 = vrot.lane.b32.xlu0 %v933, 56
        %v1206 = vpop.permute.xlu0 %1205
        %1207 = vrot.lane.b32.xlu0 %v934, 56
        %v1208 = vpop.permute.xlu0 %1207
        %v1211 = vsel %vm1002, %v1203, 0
        %v1214 = vsel %vm1002, %v1204, 0
        %v1217 = vsel %vm1050, %v1208, 0
        %1219 = vmatprep.subr.bf16.mxu0 0
        %1220 = vmatpush1.bf16.msra.mxu0 %v1206
        %1221 = vmatprep.subr.bf16.mxu0 0
        %1222 = vmatpush1.bf16.msra.mxu0 %v1217
        %1223 = vmatprep.subr.bf16.mxu0 0
        %1224 = vmatpush1.bf16.msra.mxu0 0
        %1225 = vmatprep.subr.bf16.mxu0 0
        %1226 = vmatpush1.bf16.msra.mxu0 0
        %1227 = vmatprep.subr.bf16.mxu0 0
        %1228 = vmatpush1.bf16.msra.mxu0 0
        %1229 = vmatprep.subr.bf16.mxu0 0
        %1230 = vmatpush1.bf16.msra.mxu0 0
        %1231 = vmatprep.subr.bf16.mxu0 0
        %1232 = vmatpush1.bf16.msra.mxu0 0
        %1233 = vmatprep.subr.bf16.mxu0 0
        %1234 = vmatpush1.bf16.msra.mxu0 0
        %1235 = vmatprep.subr.bf16.mxu0 0
        %1236 = vmatpush1.bf16.msra.mxu0 0
        %1237 = vmatprep.subr.bf16.mxu0 0
        %1238 = vmatpush1.bf16.msra.mxu0 0
        %1239 = vmatprep.subr.bf16.mxu0 0
        %1240 = vmatpush1.bf16.msra.mxu0 0
        %1241 = vmatprep.subr.bf16.mxu0 0
        %1242 = vmatpush1.bf16.msra.mxu0 0
        %1243 = vmatprep.subr.bf16.mxu0 0
        %1244 = vmatpush1.bf16.msra.mxu0 0
        %1245 = vmatprep.subr.bf16.mxu0 0
        %1246 = vmatpush1.bf16.msra.mxu0 0
        %1247 = vmatprep.subr.bf16.mxu0 0
        %1248 = vmatpush1.bf16.msra.mxu0 0
        %1249 = vmatprep.subr.bf16.mxu0 0
        %1250 = vmatpush1.bf16.msra.mxu0 0
        %1251 = vmatprep.mubr.bf16.mxu0 0
        %1252 = vmatmul.mubr.bf16.gmra.mrb[0].mxu0 %v1211
        %v1253 = vpop.f32.mrb[0].mxu0
        %v1254 = vadd.f32 0.0, %v1253
        %v1255 = vpop.f32.mrb[0].mxu0
        %v1256 = vpop.f32.mrb[0].mxu0
        %v1257 = vadd.f32 0.0, %v1256
        %v1258 = vpop.f32.mrb[0].mxu0
        %1259 = vmatprep.mubr.bf16.mxu0 0
        %1260 = vmatmul.mubr.bf16.gmra.mrb[0].mxu0 %v1214
        %v1261 = vpop.f32.mrb[0].mxu0
        %v1262 = vadd.f32 0.0, %v1261
        %v1263 = vpop.f32.mrb[0].mxu0
        %v1264 = vpop.f32.mrb[0].mxu0
        %v1265 = vpop.f32.mrb[0].mxu0
        %1266 = vdwg.mxu0
        %1267 = vrot.lane.b32.xlu0 %v933, 112
        %v1268 = vpop.permute.xlu0 %1267
        %1269 = vrot.lane.b32.xlu0 %v934, 112
        %v1270 = vpop.permute.xlu0 %1269
        %1271 = vrot.lane.b32.xlu0 %v933, 80
        %v1272 = vpop.permute.xlu0 %1271
        %1273 = vrot.lane.b32.xlu0 %v934, 80
        %v1274 = vpop.permute.xlu0 %1273
        %v1276 = vsel %vm941, %v1268, 0
        %v1279 = vsel %vm941, %v1270, 0
        %v1282 = vsel %vm941, %v1272, 0
        %v1285 = vsel %vm941, %v1274, 0
        %1287 = vmatprep.subr.bf16.mxu0 0
        %1288 = vmatpush1.bf16.xpose.msra.mxu0 %v1282
        %1289 = vmatprep.subr.bf16.mxu0 0
        %1290 = vmatpush1.bf16.xpose.msra.mxu0 %v1285
        %1291 = vmatprep.subr.bf16.mxu0 0
        %1292 = vmatpush1.bf16.xpose.msra.mxu0 0
        %1293 = vmatprep.subr.bf16.mxu0 0
        %1294 = vmatpush1.bf16.xpose.msra.mxu0 0
        %1295 = vmatprep.subr.bf16.mxu0 0
        %1296 = vmatpush1.bf16.xpose.msra.mxu0 0
        %1297 = vmatprep.subr.bf16.mxu0 0
        %1298 = vmatpush1.bf16.xpose.msra.mxu0 0
        %1299 = vmatprep.subr.bf16.mxu0 0
        %1300 = vmatpush1.bf16.xpose.msra.mxu0 0
        %1301 = vmatprep.subr.bf16.mxu0 0
        %1302 = vmatpush1.bf16.xpose.msra.mxu0 0
        %1303 = vmatprep.subr.bf16.mxu0 0
        %1304 = vmatpush1.bf16.xpose.msra.mxu0 0
        %1305 = vmatprep.subr.bf16.mxu0 0
        %1306 = vmatpush1.bf16.xpose.msra.mxu0 0
        %1307 = vmatprep.subr.bf16.mxu0 0
        %1308 = vmatpush1.bf16.xpose.msra.mxu0 0
        %1309 = vmatprep.subr.bf16.mxu0 0
        %1310 = vmatpush1.bf16.xpose.msra.mxu0 0
        %1311 = vmatprep.subr.bf16.mxu0 0
        %1312 = vmatpush1.bf16.xpose.msra.mxu0 0
        %1313 = vmatprep.subr.bf16.mxu0 0
        %1314 = vmatpush1.bf16.xpose.msra.mxu0 0
        %1315 = vmatprep.subr.bf16.mxu0 0
        %1316 = vmatpush1.bf16.xpose.msra.mxu0 0
        %1317 = vmatprep.subr.bf16.mxu0 0
        %1318 = vmatpush1.bf16.xpose.msra.mxu0 0
        %1319 = vmatprep.mubr.bf16.mxu0 0
        %1320 = vmatmul.mubr.bf16.gmra.mrb[0].mxu0 %v1276
        %v1321 = vpop.f32.mrb[0].mxu0
        %v1322 = vadd.f32 0.0, %v1321
        %v1323 = vpop.f32.mrb[0].mxu0
        %v1324 = vpop.f32.mrb[0].mxu0
        %v1325 = vadd.f32 0.0, %v1324
        %v1326 = vpop.f32.mrb[0].mxu0
        %1327 = vmatprep.mubr.bf16.mxu0 0
        %1328 = vmatmul.mubr.bf16.gmra.mrb[0].mxu0 %v1279
        %v1329 = vpop.f32.mrb[0].mxu0
        %v1330 = vadd.f32 0.0, %v1329
        %v1331 = vpop.f32.mrb[0].mxu0
        %v1332 = vpop.f32.mrb[0].mxu0
        %v1333 = vpop.f32.mrb[0].mxu0
        %1334 = vdwg.mxu0
        %v1335 = vsel %vm1002, %v1322, -inf
        %1336 = vmax.xlane.f32.xlu0 %v1335
        %v1337 = vpop.xlane.xlu0 %1336
        %v1338 = vsel %vm1002, %v1325, -inf
        %1339 = vmax.xlane.f32.xlu0 %v1338
        %v1340 = vpop.xlane.xlu0 %1339
        %v1341 = vsel %vm1009, %v1330, -inf
        %1342 = vmax.xlane.f32.xlu0 %v1341
        %v1343 = vpop.xlane.xlu0 %1342
        %v1344 = vsub.f32 %v1322, %v1337
        %v1345 = vsub.f32 %v1325, %v1340
        %v1346 = vsub.f32 %v1330, %v1343
        %v1347 = vmul.f32 %v1344, 1.442695
        %v1348 = vpow.pop %v1347
        %v1349 = vmul.f32 %v1345, 1.442695
        %v1350 = vpow.pop %v1349
        %v1351 = vmul.f32 %v1346, 1.442695
        %v1352 = vpow.pop %v1351
        %v1353 = vsel %vm1002, %v1348, 0.0
        %1354 = vadd.xlane.f32.xlu0 %v1353
        %v1355 = vpop.xlane.xlu0 %1354
        %v1356 = vsel %vm1002, %v1350, 0.0
        %1357 = vadd.xlane.f32.xlu0 %v1356
        %v1358 = vpop.xlane.xlu0 %1357
        %v1359 = vsel %vm1009, %v1352, 0.0
        %1360 = vadd.xlane.f32.xlu0 %v1359
        %v1361 = vpop.xlane.xlu0 %1360
        %v1362 = vrcp.pop %v1355
        %v1363 = vrcp.pop %v1358
        %v1364 = vrcp.pop %v1361
        %v1365 = vmul.f32 %v1348, %v1362
        %v1366 = vmul.f32 %v1350, %v1363
        %v1367 = vmul.f32 %v1352, %v1364
        %v1368 = vpack.c.bf16 %v1366, %v1365
        %v1369 = vpack.c.bf16 %v1367, %v1367
        %1370 = vrot.lane.b32.xlu0 %v933, 48
        %v1371 = vpop.permute.xlu0 %1370
        %1372 = vrot.lane.b32.xlu0 %v934, 48
        %v1373 = vpop.permute.xlu0 %1372
        %v1376 = vsel %vm1002, %v1368, 0
        %v1379 = vsel %vm1002, %v1369, 0
        %v1382 = vsel %vm1050, %v1373, 0
        %1384 = vmatprep.subr.bf16.mxu0 0
        %1385 = vmatpush1.bf16.msra.mxu0 %v1371
        %1386 = vmatprep.subr.bf16.mxu0 0
        %1387 = vmatpush1.bf16.msra.mxu0 %v1382
        %1388 = vmatprep.subr.bf16.mxu0 0
        %1389 = vmatpush1.bf16.msra.mxu0 0
        %1390 = vmatprep.subr.bf16.mxu0 0
        %1391 = vmatpush1.bf16.msra.mxu0 0
        %1392 = vmatprep.subr.bf16.mxu0 0
        %1393 = vmatpush1.bf16.msra.mxu0 0
        %1394 = vmatprep.subr.bf16.mxu0 0
        %1395 = vmatpush1.bf16.msra.mxu0 0
        %1396 = vmatprep.subr.bf16.mxu0 0
        %1397 = vmatpush1.bf16.msra.mxu0 0
        %1398 = vmatprep.subr.bf16.mxu0 0
        %1399 = vmatpush1.bf16.msra.mxu0 0
        %1400 = vmatprep.subr.bf16.mxu0 0
        %1401 = vmatpush1.bf16.msra.mxu0 0
        %1402 = vmatprep.subr.bf16.mxu0 0
        %1403 = vmatpush1.bf16.msra.mxu0 0
        %1404 = vmatprep.subr.bf16.mxu0 0
        %1405 = vmatpush1.bf16.msra.mxu0 0
        %1406 = vmatprep.subr.bf16.mxu0 0
        %1407 = vmatpush1.bf16.msra.mxu0 0
        %1408 = vmatprep.subr.bf16.mxu0 0
        %1409 = vmatpush1.bf16.msra.mxu0 0
        %1410 = vmatprep.subr.bf16.mxu0 0
        %1411 = vmatpush1.bf16.msra.mxu0 0
        %1412 = vmatprep.subr.bf16.mxu0 0
        %1413 = vmatpush1.bf16.msra.mxu0 0
        %1414 = vmatprep.subr.bf16.mxu0 0
        %1415 = vmatpush1.bf16.msra.mxu0 0
        %1416 = vmatprep.mubr.bf16.mxu0 0
        %1417 = vmatmul.mubr.bf16.gmra.mrb[0].mxu0 %v1376
        %v1418 = vpop.f32.mrb[0].mxu0
        %v1419 = vadd.f32 0.0, %v1418
        %v1420 = vpop.f32.mrb[0].mxu0
        %v1421 = vpop.f32.mrb[0].mxu0
        %v1422 = vadd.f32 0.0, %v1421
        %v1423 = vpop.f32.mrb[0].mxu0
        %1424 = vmatprep.mubr.bf16.mxu0 0
        %1425 = vmatmul.mubr.bf16.gmra.mrb[0].mxu0 %v1379
        %v1426 = vpop.f32.mrb[0].mxu0
        %v1427 = vadd.f32 0.0, %v1426
        %v1428 = vpop.f32.mrb[0].mxu0
        %v1429 = vpop.f32.mrb[0].mxu0
        %v1430 = vpop.f32.mrb[0].mxu0
        %1431 = vdwg.mxu0
        %1432 = vrot.lane.b32.xlu0 %v933, 104
        %v1433 = vpop.permute.xlu0 %1432
        %1434 = vrot.lane.b32.xlu0 %v934, 104
        %v1435 = vpop.permute.xlu0 %1434
        %1436 = vrot.lane.b32.xlu0 %v933, 72
        %v1437 = vpop.permute.xlu0 %1436
        %1438 = vrot.lane.b32.xlu0 %v934, 72
        %v1439 = vpop.permute.xlu0 %1438
        %v1441 = vsel %vm941, %v1433, 0
        %v1444 = vsel %vm941, %v1435, 0
        %v1447 = vsel %vm941, %v1437, 0
        %v1450 = vsel %vm941, %v1439, 0
        %1452 = vmatprep.subr.bf16.mxu0 0
        %1453 = vmatpush1.bf16.xpose.msra.mxu0 %v1447
        %1454 = vmatprep.subr.bf16.mxu0 0
        %1455 = vmatpush1.bf16.xpose.msra.mxu0 %v1450
        %1456 = vmatprep.subr.bf16.mxu0 0
        %1457 = vmatpush1.bf16.xpose.msra.mxu0 0
        %1458 = vmatprep.subr.bf16.mxu0 0
        %1459 = vmatpush1.bf16.xpose.msra.mxu0 0
        %1460 = vmatprep.subr.bf16.mxu0 0
        %1461 = vmatpush1.bf16.xpose.msra.mxu0 0
        %1462 = vmatprep.subr.bf16.mxu0 0
        %1463 = vmatpush1.bf16.xpose.msra.mxu0 0
        %1464 = vmatprep.subr.bf16.mxu0 0
        %1465 = vmatpush1.bf16.xpose.msra.mxu0 0
        %1466 = vmatprep.subr.bf16.mxu0 0
        %1467 = vmatpush1.bf16.xpose.msra.mxu0 0
        %1468 = vmatprep.subr.bf16.mxu0 0
        %1469 = vmatpush1.bf16.xpose.msra.mxu0 0
        %1470 = vmatprep.subr.bf16.mxu0 0
        %1471 = vmatpush1.bf16.xpose.msra.mxu0 0
        %1472 = vmatprep.subr.bf16.mxu0 0
        %1473 = vmatpush1.bf16.xpose.msra.mxu0 0
        %1474 = vmatprep.subr.bf16.mxu0 0
        %1475 = vmatpush1.bf16.xpose.msra.mxu0 0
        %1476 = vmatprep.subr.bf16.mxu0 0
        %1477 = vmatpush1.bf16.xpose.msra.mxu0 0
        %1478 = vmatprep.subr.bf16.mxu0 0
        %1479 = vmatpush1.bf16.xpose.msra.mxu0 0
        %1480 = vmatprep.subr.bf16.mxu0 0
        %1481 = vmatpush1.bf16.xpose.msra.mxu0 0
        %1482 = vmatprep.subr.bf16.mxu0 0
        %1483 = vmatpush1.bf16.xpose.msra.mxu0 0
        %1484 = vmatprep.mubr.bf16.mxu0 0
        %1485 = vmatmul.mubr.bf16.gmra.mrb[0].mxu0 %v1441
        %v1486 = vpop.f32.mrb[0].mxu0
        %v1487 = vadd.f32 0.0, %v1486
        %v1488 = vpop.f32.mrb[0].mxu0
        %v1489 = vpop.f32.mrb[0].mxu0
        %v1490 = vadd.f32 0.0, %v1489
        %v1491 = vpop.f32.mrb[0].mxu0
        %1492 = vmatprep.mubr.bf16.mxu0 0
        %1493 = vmatmul.mubr.bf16.gmra.mrb[0].mxu0 %v1444
        %v1494 = vpop.f32.mrb[0].mxu0
        %v1495 = vadd.f32 0.0, %v1494
        %v1496 = vpop.f32.mrb[0].mxu0
        %v1497 = vpop.f32.mrb[0].mxu0
        %v1498 = vpop.f32.mrb[0].mxu0
        %1499 = vdwg.mxu0
        %v1500 = vsel %vm1002, %v1487, -inf
        %1501 = vmax.xlane.f32.xlu0 %v1500
        %v1502 = vpop.xlane.xlu0 %1501
        %v1503 = vsel %vm1002, %v1490, -inf
        %1504 = vmax.xlane.f32.xlu0 %v1503
        %v1505 = vpop.xlane.xlu0 %1504
        %v1506 = vsel %vm1009, %v1495, -inf
        %1507 = vmax.xlane.f32.xlu0 %v1506
        %v1508 = vpop.xlane.xlu0 %1507
        %v1509 = vsub.f32 %v1487, %v1502
        %v1510 = vsub.f32 %v1490, %v1505
        %v1511 = vsub.f32 %v1495, %v1508
        %v1512 = vmul.f32 %v1509, 1.442695
        %v1513 = vpow.pop %v1512
        %v1514 = vmul.f32 %v1510, 1.442695
        %v1515 = vpow.pop %v1514
        %v1516 = vmul.f32 %v1511, 1.442695
        %v1517 = vpow.pop %v1516
        %v1518 = vsel %vm1002, %v1513, 0.0
        %1519 = vadd.xlane.f32.xlu0 %v1518
        %v1520 = vpop.xlane.xlu0 %1519
        %v1521 = vsel %vm1002, %v1515, 0.0
        %1522 = vadd.xlane.f32.xlu0 %v1521
        %v1523 = vpop.xlane.xlu0 %1522
        %v1524 = vsel %vm1009, %v1517, 0.0
        %1525 = vadd.xlane.f32.xlu0 %v1524
        %v1526 = vpop.xlane.xlu0 %1525
        %v1527 = vrcp.pop %v1520
        %v1528 = vrcp.pop %v1523
        %v1529 = vrcp.pop %v1526
        %v1530 = vmul.f32 %v1513, %v1527
        %v1531 = vmul.f32 %v1515, %v1528
        %v1532 = vmul.f32 %v1517, %v1529
        %v1533 = vpack.c.bf16 %v1531, %v1530
        %v1534 = vpack.c.bf16 %v1532, %v1532
        %1535 = vrot.lane.b32.xlu0 %v933, 40
        %v1536 = vpop.permute.xlu0 %1535
        %1537 = vrot.lane.b32.xlu0 %v934, 40
        %v1538 = vpop.permute.xlu0 %1537
        %v1541 = vsel %vm1002, %v1533, 0
        %v1544 = vsel %vm1002, %v1534, 0
        %v1547 = vsel %vm1050, %v1538, 0
        %1549 = vmatprep.subr.bf16.mxu0 0
        %1550 = vmatpush1.bf16.msra.mxu0 %v1536
        %1551 = vmatprep.subr.bf16.mxu0 0
        %1552 = vmatpush1.bf16.msra.mxu0 %v1547
        %1553 = vmatprep.subr.bf16.mxu0 0
        %1554 = vmatpush1.bf16.msra.mxu0 0
        %1555 = vmatprep.subr.bf16.mxu0 0
        %1556 = vmatpush1.bf16.msra.mxu0 0
        %1557 = vmatprep.subr.bf16.mxu0 0
        %1558 = vmatpush1.bf16.msra.mxu0 0
        %1559 = vmatprep.subr.bf16.mxu0 0
        %1560 = vmatpush1.bf16.msra.mxu0 0
        %1561 = vmatprep.subr.bf16.mxu0 0
        %1562 = vmatpush1.bf16.msra.mxu0 0
        %1563 = vmatprep.subr.bf16.mxu0 0
        %1564 = vmatpush1.bf16.msra.mxu0 0
        %1565 = vmatprep.subr.bf16.mxu0 0
        %1566 = vmatpush1.bf16.msra.mxu0 0
        %1567 = vmatprep.subr.bf16.mxu0 0
        %1568 = vmatpush1.bf16.msra.mxu0 0
        %1569 = vmatprep.subr.bf16.mxu0 0
        %1570 = vmatpush1.bf16.msra.mxu0 0
        %1571 = vmatprep.subr.bf16.mxu0 0
        %1572 = vmatpush1.bf16.msra.mxu0 0
        %1573 = vmatprep.subr.bf16.mxu0 0
        %1574 = vmatpush1.bf16.msra.mxu0 0
        %1575 = vmatprep.subr.bf16.mxu0 0
        %1576 = vmatpush1.bf16.msra.mxu0 0
        %1577 = vmatprep.subr.bf16.mxu0 0
        %1578 = vmatpush1.bf16.msra.mxu0 0
        %1579 = vmatprep.subr.bf16.mxu0 0
        %1580 = vmatpush1.bf16.msra.mxu0 0
        %1581 = vmatprep.mubr.bf16.mxu0 0
        %1582 = vmatmul.mubr.bf16.gmra.mrb[0].mxu0 %v1541
        %v1583 = vpop.f32.mrb[0].mxu0
        %v1584 = vadd.f32 0.0, %v1583
        %v1585 = vpop.f32.mrb[0].mxu0
        %v1586 = vpop.f32.mrb[0].mxu0
        %v1587 = vadd.f32 0.0, %v1586
        %v1588 = vpop.f32.mrb[0].mxu0
        %1589 = vmatprep.mubr.bf16.mxu0 0
        %1590 = vmatmul.mubr.bf16.gmra.mrb[0].mxu0 %v1544
        %v1591 = vpop.f32.mrb[0].mxu0
        %v1592 = vadd.f32 0.0, %v1591
        %v1593 = vpop.f32.mrb[0].mxu0
        %v1594 = vpop.f32.mrb[0].mxu0
        %v1595 = vpop.f32.mrb[0].mxu0
        %1596 = vdwg.mxu0
        %1600 = vrot.lane.b32.xlu0 %v1254, 8
        %v1601 = vpop.permute.xlu0 %1600
        %1602 = vrot.lane.b32.xlu0 %v1257, 8
        %v1603 = vpop.permute.xlu0 %1602
        %1604 = vrot.lane.b32.xlu0 %v1262, 8
        %v1605 = vpop.permute.xlu0 %1604
        %1612 = vrot.lane.b32.xlu0 %v1419, 16
        %v1613 = vpop.permute.xlu0 %1612
        %1614 = vrot.lane.b32.xlu0 %v1422, 16
        %v1615 = vpop.permute.xlu0 %1614
        %1616 = vrot.lane.b32.xlu0 %v1427, 16
        %v1617 = vpop.permute.xlu0 %1616
        %1624 = vrot.lane.b32.xlu0 %v1584, 24
        %v1625 = vpop.permute.xlu0 %1624
        %1626 = vrot.lane.b32.xlu0 %v1587, 24
        %v1627 = vpop.permute.xlu0 %1626
        %1628 = vrot.lane.b32.xlu0 %v1592, 24
        %v1629 = vpop.permute.xlu0 %1628
        %v1633 = vsel %vm941, %v1089, %v1601
        %v1634 = vsel %vm941, %v1092, %v1603
        %v1635 = vsel %vm941, %v1097, %v1605
        %vm1636 = vcmask 130048
        %v1637 = vsel %vm1636, %v1633, %v1613
        %v1638 = vsel %vm1636, %v1634, %v1615
        %v1639 = vsel %vm1636, %v1635, %v1617
        %vm1640 = vcmask 195584
        %v1641 = vsel %vm1640, %v1637, %v1625
        %v1642 = vsel %vm1640, %v1638, %v1627
        %v1643 = vsel %vm1640, %v1639, %v1629
        %v1644 = vpack.c.bf16 %v1642, %v1641
        %v1645 = vpack.c.bf16 %v1643, %v1643
        %v1646 = vlaneseq
        %v1647 = vshrl.u32 %v1646, 7
        %v1648 = vsub.s32 4, %v1647
        %v1649 = vrot.slane %v793, %v1648
        %v1654 = vunpack.c.l.b16 %v857
        %v1655 = vunpack.c.l.b16 %v858
        %v1656 = vunpack.c.l.b16 %v859
        %v1657 = vunpack.c.l.b16 %v860
        %v1658 = vpack.c.b16 %v1655, %v1654
        %v1659 = vpack.c.b16 %v1657, %v1656
        %v1663 = vsel %vm794, %v1644, 0
        %v1666 = vsel %vm794, %v1645, 0
        %1668 = vmatprep.subr.bf16.mxu0 0
        %1669 = vmatpush1.bf16.msra.mxu0 %v1658
        %1670 = vmatprep.subr.bf16.mxu0 0
        %1671 = vmatpush1.bf16.msra.mxu0 %v1659
        %1672 = vmatprep.subr.bf16.mxu0 0
        %1673 = vmatpush1.bf16.msra.mxu0 0
        %1674 = vmatprep.subr.bf16.mxu0 0
        %1675 = vmatpush1.bf16.msra.mxu0 0
        %1676 = vmatprep.subr.bf16.mxu0 0
        %1677 = vmatpush1.bf16.msra.mxu0 0
        %1678 = vmatprep.subr.bf16.mxu0 0
        %1679 = vmatpush1.bf16.msra.mxu0 0
        %1680 = vmatprep.subr.bf16.mxu0 0
        %1681 = vmatpush1.bf16.msra.mxu0 0
        %1682 = vmatprep.subr.bf16.mxu0 0
        %1683 = vmatpush1.bf16.msra.mxu0 0
        %1684 = vmatprep.subr.bf16.mxu0 0
        %1685 = vmatpush1.bf16.msra.mxu0 0
        %1686 = vmatprep.subr.bf16.mxu0 0
        %1687 = vmatpush1.bf16.msra.mxu0 0
        %1688 = vmatprep.subr.bf16.mxu0 0
        %1689 = vmatpush1.bf16.msra.mxu0 0
        %1690 = vmatprep.subr.bf16.mxu0 0
        %1691 = vmatpush1.bf16.msra.mxu0 0
        %1692 = vmatprep.subr.bf16.mxu0 0
        %1693 = vmatpush1.bf16.msra.mxu0 0
        %1694 = vmatprep.subr.bf16.mxu0 0
        %1695 = vmatpush1.bf16.msra.mxu0 0
        %1696 = vmatprep.subr.bf16.mxu0 0
        %1697 = vmatpush1.bf16.msra.mxu0 0
        %1698 = vmatprep.subr.bf16.mxu0 0
        %1699 = vmatpush1.bf16.msra.mxu0 0
        %1700 = vmatprep.mubr.bf16.mxu0 0
        %1701 = vmatmul.mubr.bf16.gmra.mrb[0].mxu0 %v1663
        %v1702 = vpop.f32.mrb[0].mxu0
        %v1703 = vadd.f32 %v1649, %v1702
        %v1704 = vpop.f32.mrb[0].mxu0
        %v1705 = vpop.f32.mrb[0].mxu0
        %v1706 = vadd.f32 %v1649, %v1705
        %v1707 = vpop.f32.mrb[0].mxu0
        %1708 = vmatprep.mubr.bf16.mxu0 0
        %1709 = vmatmul.mubr.bf16.gmra.mrb[0].mxu0 %v1666
        %v1710 = vpop.f32.mrb[0].mxu0
        %v1711 = vadd.f32 %v1649, %v1710
        %v1712 = vpop.f32.mrb[0].mxu0
        %v1713 = vpop.f32.mrb[0].mxu0
        %v1714 = vpop.f32.mrb[0].mxu0
        %1715 = vdwg.mxu0
        %v1716 = vadd.f32 %v780, %v1703
        %v1717 = vadd.f32 %v783, %v1706
        %v1718 = vadd.f32 %v788, %v1711
        %v1719 = vsel %vm794, %v1716, 0.0
        %1720 = vadd.xlane.f32.xlu0 %v1719
        %v1721 = vpop.xlane.xlu0 %1720
        %v1722 = vsel %vm794, %v1717, 0.0
        %1723 = vadd.xlane.f32.xlu0 %v1722
        %v1724 = vpop.xlane.xlu0 %1723
        %v1725 = vsel %vm801, %v1718, 0.0
        %1726 = vadd.xlane.f32.xlu0 %v1725
        %v1727 = vpop.xlane.xlu0 %1726
        %v1728 = vmul.f32 %v1721, %v805
        %v1729 = vmul.f32 %v1724, %v805
        %v1730 = vmul.f32 %v1727, %v805
        %v1731 = vsub.f32 %v1716, %v1728
        %v1732 = vsub.f32 %v1717, %v1729
        %v1733 = vsub.f32 %v1718, %v1730
        %v1734 = vmul.f32 %v1731, %v1731
        %v1735 = vmul.f32 %v1732, %v1732
        %v1736 = vmul.f32 %v1733, %v1733
        %v1737 = vsel %vm794, %v1734, 0.0
        %1738 = vadd.xlane.f32.xlu0 %v1737
        %v1739 = vpop.xlane.xlu0 %1738
        %v1740 = vsel %vm794, %v1735, 0.0
        %1741 = vadd.xlane.f32.xlu0 %v1740
        %v1742 = vpop.xlane.xlu0 %1741
        %v1743 = vsel %vm801, %v1736, 0.0
        %1744 = vadd.xlane.f32.xlu0 %v1743
        %v1745 = vpop.xlane.xlu0 %1744
        %v1746 = vmul.f32 %v1739, %v805
        %v1747 = vmul.f32 %v1742, %v805
        %v1748 = vmul.f32 %v1745, %v805
        %v1749 = vadd.f32 %v1746, 1e-05
        %v1750 = vadd.f32 %v1747, 1e-05
        %v1751 = vadd.f32 %v1748, 1e-05
        %v1752 = vrsqrt.pop %v1749
        %v1753 = vrsqrt.pop %v1750
        %v1754 = vrsqrt.pop %v1751
        %v1755 = vmul.f32 %v1731, %v1752
        %v1756 = vmul.f32 %v1732, %v1753
        %v1757 = vmul.f32 %v1733, %v1754
        %v1758 = vlaneseq
        %v1759 = vshrl.u32 %v1758, 7
        %v1760 = vsub.s32 2, %v1759
        %v1761 = vrot.slane %v793, %v1760
        %v1762 = vmul.f32 %v1755, %v1761
        %v1763 = vmul.f32 %v1756, %v1761
        %v1764 = vmul.f32 %v1757, %v1761
        %v1765 = vlaneseq
        %v1766 = vshrl.u32 %v1765, 7
        %v1767 = vsub.s32 3, %v1766
        %v1768 = vrot.slane %v793, %v1767
        %v1769 = vadd.f32 %v1762, %v1768
        %v1770 = vadd.f32 %v1763, %v1768
        %v1771 = vadd.f32 %v1764, %v1768
        %v1772 = vpack.c.bf16 %v1770, %v1769
        %v1773 = vpack.c.bf16 %v1771, %v1771
        %v1774 = vld [vmem:[%s7] sm:$0xf]
        %v1775 = vld [vmem:[%s7 + $0x4] sm:$0xf]
        %v1776 = vld [vmem:[%s7 + $0x8] sm:$0xf]
        %v1777 = vld [vmem:[%s7 + $0xc] sm:$0xf]
        %v1778 = vld [vmem:[%s8] sm:$0x1]
        %v1779 = vld [vmem:[%s9] sm:$0xf]
        %v1780 = vld [vmem:[%s9 + $0x4] sm:$0xf]
        %v1781 = vld [vmem:[%s9 + $0x8] sm:$0xf]
        %v1782 = vld [vmem:[%s9 + $0xc] sm:$0xf]
        %v1783 = vld [vmem:[%s9 + $0x10] sm:$0xf]
        %v1784 = vld [vmem:[%s9 + $0x14] sm:$0xf]
        %v1785 = vld [vmem:[%s9 + $0x18] sm:$0xf]
        %v1786 = vld [vmem:[%s9 + $0x1c] sm:$0xf]
        %v1788 = vlaneseq
        %v1789 = vshrl.u32 %v1788, 7
        %v1790 = vsub.s32 0, %v1789
        %v1791 = vrot.slane %v1778, %v1790
        %v1797 = vunpack.c.l.b16 %v1774
        %v1798 = vunpack.c.l.b16 %v1775
        %v1799 = vunpack.c.l.b16 %v1776
        %v1800 = vunpack.c.l.b16 %v1777
        %v1801 = vpack.c.b16 %v1798, %v1797
        %v1802 = vpack.c.b16 %v1800, %v1799
        %v1806 = vsel %vm794, %v1772, 0
        %v1809 = vsel %vm794, %v1773, 0
        %1811 = vmatprep.subr.bf16.mxu0 0
        %1812 = vmatpush1.bf16.msra.mxu0 %v1801
        %1813 = vmatprep.subr.bf16.mxu0 0
        %1814 = vmatpush1.bf16.msra.mxu0 %v1802
        %1815 = vmatprep.subr.bf16.mxu0 0
        %1816 = vmatpush1.bf16.msra.mxu0 0
        %1817 = vmatprep.subr.bf16.mxu0 0
        %1818 = vmatpush1.bf16.msra.mxu0 0
        %1819 = vmatprep.subr.bf16.mxu0 0
        %1820 = vmatpush1.bf16.msra.mxu0 0
        %1821 = vmatprep.subr.bf16.mxu0 0
        %1822 = vmatpush1.bf16.msra.mxu0 0
        %1823 = vmatprep.subr.bf16.mxu0 0
        %1824 = vmatpush1.bf16.msra.mxu0 0
        %1825 = vmatprep.subr.bf16.mxu0 0
        %1826 = vmatpush1.bf16.msra.mxu0 0
        %1827 = vmatprep.subr.bf16.mxu0 0
        %1828 = vmatpush1.bf16.msra.mxu0 0
        %1829 = vmatprep.subr.bf16.mxu0 0
        %1830 = vmatpush1.bf16.msra.mxu0 0
        %1831 = vmatprep.subr.bf16.mxu0 0
        %1832 = vmatpush1.bf16.msra.mxu0 0
        %1833 = vmatprep.subr.bf16.mxu0 0
        %1834 = vmatpush1.bf16.msra.mxu0 0
        %1835 = vmatprep.subr.bf16.mxu0 0
        %1836 = vmatpush1.bf16.msra.mxu0 0
        %1837 = vmatprep.subr.bf16.mxu0 0
        %1838 = vmatpush1.bf16.msra.mxu0 0
        %1839 = vmatprep.subr.bf16.mxu0 0
        %1840 = vmatpush1.bf16.msra.mxu0 0
        %1841 = vmatprep.subr.bf16.mxu0 0
        %1842 = vmatpush1.bf16.msra.mxu0 0
        %1843 = vmatprep.mubr.bf16.mxu0 0
        %1844 = vmatmul.mubr.bf16.gmra.mrb[0].mxu0 %v1806
        %v1845 = vpop.f32.mrb[0].mxu0
        %v1846 = vadd.f32 %v1791, %v1845
        %v1847 = vpop.f32.mrb[0].mxu0
        %v1848 = vpop.f32.mrb[0].mxu0
        %v1849 = vadd.f32 %v1791, %v1848
        %v1850 = vpop.f32.mrb[0].mxu0
        %1851 = vmatprep.mubr.bf16.mxu0 0
        %1852 = vmatmul.mubr.bf16.gmra.mrb[0].mxu0 %v1809
        %v1853 = vpop.f32.mrb[0].mxu0
        %v1854 = vadd.f32 %v1791, %v1853
        %v1855 = vpop.f32.mrb[0].mxu0
        %v1856 = vpop.f32.mrb[0].mxu0
        %v1857 = vpop.f32.mrb[0].mxu0
        %1858 = vdwg.mxu0
        %v1859 = vmul.f32 %v1846, %v1846
        %v1860 = vmul.f32 %v1849, %v1849
        %v1861 = vmul.f32 %v1854, %v1854
        %v1862 = vmul.f32 %v1846, %v1859
        %v1863 = vmul.f32 %v1849, %v1860
        %v1864 = vmul.f32 %v1854, %v1861
        %v1865 = vmul.f32 %v1862, 0.044715
        %v1866 = vmul.f32 %v1863, 0.044715
        %v1867 = vmul.f32 %v1864, 0.044715
        %v1868 = vadd.f32 %v1846, %v1865
        %v1869 = vadd.f32 %v1849, %v1866
        %v1870 = vadd.f32 %v1854, %v1867
        %v1871 = vmul.f32 %v1868, 0.7978846
        %v1872 = vmul.f32 %v1869, 0.7978846
        %v1873 = vmul.f32 %v1870, 0.7978846
        %v1874 = vtanh.pop %v1871
        %v1875 = vtanh.pop %v1872
        %v1876 = vtanh.pop %v1873
        %v1877 = vadd.f32 %v1874, 1.0
        %v1878 = vadd.f32 %v1875, 1.0
        %v1879 = vadd.f32 %v1876, 1.0
        %v1880 = vmul.f32 %v1877, 0.5
        %v1881 = vmul.f32 %v1878, 0.5
        %v1882 = vmul.f32 %v1879, 0.5
        %v1883 = vmul.f32 %v1846, %v1880
        %v1884 = vmul.f32 %v1849, %v1881
        %v1885 = vmul.f32 %v1854, %v1882
        %v1886 = vpack.c.bf16 %v1884, %v1883
        %v1887 = vpack.c.bf16 %v1885, %v1885
        %v1888 = vlaneseq
        %v1889 = vshrl.u32 %v1888, 7
        %v1890 = vsub.s32 5, %v1889
        %v1891 = vrot.slane %v793, %v1890
        %v1900 = vunpack.c.l.b16 %v1779
        %v1901 = vunpack.c.l.b16 %v1780
        %v1902 = vunpack.c.l.b16 %v1781
        %v1903 = vunpack.c.l.b16 %v1782
        %v1904 = vunpack.c.l.b16 %v1783
        %v1905 = vunpack.c.l.b16 %v1784
        %v1906 = vunpack.c.l.b16 %v1785
        %v1907 = vunpack.c.l.b16 %v1786
        %v1908 = vpack.c.b16 %v1901, %v1900
        %v1909 = vpack.c.b16 %v1903, %v1902
        %v1910 = vpack.c.b16 %v1905, %v1904
        %v1911 = vpack.c.b16 %v1907, %v1906
        %vm1916 = vcmask 523264
        %v1918 = vsel %vm1916, %v1886, 0
        %v1921 = vsel %vm1916, %v1887, 0
        %1923 = vmatprep.subr.bf16.mxu0 0
        %1924 = vmatpush1.bf16.msra.mxu0 %v1908
        %1925 = vmatprep.subr.bf16.mxu0 0
        %1926 = vmatpush1.bf16.msra.mxu0 %v1909
        %1927 = vmatprep.subr.bf16.mxu0 0
        %1928 = vmatpush1.bf16.msra.mxu0 %v1910
        %1929 = vmatprep.subr.bf16.mxu0 0
        %1930 = vmatpush1.bf16.msra.mxu0 %v1911
        %1931 = vmatprep.subr.bf16.mxu0 0
        %1932 = vmatpush1.bf16.msra.mxu0 0
        %1933 = vmatprep.subr.bf16.mxu0 0
        %1934 = vmatpush1.bf16.msra.mxu0 0
        %1935 = vmatprep.subr.bf16.mxu0 0
        %1936 = vmatpush1.bf16.msra.mxu0 0
        %1937 = vmatprep.subr.bf16.mxu0 0
        %1938 = vmatpush1.bf16.msra.mxu0 0
        %1939 = vmatprep.subr.bf16.mxu0 0
        %1940 = vmatpush1.bf16.msra.mxu0 0
        %1941 = vmatprep.subr.bf16.mxu0 0
        %1942 = vmatpush1.bf16.msra.mxu0 0
        %1943 = vmatprep.subr.bf16.mxu0 0
        %1944 = vmatpush1.bf16.msra.mxu0 0
        %1945 = vmatprep.subr.bf16.mxu0 0
        %1946 = vmatpush1.bf16.msra.mxu0 0
        %1947 = vmatprep.subr.bf16.mxu0 0
        %1948 = vmatpush1.bf16.msra.mxu0 0
        %1949 = vmatprep.subr.bf16.mxu0 0
        %1950 = vmatpush1.bf16.msra.mxu0 0
        %1951 = vmatprep.subr.bf16.mxu0 0
        %1952 = vmatpush1.bf16.msra.mxu0 0
        %1953 = vmatprep.subr.bf16.mxu0 0
        %1954 = vmatpush1.bf16.msra.mxu0 0
        %1955 = vmatprep.mubr.bf16.mxu0 0
        %1956 = vmatmul.mubr.bf16.gmra.mrb[0].mxu0 %v1918
        %v1957 = vpop.f32.mrb[0].mxu0
        %v1958 = vadd.f32 %v1891, %v1957
        %v1959 = vpop.f32.mrb[0].mxu0
        %v1960 = vpop.f32.mrb[0].mxu0
        %v1961 = vadd.f32 %v1891, %v1960
        %v1962 = vpop.f32.mrb[0].mxu0
        %1963 = vmatprep.mubr.bf16.mxu0 0
        %1964 = vmatmul.mubr.bf16.gmra.mrb[0].mxu0 %v1921
        %v1965 = vpop.f32.mrb[0].mxu0
        %v1966 = vadd.f32 %v1891, %v1965
        %v1967 = vpop.f32.mrb[0].mxu0
        %v1968 = vpop.f32.mrb[0].mxu0
        %v1969 = vpop.f32.mrb[0].mxu0
        %1970 = vdwg.mxu0
        %v1971 = vadd.f32 %v1716, %v1958
        %v1972 = vadd.f32 %v1717, %v1961
        %v1973 = vadd.f32 %v1718, %v1966
        %s1974 = scalar_lea.vmem %s3, 8
        %v1975 = vld [vmem:[%s1974] sm:$0x3f]
        %v1976 = vsel %vm794, %v1971, 0.0
        %1977 = vadd.xlane.f32.xlu0 %v1976
        %v1978 = vpop.xlane.xlu0 %1977
        %v1979 = vsel %vm794, %v1972, 0.0
        %1980 = vadd.xlane.f32.xlu0 %v1979
        %v1981 = vpop.xlane.xlu0 %1980
        %v1982 = vsel %vm801, %v1973, 0.0
        %1983 = vadd.xlane.f32.xlu0 %v1982
        %v1984 = vpop.xlane.xlu0 %1983
        %v1985 = vmul.f32 %v1978, %v805
        %v1986 = vmul.f32 %v1981, %v805
        %v1987 = vmul.f32 %v1984, %v805
        %v1988 = vsub.f32 %v1971, %v1985
        %v1989 = vsub.f32 %v1972, %v1986
        %v1990 = vsub.f32 %v1973, %v1987
        %v1991 = vmul.f32 %v1988, %v1988
        %v1992 = vmul.f32 %v1989, %v1989
        %v1993 = vmul.f32 %v1990, %v1990
        %v1994 = vsel %vm794, %v1991, 0.0
        %1995 = vadd.xlane.f32.xlu0 %v1994
        %v1996 = vpop.xlane.xlu0 %1995
        %v1997 = vsel %vm794, %v1992, 0.0
        %1998 = vadd.xlane.f32.xlu0 %v1997
        %v1999 = vpop.xlane.xlu0 %1998
        %v2000 = vsel %vm801, %v1993, 0.0
        %2001 = vadd.xlane.f32.xlu0 %v2000
        %v2002 = vpop.xlane.xlu0 %2001
        %v2003 = vmul.f32 %v1996, %v805
        %v2004 = vmul.f32 %v1999, %v805
        %v2005 = vmul.f32 %v2002, %v805
        %v2006 = vadd.f32 %v2003, 1e-05
        %v2007 = vadd.f32 %v2004, 1e-05
        %v2008 = vadd.f32 %v2005, 1e-05
        %v2009 = vrsqrt.pop %v2006
        %v2010 = vrsqrt.pop %v2007
        %v2011 = vrsqrt.pop %v2008
        %v2012 = vmul.f32 %v1988, %v2009
        %v2013 = vmul.f32 %v1989, %v2010
        %v2014 = vmul.f32 %v1990, %v2011
        %v2015 = vlaneseq
        %v2016 = vshrl.u32 %v2015, 7
        %v2017 = vsub.s32 0, %v2016
        %v2018 = vrot.slane %v1975, %v2017
        %v2019 = vmul.f32 %v2012, %v2018
        %v2020 = vmul.f32 %v2013, %v2018
        %v2021 = vmul.f32 %v2014, %v2018
        %v2022 = vlaneseq
        %v2023 = vshrl.u32 %v2022, 7
        %v2024 = vsub.s32 1, %v2023
        %v2025 = vrot.slane %v1975, %v2024
        %v2026 = vadd.f32 %v2019, %v2025
        %v2027 = vadd.f32 %v2020, %v2025
        %v2028 = vadd.f32 %v2021, %v2025
        %v2029 = vpack.c.bf16 %v2027, %v2026
        %v2030 = vpack.c.bf16 %v2028, %v2028
        %s2031 = scalar_lea.vmem %s4, 16
        %v2032 = vld [vmem:[%s2031] sm:$0xf]
        %v2033 = vld [vmem:[%s2031 + $0x4] sm:$0xf]
        %v2034 = vld [vmem:[%s2031 + $0x8] sm:$0xf]
        %v2035 = vld [vmem:[%s2031 + $0xc] sm:$0xf]
        %s2036 = scalar_lea.vmem %s5, 1
        %v2037 = vld [vmem:[%s2036] sm:$0x1]
        %s2038 = scalar_lea.vmem %s6, 16
        %v2039 = vld [vmem:[%s2038] sm:$0xf]
        %v2040 = vld [vmem:[%s2038 + $0x4] sm:$0xf]
        %v2041 = vld [vmem:[%s2038 + $0x8] sm:$0xf]
        %v2042 = vld [vmem:[%s2038 + $0xc] sm:$0xf]
        %v2044 = vlaneseq
        %v2045 = vshrl.u32 %v2044, 7
        %v2046 = vsub.s32 0, %v2045
        %v2047 = vrot.slane %v2037, %v2046
        %v2053 = vunpack.c.l.b16 %v2032
        %v2054 = vunpack.c.l.b16 %v2033
        %v2055 = vunpack.c.l.b16 %v2034
        %v2056 = vunpack.c.l.b16 %v2035
        %v2057 = vpack.c.b16 %v2054, %v2053
        %v2058 = vpack.c.b16 %v2056, %v2055
        %v2062 = vsel %vm794, %v2029, 0
        %v2065 = vsel %vm794, %v2030, 0
        %2067 = vmatprep.subr.bf16.mxu0 0
        %2068 = vmatpush1.bf16.msra.mxu0 %v2057
        %2069 = vmatprep.subr.bf16.mxu0 0
        %2070 = vmatpush1.bf16.msra.mxu0 %v2058
        %2071 = vmatprep.subr.bf16.mxu0 0
        %2072 = vmatpush1.bf16.msra.mxu0 0
        %2073 = vmatprep.subr.bf16.mxu0 0
        %2074 = vmatpush1.bf16.msra.mxu0 0
        %2075 = vmatprep.subr.bf16.mxu0 0
        %2076 = vmatpush1.bf16.msra.mxu0 0
        %2077 = vmatprep.subr.bf16.mxu0 0
        %2078 = vmatpush1.bf16.msra.mxu0 0
        %2079 = vmatprep.subr.bf16.mxu0 0
        %2080 = vmatpush1.bf16.msra.mxu0 0
        %2081 = vmatprep.subr.bf16.mxu0 0
        %2082 = vmatpush1.bf16.msra.mxu0 0
        %2083 = vmatprep.subr.bf16.mxu0 0
        %2084 = vmatpush1.bf16.msra.mxu0 0
        %2085 = vmatprep.subr.bf16.mxu0 0
        %2086 = vmatpush1.bf16.msra.mxu0 0
        %2087 = vmatprep.subr.bf16.mxu0 0
        %2088 = vmatpush1.bf16.msra.mxu0 0
        %2089 = vmatprep.subr.bf16.mxu0 0
        %2090 = vmatpush1.bf16.msra.mxu0 0
        %2091 = vmatprep.subr.bf16.mxu0 0
        %2092 = vmatpush1.bf16.msra.mxu0 0
        %2093 = vmatprep.subr.bf16.mxu0 0
        %2094 = vmatpush1.bf16.msra.mxu0 0
        %2095 = vmatprep.subr.bf16.mxu0 0
        %2096 = vmatpush1.bf16.msra.mxu0 0
        %2097 = vmatprep.subr.bf16.mxu0 0
        %2098 = vmatpush1.bf16.msra.mxu0 0
        %2099 = vmatprep.mubr.bf16.mxu0 0
        %2100 = vmatmul.mubr.bf16.gmra.mrb[0].mxu0 %v2062
        %v2101 = vpop.f32.mrb[0].mxu0
        %v2102 = vadd.f32 %v2047, %v2101
        %v2103 = vpop.f32.mrb[0].mxu0
        %v2104 = vpop.f32.mrb[0].mxu0
        %v2105 = vadd.f32 %v2047, %v2104
        %v2106 = vpop.f32.mrb[0].mxu0
        %2107 = vmatprep.mubr.bf16.mxu0 0
        %2108 = vmatmul.mubr.bf16.gmra.mrb[0].mxu0 %v2065
        %v2109 = vpop.f32.mrb[0].mxu0
        %v2110 = vadd.f32 %v2047, %v2109
        %v2111 = vpop.f32.mrb[0].mxu0
        %v2112 = vpop.f32.mrb[0].mxu0
        %v2113 = vpop.f32.mrb[0].mxu0
        %2114 = vdwg.mxu0
        %v2115 = vpack.c.bf16 %v2105, %v2102
        %v2116 = vpack.c.bf16 %v2110, %v2110
        %2119 = vrot.lane.b32.xlu0 %v2115, 96
        %v2120 = vpop.permute.xlu0 %2119
        %2121 = vrot.lane.b32.xlu0 %v2116, 96
        %v2122 = vpop.permute.xlu0 %2121
        %v2124 = vsel %vm941, %v2115, 0
        %v2127 = vsel %vm941, %v2116, 0
        %v2130 = vsel %vm941, %v2120, 0
        %v2133 = vsel %vm941, %v2122, 0
        %2135 = vmatprep.subr.bf16.mxu0 0
        %2136 = vmatpush1.bf16.xpose.msra.mxu0 %v2130
        %2137 = vmatprep.subr.bf16.mxu0 0
        %2138 = vmatpush1.bf16.xpose.msra.mxu0 %v2133
        %2139 = vmatprep.subr.bf16.mxu0 0
        %2140 = vmatpush1.bf16.xpose.msra.mxu0 0
        %2141 = vmatprep.subr.bf16.mxu0 0
        %2142 = vmatpush1.bf16.xpose.msra.mxu0 0
        %2143 = vmatprep.subr.bf16.mxu0 0
        %2144 = vmatpush1.bf16.xpose.msra.mxu0 0
        %2145 = vmatprep.subr.bf16.mxu0 0
        %2146 = vmatpush1.bf16.xpose.msra.mxu0 0
        %2147 = vmatprep.subr.bf16.mxu0 0
        %2148 = vmatpush1.bf16.xpose.msra.mxu0 0
        %2149 = vmatprep.subr.bf16.mxu0 0
        %2150 = vmatpush1.bf16.xpose.msra.mxu0 0
        %2151 = vmatprep.subr.bf16.mxu0 0
        %2152 = vmatpush1.bf16.xpose.msra.mxu0 0
        %2153 = vmatprep.subr.bf16.mxu0 0
        %2154 = vmatpush1.bf16.xpose.msra.mxu0 0
        %2155 = vmatprep.subr.bf16.mxu0 0
        %2156 = vmatpush1.bf16.xpose.msra.mxu0 0
        %2157 = vmatprep.subr.bf16.mxu0 0
        %2158 = vmatpush1.bf16.xpose.msra.mxu0 0
        %2159 = vmatprep.subr.bf16.mxu0 0
        %2160 = vmatpush1.bf16.xpose.msra.mxu0 0
        %2161 = vmatprep.subr.bf16.mxu0 0
        %2162 = vmatpush1.bf16.xpose.msra.mxu0 0
        %2163 = vmatprep.subr.bf16.mxu0 0
        %2164 = vmatpush1.bf16.xpose.msra.mxu0 0
        %2165 = vmatprep.subr.bf16.mxu0 0
        %2166 = vmatpush1.bf16.xpose.msra.mxu0 0
        %2167 = vmatprep.mubr.bf16.mxu0 0
        %2168 = vmatmul.mubr.bf16.gmra.mrb[0].mxu0 %v2124
        %v2169 = vpop.f32.mrb[0].mxu0
        %v2170 = vadd.f32 0.0, %v2169
        %v2171 = vpop.f32.mrb[0].mxu0
        %v2172 = vpop.f32.mrb[0].mxu0
        %v2173 = vadd.f32 0.0, %v2172
        %v2174 = vpop.f32.mrb[0].mxu0
        %2175 = vmatprep.mubr.bf16.mxu0 0
        %2176 = vmatmul.mubr.bf16.gmra.mrb[0].mxu0 %v2127
        %v2177 = vpop.f32.mrb[0].mxu0
        %v2178 = vadd.f32 0.0, %v2177
        %v2179 = vpop.f32.mrb[0].mxu0
        %v2180 = vpop.f32.mrb[0].mxu0
        %v2181 = vpop.f32.mrb[0].mxu0
        %2182 = vdwg.mxu0
        %v2183 = vsel %vm1002, %v2170, -inf
        %2184 = vmax.xlane.f32.xlu0 %v2183
        %v2185 = vpop.xlane.xlu0 %2184
        %v2186 = vsel %vm1002, %v2173, -inf
        %2187 = vmax.xlane.f32.xlu0 %v2186
        %v2188 = vpop.xlane.xlu0 %2187
        %v2189 = vsel %vm1009, %v2178, -inf
        %2190 = vmax.xlane.f32.xlu0 %v2189
        %v2191 = vpop.xlane.xlu0 %2190
        %v2192 = vsub.f32 %v2170, %v2185
        %v2193 = vsub.f32 %v2173, %v2188
        %v2194 = vsub.f32 %v2178, %v2191
        %v2195 = vmul.f32 %v2192, 1.442695
        %v2196 = vpow.pop %v2195
        %v2197 = vmul.f32 %v2193, 1.442695
        %v2198 = vpow.pop %v2197
        %v2199 = vmul.f32 %v2194, 1.442695
        %v2200 = vpow.pop %v2199
        %v2201 = vsel %vm1002, %v2196, 0.0
        %2202 = vadd.xlane.f32.xlu0 %v2201
        %v2203 = vpop.xlane.xlu0 %2202
        %v2204 = vsel %vm1002, %v2198, 0.0
        %2205 = vadd.xlane.f32.xlu0 %v2204
        %v2206 = vpop.xlane.xlu0 %2205
        %v2207 = vsel %vm1009, %v2200, 0.0
        %2208 = vadd.xlane.f32.xlu0 %v2207
        %v2209 = vpop.xlane.xlu0 %2208
        %v2210 = vrcp.pop %v2203
        %v2211 = vrcp.pop %v2206
        %v2212 = vrcp.pop %v2209
        %v2213 = vmul.f32 %v2196, %v2210
        %v2214 = vmul.f32 %v2198, %v2211
        %v2215 = vmul.f32 %v2200, %v2212
        %v2216 = vpack.c.bf16 %v2214, %v2213
        %v2217 = vpack.c.bf16 %v2215, %v2215
        %2218 = vrot.lane.b32.xlu0 %v2115, 64
        %v2219 = vpop.permute.xlu0 %2218
        %2220 = vrot.lane.b32.xlu0 %v2116, 64
        %v2221 = vpop.permute.xlu0 %2220
        %v2224 = vsel %vm1002, %v2216, 0
        %v2227 = vsel %vm1002, %v2217, 0
        %v2230 = vsel %vm1050, %v2221, 0
        %2232 = vmatprep.subr.bf16.mxu0 0
        %2233 = vmatpush1.bf16.msra.mxu0 %v2219
        %2234 = vmatprep.subr.bf16.mxu0 0
        %2235 = vmatpush1.bf16.msra.mxu0 %v2230
        %2236 = vmatprep.subr.bf16.mxu0 0
        %2237 = vmatpush1.bf16.msra.mxu0 0
        %2238 = vmatprep.subr.bf16.mxu0 0
        %2239 = vmatpush1.bf16.msra.mxu0 0
        %2240 = vmatprep.subr.bf16.mxu0 0
        %2241 = vmatpush1.bf16.msra.mxu0 0
        %2242 = vmatprep.subr.bf16.mxu0 0
        %2243 = vmatpush1.bf16.msra.mxu0 0
        %2244 = vmatprep.subr.bf16.mxu0 0
        %2245 = vmatpush1.bf16.msra.mxu0 0
        %2246 = vmatprep.subr.bf16.mxu0 0
        %2247 = vmatpush1.bf16.msra.mxu0 0
        %2248 = vmatprep.subr.bf16.mxu0 0
        %2249 = vmatpush1.bf16.msra.mxu0 0
        %2250 = vmatprep.subr.bf16.mxu0 0
        %2251 = vmatpush1.bf16.msra.mxu0 0
        %2252 = vmatprep.subr.bf16.mxu0 0
        %2253 = vmatpush1.bf16.msra.mxu0 0
        %2254 = vmatprep.subr.bf16.mxu0 0
        %2255 = vmatpush1.bf16.msra.mxu0 0
        %2256 = vmatprep.subr.bf16.mxu0 0
        %2257 = vmatpush1.bf16.msra.mxu0 0
        %2258 = vmatprep.subr.bf16.mxu0 0
        %2259 = vmatpush1.bf16.msra.mxu0 0
        %2260 = vmatprep.subr.bf16.mxu0 0
        %2261 = vmatpush1.bf16.msra.mxu0 0
        %2262 = vmatprep.subr.bf16.mxu0 0
        %2263 = vmatpush1.bf16.msra.mxu0 0
        %2264 = vmatprep.mubr.bf16.mxu0 0
        %2265 = vmatmul.mubr.bf16.gmra.mrb[0].mxu0 %v2224
        %v2266 = vpop.f32.mrb[0].mxu0
        %v2267 = vadd.f32 0.0, %v2266
        %v2268 = vpop.f32.mrb[0].mxu0
        %v2269 = vpop.f32.mrb[0].mxu0
        %v2270 = vadd.f32 0.0, %v2269
        %v2271 = vpop.f32.mrb[0].mxu0
        %2272 = vmatprep.mubr.bf16.mxu0 0
        %2273 = vmatmul.mubr.bf16.gmra.mrb[0].mxu0 %v2227
        %v2274 = vpop.f32.mrb[0].mxu0
        %v2275 = vadd.f32 0.0, %v2274
        %v2276 = vpop.f32.mrb[0].mxu0
        %v2277 = vpop.f32.mrb[0].mxu0
        %v2278 = vpop.f32.mrb[0].mxu0
        %2279 = vdwg.mxu0
        %2280 = vrot.lane.b32.xlu0 %v2115, 120
        %v2281 = vpop.permute.xlu0 %2280
        %2282 = vrot.lane.b32.xlu0 %v2116, 120
        %v2283 = vpop.permute.xlu0 %2282
        %2284 = vrot.lane.b32.xlu0 %v2115, 88
        %v2285 = vpop.permute.xlu0 %2284
        %2286 = vrot.lane.b32.xlu0 %v2116, 88
        %v2287 = vpop.permute.xlu0 %2286
        %v2289 = vsel %vm941, %v2281, 0
        %v2292 = vsel %vm941, %v2283, 0
        %v2295 = vsel %vm941, %v2285, 0
        %v2298 = vsel %vm941, %v2287, 0
        %2300 = vmatprep.subr.bf16.mxu0 0
        %2301 = vmatpush1.bf16.xpose.msra.mxu0 %v2295
        %2302 = vmatprep.subr.bf16.mxu0 0
        %2303 = vmatpush1.bf16.xpose.msra.mxu0 %v2298
        %2304 = vmatprep.subr.bf16.mxu0 0
        %2305 = vmatpush1.bf16.xpose.msra.mxu0 0
        %2306 = vmatprep.subr.bf16.mxu0 0
        %2307 = vmatpush1.bf16.xpose.msra.mxu0 0
        %2308 = vmatprep.subr.bf16.mxu0 0
        %2309 = vmatpush1.bf16.xpose.msra.mxu0 0
        %2310 = vmatprep.subr.bf16.mxu0 0
        %2311 = vmatpush1.bf16.xpose.msra.mxu0 0
        %2312 = vmatprep.subr.bf16.mxu0 0
        %2313 = vmatpush1.bf16.xpose.msra.mxu0 0
        %2314 = vmatprep.subr.bf16.mxu0 0
        %2315 = vmatpush1.bf16.xpose.msra.mxu0 0
        %2316 = vmatprep.subr.bf16.mxu0 0
        %2317 = vmatpush1.bf16.xpose.msra.mxu0 0
        %2318 = vmatprep.subr.bf16.mxu0 0
        %2319 = vmatpush1.bf16.xpose.msra.mxu0 0
        %2320 = vmatprep.subr.bf16.mxu0 0
        %2321 = vmatpush1.bf16.xpose.msra.mxu0 0
        %2322 = vmatprep.subr.bf16.mxu0 0
        %2323 = vmatpush1.bf16.xpose.msra.mxu0 0
        %2324 = vmatprep.subr.bf16.mxu0 0
        %2325 = vmatpush1.bf16.xpose.msra.mxu0 0
        %2326 = vmatprep.subr.bf16.mxu0 0
        %2327 = vmatpush1.bf16.xpose.msra.mxu0 0
        %2328 = vmatprep.subr.bf16.mxu0 0
        %2329 = vmatpush1.bf16.xpose.msra.mxu0 0
        %2330 = vmatprep.subr.bf16.mxu0 0
        %2331 = vmatpush1.bf16.xpose.msra.mxu0 0
        %2332 = vmatprep.mubr.bf16.mxu0 0
        %2333 = vmatmul.mubr.bf16.gmra.mrb[0].mxu0 %v2289
        %v2334 = vpop.f32.mrb[0].mxu0
        %v2335 = vadd.f32 0.0, %v2334
        %v2336 = vpop.f32.mrb[0].mxu0
        %v2337 = vpop.f32.mrb[0].mxu0
        %v2338 = vadd.f32 0.0, %v2337
        %v2339 = vpop.f32.mrb[0].mxu0
        %2340 = vmatprep.mubr.bf16.mxu0 0
        %2341 = vmatmul.mubr.bf16.gmra.mrb[0].mxu0 %v2292
        %v2342 = vpop.f32.mrb[0].mxu0
        %v2343 = vadd.f32 0.0, %v2342
        %v2344 = vpop.f32.mrb[0].mxu0
        %v2345 = vpop.f32.mrb[0].mxu0
        %v2346 = vpop.f32.mrb[0].mxu0
        %2347 = vdwg.mxu0
        %v2348 = vsel %vm1002, %v2335, -inf
        %2349 = vmax.xlane.f32.xlu0 %v2348
        %v2350 = vpop.xlane.xlu0 %2349
        %v2351 = vsel %vm1002, %v2338, -inf
        %2352 = vmax.xlane.f32.xlu0 %v2351
        %v2353 = vpop.xlane.xlu0 %2352
        %v2354 = vsel %vm1009, %v2343, -inf
        %2355 = vmax.xlane.f32.xlu0 %v2354
        %v2356 = vpop.xlane.xlu0 %2355
        %v2357 = vsub.f32 %v2335, %v2350
        %v2358 = vsub.f32 %v2338, %v2353
        %v2359 = vsub.f32 %v2343, %v2356
        %v2360 = vmul.f32 %v2357, 1.442695
        %v2361 = vpow.pop %v2360
        %v2362 = vmul.f32 %v2358, 1.442695
        %v2363 = vpow.pop %v2362
        %v2364 = vmul.f32 %v2359, 1.442695
        %v2365 = vpow.pop %v2364
        %v2366 = vsel %vm1002, %v2361, 0.0
        %2367 = vadd.xlane.f32.xlu0 %v2366
        %v2368 = vpop.xlane.xlu0 %2367
        %v2369 = vsel %vm1002, %v2363, 0.0
        %2370 = vadd.xlane.f32.xlu0 %v2369
        %v2371 = vpop.xlane.xlu0 %2370
        %v2372 = vsel %vm1009, %v2365, 0.0
        %2373 = vadd.xlane.f32.xlu0 %v2372
        %v2374 = vpop.xlane.xlu0 %2373
        %v2375 = vrcp.pop %v2368
        %v2376 = vrcp.pop %v2371
        %v2377 = vrcp.pop %v2374
        %v2378 = vmul.f32 %v2361, %v2375
        %v2379 = vmul.f32 %v2363, %v2376
        %v2380 = vmul.f32 %v2365, %v2377
        %v2381 = vpack.c.bf16 %v2379, %v2378
        %v2382 = vpack.c.bf16 %v2380, %v2380
        %2383 = vrot.lane.b32.xlu0 %v2115, 56
        %v2384 = vpop.permute.xlu0 %2383
        %2385 = vrot.lane.b32.xlu0 %v2116, 56
        %v2386 = vpop.permute.xlu0 %2385
        %v2389 = vsel %vm1002, %v2381, 0
        %v2392 = vsel %vm1002, %v2382, 0
        %v2395 = vsel %vm1050, %v2386, 0
        %2397 = vmatprep.subr.bf16.mxu0 0
        %2398 = vmatpush1.bf16.msra.mxu0 %v2384
        %2399 = vmatprep.subr.bf16.mxu0 0
        %2400 = vmatpush1.bf16.msra.mxu0 %v2395
        %2401 = vmatprep.subr.bf16.mxu0 0
        %2402 = vmatpush1.bf16.msra.mxu0 0
        %2403 = vmatprep.subr.bf16.mxu0 0
        %2404 = vmatpush1.bf16.msra.mxu0 0
        %2405 = vmatprep.subr.bf16.mxu0 0
        %2406 = vmatpush1.bf16.msra.mxu0 0
        %2407 = vmatprep.subr.bf16.mxu0 0
        %2408 = vmatpush1.bf16.msra.mxu0 0
        %2409 = vmatprep.subr.bf16.mxu0 0
        %2410 = vmatpush1.bf16.msra.mxu0 0
        %2411 = vmatprep.subr.bf16.mxu0 0
        %2412 = vmatpush1.bf16.msra.mxu0 0
        %2413 = vmatprep.subr.bf16.mxu0 0
        %2414 = vmatpush1.bf16.msra.mxu0 0
        %2415 = vmatprep.subr.bf16.mxu0 0
        %2416 = vmatpush1.bf16.msra.mxu0 0
        %2417 = vmatprep.subr.bf16.mxu0 0
        %2418 = vmatpush1.bf16.msra.mxu0 0
        %2419 = vmatprep.subr.bf16.mxu0 0
        %2420 = vmatpush1.bf16.msra.mxu0 0
        %2421 = vmatprep.subr.bf16.mxu0 0
        %2422 = vmatpush1.bf16.msra.mxu0 0
        %2423 = vmatprep.subr.bf16.mxu0 0
        %2424 = vmatpush1.bf16.msra.mxu0 0
        %2425 = vmatprep.subr.bf16.mxu0 0
        %2426 = vmatpush1.bf16.msra.mxu0 0
        %2427 = vmatprep.subr.bf16.mxu0 0
        %2428 = vmatpush1.bf16.msra.mxu0 0
        %2429 = vmatprep.mubr.bf16.mxu0 0
        %2430 = vmatmul.mubr.bf16.gmra.mrb[0].mxu0 %v2389
        %v2431 = vpop.f32.mrb[0].mxu0
        %v2432 = vadd.f32 0.0, %v2431
        %v2433 = vpop.f32.mrb[0].mxu0
        %v2434 = vpop.f32.mrb[0].mxu0
        %v2435 = vadd.f32 0.0, %v2434
        %v2436 = vpop.f32.mrb[0].mxu0
        %2437 = vmatprep.mubr.bf16.mxu0 0
        %2438 = vmatmul.mubr.bf16.gmra.mrb[0].mxu0 %v2392
        %v2439 = vpop.f32.mrb[0].mxu0
        %v2440 = vadd.f32 0.0, %v2439
        %v2441 = vpop.f32.mrb[0].mxu0
        %v2442 = vpop.f32.mrb[0].mxu0
        %v2443 = vpop.f32.mrb[0].mxu0
        %2444 = vdwg.mxu0
        %2445 = vrot.lane.b32.xlu0 %v2115, 112
        %v2446 = vpop.permute.xlu0 %2445
        %2447 = vrot.lane.b32.xlu0 %v2116, 112
        %v2448 = vpop.permute.xlu0 %2447
        %2449 = vrot.lane.b32.xlu0 %v2115, 80
        %v2450 = vpop.permute.xlu0 %2449
        %2451 = vrot.lane.b32.xlu0 %v2116, 80
        %v2452 = vpop.permute.xlu0 %2451
        %v2454 = vsel %vm941, %v2446, 0
        %v2457 = vsel %vm941, %v2448, 0
        %v2460 = vsel %vm941, %v2450, 0
        %v2463 = vsel %vm941, %v2452, 0
        %2465 = vmatprep.subr.bf16.mxu0 0
        %2466 = vmatpush1.bf16.xpose.msra.mxu0 %v2460
        %2467 = vmatprep.subr.bf16.mxu0 0
        %2468 = vmatpush1.bf16.xpose.msra.mxu0 %v2463
        %2469 = vmatprep.subr.bf16.mxu0 0
        %2470 = vmatpush1.bf16.xpose.msra.mxu0 0
        %2471 = vmatprep.subr.bf16.mxu0 0
        %2472 = vmatpush1.bf16.xpose.msra.mxu0 0
        %2473 = vmatprep.subr.bf16.mxu0 0
        %2474 = vmatpush1.bf16.xpose.msra.mxu0 0
        %2475 = vmatprep.subr.bf16.mxu0 0
        %2476 = vmatpush1.bf16.xpose.msra.mxu0 0
        %2477 = vmatprep.subr.bf16.mxu0 0
        %2478 = vmatpush1.bf16.xpose.msra.mxu0 0
        %2479 = vmatprep.subr.bf16.mxu0 0
        %2480 = vmatpush1.bf16.xpose.msra.mxu0 0
        %2481 = vmatprep.subr.bf16.mxu0 0
        %2482 = vmatpush1.bf16.xpose.msra.mxu0 0
        %2483 = vmatprep.subr.bf16.mxu0 0
        %2484 = vmatpush1.bf16.xpose.msra.mxu0 0
        %2485 = vmatprep.subr.bf16.mxu0 0
        %2486 = vmatpush1.bf16.xpose.msra.mxu0 0
        %2487 = vmatprep.subr.bf16.mxu0 0
        %2488 = vmatpush1.bf16.xpose.msra.mxu0 0
        %2489 = vmatprep.subr.bf16.mxu0 0
        %2490 = vmatpush1.bf16.xpose.msra.mxu0 0
        %2491 = vmatprep.subr.bf16.mxu0 0
        %2492 = vmatpush1.bf16.xpose.msra.mxu0 0
        %2493 = vmatprep.subr.bf16.mxu0 0
        %2494 = vmatpush1.bf16.xpose.msra.mxu0 0
        %2495 = vmatprep.subr.bf16.mxu0 0
        %2496 = vmatpush1.bf16.xpose.msra.mxu0 0
        %2497 = vmatprep.mubr.bf16.mxu0 0
        %2498 = vmatmul.mubr.bf16.gmra.mrb[0].mxu0 %v2454
        %v2499 = vpop.f32.mrb[0].mxu0
        %v2500 = vadd.f32 0.0, %v2499
        %v2501 = vpop.f32.mrb[0].mxu0
        %v2502 = vpop.f32.mrb[0].mxu0
        %v2503 = vadd.f32 0.0, %v2502
        %v2504 = vpop.f32.mrb[0].mxu0
        %2505 = vmatprep.mubr.bf16.mxu0 0
        %2506 = vmatmul.mubr.bf16.gmra.mrb[0].mxu0 %v2457
        %v2507 = vpop.f32.mrb[0].mxu0
        %v2508 = vadd.f32 0.0, %v2507
        %v2509 = vpop.f32.mrb[0].mxu0
        %v2510 = vpop.f32.mrb[0].mxu0
        %v2511 = vpop.f32.mrb[0].mxu0
        %2512 = vdwg.mxu0
        %v2513 = vsel %vm1002, %v2500, -inf
        %2514 = vmax.xlane.f32.xlu0 %v2513
        %v2515 = vpop.xlane.xlu0 %2514
        %v2516 = vsel %vm1002, %v2503, -inf
        %2517 = vmax.xlane.f32.xlu0 %v2516
        %v2518 = vpop.xlane.xlu0 %2517
        %v2519 = vsel %vm1009, %v2508, -inf
        %2520 = vmax.xlane.f32.xlu0 %v2519
        %v2521 = vpop.xlane.xlu0 %2520
        %v2522 = vsub.f32 %v2500, %v2515
        %v2523 = vsub.f32 %v2503, %v2518
        %v2524 = vsub.f32 %v2508, %v2521
        %v2525 = vmul.f32 %v2522, 1.442695
        %v2526 = vpow.pop %v2525
        %v2527 = vmul.f32 %v2523, 1.442695
        %v2528 = vpow.pop %v2527
        %v2529 = vmul.f32 %v2524, 1.442695
        %v2530 = vpow.pop %v2529
        %v2531 = vsel %vm1002, %v2526, 0.0
        %2532 = vadd.xlane.f32.xlu0 %v2531
        %v2533 = vpop.xlane.xlu0 %2532
        %v2534 = vsel %vm1002, %v2528, 0.0
        %2535 = vadd.xlane.f32.xlu0 %v2534
        %v2536 = vpop.xlane.xlu0 %2535
        %v2537 = vsel %vm1009, %v2530, 0.0
        %2538 = vadd.xlane.f32.xlu0 %v2537
        %v2539 = vpop.xlane.xlu0 %2538
        %v2540 = vrcp.pop %v2533
        %v2541 = vrcp.pop %v2536
        %v2542 = vrcp.pop %v2539
        %v2543 = vmul.f32 %v2526, %v2540
        %v2544 = vmul.f32 %v2528, %v2541
        %v2545 = vmul.f32 %v2530, %v2542
        %v2546 = vpack.c.bf16 %v2544, %v2543
        %v2547 = vpack.c.bf16 %v2545, %v2545
        %2548 = vrot.lane.b32.xlu0 %v2115, 48
        %v2549 = vpop.permute.xlu0 %2548
        %2550 = vrot.lane.b32.xlu0 %v2116, 48
        %v2551 = vpop.permute.xlu0 %2550
        %v2554 = vsel %vm1002, %v2546, 0
        %v2557 = vsel %vm1002, %v2547, 0
        %v2560 = vsel %vm1050, %v2551, 0
        %2562 = vmatprep.subr.bf16.mxu0 0
        %2563 = vmatpush1.bf16.msra.mxu0 %v2549
        %2564 = vmatprep.subr.bf16.mxu0 0
        %2565 = vmatpush1.bf16.msra.mxu0 %v2560
        %2566 = vmatprep.subr.bf16.mxu0 0
        %2567 = vmatpush1.bf16.msra.mxu0 0
        %2568 = vmatprep.subr.bf16.mxu0 0
        %2569 = vmatpush1.bf16.msra.mxu0 0
        %2570 = vmatprep.subr.bf16.mxu0 0
        %2571 = vmatpush1.bf16.msra.mxu0 0
        %2572 = vmatprep.subr.bf16.mxu0 0
        %2573 = vmatpush1.bf16.msra.mxu0 0
        %2574 = vmatprep.subr.bf16.mxu0 0
        %2575 = vmatpush1.bf16.msra.mxu0 0
        %2576 = vmatprep.subr.bf16.mxu0 0
        %2577 = vmatpush1.bf16.msra.mxu0 0
        %2578 = vmatprep.subr.bf16.mxu0 0
        %2579 = vmatpush1.bf16.msra.mxu0 0
        %2580 = vmatprep.subr.bf16.mxu0 0
        %2581 = vmatpush1.bf16.msra.mxu0 0
        %2582 = vmatprep.subr.bf16.mxu0 0
        %2583 = vmatpush1.bf16.msra.mxu0 0
        %2584 = vmatprep.subr.bf16.mxu0 0
        %2585 = vmatpush1.bf16.msra.mxu0 0
        %2586 = vmatprep.subr.bf16.mxu0 0
        %2587 = vmatpush1.bf16.msra.mxu0 0
        %2588 = vmatprep.subr.bf16.mxu0 0
        %2589 = vmatpush1.bf16.msra.mxu0 0
        %2590 = vmatprep.subr.bf16.mxu0 0
        %2591 = vmatpush1.bf16.msra.mxu0 0
        %2592 = vmatprep.subr.bf16.mxu0 0
        %2593 = vmatpush1.bf16.msra.mxu0 0
        %2594 = vmatprep.mubr.bf16.mxu0 0
        %2595 = vmatmul.mubr.bf16.gmra.mrb[0].mxu0 %v2554
        %v2596 = vpop.f32.mrb[0].mxu0
        %v2597 = vadd.f32 0.0, %v2596
        %v2598 = vpop.f32.mrb[0].mxu0
        %v2599 = vpop.f32.mrb[0].mxu0
        %v2600 = vadd.f32 0.0, %v2599
        %v2601 = vpop.f32.mrb[0].mxu0
        %2602 = vmatprep.mubr.bf16.mxu0 0
        %2603 = vmatmul.mubr.bf16.gmra.mrb[0].mxu0 %v2557
        %v2604 = vpop.f32.mrb[0].mxu0
        %v2605 = vadd.f32 0.0, %v2604
        %v2606 = vpop.f32.mrb[0].mxu0
        %v2607 = vpop.f32.mrb[0].mxu0
        %v2608 = vpop.f32.mrb[0].mxu0
        %2609 = vdwg.mxu0
        %2610 = vrot.lane.b32.xlu0 %v2115, 104
        %v2611 = vpop.permute.xlu0 %2610
        %2612 = vrot.lane.b32.xlu0 %v2116, 104
        %v2613 = vpop.permute.xlu0 %2612
        %2614 = vrot.lane.b32.xlu0 %v2115, 72
        %v2615 = vpop.permute.xlu0 %2614
        %2616 = vrot.lane.b32.xlu0 %v2116, 72
        %v2617 = vpop.permute.xlu0 %2616
        %v2619 = vsel %vm941, %v2611, 0
        %v2622 = vsel %vm941, %v2613, 0
        %v2625 = vsel %vm941, %v2615, 0
        %v2628 = vsel %vm941, %v2617, 0
        %2630 = vmatprep.subr.bf16.mxu0 0
        %2631 = vmatpush1.bf16.xpose.msra.mxu0 %v2625
        %2632 = vmatprep.subr.bf16.mxu0 0
        %2633 = vmatpush1.bf16.xpose.msra.mxu0 %v2628
        %2634 = vmatprep.subr.bf16.mxu0 0
        %2635 = vmatpush1.bf16.xpose.msra.mxu0 0
        %2636 = vmatprep.subr.bf16.mxu0 0
        %2637 = vmatpush1.bf16.xpose.msra.mxu0 0
        %2638 = vmatprep.subr.bf16.mxu0 0
        %2639 = vmatpush1.bf16.xpose.msra.mxu0 0
        %2640 = vmatprep.subr.bf16.mxu0 0
        %2641 = vmatpush1.bf16.xpose.msra.mxu0 0
        %2642 = vmatprep.subr.bf16.mxu0 0
        %2643 = vmatpush1.bf16.xpose.msra.mxu0 0
        %2644 = vmatprep.subr.bf16.mxu0 0
        %2645 = vmatpush1.bf16.xpose.msra.mxu0 0
        %2646 = vmatprep.subr.bf16.mxu0 0
        %2647 = vmatpush1.bf16.xpose.msra.mxu0 0
        %2648 = vmatprep.subr.bf16.mxu0 0
        %2649 = vmatpush1.bf16.xpose.msra.mxu0 0
        %2650 = vmatprep.subr.bf16.mxu0 0
        %2651 = vmatpush1.bf16.xpose.msra.mxu0 0
        %2652 = vmatprep.subr.bf16.mxu0 0
        %2653 = vmatpush1.bf16.xpose.msra.mxu0 0
        %2654 = vmatprep.subr.bf16.mxu0 0
        %2655 = vmatpush1.bf16.xpose.msra.mxu0 0
        %2656 = vmatprep.subr.bf16.mxu0 0
        %2657 = vmatpush1.bf16.xpose.msra.mxu0 0
        %2658 = vmatprep.subr.bf16.mxu0 0
        %2659 = vmatpush1.bf16.xpose.msra.mxu0 0
        %2660 = vmatprep.subr.bf16.mxu0 0
        %2661 = vmatpush1.bf16.xpose.msra.mxu0 0
        %2662 = vmatprep.mubr.bf16.mxu0 0
        %2663 = vmatmul.mubr.bf16.gmra.mrb[0].mxu0 %v2619
        %v2664 = vpop.f32.mrb[0].mxu0
        %v2665 = vadd.f32 0.0, %v2664
        %v2666 = vpop.f32.mrb[0].mxu0
        %v2667 = vpop.f32.mrb[0].mxu0
        %v2668 = vadd.f32 0.0, %v2667
        %v2669 = vpop.f32.mrb[0].mxu0
        %2670 = vmatprep.mubr.bf16.mxu0 0
        %2671 = vmatmul.mubr.bf16.gmra.mrb[0].mxu0 %v2622
        %v2672 = vpop.f32.mrb[0].mxu0
        %v2673 = vadd.f32 0.0, %v2672
        %v2674 = vpop.f32.mrb[0].mxu0
        %v2675 = vpop.f32.mrb[0].mxu0
        %v2676 = vpop.f32.mrb[0].mxu0
        %2677 = vdwg.mxu0
        %v2678 = vsel %vm1002, %v2665, -inf
        %2679 = vmax.xlane.f32.xlu0 %v2678
        %v2680 = vpop.xlane.xlu0 %2679
        %v2681 = vsel %vm1002, %v2668, -inf
        %2682 = vmax.xlane.f32.xlu0 %v2681
        %v2683 = vpop.xlane.xlu0 %2682
        %v2684 = vsel %vm1009, %v2673, -inf
        %2685 = vmax.xlane.f32.xlu0 %v2684
        %v2686 = vpop.xlane.xlu0 %2685
        %v2687 = vsub.f32 %v2665, %v2680
        %v2688 = vsub.f32 %v2668, %v2683
        %v2689 = vsub.f32 %v2673, %v2686
        %v2690 = vmul.f32 %v2687, 1.442695
        %v2691 = vpow.pop %v2690
        %v2692 = vmul.f32 %v2688, 1.442695
        %v2693 = vpow.pop %v2692
        %v2694 = vmul.f32 %v2689, 1.442695
        %v2695 = vpow.pop %v2694
        %v2696 = vsel %vm1002, %v2691, 0.0
        %2697 = vadd.xlane.f32.xlu0 %v2696
        %v2698 = vpop.xlane.xlu0 %2697
        %v2699 = vsel %vm1002, %v2693, 0.0
        %2700 = vadd.xlane.f32.xlu0 %v2699
        %v2701 = vpop.xlane.xlu0 %2700
        %v2702 = vsel %vm1009, %v2695, 0.0
        %2703 = vadd.xlane.f32.xlu0 %v2702
        %v2704 = vpop.xlane.xlu0 %2703
        %v2705 = vrcp.pop %v2698
        %v2706 = vrcp.pop %v2701
        %v2707 = vrcp.pop %v2704
        %v2708 = vmul.f32 %v2691, %v2705
        %v2709 = vmul.f32 %v2693, %v2706
        %v2710 = vmul.f32 %v2695, %v2707
        %v2711 = vpack.c.bf16 %v2709, %v2708
        %v2712 = vpack.c.bf16 %v2710, %v2710
        %2713 = vrot.lane.b32.xlu0 %v2115, 40
        %v2714 = vpop.permute.xlu0 %2713
        %2715 = vrot.lane.b32.xlu0 %v2116, 40
        %v2716 = vpop.permute.xlu0 %2715
        %v2719 = vsel %vm1002, %v2711, 0
        %v2722 = vsel %vm1002, %v2712, 0
        %v2725 = vsel %vm1050, %v2716, 0
        %2727 = vmatprep.subr.bf16.mxu0 0
        %2728 = vmatpush1.bf16.msra.mxu0 %v2714
        %2729 = vmatprep.subr.bf16.mxu0 0
        %2730 = vmatpush1.bf16.msra.mxu0 %v2725
        %2731 = vmatprep.subr.bf16.mxu0 0
        %2732 = vmatpush1.bf16.msra.mxu0 0
        %2733 = vmatprep.subr.bf16.mxu0 0
        %2734 = vmatpush1.bf16.msra.mxu0 0
        %2735 = vmatprep.subr.bf16.mxu0 0
        %2736 = vmatpush1.bf16.msra.mxu0 0
        %2737 = vmatprep.subr.bf16.mxu0 0
        %2738 = vmatpush1.bf16.msra.mxu0 0
        %2739 = vmatprep.subr.bf16.mxu0 0
        %2740 = vmatpush1.bf16.msra.mxu0 0
        %2741 = vmatprep.subr.bf16.mxu0 0
        %2742 = vmatpush1.bf16.msra.mxu0 0
        %2743 = vmatprep.subr.bf16.mxu0 0
        %2744 = vmatpush1.bf16.msra.mxu0 0
        %2745 = vmatprep.subr.bf16.mxu0 0
        %2746 = vmatpush1.bf16.msra.mxu0 0
        %2747 = vmatprep.subr.bf16.mxu0 0
        %2748 = vmatpush1.bf16.msra.mxu0 0
        %2749 = vmatprep.subr.bf16.mxu0 0
        %2750 = vmatpush1.bf16.msra.mxu0 0
        %2751 = vmatprep.subr.bf16.mxu0 0
        %2752 = vmatpush1.bf16.msra.mxu0 0
        %2753 = vmatprep.subr.bf16.mxu0 0
        %2754 = vmatpush1.bf16.msra.mxu0 0
        %2755 = vmatprep.subr.bf16.mxu0 0
        %2756 = vmatpush1.bf16.msra.mxu0 0
        %2757 = vmatprep.subr.bf16.mxu0 0
        %2758 = vmatpush1.bf16.msra.mxu0 0
        %2759 = vmatprep.mubr.bf16.mxu0 0
        %2760 = vmatmul.mubr.bf16.gmra.mrb[0].mxu0 %v2719
        %v2761 = vpop.f32.mrb[0].mxu0
        %v2762 = vadd.f32 0.0, %v2761
        %v2763 = vpop.f32.mrb[0].mxu0
        %v2764 = vpop.f32.mrb[0].mxu0
        %v2765 = vadd.f32 0.0, %v2764
        %v2766 = vpop.f32.mrb[0].mxu0
        %2767 = vmatprep.mubr.bf16.mxu0 0
        %2768 = vmatmul.mubr.bf16.gmra.mrb[0].mxu0 %v2722
        %v2769 = vpop.f32.mrb[0].mxu0
        %v2770 = vadd.f32 0.0, %v2769
        %v2771 = vpop.f32.mrb[0].mxu0
        %v2772 = vpop.f32.mrb[0].mxu0
        %v2773 = vpop.f32.mrb[0].mxu0
        %2774 = vdwg.mxu0
        %2778 = vrot.lane.b32.xlu0 %v2432, 8
        %v2779 = vpop.permute.xlu0 %2778
        %2780 = vrot.lane.b32.xlu0 %v2435, 8
        %v2781 = vpop.permute.xlu0 %2780
        %2782 = vrot.lane.b32.xlu0 %v2440, 8
        %v2783 = vpop.permute.xlu0 %2782
        %2790 = vrot.lane.b32.xlu0 %v2597, 16
        %v2791 = vpop.permute.xlu0 %2790
        %2792 = vrot.lane.b32.xlu0 %v2600, 16
        %v2793 = vpop.permute.xlu0 %2792
        %2794 = vrot.lane.b32.xlu0 %v2605, 16
        %v2795 = vpop.permute.xlu0 %2794
        %2802 = vrot.lane.b32.xlu0 %v2762, 24
        %v2803 = vpop.permute.xlu0 %2802
        %2804 = vrot.lane.b32.xlu0 %v2765, 24
        %v2805 = vpop.permute.xlu0 %2804
        %2806 = vrot.lane.b32.xlu0 %v2770, 24
        %v2807 = vpop.permute.xlu0 %2806
        %v2811 = vsel %vm941, %v2267, %v2779
        %v2812 = vsel %vm941, %v2270, %v2781
        %v2813 = vsel %vm941, %v2275, %v2783
        %v2814 = vsel %vm1636, %v2811, %v2791
        %v2815 = vsel %vm1636, %v2812, %v2793
        %v2816 = vsel %vm1636, %v2813, %v2795
        %v2817 = vsel %vm1640, %v2814, %v2803
        %v2818 = vsel %vm1640, %v2815, %v2805
        %v2819 = vsel %vm1640, %v2816, %v2807
        %v2820 = vpack.c.bf16 %v2818, %v2817
        %v2821 = vpack.c.bf16 %v2819, %v2819
        %v2822 = vlaneseq
        %v2823 = vshrl.u32 %v2822, 7
        %v2824 = vsub.s32 4, %v2823
        %v2825 = vrot.slane %v1975, %v2824
        %v2830 = vunpack.c.l.b16 %v2039
        %v2831 = vunpack.c.l.b16 %v2040
        %v2832 = vunpack.c.l.b16 %v2041
        %v2833 = vunpack.c.l.b16 %v2042
        %v2834 = vpack.c.b16 %v2831, %v2830
        %v2835 = vpack.c.b16 %v2833, %v2832
        %v2839 = vsel %vm794, %v2820, 0
        %v2842 = vsel %vm794, %v2821, 0
        %2844 = vmatprep.subr.bf16.mxu0 0
        %2845 = vmatpush1.bf16.msra.mxu0 %v2834
        %2846 = vmatprep.subr.bf16.mxu0 0
        %2847 = vmatpush1.bf16.msra.mxu0 %v2835
        %2848 = vmatprep.subr.bf16.mxu0 0
        %2849 = vmatpush1.bf16.msra.mxu0 0
        %2850 = vmatprep.subr.bf16.mxu0 0
        %2851 = vmatpush1.bf16.msra.mxu0 0
        %2852 = vmatprep.subr.bf16.mxu0 0
        %2853 = vmatpush1.bf16.msra.mxu0 0
        %2854 = vmatprep.subr.bf16.mxu0 0
        %2855 = vmatpush1.bf16.msra.mxu0 0
        %2856 = vmatprep.subr.bf16.mxu0 0
        %2857 = vmatpush1.bf16.msra.mxu0 0
        %2858 = vmatprep.subr.bf16.mxu0 0
        %2859 = vmatpush1.bf16.msra.mxu0 0
        %2860 = vmatprep.subr.bf16.mxu0 0
        %2861 = vmatpush1.bf16.msra.mxu0 0
        %2862 = vmatprep.subr.bf16.mxu0 0
        %2863 = vmatpush1.bf16.msra.mxu0 0
        %2864 = vmatprep.subr.bf16.mxu0 0
        %2865 = vmatpush1.bf16.msra.mxu0 0
        %2866 = vmatprep.subr.bf16.mxu0 0
        %2867 = vmatpush1.bf16.msra.mxu0 0
        %2868 = vmatprep.subr.bf16.mxu0 0
        %2869 = vmatpush1.bf16.msra.mxu0 0
        %2870 = vmatprep.subr.bf16.mxu0 0
        %2871 = vmatpush1.bf16.msra.mxu0 0
        %2872 = vmatprep.subr.bf16.mxu0 0
        %2873 = vmatpush1.bf16.msra.mxu0 0
        %2874 = vmatprep.subr.bf16.mxu0 0
        %2875 = vmatpush1.bf16.msra.mxu0 0
        %2876 = vmatprep.mubr.bf16.mxu0 0
        %2877 = vmatmul.mubr.bf16.gmra.mrb[0].mxu0 %v2839
        %v2878 = vpop.f32.mrb[0].mxu0
        %v2879 = vadd.f32 %v2825, %v2878
        %v2880 = vpop.f32.mrb[0].mxu0
        %v2881 = vpop.f32.mrb[0].mxu0
        %v2882 = vadd.f32 %v2825, %v2881
        %v2883 = vpop.f32.mrb[0].mxu0
        %2884 = vmatprep.mubr.bf16.mxu0 0
        %2885 = vmatmul.mubr.bf16.gmra.mrb[0].mxu0 %v2842
        %v2886 = vpop.f32.mrb[0].mxu0
        %v2887 = vadd.f32 %v2825, %v2886
        %v2888 = vpop.f32.mrb[0].mxu0
        %v2889 = vpop.f32.mrb[0].mxu0
        %v2890 = vpop.f32.mrb[0].mxu0
        %2891 = vdwg.mxu0
        %v2892 = vadd.f32 %v1971, %v2879
        %v2893 = vadd.f32 %v1972, %v2882
        %v2894 = vadd.f32 %v1973, %v2887
        %v2895 = vsel %vm794, %v2892, 0.0
        %2896 = vadd.xlane.f32.xlu0 %v2895
        %v2897 = vpop.xlane.xlu0 %2896
        %v2898 = vsel %vm794, %v2893, 0.0
        %2899 = vadd.xlane.f32.xlu0 %v2898
        %v2900 = vpop.xlane.xlu0 %2899
        %v2901 = vsel %vm801, %v2894, 0.0
        %2902 = vadd.xlane.f32.xlu0 %v2901
        %v2903 = vpop.xlane.xlu0 %2902
        %v2904 = vmul.f32 %v2897, %v805
        %v2905 = vmul.f32 %v2900, %v805
        %v2906 = vmul.f32 %v2903, %v805
        %v2907 = vsub.f32 %v2892, %v2904
        %v2908 = vsub.f32 %v2893, %v2905
        %v2909 = vsub.f32 %v2894, %v2906
        %v2910 = vmul.f32 %v2907, %v2907
        %v2911 = vmul.f32 %v2908, %v2908
        %v2912 = vmul.f32 %v2909, %v2909
        %v2913 = vsel %vm794, %v2910, 0.0
        %2914 = vadd.xlane.f32.xlu0 %v2913
        %v2915 = vpop.xlane.xlu0 %2914
        %v2916 = vsel %vm794, %v2911, 0.0
        %2917 = vadd.xlane.f32.xlu0 %v2916
        %v2918 = vpop.xlane.xlu0 %2917
        %v2919 = vsel %vm801, %v2912, 0.0
        %2920 = vadd.xlane.f32.xlu0 %v2919
        %v2921 = vpop.xlane.xlu0 %2920
        %v2922 = vmul.f32 %v2915, %v805
        %v2923 = vmul.f32 %v2918, %v805
        %v2924 = vmul.f32 %v2921, %v805
        %v2925 = vadd.f32 %v2922, 1e-05
        %v2926 = vadd.f32 %v2923, 1e-05
        %v2927 = vadd.f32 %v2924, 1e-05
        %v2928 = vrsqrt.pop %v2925
        %v2929 = vrsqrt.pop %v2926
        %v2930 = vrsqrt.pop %v2927
        %v2931 = vmul.f32 %v2907, %v2928
        %v2932 = vmul.f32 %v2908, %v2929
        %v2933 = vmul.f32 %v2909, %v2930
        %v2934 = vlaneseq
        %v2935 = vshrl.u32 %v2934, 7
        %v2936 = vsub.s32 2, %v2935
        %v2937 = vrot.slane %v1975, %v2936
        %v2938 = vmul.f32 %v2931, %v2937
        %v2939 = vmul.f32 %v2932, %v2937
        %v2940 = vmul.f32 %v2933, %v2937
        %v2941 = vlaneseq
        %v2942 = vshrl.u32 %v2941, 7
        %v2943 = vsub.s32 3, %v2942
        %v2944 = vrot.slane %v1975, %v2943
        %v2945 = vadd.f32 %v2938, %v2944
        %v2946 = vadd.f32 %v2939, %v2944
        %v2947 = vadd.f32 %v2940, %v2944
        %v2948 = vpack.c.bf16 %v2946, %v2945
        %v2949 = vpack.c.bf16 %v2947, %v2947
        %s2950 = scalar_lea.vmem %s7, 16
        %v2951 = vld [vmem:[%s2950] sm:$0xf]
        %v2952 = vld [vmem:[%s2950 + $0x4] sm:$0xf]
        %v2953 = vld [vmem:[%s2950 + $0x8] sm:$0xf]
        %v2954 = vld [vmem:[%s2950 + $0xc] sm:$0xf]
        %s2955 = scalar_lea.vmem %s8, 1
        %v2956 = vld [vmem:[%s2955] sm:$0x1]
        %s2957 = scalar_lea.vmem %s9, 32
        %v2958 = vld [vmem:[%s2957] sm:$0xf]
        %v2959 = vld [vmem:[%s2957 + $0x4] sm:$0xf]
        %v2960 = vld [vmem:[%s2957 + $0x8] sm:$0xf]
        %v2961 = vld [vmem:[%s2957 + $0xc] sm:$0xf]
        %v2962 = vld [vmem:[%s2957 + $0x10] sm:$0xf]
        %v2963 = vld [vmem:[%s2957 + $0x14] sm:$0xf]
        %v2964 = vld [vmem:[%s2957 + $0x18] sm:$0xf]
        %v2965 = vld [vmem:[%s2957 + $0x1c] sm:$0xf]
        %v2967 = vlaneseq
        %v2968 = vshrl.u32 %v2967, 7
        %v2969 = vsub.s32 0, %v2968
        %v2970 = vrot.slane %v2956, %v2969
        %v2976 = vunpack.c.l.b16 %v2951
        %v2977 = vunpack.c.l.b16 %v2952
        %v2978 = vunpack.c.l.b16 %v2953
        %v2979 = vunpack.c.l.b16 %v2954
        %v2980 = vpack.c.b16 %v2977, %v2976
        %v2981 = vpack.c.b16 %v2979, %v2978
        %v2985 = vsel %vm794, %v2948, 0
        %v2988 = vsel %vm794, %v2949, 0
        %2990 = vmatprep.subr.bf16.mxu0 0
        %2991 = vmatpush1.bf16.msra.mxu0 %v2980
        %2992 = vmatprep.subr.bf16.mxu0 0
        %2993 = vmatpush1.bf16.msra.mxu0 %v2981
        %2994 = vmatprep.subr.bf16.mxu0 0
        %2995 = vmatpush1.bf16.msra.mxu0 0
        %2996 = vmatprep.subr.bf16.mxu0 0
        %2997 = vmatpush1.bf16.msra.mxu0 0
        %2998 = vmatprep.subr.bf16.mxu0 0
        %2999 = vmatpush1.bf16.msra.mxu0 0
        %3000 = vmatprep.subr.bf16.mxu0 0
        %3001 = vmatpush1.bf16.msra.mxu0 0
        %3002 = vmatprep.subr.bf16.mxu0 0
        %3003 = vmatpush1.bf16.msra.mxu0 0
        %3004 = vmatprep.subr.bf16.mxu0 0
        %3005 = vmatpush1.bf16.msra.mxu0 0
        %3006 = vmatprep.subr.bf16.mxu0 0
        %3007 = vmatpush1.bf16.msra.mxu0 0
        %3008 = vmatprep.subr.bf16.mxu0 0
        %3009 = vmatpush1.bf16.msra.mxu0 0
        %3010 = vmatprep.subr.bf16.mxu0 0
        %3011 = vmatpush1.bf16.msra.mxu0 0
        %3012 = vmatprep.subr.bf16.mxu0 0
        %3013 = vmatpush1.bf16.msra.mxu0 0
        %3014 = vmatprep.subr.bf16.mxu0 0
        %3015 = vmatpush1.bf16.msra.mxu0 0
        %3016 = vmatprep.subr.bf16.mxu0 0
        %3017 = vmatpush1.bf16.msra.mxu0 0
        %3018 = vmatprep.subr.bf16.mxu0 0
        %3019 = vmatpush1.bf16.msra.mxu0 0
        %3020 = vmatprep.subr.bf16.mxu0 0
        %3021 = vmatpush1.bf16.msra.mxu0 0
        %3022 = vmatprep.mubr.bf16.mxu0 0
        %3023 = vmatmul.mubr.bf16.gmra.mrb[0].mxu0 %v2985
        %v3024 = vpop.f32.mrb[0].mxu0
        %v3025 = vadd.f32 %v2970, %v3024
        %v3026 = vpop.f32.mrb[0].mxu0
        %v3027 = vpop.f32.mrb[0].mxu0
        %v3028 = vadd.f32 %v2970, %v3027
        %v3029 = vpop.f32.mrb[0].mxu0
        %3030 = vmatprep.mubr.bf16.mxu0 0
        %3031 = vmatmul.mubr.bf16.gmra.mrb[0].mxu0 %v2988
        %v3032 = vpop.f32.mrb[0].mxu0
        %v3033 = vadd.f32 %v2970, %v3032
        %v3034 = vpop.f32.mrb[0].mxu0
        %v3035 = vpop.f32.mrb[0].mxu0
        %v3036 = vpop.f32.mrb[0].mxu0
        %3037 = vdwg.mxu0
        %v3038 = vmul.f32 %v3025, %v3025
        %v3039 = vmul.f32 %v3028, %v3028
        %v3040 = vmul.f32 %v3033, %v3033
        %v3041 = vmul.f32 %v3025, %v3038
        %v3042 = vmul.f32 %v3028, %v3039
        %v3043 = vmul.f32 %v3033, %v3040
        %v3044 = vmul.f32 %v3041, 0.044715
        %v3045 = vmul.f32 %v3042, 0.044715
        %v3046 = vmul.f32 %v3043, 0.044715
        %v3047 = vadd.f32 %v3025, %v3044
        %v3048 = vadd.f32 %v3028, %v3045
        %v3049 = vadd.f32 %v3033, %v3046
        %v3050 = vmul.f32 %v3047, 0.7978846
        %v3051 = vmul.f32 %v3048, 0.7978846
        %v3052 = vmul.f32 %v3049, 0.7978846
        %v3053 = vtanh.pop %v3050
        %v3054 = vtanh.pop %v3051
        %v3055 = vtanh.pop %v3052
        %v3056 = vadd.f32 %v3053, 1.0
        %v3057 = vadd.f32 %v3054, 1.0
        %v3058 = vadd.f32 %v3055, 1.0
        %v3059 = vmul.f32 %v3056, 0.5
        %v3060 = vmul.f32 %v3057, 0.5
        %v3061 = vmul.f32 %v3058, 0.5
        %v3062 = vmul.f32 %v3025, %v3059
        %v3063 = vmul.f32 %v3028, %v3060
        %v3064 = vmul.f32 %v3033, %v3061
        %v3065 = vpack.c.bf16 %v3063, %v3062
        %v3066 = vpack.c.bf16 %v3064, %v3064
        %v3067 = vlaneseq
        %v3068 = vshrl.u32 %v3067, 7
        %v3069 = vsub.s32 5, %v3068
        %v3070 = vrot.slane %v1975, %v3069
        %v3079 = vunpack.c.l.b16 %v2958
        %v3080 = vunpack.c.l.b16 %v2959
        %v3081 = vunpack.c.l.b16 %v2960
        %v3082 = vunpack.c.l.b16 %v2961
        %v3083 = vunpack.c.l.b16 %v2962
        %v3084 = vunpack.c.l.b16 %v2963
        %v3085 = vunpack.c.l.b16 %v2964
        %v3086 = vunpack.c.l.b16 %v2965
        %v3087 = vpack.c.b16 %v3080, %v3079
        %v3088 = vpack.c.b16 %v3082, %v3081
        %v3089 = vpack.c.b16 %v3084, %v3083
        %v3090 = vpack.c.b16 %v3086, %v3085
        %v3096 = vsel %vm1916, %v3065, 0
        %v3099 = vsel %vm1916, %v3066, 0
        %3101 = vmatprep.subr.bf16.mxu0 0
        %3102 = vmatpush1.bf16.msra.mxu0 %v3087
        %3103 = vmatprep.subr.bf16.mxu0 0
        %3104 = vmatpush1.bf16.msra.mxu0 %v3088
        %3105 = vmatprep.subr.bf16.mxu0 0
        %3106 = vmatpush1.bf16.msra.mxu0 %v3089
        %3107 = vmatprep.subr.bf16.mxu0 0
        %3108 = vmatpush1.bf16.msra.mxu0 %v3090
        %3109 = vmatprep.subr.bf16.mxu0 0
        %3110 = vmatpush1.bf16.msra.mxu0 0
        %3111 = vmatprep.subr.bf16.mxu0 0
        %3112 = vmatpush1.bf16.msra.mxu0 0
        %3113 = vmatprep.subr.bf16.mxu0 0
        %3114 = vmatpush1.bf16.msra.mxu0 0
        %3115 = vmatprep.subr.bf16.mxu0 0
        %3116 = vmatpush1.bf16.msra.mxu0 0
        %3117 = vmatprep.subr.bf16.mxu0 0
        %3118 = vmatpush1.bf16.msra.mxu0 0
        %3119 = vmatprep.subr.bf16.mxu0 0
        %3120 = vmatpush1.bf16.msra.mxu0 0
        %3121 = vmatprep.subr.bf16.mxu0 0
        %3122 = vmatpush1.bf16.msra.mxu0 0
        %3123 = vmatprep.subr.bf16.mxu0 0
        %3124 = vmatpush1.bf16.msra.mxu0 0
        %3125 = vmatprep.subr.bf16.mxu0 0
        %3126 = vmatpush1.bf16.msra.mxu0 0
        %3127 = vmatprep.subr.bf16.mxu0 0
        %3128 = vmatpush1.bf16.msra.mxu0 0
        %3129 = vmatprep.subr.bf16.mxu0 0
        %3130 = vmatpush1.bf16.msra.mxu0 0
        %3131 = vmatprep.subr.bf16.mxu0 0
        %3132 = vmatpush1.bf16.msra.mxu0 0
        %3133 = vmatprep.mubr.bf16.mxu0 0
        %3134 = vmatmul.mubr.bf16.gmra.mrb[0].mxu0 %v3096
        %v3135 = vpop.f32.mrb[0].mxu0
        %v3136 = vadd.f32 %v3070, %v3135
        %v3137 = vpop.f32.mrb[0].mxu0
        %v3138 = vpop.f32.mrb[0].mxu0
        %v3139 = vadd.f32 %v3070, %v3138
        %v3140 = vpop.f32.mrb[0].mxu0
        %3141 = vmatprep.mubr.bf16.mxu0 0
        %3142 = vmatmul.mubr.bf16.gmra.mrb[0].mxu0 %v3099
        %v3143 = vpop.f32.mrb[0].mxu0
        %v3144 = vadd.f32 %v3070, %v3143
        %v3145 = vpop.f32.mrb[0].mxu0
        %v3146 = vpop.f32.mrb[0].mxu0
        %v3147 = vpop.f32.mrb[0].mxu0
        %3148 = vdwg.mxu0
        %v3149 = vadd.f32 %v2892, %v3136
        %v3150 = vadd.f32 %v2893, %v3139
        %v3151 = vadd.f32 %v2894, %v3144
        %v3152 = vld [vmem:[%s10] sm:$0x3]
        %v3153 = vld [vmem:[%s14] sm:$0x7]
        %v3154 = vsel %vm794, %v3149, 0.0
        %3155 = vadd.xlane.f32.xlu0 %v3154
        %v3156 = vpop.xlane.xlu0 %3155
        %v3157 = vsel %vm794, %v3150, 0.0
        %3158 = vadd.xlane.f32.xlu0 %v3157
        %v3159 = vpop.xlane.xlu0 %3158
        %v3160 = vsel %vm801, %v3151, 0.0
        %3161 = vadd.xlane.f32.xlu0 %v3160
        %v3162 = vpop.xlane.xlu0 %3161
        %v3163 = vmul.f32 %v3156, %v805
        %v3164 = vmul.f32 %v3159, %v805
        %v3165 = vmul.f32 %v3162, %v805
        %v3166 = vsub.f32 %v3149, %v3163
        %v3167 = vsub.f32 %v3150, %v3164
        %v3168 = vsub.f32 %v3151, %v3165
        %v3169 = vmul.f32 %v3166, %v3166
        %v3170 = vmul.f32 %v3167, %v3167
        %v3171 = vmul.f32 %v3168, %v3168
        %v3172 = vsel %vm794, %v3169, 0.0
        %3173 = vadd.xlane.f32.xlu0 %v3172
        %v3174 = vpop.xlane.xlu0 %3173
        %v3175 = vsel %vm794, %v3170, 0.0
        %3176 = vadd.xlane.f32.xlu0 %v3175
        %v3177 = vpop.xlane.xlu0 %3176
        %v3178 = vsel %vm801, %v3171, 0.0
        %3179 = vadd.xlane.f32.xlu0 %v3178
        %v3180 = vpop.xlane.xlu0 %3179
        %v3181 = vmul.f32 %v3174, %v805
        %v3182 = vmul.f32 %v3177, %v805
        %v3183 = vmul.f32 %v3180, %v805
        %v3184 = vadd.f32 %v3181, 1e-05
        %v3185 = vadd.f32 %v3182, 1e-05
        %v3186 = vadd.f32 %v3183, 1e-05
        %v3187 = vrsqrt.pop %v3184
        %v3188 = vrsqrt.pop %v3185
        %v3189 = vrsqrt.pop %v3186
        %v3190 = vmul.f32 %v3166, %v3187
        %v3191 = vmul.f32 %v3167, %v3188
        %v3192 = vmul.f32 %v3168, %v3189
        %v3193 = vlaneseq
        %v3194 = vshrl.u32 %v3193, 7
        %v3195 = vsub.s32 0, %v3194
        %v3196 = vrot.slane %v3152, %v3195
        %v3197 = vmul.f32 %v3190, %v3196
        %v3198 = vmul.f32 %v3191, %v3196
        %v3199 = vmul.f32 %v3192, %v3196
        %v3200 = vlaneseq
        %v3201 = vshrl.u32 %v3200, 7
        %v3202 = vsub.s32 1, %v3201
        %v3203 = vrot.slane %v3152, %v3202
        %v3204 = vadd.f32 %v3197, %v3203
        %v3205 = vadd.f32 %v3198, %v3203
        %v3206 = vadd.f32 %v3199, %v3203
        %v3207 = vpack.c.bf16 %v3205, %v3204
        %v3208 = vpack.c.bf16 %v3206, %v3206
        %v3209 = vld [vmem:[%s11] sm:$0xf]
        %v3210 = vld [vmem:[%s11 + $0x4] sm:$0xf]
        %v3211 = vld [vmem:[%s11 + $0x8] sm:$0xf]
        %v3212 = vld [vmem:[%s11 + $0xc] sm:$0xf]
        %v3213 = vlaneseq
        %v3214 = vshrl.u32 %v3213, 7
        %v3215 = vsub.s32 0, %v3214
        %v3216 = vrot.slane %v3153, %v3215
        %v3221 = vunpack.c.l.b16 %v3209
        %v3222 = vunpack.c.l.b16 %v3210
        %v3223 = vunpack.c.l.b16 %v3211
        %v3224 = vunpack.c.l.b16 %v3212
        %v3225 = vpack.c.b16 %v3222, %v3221
        %v3226 = vpack.c.b16 %v3224, %v3223
        %v3230 = vsel %vm794, %v3207, 0
        %v3233 = vsel %vm794, %v3208, 0
        %3235 = vmatprep.subr.bf16.mxu0 0
        %3236 = vmatpush1.bf16.msra.mxu0 %v3225
        %3237 = vmatprep.subr.bf16.mxu0 0
        %3238 = vmatpush1.bf16.msra.mxu0 %v3226
        %3239 = vmatprep.subr.bf16.mxu0 0
        %3240 = vmatpush1.bf16.msra.mxu0 0
        %3241 = vmatprep.subr.bf16.mxu0 0
        %3242 = vmatpush1.bf16.msra.mxu0 0
        %3243 = vmatprep.subr.bf16.mxu0 0
        %3244 = vmatpush1.bf16.msra.mxu0 0
        %3245 = vmatprep.subr.bf16.mxu0 0
        %3246 = vmatpush1.bf16.msra.mxu0 0
        %3247 = vmatprep.subr.bf16.mxu0 0
        %3248 = vmatpush1.bf16.msra.mxu0 0
        %3249 = vmatprep.subr.bf16.mxu0 0
        %3250 = vmatpush1.bf16.msra.mxu0 0
        %3251 = vmatprep.subr.bf16.mxu0 0
        %3252 = vmatpush1.bf16.msra.mxu0 0
        %3253 = vmatprep.subr.bf16.mxu0 0
        %3254 = vmatpush1.bf16.msra.mxu0 0
        %3255 = vmatprep.subr.bf16.mxu0 0
        %3256 = vmatpush1.bf16.msra.mxu0 0
        %3257 = vmatprep.subr.bf16.mxu0 0
        %3258 = vmatpush1.bf16.msra.mxu0 0
        %3259 = vmatprep.subr.bf16.mxu0 0
        %3260 = vmatpush1.bf16.msra.mxu0 0
        %3261 = vmatprep.subr.bf16.mxu0 0
        %3262 = vmatpush1.bf16.msra.mxu0 0
        %3263 = vmatprep.subr.bf16.mxu0 0
        %3264 = vmatpush1.bf16.msra.mxu0 0
        %3265 = vmatprep.subr.bf16.mxu0 0
        %3266 = vmatpush1.bf16.msra.mxu0 0
        %3267 = vmatprep.mubr.bf16.mxu0 0
        %3268 = vmatmul.mubr.bf16.gmra.mrb[0].mxu0 %v3230
        %v3269 = vpop.f32.mrb[0].mxu0
        %v3270 = vadd.f32 %v3216, %v3269
        %v3271 = vpop.f32.mrb[0].mxu0
        %v3272 = vpop.f32.mrb[0].mxu0
        %v3273 = vadd.f32 %v3216, %v3272
        %v3274 = vpop.f32.mrb[0].mxu0
        %3275 = vmatprep.mubr.bf16.mxu0 0
        %3276 = vmatmul.mubr.bf16.gmra.mrb[0].mxu0 %v3233
        %v3277 = vpop.f32.mrb[0].mxu0
        %v3278 = vadd.f32 %v3216, %v3277
        %v3279 = vpop.f32.mrb[0].mxu0
        %v3280 = vpop.f32.mrb[0].mxu0
        %v3281 = vpop.f32.mrb[0].mxu0
        %3282 = vdwg.mxu0
        %v3283 = vpack.c.bf16 %v3273, %v3270
        %v3284 = vpack.c.bf16 %v3278, %v3278
        %v3285 = vld [vmem:[%s698] sm:$0xff]
        %v3286 = vsel %vm1916, %v3285, 0.0
        %3287 = vadd.xlane.f32.xlu0 %v3286
        %v3288 = vpop.xlane.xlu0 %3287
        %v3289 = vrcp.pop 64.0
        %v3290 = vmul.f32 %v3288, %v3289
        %v3291 = vsub.f32 %v3285, %v3290
        %v3292 = vmul.f32 %v3291, %v3291
        %v3293 = vsel %vm1916, %v3292, 0.0
        %3294 = vadd.xlane.f32.xlu0 %v3293
        %v3295 = vpop.xlane.xlu0 %3294
        %v3296 = vmul.f32 %v3295, %v3289
        %v3297 = vadd.f32 %v3296, 1e-05
        %v3298 = vrsqrt.pop %v3297
        %v3299 = vmul.f32 %v3291, %v3298
        %v3300 = vlaneseq
        %v3301 = vshrl.u32 %v3300, 7
        %v3302 = vsub.s32 1, %v3301
        %v3303 = vrot.slane %v3153, %v3302
        %v3304 = vmul.f32 %v3299, %v3303
        %v3305 = vlaneseq
        %v3306 = vshrl.u32 %v3305, 7
        %v3307 = vsub.s32 2, %v3306
        %v3308 = vrot.slane %v3153, %v3307
        %v3309 = vadd.f32 %v3304, %v3308
        %v3310 = vld [vmem:[%s13] sm:$0xff]
        %v3311 = vld [vmem:[%s15] sm:$0xff]
        %v3312 = vld [vmem:[%s15 + $0x8] sm:$0x1]
        %v3313 = vpack.c.bf16 %v3309, %v3309
        %v3314 = vld [vmem:[%s16] sm:$0xff]
        %v3315 = vld [vmem:[%s16 + $0x8] sm:$0xff]
        %v3316 = vld [vmem:[%s16 + $0x10] sm:$0xff]
        %v3317 = vld [vmem:[%s16 + $0x18] sm:$0xff]
        %v3318 = vld [vmem:[%s16 + $0x20] sm:$0xff]
        %v3319 = vld [vmem:[%s16 + $0x28] sm:$0xff]
        %v3320 = vld [vmem:[%s16 + $0x30] sm:$0xff]
        %v3321 = vld [vmem:[%s16 + $0x38] sm:$0xff]
        %v3322 = vld [vmem:[%s17] sm:$0x3]
        %v3323 = vld [vmem:[%s18] sm:$0xf]
        %v3324 = vld [vmem:[%s18 + $0x4] sm:$0xf]
        %v3325 = vld [vmem:[%s18 + $0x8] sm:$0xf]
        %v3326 = vld [vmem:[%s18 + $0xc] sm:$0xf]
        %v3327 = vld [vmem:[%s18 + $0x10] sm:$0xf]
        %v3328 = vld [vmem:[%s18 + $0x14] sm:$0xf]
        %v3329 = vld [vmem:[%s18 + $0x18] sm:$0xf]
        %v3330 = vld [vmem:[%s18 + $0x1c] sm:$0xf]
        %v3332 = vlaneseq
        %v3333 = vshrl.u32 %v3332, 7
        %v3334 = vsub.s32 0, %v3333
        %v3335 = vrot.slane %v3322, %v3334
        %v3336 = vlaneseq
        %v3337 = vshrl.u32 %v3336, 7
        %v3338 = vsub.s32 1, %v3337
        %v3339 = vrot.slane %v3322, %v3338
        %v3350 = vunpack.c.l.b16 %v3314
        %v3351 = vunpack.c.h.b16 %v3314
        %v3352 = vunpack.c.l.b16 %v3315
        %v3353 = vunpack.c.h.b16 %v3315
        %v3354 = vunpack.c.l.b16 %v3316
        %v3355 = vunpack.c.h.b16 %v3316
        %v3356 = vunpack.c.l.b16 %v3317
        %v3357 = vunpack.c.h.b16 %v3317
        %v3358 = vunpack.c.l.b16 %v3318
        %v3359 = vunpack.c.h.b16 %v3318
        %v3360 = vunpack.c.l.b16 %v3319
        %v3361 = vunpack.c.h.b16 %v3319
        %v3362 = vunpack.c.l.b16 %v3320
        %v3363 = vunpack.c.h.b16 %v3320
        %v3364 = vunpack.c.l.b16 %v3321
        %v3365 = vunpack.c.h.b16 %v3321
        %v3366 = vpack.c.b16 %v3352, %v3350
        %v3367 = vpack.c.b16 %v3353, %v3351
        %v3368 = vpack.c.b16 %v3356, %v3354
        %v3369 = vpack.c.b16 %v3357, %v3355
        %v3370 = vpack.c.b16 %v3360, %v3358
        %v3371 = vpack.c.b16 %v3361, %v3359
        %v3372 = vpack.c.b16 %v3364, %v3362
        %v3373 = vpack.c.b16 %v3365, %v3363
        %v3383 = vsel %vm1916, %v3313, 0
        %3385 = vmatprep.subr.bf16.mxu0 %v3367
        %3386 = vmatpush1.bf16.msra.mxu0 %v3366
        %3387 = vmatprep.subr.bf16.mxu0 %v3369
        %3388 = vmatpush1.bf16.msra.mxu0 %v3368
        %3389 = vmatprep.subr.bf16.mxu0 %v3371
        %3390 = vmatpush1.bf16.msra.mxu0 %v3370
        %3391 = vmatprep.subr.bf16.mxu0 %v3373
        %3392 = vmatpush1.bf16.msra.mxu0 %v3372
        %3393 = vmatprep.subr.bf16.mxu0 0
        %3394 = vmatpush1.bf16.msra.mxu0 0
        %3395 = vmatprep.subr.bf16.mxu0 0
        %3396 = vmatpush1.bf16.msra.mxu0 0
        %3397 = vmatprep.subr.bf16.mxu0 0
        %3398 = vmatpush1.bf16.msra.mxu0 0
        %3399 = vmatprep.subr.bf16.mxu0 0
        %3400 = vmatpush1.bf16.msra.mxu0 0
        %3401 = vmatprep.subr.bf16.mxu0 0
        %3402 = vmatpush1.bf16.msra.mxu0 0
        %3403 = vmatprep.subr.bf16.mxu0 0
        %3404 = vmatpush1.bf16.msra.mxu0 0
        %3405 = vmatprep.subr.bf16.mxu0 0
        %3406 = vmatpush1.bf16.msra.mxu0 0
        %3407 = vmatprep.subr.bf16.mxu0 0
        %3408 = vmatpush1.bf16.msra.mxu0 0
        %3409 = vmatprep.subr.bf16.mxu0 0
        %3410 = vmatpush1.bf16.msra.mxu0 0
        %3411 = vmatprep.subr.bf16.mxu0 0
        %3412 = vmatpush1.bf16.msra.mxu0 0
        %3413 = vmatprep.subr.bf16.mxu0 0
        %3414 = vmatpush1.bf16.msra.mxu0 0
        %3415 = vmatprep.subr.bf16.mxu0 0
        %3416 = vmatpush1.bf16.msra.mxu0 0
        %3417 = vmatprep.mubr.bf16.mxu0 0
        %3418 = vmatmul.mubr.bf16.gmra.mrb[0].mxu0 %v3383
        %v3419 = vpop.f32.mrb[0].mxu0
        %v3420 = vadd.f32 %v3335, %v3419
        %v3421 = vpop.f32.mrb[0].mxu0
        %v3422 = vadd.f32 %v3339, %v3421
        %v3423 = vpop.f32.mrb[0].mxu0
        %v3424 = vpop.f32.mrb[0].mxu0
        %3425 = vdwg.mxu0
        %v3426 = vpack.c.bf16 %v3420, %v3420
        %v3427 = vpack.c.bf16 %v3422, %v3422
        %3429 = vrot.lane.b32.xlu0 %v3426, 64
        %v3430 = vpop.permute.xlu0 %3429
        %v3432 = vsel %vm1636, %v3426, 0
        %v3435 = vsel %vm1636, %v3430, 0
        %3437 = vmatprep.subr.bf16.mxu0 0
        %3438 = vmatpush1.bf16.xpose.msra.mxu0 %v3435
        %3439 = vmatprep.subr.bf16.mxu0 0
        %3440 = vmatpush1.bf16.xpose.msra.mxu0 0
        %3441 = vmatprep.subr.bf16.mxu0 0
        %3442 = vmatpush1.bf16.xpose.msra.mxu0 0
        %3443 = vmatprep.subr.bf16.mxu0 0
        %3444 = vmatpush1.bf16.xpose.msra.mxu0 0
        %3445 = vmatprep.subr.bf16.mxu0 0
        %3446 = vmatpush1.bf16.xpose.msra.mxu0 0
        %3447 = vmatprep.subr.bf16.mxu0 0
        %3448 = vmatpush1.bf16.xpose.msra.mxu0 0
        %3449 = vmatprep.subr.bf16.mxu0 0
        %3450 = vmatpush1.bf16.xpose.msra.mxu0 0
        %3451 = vmatprep.subr.bf16.mxu0 0
        %3452 = vmatpush1.bf16.xpose.msra.mxu0 0
        %3453 = vmatprep.subr.bf16.mxu0 0
        %3454 = vmatpush1.bf16.xpose.msra.mxu0 0
        %3455 = vmatprep.subr.bf16.mxu0 0
        %3456 = vmatpush1.bf16.xpose.msra.mxu0 0
        %3457 = vmatprep.subr.bf16.mxu0 0
        %3458 = vmatpush1.bf16.xpose.msra.mxu0 0
        %3459 = vmatprep.subr.bf16.mxu0 0
        %3460 = vmatpush1.bf16.xpose.msra.mxu0 0
        %3461 = vmatprep.subr.bf16.mxu0 0
        %3462 = vmatpush1.bf16.xpose.msra.mxu0 0
        %3463 = vmatprep.subr.bf16.mxu0 0
        %3464 = vmatpush1.bf16.xpose.msra.mxu0 0
        %3465 = vmatprep.subr.bf16.mxu0 0
        %3466 = vmatpush1.bf16.xpose.msra.mxu0 0
        %3467 = vmatprep.subr.bf16.mxu0 0
        %3468 = vmatpush1.bf16.xpose.msra.mxu0 0
        %3469 = vmatprep.mubr.bf16.mxu0 0
        %3470 = vmatmul.mubr.bf16.gmra.mrb[0].mxu0 %v3432
        %v3471 = vpop.f32.mrb[0].mxu0
        %v3472 = vadd.f32 %v3310, %v3471
        %v3473 = vpop.f32.mrb[0].mxu0
        %v3474 = vpop.f32.mrb[0].mxu0
        %v3475 = vpop.f32.mrb[0].mxu0
        %3476 = vdwg.mxu0
        %v3477 = vsel %vm941, %v3472, -inf
        %3478 = vmax.xlane.f32.xlu0 %v3477
        %v3479 = vpop.xlane.xlu0 %3478
        %v3480 = vsub.f32 %v3472, %v3479
        %v3481 = vmul.f32 %v3480, 1.442695
        %v3482 = vpow.pop %v3481
        %v3483 = vsel %vm941, %v3482, 0.0
        %3484 = vadd.xlane.f32.xlu0 %v3483
        %v3485 = vpop.xlane.xlu0 %3484
        %v3486 = vrcp.pop %v3485
        %v3487 = vmul.f32 %v3482, %v3486
        %v3488 = vpack.c.bf16 %v3487, %v3487
        %v3490 = vsel %vm941, %v3488, 0
        %vm3492 = vcmask 1043456
        %v3494 = vsel %vm3492, %v3427, 0
        %3496 = vmatprep.subr.bf16.mxu0 0
        %3497 = vmatpush1.bf16.msra.mxu0 %v3494
        %3498 = vmatprep.subr.bf16.mxu0 0
        %3499 = vmatpush1.bf16.msra.mxu0 0
        %3500 = vmatprep.subr.bf16.mxu0 0
        %3501 = vmatpush1.bf16.msra.mxu0 0
        %3502 = vmatprep.subr.bf16.mxu0 0
        %3503 = vmatpush1.bf16.msra.mxu0 0
        %3504 = vmatprep.subr.bf16.mxu0 0
        %3505 = vmatpush1.bf16.msra.mxu0 0
        %3506 = vmatprep.subr.bf16.mxu0 0
        %3507 = vmatpush1.bf16.msra.mxu0 0
        %3508 = vmatprep.subr.bf16.mxu0 0
        %3509 = vmatpush1.bf16.msra.mxu0 0
        %3510 = vmatprep.subr.bf16.mxu0 0
        %3511 = vmatpush1.bf16.msra.mxu0 0
        %3512 = vmatprep.subr.bf16.mxu0 0
        %3513 = vmatpush1.bf16.msra.mxu0 0
        %3514 = vmatprep.subr.bf16.mxu0 0
        %3515 = vmatpush1.bf16.msra.mxu0 0
        %3516 = vmatprep.subr.bf16.mxu0 0
        %3517 = vmatpush1.bf16.msra.mxu0 0
        %3518 = vmatprep.subr.bf16.mxu0 0
        %3519 = vmatpush1.bf16.msra.mxu0 0
        %3520 = vmatprep.subr.bf16.mxu0 0
        %3521 = vmatpush1.bf16.msra.mxu0 0
        %3522 = vmatprep.subr.bf16.mxu0 0
        %3523 = vmatpush1.bf16.msra.mxu0 0
        %3524 = vmatprep.subr.bf16.mxu0 0
        %3525 = vmatpush1.bf16.msra.mxu0 0
        %3526 = vmatprep.subr.bf16.mxu0 0
        %3527 = vmatpush1.bf16.msra.mxu0 0
        %3528 = vmatprep.mubr.bf16.mxu0 0
        %3529 = vmatmul.mubr.bf16.gmra.mrb[0].mxu0 %v3490
        %v3530 = vpop.f32.mrb[0].mxu0
        %v3531 = vadd.f32 0.0, %v3530
        %v3532 = vpop.f32.mrb[0].mxu0
        %v3533 = vpop.f32.mrb[0].mxu0
        %v3534 = vpop.f32.mrb[0].mxu0
        %3535 = vdwg.mxu0
        %3536 = vrot.lane.b32.xlu0 %v3426, 112
        %v3537 = vpop.permute.xlu0 %3536
        %3538 = vrot.lane.b32.xlu0 %v3426, 48
        %v3539 = vpop.permute.xlu0 %3538
        %v3541 = vsel %vm1636, %v3537, 0
        %v3544 = vsel %vm1636, %v3539, 0
        %3546 = vmatprep.subr.bf16.mxu0 0
        %3547 = vmatpush1.bf16.xpose.msra.mxu0 %v3544
        %3548 = vmatprep.subr.bf16.mxu0 0
        %3549 = vmatpush1.bf16.xpose.msra.mxu0 0
        %3550 = vmatprep.subr.bf16.mxu0 0
        %3551 = vmatpush1.bf16.xpose.msra.mxu0 0
        %3552 = vmatprep.subr.bf16.mxu0 0
        %3553 = vmatpush1.bf16.xpose.msra.mxu0 0
        %3554 = vmatprep.subr.bf16.mxu0 0
        %3555 = vmatpush1.bf16.xpose.msra.mxu0 0
        %3556 = vmatprep.subr.bf16.mxu0 0
        %3557 = vmatpush1.bf16.xpose.msra.mxu0 0
        %3558 = vmatprep.subr.bf16.mxu0 0
        %3559 = vmatpush1.bf16.xpose.msra.mxu0 0
        %3560 = vmatprep.subr.bf16.mxu0 0
        %3561 = vmatpush1.bf16.xpose.msra.mxu0 0
        %3562 = vmatprep.subr.bf16.mxu0 0
        %3563 = vmatpush1.bf16.xpose.msra.mxu0 0
        %3564 = vmatprep.subr.bf16.mxu0 0
        %3565 = vmatpush1.bf16.xpose.msra.mxu0 0
        %3566 = vmatprep.subr.bf16.mxu0 0
        %3567 = vmatpush1.bf16.xpose.msra.mxu0 0
        %3568 = vmatprep.subr.bf16.mxu0 0
        %3569 = vmatpush1.bf16.xpose.msra.mxu0 0
        %3570 = vmatprep.subr.bf16.mxu0 0
        %3571 = vmatpush1.bf16.xpose.msra.mxu0 0
        %3572 = vmatprep.subr.bf16.mxu0 0
        %3573 = vmatpush1.bf16.xpose.msra.mxu0 0
        %3574 = vmatprep.subr.bf16.mxu0 0
        %3575 = vmatpush1.bf16.xpose.msra.mxu0 0
        %3576 = vmatprep.subr.bf16.mxu0 0
        %3577 = vmatpush1.bf16.xpose.msra.mxu0 0
        %3578 = vmatprep.mubr.bf16.mxu0 0
        %3579 = vmatmul.mubr.bf16.gmra.mrb[0].mxu0 %v3541
        %v3580 = vpop.f32.mrb[0].mxu0
        %v3581 = vadd.f32 %v3310, %v3580
        %v3582 = vpop.f32.mrb[0].mxu0
        %v3583 = vpop.f32.mrb[0].mxu0
        %v3584 = vpop.f32.mrb[0].mxu0
        %3585 = vdwg.mxu0
        %v3586 = vsel %vm941, %v3581, -inf
        %3587 = vmax.xlane.f32.xlu0 %v3586
        %v3588 = vpop.xlane.xlu0 %3587
        %v3589 = vsub.f32 %v3581, %v3588
        %v3590 = vmul.f32 %v3589, 1.442695
        %v3591 = vpow.pop %v3590
        %v3592 = vsel %vm941, %v3591, 0.0
        %3593 = vadd.xlane.f32.xlu0 %v3592
        %v3594 = vpop.xlane.xlu0 %3593
        %v3595 = vrcp.pop %v3594
        %v3596 = vmul.f32 %v3591, %v3595
        %v3597 = vpack.c.bf16 %v3596, %v3596
        %3599 = vrot.lane.b32.xlu0 %v3427, 112
        %v3600 = vpop.permute.xlu0 %3599
        %v3602 = vsel %vm941, %v3597, 0
        %v3605 = vsel %vm3492, %v3600, 0
        %3607 = vmatprep.subr.bf16.mxu0 0
        %3608 = vmatpush1.bf16.msra.mxu0 %v3605
        %3609 = vmatprep.subr.bf16.mxu0 0
        %3610 = vmatpush1.bf16.msra.mxu0 0
        %3611 = vmatprep.subr.bf16.mxu0 0
        %3612 = vmatpush1.bf16.msra.mxu0 0
        %3613 = vmatprep.subr.bf16.mxu0 0
        %3614 = vmatpush1.bf16.msra.mxu0 0
        %3615 = vmatprep.subr.bf16.mxu0 0
        %3616 = vmatpush1.bf16.msra.mxu0 0
        %3617 = vmatprep.subr.bf16.mxu0 0
        %3618 = vmatpush1.bf16.msra.mxu0 0
        %3619 = vmatprep.subr.bf16.mxu0 0
        %3620 = vmatpush1.bf16.msra.mxu0 0
        %3621 = vmatprep.subr.bf16.mxu0 0
        %3622 = vmatpush1.bf16.msra.mxu0 0
        %3623 = vmatprep.subr.bf16.mxu0 0
        %3624 = vmatpush1.bf16.msra.mxu0 0
        %3625 = vmatprep.subr.bf16.mxu0 0
        %3626 = vmatpush1.bf16.msra.mxu0 0
        %3627 = vmatprep.subr.bf16.mxu0 0
        %3628 = vmatpush1.bf16.msra.mxu0 0
        %3629 = vmatprep.subr.bf16.mxu0 0
        %3630 = vmatpush1.bf16.msra.mxu0 0
        %3631 = vmatprep.subr.bf16.mxu0 0
        %3632 = vmatpush1.bf16.msra.mxu0 0
        %3633 = vmatprep.subr.bf16.mxu0 0
        %3634 = vmatpush1.bf16.msra.mxu0 0
        %3635 = vmatprep.subr.bf16.mxu0 0
        %3636 = vmatpush1.bf16.msra.mxu0 0
        %3637 = vmatprep.subr.bf16.mxu0 0
        %3638 = vmatpush1.bf16.msra.mxu0 0
        %3639 = vmatprep.mubr.bf16.mxu0 0
        %3640 = vmatmul.mubr.bf16.gmra.mrb[0].mxu0 %v3602
        %v3641 = vpop.f32.mrb[0].mxu0
        %v3642 = vadd.f32 0.0, %v3641
        %v3643 = vpop.f32.mrb[0].mxu0
        %v3644 = vpop.f32.mrb[0].mxu0
        %v3645 = vpop.f32.mrb[0].mxu0
        %3646 = vdwg.mxu0
        %3647 = vrot.lane.b32.xlu0 %v3426, 96
        %v3648 = vpop.permute.xlu0 %3647
        %3649 = vrot.lane.b32.xlu0 %v3426, 32
        %v3650 = vpop.permute.xlu0 %3649
        %v3652 = vsel %vm1636, %v3648, 0
        %v3655 = vsel %vm1636, %v3650, 0
        %3657 = vmatprep.subr.bf16.mxu0 0
        %3658 = vmatpush1.bf16.xpose.msra.mxu0 %v3655
        %3659 = vmatprep.subr.bf16.mxu0 0
        %3660 = vmatpush1.bf16.xpose.msra.mxu0 0
        %3661 = vmatprep.subr.bf16.mxu0 0
        %3662 = vmatpush1.bf16.xpose.msra.mxu0 0
        %3663 = vmatprep.subr.bf16.mxu0 0
        %3664 = vmatpush1.bf16.xpose.msra.mxu0 0
        %3665 = vmatprep.subr.bf16.mxu0 0
        %3666 = vmatpush1.bf16.xpose.msra.mxu0 0
        %3667 = vmatprep.subr.bf16.mxu0 0
        %3668 = vmatpush1.bf16.xpose.msra.mxu0 0
        %3669 = vmatprep.subr.bf16.mxu0 0
        %3670 = vmatpush1.bf16.xpose.msra.mxu0 0
        %3671 = vmatprep.subr.bf16.mxu0 0
        %3672 = vmatpush1.bf16.xpose.msra.mxu0 0
        %3673 = vmatprep.subr.bf16.mxu0 0
        %3674 = vmatpush1.bf16.xpose.msra.mxu0 0
        %3675 = vmatprep.subr.bf16.mxu0 0
        %3676 = vmatpush1.bf16.xpose.msra.mxu0 0
        %3677 = vmatprep.subr.bf16.mxu0 0
        %3678 = vmatpush1.bf16.xpose.msra.mxu0 0
        %3679 = vmatprep.subr.bf16.mxu0 0
        %3680 = vmatpush1.bf16.xpose.msra.mxu0 0
        %3681 = vmatprep.subr.bf16.mxu0 0
        %3682 = vmatpush1.bf16.xpose.msra.mxu0 0
        %3683 = vmatprep.subr.bf16.mxu0 0
        %3684 = vmatpush1.bf16.xpose.msra.mxu0 0
        %3685 = vmatprep.subr.bf16.mxu0 0
        %3686 = vmatpush1.bf16.xpose.msra.mxu0 0
        %3687 = vmatprep.subr.bf16.mxu0 0
        %3688 = vmatpush1.bf16.xpose.msra.mxu0 0
        %3689 = vmatprep.mubr.bf16.mxu0 0
        %3690 = vmatmul.mubr.bf16.gmra.mrb[0].mxu0 %v3652
        %v3691 = vpop.f32.mrb[0].mxu0
        %v3692 = vadd.f32 %v3310, %v3691
        %v3693 = vpop.f32.mrb[0].mxu0
        %v3694 = vpop.f32.mrb[0].mxu0
        %v3695 = vpop.f32.mrb[0].mxu0
        %3696 = vdwg.mxu0
        %v3697 = vsel %vm941, %v3692, -inf
        %3698 = vmax.xlane.f32.xlu0 %v3697
        %v3699 = vpop.xlane.xlu0 %3698
        %v3700 = vsub.f32 %v3692, %v3699
        %v3701 = vmul.f32 %v3700, 1.442695
        %v3702 = vpow.pop %v3701
        %v3703 = vsel %vm941, %v3702, 0.0
        %3704 = vadd.xlane.f32.xlu0 %v3703
        %v3705 = vpop.xlane.xlu0 %3704
        %v3706 = vrcp.pop %v3705
        %v3707 = vmul.f32 %v3702, %v3706
        %v3708 = vpack.c.bf16 %v3707, %v3707
        %3709 = vrot.lane.b32.xlu0 %v3427, 96
        %v3710 = vpop.permute.xlu0 %3709
        %v3712 = vsel %vm941, %v3708, 0
        %v3715 = vsel %vm3492, %v3710, 0
        %3717 = vmatprep.subr.bf16.mxu0 0
        %3718 = vmatpush1.bf16.msra.mxu0 %v3715
        %3719 = vmatprep.subr.bf16.mxu0 0
        %3720 = vmatpush1.bf16.msra.mxu0 0
        %3721 = vmatprep.subr.bf16.mxu0 0
        %3722 = vmatpush1.bf16.msra.mxu0 0
        %3723 = vmatprep.subr.bf16.mxu0 0
        %3724 = vmatpush1.bf16.msra.mxu0 0
        %3725 = vmatprep.subr.bf16.mxu0 0
        %3726 = vmatpush1.bf16.msra.mxu0 0
        %3727 = vmatprep.subr.bf16.mxu0 0
        %3728 = vmatpush1.bf16.msra.mxu0 0
        %3729 = vmatprep.subr.bf16.mxu0 0
        %3730 = vmatpush1.bf16.msra.mxu0 0
        %3731 = vmatprep.subr.bf16.mxu0 0
        %3732 = vmatpush1.bf16.msra.mxu0 0
        %3733 = vmatprep.subr.bf16.mxu0 0
        %3734 = vmatpush1.bf16.msra.mxu0 0
        %3735 = vmatprep.subr.bf16.mxu0 0
        %3736 = vmatpush1.bf16.msra.mxu0 0
        %3737 = vmatprep.subr.bf16.mxu0 0
        %3738 = vmatpush1.bf16.msra.mxu0 0
        %3739 = vmatprep.subr.bf16.mxu0 0
        %3740 = vmatpush1.bf16.msra.mxu0 0
        %3741 = vmatprep.subr.bf16.mxu0 0
        %3742 = vmatpush1.bf16.msra.mxu0 0
        %3743 = vmatprep.subr.bf16.mxu0 0
        %3744 = vmatpush1.bf16.msra.mxu0 0
        %3745 = vmatprep.subr.bf16.mxu0 0
        %3746 = vmatpush1.bf16.msra.mxu0 0
        %3747 = vmatprep.subr.bf16.mxu0 0
        %3748 = vmatpush1.bf16.msra.mxu0 0
        %3749 = vmatprep.mubr.bf16.mxu0 0
        %3750 = vmatmul.mubr.bf16.gmra.mrb[0].mxu0 %v3712
        %v3751 = vpop.f32.mrb[0].mxu0
        %v3752 = vadd.f32 0.0, %v3751
        %v3753 = vpop.f32.mrb[0].mxu0
        %v3754 = vpop.f32.mrb[0].mxu0
        %v3755 = vpop.f32.mrb[0].mxu0
        %3756 = vdwg.mxu0
        %3757 = vrot.lane.b32.xlu0 %v3426, 80
        %v3758 = vpop.permute.xlu0 %3757
        %3759 = vrot.lane.b32.xlu0 %v3426, 16
        %v3760 = vpop.permute.xlu0 %3759
        %v3762 = vsel %vm1636, %v3758, 0
        %v3765 = vsel %vm1636, %v3760, 0
        %3767 = vmatprep.subr.bf16.mxu0 0
        %3768 = vmatpush1.bf16.xpose.msra.mxu0 %v3765
        %3769 = vmatprep.subr.bf16.mxu0 0
        %3770 = vmatpush1.bf16.xpose.msra.mxu0 0
        %3771 = vmatprep.subr.bf16.mxu0 0
        %3772 = vmatpush1.bf16.xpose.msra.mxu0 0
        %3773 = vmatprep.subr.bf16.mxu0 0
        %3774 = vmatpush1.bf16.xpose.msra.mxu0 0
        %3775 = vmatprep.subr.bf16.mxu0 0
        %3776 = vmatpush1.bf16.xpose.msra.mxu0 0
        %3777 = vmatprep.subr.bf16.mxu0 0
        %3778 = vmatpush1.bf16.xpose.msra.mxu0 0
        %3779 = vmatprep.subr.bf16.mxu0 0
        %3780 = vmatpush1.bf16.xpose.msra.mxu0 0
        %3781 = vmatprep.subr.bf16.mxu0 0
        %3782 = vmatpush1.bf16.xpose.msra.mxu0 0
        %3783 = vmatprep.subr.bf16.mxu0 0
        %3784 = vmatpush1.bf16.xpose.msra.mxu0 0
        %3785 = vmatprep.subr.bf16.mxu0 0
        %3786 = vmatpush1.bf16.xpose.msra.mxu0 0
        %3787 = vmatprep.subr.bf16.mxu0 0
        %3788 = vmatpush1.bf16.xpose.msra.mxu0 0
        %3789 = vmatprep.subr.bf16.mxu0 0
        %3790 = vmatpush1.bf16.xpose.msra.mxu0 0
        %3791 = vmatprep.subr.bf16.mxu0 0
        %3792 = vmatpush1.bf16.xpose.msra.mxu0 0
        %3793 = vmatprep.subr.bf16.mxu0 0
        %3794 = vmatpush1.bf16.xpose.msra.mxu0 0
        %3795 = vmatprep.subr.bf16.mxu0 0
        %3796 = vmatpush1.bf16.xpose.msra.mxu0 0
        %3797 = vmatprep.subr.bf16.mxu0 0
        %3798 = vmatpush1.bf16.xpose.msra.mxu0 0
        %3799 = vmatprep.mubr.bf16.mxu0 0
        %3800 = vmatmul.mubr.bf16.gmra.mrb[0].mxu0 %v3762
        %v3801 = vpop.f32.mrb[0].mxu0
        %v3802 = vadd.f32 %v3310, %v3801
        %v3803 = vpop.f32.mrb[0].mxu0
        %v3804 = vpop.f32.mrb[0].mxu0
        %v3805 = vpop.f32.mrb[0].mxu0
        %3806 = vdwg.mxu0
        %v3807 = vsel %vm941, %v3802, -inf
        %3808 = vmax.xlane.f32.xlu0 %v3807
        %v3809 = vpop.xlane.xlu0 %3808
        %v3810 = vsub.f32 %v3802, %v3809
        %v3811 = vmul.f32 %v3810, 1.442695
        %v3812 = vpow.pop %v3811
        %v3813 = vsel %vm941, %v3812, 0.0
        %3814 = vadd.xlane.f32.xlu0 %v3813
        %v3815 = vpop.xlane.xlu0 %3814
        %v3816 = vrcp.pop %v3815
        %v3817 = vmul.f32 %v3812, %v3816
        %v3818 = vpack.c.bf16 %v3817, %v3817
        %3819 = vrot.lane.b32.xlu0 %v3427, 80
        %v3820 = vpop.permute.xlu0 %3819
        %v3822 = vsel %vm941, %v3818, 0
        %v3825 = vsel %vm3492, %v3820, 0
        %3827 = vmatprep.subr.bf16.mxu0 0
        %3828 = vmatpush1.bf16.msra.mxu0 %v3825
        %3829 = vmatprep.subr.bf16.mxu0 0
        %3830 = vmatpush1.bf16.msra.mxu0 0
        %3831 = vmatprep.subr.bf16.mxu0 0
        %3832 = vmatpush1.bf16.msra.mxu0 0
        %3833 = vmatprep.subr.bf16.mxu0 0
        %3834 = vmatpush1.bf16.msra.mxu0 0
        %3835 = vmatprep.subr.bf16.mxu0 0
        %3836 = vmatpush1.bf16.msra.mxu0 0
        %3837 = vmatprep.subr.bf16.mxu0 0
        %3838 = vmatpush1.bf16.msra.mxu0 0
        %3839 = vmatprep.subr.bf16.mxu0 0
        %3840 = vmatpush1.bf16.msra.mxu0 0
        %3841 = vmatprep.subr.bf16.mxu0 0
        %3842 = vmatpush1.bf16.msra.mxu0 0
        %3843 = vmatprep.subr.bf16.mxu0 0
        %3844 = vmatpush1.bf16.msra.mxu0 0
        %3845 = vmatprep.subr.bf16.mxu0 0
        %3846 = vmatpush1.bf16.msra.mxu0 0
        %3847 = vmatprep.subr.bf16.mxu0 0
        %3848 = vmatpush1.bf16.msra.mxu0 0
        %3849 = vmatprep.subr.bf16.mxu0 0
        %3850 = vmatpush1.bf16.msra.mxu0 0
        %3851 = vmatprep.subr.bf16.mxu0 0
        %3852 = vmatpush1.bf16.msra.mxu0 0
        %3853 = vmatprep.subr.bf16.mxu0 0
        %3854 = vmatpush1.bf16.msra.mxu0 0
        %3855 = vmatprep.subr.bf16.mxu0 0
        %3856 = vmatpush1.bf16.msra.mxu0 0
        %3857 = vmatprep.subr.bf16.mxu0 0
        %3858 = vmatpush1.bf16.msra.mxu0 0
        %3859 = vmatprep.mubr.bf16.mxu0 0
        %3860 = vmatmul.mubr.bf16.gmra.mrb[0].mxu0 %v3822
        %v3861 = vpop.f32.mrb[0].mxu0
        %v3862 = vadd.f32 0.0, %v3861
        %v3863 = vpop.f32.mrb[0].mxu0
        %v3864 = vpop.f32.mrb[0].mxu0
        %v3865 = vpop.f32.mrb[0].mxu0
        %3866 = vdwg.mxu0
        %3868 = vrot.lane.b32.xlu0 %v3642, 16
        %v3869 = vpop.permute.xlu0 %3868
        %3872 = vrot.lane.b32.xlu0 %v3752, 32
        %v3873 = vpop.permute.xlu0 %3872
        %3876 = vrot.lane.b32.xlu0 %v3862, 48
        %v3877 = vpop.permute.xlu0 %3876
        %v3879 = vsel %vm1636, %v3531, %v3869
        %v3880 = vsel %vm794, %v3879, %v3873
        %v3881 = vsel %vm738, %v3880, %v3877
        %v3882 = vpack.c.bf16 %v3881, %v3881
        %v3883 = vlaneseq
        %v3884 = vshrl.u32 %v3883, 7
        %v3885 = vsub.s32 6, %v3884
        %v3886 = vrot.slane %v3311, %v3885
        %v3895 = vunpack.c.l.b16 %v3323
        %v3896 = vunpack.c.l.b16 %v3324
        %v3897 = vunpack.c.l.b16 %v3325
        %v3898 = vunpack.c.l.b16 %v3326
        %v3899 = vunpack.c.l.b16 %v3327
        %v3900 = vunpack.c.l.b16 %v3328
        %v3901 = vunpack.c.l.b16 %v3329
        %v3902 = vunpack.c.l.b16 %v3330
        %v3903 = vpack.c.b16 %v3896, %v3895
        %v3904 = vpack.c.b16 %v3898, %v3897
        %v3905 = vpack.c.b16 %v3900, %v3899
        %v3906 = vpack.c.b16 %v3902, %v3901
        %v3912 = vsel %vm1916, %v3882, 0
        %3914 = vmatprep.subr.bf16.mxu0 0
        %3915 = vmatpush1.bf16.msra.mxu0 %v3903
        %3916 = vmatprep.subr.bf16.mxu0 0
        %3917 = vmatpush1.bf16.msra.mxu0 %v3904
        %3918 = vmatprep.subr.bf16.mxu0 0
        %3919 = vmatpush1.bf16.msra.mxu0 %v3905
        %3920 = vmatprep.subr.bf16.mxu0 0
        %3921 = vmatpush1.bf16.msra.mxu0 %v3906
        %3922 = vmatprep.subr.bf16.mxu0 0
        %3923 = vmatpush1.bf16.msra.mxu0 0
        %3924 = vmatprep.subr.bf16.mxu0 0
        %3925 = vmatpush1.bf16.msra.mxu0 0
        %3926 = vmatprep.subr.bf16.mxu0 0
        %3927 = vmatpush1.bf16.msra.mxu0 0
        %3928 = vmatprep.subr.bf16.mxu0 0
        %3929 = vmatpush1.bf16.msra.mxu0 0
        %3930 = vmatprep.subr.bf16.mxu0 0
        %3931 = vmatpush1.bf16.msra.mxu0 0
        %3932 = vmatprep.subr.bf16.mxu0 0
        %3933 = vmatpush1.bf16.msra.mxu0 0
        %3934 = vmatprep.subr.bf16.mxu0 0
        %3935 = vmatpush1.bf16.msra.mxu0 0
        %3936 = vmatprep.subr.bf16.mxu0 0
        %3937 = vmatpush1.bf16.msra.mxu0 0
        %3938 = vmatprep.subr.bf16.mxu0 0
        %3939 = vmatpush1.bf16.msra.mxu0 0
        %3940 = vmatprep.subr.bf16.mxu0 0
        %3941 = vmatpush1.bf16.msra.mxu0 0
        %3942 = vmatprep.subr.bf16.mxu0 0
        %3943 = vmatpush1.bf16.msra.mxu0 0
        %3944 = vmatprep.subr.bf16.mxu0 0
        %3945 = vmatpush1.bf16.msra.mxu0 0
        %3946 = vmatprep.mubr.bf16.mxu0 0
        %3947 = vmatmul.mubr.bf16.gmra.mrb[0].mxu0 %v3912
        %v3948 = vpop.f32.mrb[0].mxu0
        %v3949 = vadd.f32 %v3886, %v3948
        %v3950 = vpop.f32.mrb[0].mxu0
        %v3951 = vpop.f32.mrb[0].mxu0
        %v3952 = vpop.f32.mrb[0].mxu0
        %3953 = vdwg.mxu0
        %v3954 = vadd.f32 %v3309, %v3949
        %v3955 = vsel %vm1916, %v3954, 0.0
        %3956 = vadd.xlane.f32.xlu0 %v3955
        %v3957 = vpop.xlane.xlu0 %3956
        %v3958 = vmul.f32 %v3957, %v3289
        %v3959 = vsub.f32 %v3954, %v3958
        %v3960 = vmul.f32 %v3959, %v3959
        %v3961 = vsel %vm1916, %v3960, 0.0
        %3962 = vadd.xlane.f32.xlu0 %v3961
        %v3963 = vpop.xlane.xlu0 %3962
        %v3964 = vmul.f32 %v3963, %v3289
        %v3965 = vadd.f32 %v3964, 1e-05
        %v3966 = vrsqrt.pop %v3965
        %v3967 = vmul.f32 %v3959, %v3966
        %v3968 = vlaneseq
        %v3969 = vshrl.u32 %v3968, 7
        %v3970 = vsub.s32 0, %v3969
        %v3971 = vrot.slane %v3311, %v3970
        %v3972 = vmul.f32 %v3967, %v3971
        %v3973 = vlaneseq
        %v3974 = vshrl.u32 %v3973, 7
        %v3975 = vsub.s32 1, %v3974
        %v3976 = vrot.slane %v3311, %v3975
        %v3977 = vadd.f32 %v3972, %v3976
        %v3978 = vpack.c.bf16 %v3977, %v3977
        %s3979 = scalar_lea.vmem %s16, 64
        %v3980 = vld [vmem:[%s3979] sm:$0xff]
        %v3981 = vld [vmem:[%s3979 + $0x8] sm:$0xff]
        %v3982 = vld [vmem:[%s3979 + $0x10] sm:$0xff]
        %v3983 = vld [vmem:[%s3979 + $0x18] sm:$0xff]
        %v3984 = vld [vmem:[%s3979 + $0x20] sm:$0xff]
        %v3985 = vld [vmem:[%s3979 + $0x28] sm:$0xff]
        %v3986 = vld [vmem:[%s3979 + $0x30] sm:$0xff]
        %v3987 = vld [vmem:[%s3979 + $0x38] sm:$0xff]
        %s3988 = scalar_lea.vmem %s17, 2
        %v3989 = vld [vmem:[%s3988] sm:$0x3]
        %s3990 = scalar_lea.vmem %s18, 32
        %v3991 = vld [vmem:[%s3990] sm:$0xf]
        %v3992 = vld [vmem:[%s3990 + $0x4] sm:$0xf]
        %v3993 = vld [vmem:[%s3990 + $0x8] sm:$0xf]
        %v3994 = vld [vmem:[%s3990 + $0xc] sm:$0xf]
        %v3995 = vld [vmem:[%s3990 + $0x10] sm:$0xf]
        %v3996 = vld [vmem:[%s3990 + $0x14] sm:$0xf]
        %v3997 = vld [vmem:[%s3990 + $0x18] sm:$0xf]
        %v3998 = vld [vmem:[%s3990 + $0x1c] sm:$0xf]
        %v4000 = vlaneseq
        %v4001 = vshrl.u32 %v4000, 7
        %v4002 = vsub.s32 0, %v4001
        %v4003 = vrot.slane %v3989, %v4002
        %v4013 = vunpack.c.l.b16 %v3980
        %v4014 = vunpack.c.l.b16 %v3981
        %v4015 = vunpack.c.l.b16 %v3982
        %v4016 = vunpack.c.l.b16 %v3983
        %v4017 = vunpack.c.l.b16 %v3984
        %v4018 = vunpack.c.l.b16 %v3985
        %v4019 = vunpack.c.l.b16 %v3986
        %v4020 = vunpack.c.l.b16 %v3987
        %v4021 = vpack.c.b16 %v4014, %v4013
        %v4022 = vpack.c.b16 %v4016, %v4015
        %v4023 = vpack.c.b16 %v4018, %v4017
        %v4024 = vpack.c.b16 %v4020, %v4019
        %v4030 = vsel %vm1916, %v3978, 0
        %4032 = vmatprep.subr.bf16.mxu0 0
        %4033 = vmatpush1.bf16.msra.mxu0 %v4021
        %4034 = vmatprep.subr.bf16.mxu0 0
        %4035 = vmatpush1.bf16.msra.mxu0 %v4022
        %4036 = vmatprep.subr.bf16.mxu0 0
        %4037 = vmatpush1.bf16.msra.mxu0 %v4023
        %4038 = vmatprep.subr.bf16.mxu0 0
        %4039 = vmatpush1.bf16.msra.mxu0 %v4024
        %4040 = vmatprep.subr.bf16.mxu0 0
        %4041 = vmatpush1.bf16.msra.mxu0 0
        %4042 = vmatprep.subr.bf16.mxu0 0
        %4043 = vmatpush1.bf16.msra.mxu0 0
        %4044 = vmatprep.subr.bf16.mxu0 0
        %4045 = vmatpush1.bf16.msra.mxu0 0
        %4046 = vmatprep.subr.bf16.mxu0 0
        %4047 = vmatpush1.bf16.msra.mxu0 0
        %4048 = vmatprep.subr.bf16.mxu0 0
        %4049 = vmatpush1.bf16.msra.mxu0 0
        %4050 = vmatprep.subr.bf16.mxu0 0
        %4051 = vmatpush1.bf16.msra.mxu0 0
        %4052 = vmatprep.subr.bf16.mxu0 0
        %4053 = vmatpush1.bf16.msra.mxu0 0
        %4054 = vmatprep.subr.bf16.mxu0 0
        %4055 = vmatpush1.bf16.msra.mxu0 0
        %4056 = vmatprep.subr.bf16.mxu0 0
        %4057 = vmatpush1.bf16.msra.mxu0 0
        %4058 = vmatprep.subr.bf16.mxu0 0
        %4059 = vmatpush1.bf16.msra.mxu0 0
        %4060 = vmatprep.subr.bf16.mxu0 0
        %4061 = vmatpush1.bf16.msra.mxu0 0
        %4062 = vmatprep.subr.bf16.mxu0 0
        %4063 = vmatpush1.bf16.msra.mxu0 0
        %4064 = vmatprep.mubr.bf16.mxu0 0
        %4065 = vmatmul.mubr.bf16.gmra.mrb[0].mxu0 %v4030
        %v4066 = vpop.f32.mrb[0].mxu0
        %v4067 = vadd.f32 %v4003, %v4066
        %v4068 = vpop.f32.mrb[0].mxu0
        %v4069 = vpop.f32.mrb[0].mxu0
        %v4070 = vpop.f32.mrb[0].mxu0
        %4071 = vdwg.mxu0
        %v4072 = vlaneseq
        %v4073 = vshrl.u32 %v4072, 7
        %v4074 = vsub.s32 1, %v4073
        %v4075 = vrot.slane %v3989, %v4074
        %v4076 = vunpack.c.h.b16 %v3980
        %v4077 = vunpack.c.h.b16 %v3981
        %v4078 = vunpack.c.h.b16 %v3982
        %v4079 = vunpack.c.h.b16 %v3983
        %v4080 = vunpack.c.h.b16 %v3984
        %v4081 = vunpack.c.h.b16 %v3985
        %v4082 = vunpack.c.h.b16 %v3986
        %v4083 = vunpack.c.h.b16 %v3987
        %v4084 = vpack.c.b16 %v4077, %v4076
        %v4085 = vpack.c.b16 %v4079, %v4078
        %v4086 = vpack.c.b16 %v4081, %v4080
        %v4087 = vpack.c.b16 %v4083, %v4082
        %4088 = vrot.lane.b32.xlu0 %v4021, 64
        %v4089 = vpop.permute.xlu0 %4088
        %4090 = vrot.lane.b32.xlu0 %v4084, 64
        %v4091 = vpop.permute.xlu0 %4090
        %4092 = vrot.lane.b32.xlu0 %v4022, 64
        %v4093 = vpop.permute.xlu0 %4092
        %4094 = vrot.lane.b32.xlu0 %v4085, 64
        %v4095 = vpop.permute.xlu0 %4094
        %4096 = vrot.lane.b32.xlu0 %v4023, 64
        %v4097 = vpop.permute.xlu0 %4096
        %4098 = vrot.lane.b32.xlu0 %v4086, 64
        %v4099 = vpop.permute.xlu0 %4098
        %4100 = vrot.lane.b32.xlu0 %v4024, 64
        %v4101 = vpop.permute.xlu0 %4100
        %4102 = vrot.lane.b32.xlu0 %v4087, 64
        %v4103 = vpop.permute.xlu0 %4102
        %vm4104 = vcmask 523264
        %v4105 = vsel %vm4104, %v4089, %v4091
        %v4106 = vsel %vm4104, %v4093, %v4095
        %v4107 = vsel %vm4104, %v4097, %v4099
        %v4108 = vsel %vm4104, %v4101, %v4103
        %4113 = vrot.lane.b32.xlu0 %v4003, 64
        %v4114 = vpop.permute.xlu0 %4113
        %4115 = vrot.lane.b32.xlu0 %v4075, 64
        %v4116 = vpop.permute.xlu0 %4115
        %v4117 = vsel %vm1916, %v4114, %v4116
        %v4120 = vsel %vm1916, %v3283, 0
        %v4123 = vsel %vm1916, %v3284, 0
        %4125 = vmatprep.subr.bf16.mxu0 0
        %4126 = vmatpush1.bf16.msra.mxu0 %v4105
        %4127 = vmatprep.subr.bf16.mxu0 0
        %4128 = vmatpush1.bf16.msra.mxu0 %v4106
        %4129 = vmatprep.subr.bf16.mxu0 0
        %4130 = vmatpush1.bf16.msra.mxu0 %v4107
        %4131 = vmatprep.subr.bf16.mxu0 0
        %4132 = vmatpush1.bf16.msra.mxu0 %v4108
        %4133 = vmatprep.subr.bf16.mxu0 0
        %4134 = vmatpush1.bf16.msra.mxu0 0
        %4135 = vmatprep.subr.bf16.mxu0 0
        %4136 = vmatpush1.bf16.msra.mxu0 0
        %4137 = vmatprep.subr.bf16.mxu0 0
        %4138 = vmatpush1.bf16.msra.mxu0 0
        %4139 = vmatprep.subr.bf16.mxu0 0
        %4140 = vmatpush1.bf16.msra.mxu0 0
        %4141 = vmatprep.subr.bf16.mxu0 0
        %4142 = vmatpush1.bf16.msra.mxu0 0
        %4143 = vmatprep.subr.bf16.mxu0 0
        %4144 = vmatpush1.bf16.msra.mxu0 0
        %4145 = vmatprep.subr.bf16.mxu0 0
        %4146 = vmatpush1.bf16.msra.mxu0 0
        %4147 = vmatprep.subr.bf16.mxu0 0
        %4148 = vmatpush1.bf16.msra.mxu0 0
        %4149 = vmatprep.subr.bf16.mxu0 0
        %4150 = vmatpush1.bf16.msra.mxu0 0
        %4151 = vmatprep.subr.bf16.mxu0 0
        %4152 = vmatpush1.bf16.msra.mxu0 0
        %4153 = vmatprep.subr.bf16.mxu0 0
        %4154 = vmatpush1.bf16.msra.mxu0 0
        %4155 = vmatprep.subr.bf16.mxu0 0
        %4156 = vmatpush1.bf16.msra.mxu0 0
        %4157 = vmatprep.mubr.bf16.mxu0 0
        %4158 = vmatmul.mubr.bf16.gmra.mrb[0].mxu0 %v4120
        %v4159 = vpop.f32.mrb[0].mxu0
        %v4160 = vadd.f32 %v4117, %v4159
        %v4161 = vpop.f32.mrb[0].mxu0
        %v4162 = vpop.f32.mrb[0].mxu0
        %v4163 = vadd.f32 %v4117, %v4162
        %v4164 = vpop.f32.mrb[0].mxu0
        %4165 = vmatprep.mubr.bf16.mxu0 0
        %4166 = vmatmul.mubr.bf16.gmra.mrb[0].mxu0 %v4123
        %v4167 = vpop.f32.mrb[0].mxu0
        %v4168 = vadd.f32 %v4117, %v4167
        %v4169 = vpop.f32.mrb[0].mxu0
        %v4170 = vpop.f32.mrb[0].mxu0
        %v4171 = vpop.f32.mrb[0].mxu0
        %4172 = vdwg.mxu0
        %v4173 = vpack.c.bf16 %v4067, %v4067
        %v4174 = vpack.c.bf16 %v4163, %v4160
        %v4175 = vpack.c.bf16 %v4168, %v4168
        %v4177 = vsel %vm1636, %v4173, 0
        %v4180 = vsel %vm1636, %v4174, 0
        %v4183 = vsel %vm1636, %v4175, 0
        %4185 = vmatprep.subr.bf16.mxu0 0
        %4186 = vmatpush1.bf16.xpose.msra.mxu0 %v4180
        %4187 = vmatprep.subr.bf16.mxu0 0
        %4188 = vmatpush1.bf16.xpose.msra.mxu0 %v4183
        %4189 = vmatprep.subr.bf16.mxu0 0
        %4190 = vmatpush1.bf16.xpose.msra.mxu0 0
        %4191 = vmatprep.subr.bf16.mxu0 0
        %4192 = vmatpush1.bf16.xpose.msra.mxu0 0
        %4193 = vmatprep.subr.bf16.mxu0 0
        %4194 = vmatpush1.bf16.xpose.msra.mxu0 0
        %4195 = vmatprep.subr.bf16.mxu0 0
        %4196 = vmatpush1.bf16.xpose.msra.mxu0 0
        %4197 = vmatprep.subr.bf16.mxu0 0
        %4198 = vmatpush1.bf16.xpose.msra.mxu0 0
        %4199 = vmatprep.subr.bf16.mxu0 0
        %4200 = vmatpush1.bf16.xpose.msra.mxu0 0
        %4201 = vmatprep.subr.bf16.mxu0 0
        %4202 = vmatpush1.bf16.xpose.msra.mxu0 0
        %4203 = vmatprep.subr.bf16.mxu0 0
        %4204 = vmatpush1.bf16.xpose.msra.mxu0 0
        %4205 = vmatprep.subr.bf16.mxu0 0
        %4206 = vmatpush1.bf16.xpose.msra.mxu0 0
        %4207 = vmatprep.subr.bf16.mxu0 0
        %4208 = vmatpush1.bf16.xpose.msra.mxu0 0
        %4209 = vmatprep.subr.bf16.mxu0 0
        %4210 = vmatpush1.bf16.xpose.msra.mxu0 0
        %4211 = vmatprep.subr.bf16.mxu0 0
        %4212 = vmatpush1.bf16.xpose.msra.mxu0 0
        %4213 = vmatprep.subr.bf16.mxu0 0
        %4214 = vmatpush1.bf16.xpose.msra.mxu0 0
        %4215 = vmatprep.subr.bf16.mxu0 0
        %4216 = vmatpush1.bf16.xpose.msra.mxu0 0
        %4217 = vmatprep.mubr.bf16.mxu0 0
        %4218 = vmatmul.mubr.bf16.gmra.mrb[0].mxu0 %v4177
        %v4219 = vpop.f32.mrb[0].mxu0
        %v4220 = vadd.f32 0.0, %v4219
        %v4221 = vpop.f32.mrb[0].mxu0
        %v4222 = vpop.f32.mrb[0].mxu0
        %v4223 = vpop.f32.mrb[0].mxu0
        %4224 = vdwg.mxu0
        %v4225 = vsel %vm1002, %v4220, -inf
        %4226 = vmax.xlane.f32.xlu0 %v4225
        %v4227 = vpop.xlane.xlu0 %4226
        %v4228 = vsub.f32 %v4220, %v4227
        %v4229 = vmul.f32 %v4228, 1.442695
        %v4230 = vpow.pop %v4229
        %v4231 = vsel %vm1002, %v4230, 0.0
        %4232 = vadd.xlane.f32.xlu0 %v4231
        %v4233 = vpop.xlane.xlu0 %4232
        %v4234 = vrcp.pop %v4233
        %v4235 = vmul.f32 %v4230, %v4234
        %v4236 = vpack.c.bf16 %v4235, %v4235
        %4239 = vrot.lane.b32.xlu0 %v4174, 64
        %v4240 = vpop.permute.xlu0 %4239
        %4241 = vrot.lane.b32.xlu0 %v4175, 64
        %v4242 = vpop.permute.xlu0 %4241
        %v4245 = vsel %vm1002, %v4236, 0
        %v4248 = vsel %vm1050, %v4242, 0
        %4250 = vmatprep.subr.bf16.mxu0 0
        %4251 = vmatpush1.bf16.msra.mxu0 %v4240
        %4252 = vmatprep.subr.bf16.mxu0 0
        %4253 = vmatpush1.bf16.msra.mxu0 %v4248
        %4254 = vmatprep.subr.bf16.mxu0 0
        %4255 = vmatpush1.bf16.msra.mxu0 0
        %4256 = vmatprep.subr.bf16.mxu0 0
        %4257 = vmatpush1.bf16.msra.mxu0 0
        %4258 = vmatprep.subr.bf16.mxu0 0
        %4259 = vmatpush1.bf16.msra.mxu0 0
        %4260 = vmatprep.subr.bf16.mxu0 0
        %4261 = vmatpush1.bf16.msra.mxu0 0
        %4262 = vmatprep.subr.bf16.mxu0 0
        %4263 = vmatpush1.bf16.msra.mxu0 0
        %4264 = vmatprep.subr.bf16.mxu0 0
        %4265 = vmatpush1.bf16.msra.mxu0 0
        %4266 = vmatprep.subr.bf16.mxu0 0
        %4267 = vmatpush1.bf16.msra.mxu0 0
        %4268 = vmatprep.subr.bf16.mxu0 0
        %4269 = vmatpush1.bf16.msra.mxu0 0
        %4270 = vmatprep.subr.bf16.mxu0 0
        %4271 = vmatpush1.bf16.msra.mxu0 0
        %4272 = vmatprep.subr.bf16.mxu0 0
        %4273 = vmatpush1.bf16.msra.mxu0 0
        %4274 = vmatprep.subr.bf16.mxu0 0
        %4275 = vmatpush1.bf16.msra.mxu0 0
        %4276 = vmatprep.subr.bf16.mxu0 0
        %4277 = vmatpush1.bf16.msra.mxu0 0
        %4278 = vmatprep.subr.bf16.mxu0 0
        %4279 = vmatpush1.bf16.msra.mxu0 0
        %4280 = vmatprep.subr.bf16.mxu0 0
        %4281 = vmatpush1.bf16.msra.mxu0 0
        %4282 = vmatprep.mubr.bf16.mxu0 0
        %4283 = vmatmul.mubr.bf16.gmra.mrb[0].mxu0 %v4245
        %v4284 = vpop.f32.mrb[0].mxu0
        %v4285 = vadd.f32 0.0, %v4284
        %v4286 = vpop.f32.mrb[0].mxu0
        %v4287 = vpop.f32.mrb[0].mxu0
        %v4288 = vpop.f32.mrb[0].mxu0
        %4289 = vdwg.mxu0
        %4291 = vrot.lane.b32.xlu0 %v4173, 112
        %v4292 = vpop.permute.xlu0 %4291
        %4293 = vrot.lane.b32.xlu0 %v4174, 112
        %v4294 = vpop.permute.xlu0 %4293
        %4295 = vrot.lane.b32.xlu0 %v4175, 112
        %v4296 = vpop.permute.xlu0 %4295
        %v4298 = vsel %vm1636, %v4292, 0
        %v4301 = vsel %vm1636, %v4294, 0
        %v4304 = vsel %vm1636, %v4296, 0
        %4306 = vmatprep.subr.bf16.mxu0 0
        %4307 = vmatpush1.bf16.xpose.msra.mxu0 %v4301
        %4308 = vmatprep.subr.bf16.mxu0 0
        %4309 = vmatpush1.bf16.xpose.msra.mxu0 %v4304
        %4310 = vmatprep.subr.bf16.mxu0 0
        %4311 = vmatpush1.bf16.xpose.msra.mxu0 0
        %4312 = vmatprep.subr.bf16.mxu0 0
        %4313 = vmatpush1.bf16.xpose.msra.mxu0 0
        %4314 = vmatprep.subr.bf16.mxu0 0
        %4315 = vmatpush1.bf16.xpose.msra.mxu0 0
        %4316 = vmatprep.subr.bf16.mxu0 0
        %4317 = vmatpush1.bf16.xpose.msra.mxu0 0
        %4318 = vmatprep.subr.bf16.mxu0 0
        %4319 = vmatpush1.bf16.xpose.msra.mxu0 0
        %4320 = vmatprep.subr.bf16.mxu0 0
        %4321 = vmatpush1.bf16.xpose.msra.mxu0 0
        %4322 = vmatprep.subr.bf16.mxu0 0
        %4323 = vmatpush1.bf16.xpose.msra.mxu0 0
        %4324 = vmatprep.subr.bf16.mxu0 0
        %4325 = vmatpush1.bf16.xpose.msra.mxu0 0
        %4326 = vmatprep.subr.bf16.mxu0 0
        %4327 = vmatpush1.bf16.xpose.msra.mxu0 0
        %4328 = vmatprep.subr.bf16.mxu0 0
        %4329 = vmatpush1.bf16.xpose.msra.mxu0 0
        %4330 = vmatprep.subr.bf16.mxu0 0
        %4331 = vmatpush1.bf16.xpose.msra.mxu0 0
        %4332 = vmatprep.subr.bf16.mxu0 0
        %4333 = vmatpush1.bf16.xpose.msra.mxu0 0
        %4334 = vmatprep.subr.bf16.mxu0 0
        %4335 = vmatpush1.bf16.xpose.msra.mxu0 0
        %4336 = vmatprep.subr.bf16.mxu0 0
        %4337 = vmatpush1.bf16.xpose.msra.mxu0 0
        %4338 = vmatprep.mubr.bf16.mxu0 0
        %4339 = vmatmul.mubr.bf16.gmra.mrb[0].mxu0 %v4298
        %v4340 = vpop.f32.mrb[0].mxu0
        %v4341 = vadd.f32 0.0, %v4340
        %v4342 = vpop.f32.mrb[0].mxu0
        %v4343 = vpop.f32.mrb[0].mxu0
        %v4344 = vpop.f32.mrb[0].mxu0
        %4345 = vdwg.mxu0
        %v4346 = vsel %vm1002, %v4341, -inf
        %4347 = vmax.xlane.f32.xlu0 %v4346
        %v4348 = vpop.xlane.xlu0 %4347
        %v4349 = vsub.f32 %v4341, %v4348
        %v4350 = vmul.f32 %v4349, 1.442695
        %v4351 = vpow.pop %v4350
        %v4352 = vsel %vm1002, %v4351, 0.0
        %4353 = vadd.xlane.f32.xlu0 %v4352
        %v4354 = vpop.xlane.xlu0 %4353
        %v4355 = vrcp.pop %v4354
        %v4356 = vmul.f32 %v4351, %v4355
        %v4357 = vpack.c.bf16 %v4356, %v4356
        %4358 = vrot.lane.b32.xlu0 %v4174, 48
        %v4359 = vpop.permute.xlu0 %4358
        %4360 = vrot.lane.b32.xlu0 %v4175, 48
        %v4361 = vpop.permute.xlu0 %4360
        %v4364 = vsel %vm1002, %v4357, 0
        %v4367 = vsel %vm1050, %v4361, 0
        %4369 = vmatprep.subr.bf16.mxu0 0
        %4370 = vmatpush1.bf16.msra.mxu0 %v4359
        %4371 = vmatprep.subr.bf16.mxu0 0
        %4372 = vmatpush1.bf16.msra.mxu0 %v4367
        %4373 = vmatprep.subr.bf16.mxu0 0
        %4374 = vmatpush1.bf16.msra.mxu0 0
        %4375 = vmatprep.subr.bf16.mxu0 0
        %4376 = vmatpush1.bf16.msra.mxu0 0
        %4377 = vmatprep.subr.bf16.mxu0 0
        %4378 = vmatpush1.bf16.msra.mxu0 0
        %4379 = vmatprep.subr.bf16.mxu0 0
        %4380 = vmatpush1.bf16.msra.mxu0 0
        %4381 = vmatprep.subr.bf16.mxu0 0
        %4382 = vmatpush1.bf16.msra.mxu0 0
        %4383 = vmatprep.subr.bf16.mxu0 0
        %4384 = vmatpush1.bf16.msra.mxu0 0
        %4385 = vmatprep.subr.bf16.mxu0 0
        %4386 = vmatpush1.bf16.msra.mxu0 0
        %4387 = vmatprep.subr.bf16.mxu0 0
        %4388 = vmatpush1.bf16.msra.mxu0 0
        %4389 = vmatprep.subr.bf16.mxu0 0
        %4390 = vmatpush1.bf16.msra.mxu0 0
        %4391 = vmatprep.subr.bf16.mxu0 0
        %4392 = vmatpush1.bf16.msra.mxu0 0
        %4393 = vmatprep.subr.bf16.mxu0 0
        %4394 = vmatpush1.bf16.msra.mxu0 0
        %4395 = vmatprep.subr.bf16.mxu0 0
        %4396 = vmatpush1.bf16.msra.mxu0 0
        %4397 = vmatprep.subr.bf16.mxu0 0
        %4398 = vmatpush1.bf16.msra.mxu0 0
        %4399 = vmatprep.subr.bf16.mxu0 0
        %4400 = vmatpush1.bf16.msra.mxu0 0
        %4401 = vmatprep.mubr.bf16.mxu0 0
        %4402 = vmatmul.mubr.bf16.gmra.mrb[0].mxu0 %v4364
        %v4403 = vpop.f32.mrb[0].mxu0
        %v4404 = vadd.f32 0.0, %v4403
        %v4405 = vpop.f32.mrb[0].mxu0
        %v4406 = vpop.f32.mrb[0].mxu0
        %v4407 = vpop.f32.mrb[0].mxu0
        %4408 = vdwg.mxu0
        %4409 = vrot.lane.b32.xlu0 %v4173, 96
        %v4410 = vpop.permute.xlu0 %4409
        %4411 = vrot.lane.b32.xlu0 %v4174, 96
        %v4412 = vpop.permute.xlu0 %4411
        %4413 = vrot.lane.b32.xlu0 %v4175, 96
        %v4414 = vpop.permute.xlu0 %4413
        %v4416 = vsel %vm1636, %v4410, 0
        %v4419 = vsel %vm1636, %v4412, 0
        %v4422 = vsel %vm1636, %v4414, 0
        %4424 = vmatprep.subr.bf16.mxu0 0
        %4425 = vmatpush1.bf16.xpose.msra.mxu0 %v4419
        %4426 = vmatprep.subr.bf16.mxu0 0
        %4427 = vmatpush1.bf16.xpose.msra.mxu0 %v4422
        %4428 = vmatprep.subr.bf16.mxu0 0
        %4429 = vmatpush1.bf16.xpose.msra.mxu0 0
        %4430 = vmatprep.subr.bf16.mxu0 0
        %4431 = vmatpush1.bf16.xpose.msra.mxu0 0
        %4432 = vmatprep.subr.bf16.mxu0 0
        %4433 = vmatpush1.bf16.xpose.msra.mxu0 0
        %4434 = vmatprep.subr.bf16.mxu0 0
        %4435 = vmatpush1.bf16.xpose.msra.mxu0 0
        %4436 = vmatprep.subr.bf16.mxu0 0
        %4437 = vmatpush1.bf16.xpose.msra.mxu0 0
        %4438 = vmatprep.subr.bf16.mxu0 0
        %4439 = vmatpush1.bf16.xpose.msra.mxu0 0
        %4440 = vmatprep.subr.bf16.mxu0 0
        %4441 = vmatpush1.bf16.xpose.msra.mxu0 0
        %4442 = vmatprep.subr.bf16.mxu0 0
        %4443 = vmatpush1.bf16.xpose.msra.mxu0 0
        %4444 = vmatprep.subr.bf16.mxu0 0
        %4445 = vmatpush1.bf16.xpose.msra.mxu0 0
        %4446 = vmatprep.subr.bf16.mxu0 0
        %4447 = vmatpush1.bf16.xpose.msra.mxu0 0
        %4448 = vmatprep.subr.bf16.mxu0 0
        %4449 = vmatpush1.bf16.xpose.msra.mxu0 0
        %4450 = vmatprep.subr.bf16.mxu0 0
        %4451 = vmatpush1.bf16.xpose.msra.mxu0 0
        %4452 = vmatprep.subr.bf16.mxu0 0
        %4453 = vmatpush1.bf16.xpose.msra.mxu0 0
        %4454 = vmatprep.subr.bf16.mxu0 0
        %4455 = vmatpush1.bf16.xpose.msra.mxu0 0
        %4456 = vmatprep.mubr.bf16.mxu0 0
        %4457 = vmatmul.mubr.bf16.gmra.mrb[0].mxu0 %v4416
        %v4458 = vpop.f32.mrb[0].mxu0
        %v4459 = vadd.f32 0.0, %v4458
        %v4460 = vpop.f32.mrb[0].mxu0
        %v4461 = vpop.f32.mrb[0].mxu0
        %v4462 = vpop.f32.mrb[0].mxu0
        %4463 = vdwg.mxu0
        %v4464 = vsel %vm1002, %v4459, -inf
        %4465 = vmax.xlane.f32.xlu0 %v4464
        %v4466 = vpop.xlane.xlu0 %4465
        %v4467 = vsub.f32 %v4459, %v4466
        %v4468 = vmul.f32 %v4467, 1.442695
        %v4469 = vpow.pop %v4468
        %v4470 = vsel %vm1002, %v4469, 0.0
        %4471 = vadd.xlane.f32.xlu0 %v4470
        %v4472 = vpop.xlane.xlu0 %4471
        %v4473 = vrcp.pop %v4472
        %v4474 = vmul.f32 %v4469, %v4473
        %v4475 = vpack.c.bf16 %v4474, %v4474
        %4476 = vrot.lane.b32.xlu0 %v4174, 32
        %v4477 = vpop.permute.xlu0 %4476
        %4478 = vrot.lane.b32.xlu0 %v4175, 32
        %v4479 = vpop.permute.xlu0 %4478
        %v4482 = vsel %vm1002, %v4475, 0
        %v4485 = vsel %vm1050, %v4479, 0
        %4487 = vmatprep.subr.bf16.mxu0 0
        %4488 = vmatpush1.bf16.msra.mxu0 %v4477
        %4489 = vmatprep.subr.bf16.mxu0 0
        %4490 = vmatpush1.bf16.msra.mxu0 %v4485
        %4491 = vmatprep.subr.bf16.mxu0 0
        %4492 = vmatpush1.bf16.msra.mxu0 0
        %4493 = vmatprep.subr.bf16.mxu0 0
        %4494 = vmatpush1.bf16.msra.mxu0 0
        %4495 = vmatprep.subr.bf16.mxu0 0
        %4496 = vmatpush1.bf16.msra.mxu0 0
        %4497 = vmatprep.subr.bf16.mxu0 0
        %4498 = vmatpush1.bf16.msra.mxu0 0
        %4499 = vmatprep.subr.bf16.mxu0 0
        %4500 = vmatpush1.bf16.msra.mxu0 0
        %4501 = vmatprep.subr.bf16.mxu0 0
        %4502 = vmatpush1.bf16.msra.mxu0 0
        %4503 = vmatprep.subr.bf16.mxu0 0
        %4504 = vmatpush1.bf16.msra.mxu0 0
        %4505 = vmatprep.subr.bf16.mxu0 0
        %4506 = vmatpush1.bf16.msra.mxu0 0
        %4507 = vmatprep.subr.bf16.mxu0 0
        %4508 = vmatpush1.bf16.msra.mxu0 0
        %4509 = vmatprep.subr.bf16.mxu0 0
        %4510 = vmatpush1.bf16.msra.mxu0 0
        %4511 = vmatprep.subr.bf16.mxu0 0
        %4512 = vmatpush1.bf16.msra.mxu0 0
        %4513 = vmatprep.subr.bf16.mxu0 0
        %4514 = vmatpush1.bf16.msra.mxu0 0
        %4515 = vmatprep.subr.bf16.mxu0 0
        %4516 = vmatpush1.bf16.msra.mxu0 0
        %4517 = vmatprep.subr.bf16.mxu0 0
        %4518 = vmatpush1.bf16.msra.mxu0 0
        %4519 = vmatprep.mubr.bf16.mxu0 0
        %4520 = vmatmul.mubr.bf16.gmra.mrb[0].mxu0 %v4482
        %v4521 = vpop.f32.mrb[0].mxu0
        %v4522 = vadd.f32 0.0, %v4521
        %v4523 = vpop.f32.mrb[0].mxu0
        %v4524 = vpop.f32.mrb[0].mxu0
        %v4525 = vpop.f32.mrb[0].mxu0
        %4526 = vdwg.mxu0
        %4527 = vrot.lane.b32.xlu0 %v4173, 80
        %v4528 = vpop.permute.xlu0 %4527
        %4529 = vrot.lane.b32.xlu0 %v4174, 80
        %v4530 = vpop.permute.xlu0 %4529
        %4531 = vrot.lane.b32.xlu0 %v4175, 80
        %v4532 = vpop.permute.xlu0 %4531
        %v4534 = vsel %vm1636, %v4528, 0
        %v4537 = vsel %vm1636, %v4530, 0
        %v4540 = vsel %vm1636, %v4532, 0
        %4542 = vmatprep.subr.bf16.mxu0 0
        %4543 = vmatpush1.bf16.xpose.msra.mxu0 %v4537
        %4544 = vmatprep.subr.bf16.mxu0 0
        %4545 = vmatpush1.bf16.xpose.msra.mxu0 %v4540
        %4546 = vmatprep.subr.bf16.mxu0 0
        %4547 = vmatpush1.bf16.xpose.msra.mxu0 0
        %4548 = vmatprep.subr.bf16.mxu0 0
        %4549 = vmatpush1.bf16.xpose.msra.mxu0 0
        %4550 = vmatprep.subr.bf16.mxu0 0
        %4551 = vmatpush1.bf16.xpose.msra.mxu0 0
        %4552 = vmatprep.subr.bf16.mxu0 0
        %4553 = vmatpush1.bf16.xpose.msra.mxu0 0
        %4554 = vmatprep.subr.bf16.mxu0 0
        %4555 = vmatpush1.bf16.xpose.msra.mxu0 0
        %4556 = vmatprep.subr.bf16.mxu0 0
        %4557 = vmatpush1.bf16.xpose.msra.mxu0 0
        %4558 = vmatprep.subr.bf16.mxu0 0
        %4559 = vmatpush1.bf16.xpose.msra.mxu0 0
        %4560 = vmatprep.subr.bf16.mxu0 0
        %4561 = vmatpush1.bf16.xpose.msra.mxu0 0
        %4562 = vmatprep.subr.bf16.mxu0 0
        %4563 = vmatpush1.bf16.xpose.msra.mxu0 0
        %4564 = vmatprep.subr.bf16.mxu0 0
        %4565 = vmatpush1.bf16.xpose.msra.mxu0 0
        %4566 = vmatprep.subr.bf16.mxu0 0
        %4567 = vmatpush1.bf16.xpose.msra.mxu0 0
        %4568 = vmatprep.subr.bf16.mxu0 0
        %4569 = vmatpush1.bf16.xpose.msra.mxu0 0
        %4570 = vmatprep.subr.bf16.mxu0 0
        %4571 = vmatpush1.bf16.xpose.msra.mxu0 0
        %4572 = vmatprep.subr.bf16.mxu0 0
        %4573 = vmatpush1.bf16.xpose.msra.mxu0 0
        %4574 = vmatprep.mubr.bf16.mxu0 0
        %4575 = vmatmul.mubr.bf16.gmra.mrb[0].mxu0 %v4534
        %v4576 = vpop.f32.mrb[0].mxu0
        %v4577 = vadd.f32 0.0, %v4576
        %v4578 = vpop.f32.mrb[0].mxu0
        %v4579 = vpop.f32.mrb[0].mxu0
        %v4580 = vpop.f32.mrb[0].mxu0
        %4581 = vdwg.mxu0
        %v4582 = vsel %vm1002, %v4577, -inf
        %4583 = vmax.xlane.f32.xlu0 %v4582
        %v4584 = vpop.xlane.xlu0 %4583
        %v4585 = vsub.f32 %v4577, %v4584
        %v4586 = vmul.f32 %v4585, 1.442695
        %v4587 = vpow.pop %v4586
        %v4588 = vsel %vm1002, %v4587, 0.0
        %4589 = vadd.xlane.f32.xlu0 %v4588
        %v4590 = vpop.xlane.xlu0 %4589
        %v4591 = vrcp.pop %v4590
        %v4592 = vmul.f32 %v4587, %v4591
        %v4593 = vpack.c.bf16 %v4592, %v4592
        %4594 = vrot.lane.b32.xlu0 %v4174, 16
        %v4595 = vpop.permute.xlu0 %4594
        %4596 = vrot.lane.b32.xlu0 %v4175, 16
        %v4597 = vpop.permute.xlu0 %4596
        %v4600 = vsel %vm1002, %v4593, 0
        %v4603 = vsel %vm1050, %v4597, 0
        %4605 = vmatprep.subr.bf16.mxu0 0
        %4606 = vmatpush1.bf16.msra.mxu0 %v4595
        %4607 = vmatprep.subr.bf16.mxu0 0
        %4608 = vmatpush1.bf16.msra.mxu0 %v4603
        %4609 = vmatprep.subr.bf16.mxu0 0
        %4610 = vmatpush1.bf16.msra.mxu0 0
        %4611 = vmatprep.subr.bf16.mxu0 0
        %4612 = vmatpush1.bf16.msra.mxu0 0
        %4613 = vmatprep.subr.bf16.mxu0 0
        %4614 = vmatpush1.bf16.msra.mxu0 0
        %4615 = vmatprep.subr.bf16.mxu0 0
        %4616 = vmatpush1.bf16.msra.mxu0 0
        %4617 = vmatprep.subr.bf16.mxu0 0
        %4618 = vmatpush1.bf16.msra.mxu0 0
        %4619 = vmatprep.subr.bf16.mxu0 0
        %4620 = vmatpush1.bf16.msra.mxu0 0
        %4621 = vmatprep.subr.bf16.mxu0 0
        %4622 = vmatpush1.bf16.msra.mxu0 0
        %4623 = vmatprep.subr.bf16.mxu0 0
        %4624 = vmatpush1.bf16.msra.mxu0 0
        %4625 = vmatprep.subr.bf16.mxu0 0
        %4626 = vmatpush1.bf16.msra.mxu0 0
        %4627 = vmatprep.subr.bf16.mxu0 0
        %4628 = vmatpush1.bf16.msra.mxu0 0
        %4629 = vmatprep.subr.bf16.mxu0 0
        %4630 = vmatpush1.bf16.msra.mxu0 0
        %4631 = vmatprep.subr.bf16.mxu0 0
        %4632 = vmatpush1.bf16.msra.mxu0 0
        %4633 = vmatprep.subr.bf16.mxu0 0
        %4634 = vmatpush1.bf16.msra.mxu0 0
        %4635 = vmatprep.subr.bf16.mxu0 0
        %4636 = vmatpush1.bf16.msra.mxu0 0
        %4637 = vmatprep.mubr.bf16.mxu0 0
        %4638 = vmatmul.mubr.bf16.gmra.mrb[0].mxu0 %v4600
        %v4639 = vpop.f32.mrb[0].mxu0
        %v4640 = vadd.f32 0.0, %v4639
        %v4641 = vpop.f32.mrb[0].mxu0
        %v4642 = vpop.f32.mrb[0].mxu0
        %v4643 = vpop.f32.mrb[0].mxu0
        %4644 = vdwg.mxu0
        %4646 = vrot.lane.b32.xlu0 %v4404, 16
        %v4647 = vpop.permute.xlu0 %4646
        %4650 = vrot.lane.b32.xlu0 %v4522, 32
        %v4651 = vpop.permute.xlu0 %4650
        %4654 = vrot.lane.b32.xlu0 %v4640, 48
        %v4655 = vpop.permute.xlu0 %4654
        %v4657 = vsel %vm1636, %v4285, %v4647
        %v4658 = vsel %vm794, %v4657, %v4651
        %v4659 = vsel %vm738, %v4658, %v4655
        %v4660 = vpack.c.bf16 %v4659, %v4659
        %v4661 = vlaneseq
        %v4662 = vshrl.u32 %v4661, 7
        %v4663 = vsub.s32 7, %v4662
        %v4664 = vrot.slane %v3311, %v4663
        %v4673 = vunpack.c.l.b16 %v3991
        %v4674 = vunpack.c.l.b16 %v3992
        %v4675 = vunpack.c.l.b16 %v3993
        %v4676 = vunpack.c.l.b16 %v3994
        %v4677 = vunpack.c.l.b16 %v3995
        %v4678 = vunpack.c.l.b16 %v3996
        %v4679 = vunpack.c.l.b16 %v3997
        %v4680 = vunpack.c.l.b16 %v3998
        %v4681 = vpack.c.b16 %v4674, %v4673
        %v4682 = vpack.c.b16 %v4676, %v4675
        %v4683 = vpack.c.b16 %v4678, %v4677
        %v4684 = vpack.c.b16 %v4680, %v4679
        %v4690 = vsel %vm1916, %v4660, 0
        %4692 = vmatprep.subr.bf16.mxu0 0
        %4693 = vmatpush1.bf16.msra.mxu0 %v4681
        %4694 = vmatprep.subr.bf16.mxu0 0
        %4695 = vmatpush1.bf16.msra.mxu0 %v4682
        %4696 = vmatprep.subr.bf16.mxu0 0
        %4697 = vmatpush1.bf16.msra.mxu0 %v4683
        %4698 = vmatprep.subr.bf16.mxu0 0
        %4699 = vmatpush1.bf16.msra.mxu0 %v4684
        %4700 = vmatprep.subr.bf16.mxu0 0
        %4701 = vmatpush1.bf16.msra.mxu0 0
        %4702 = vmatprep.subr.bf16.mxu0 0
        %4703 = vmatpush1.bf16.msra.mxu0 0
        %4704 = vmatprep.subr.bf16.mxu0 0
        %4705 = vmatpush1.bf16.msra.mxu0 0
        %4706 = vmatprep.subr.bf16.mxu0 0
        %4707 = vmatpush1.bf16.msra.mxu0 0
        %4708 = vmatprep.subr.bf16.mxu0 0
        %4709 = vmatpush1.bf16.msra.mxu0 0
        %4710 = vmatprep.subr.bf16.mxu0 0
        %4711 = vmatpush1.bf16.msra.mxu0 0
        %4712 = vmatprep.subr.bf16.mxu0 0
        %4713 = vmatpush1.bf16.msra.mxu0 0
        %4714 = vmatprep.subr.bf16.mxu0 0
        %4715 = vmatpush1.bf16.msra.mxu0 0
        %4716 = vmatprep.subr.bf16.mxu0 0
        %4717 = vmatpush1.bf16.msra.mxu0 0
        %4718 = vmatprep.subr.bf16.mxu0 0
        %4719 = vmatpush1.bf16.msra.mxu0 0
        %4720 = vmatprep.subr.bf16.mxu0 0
        %4721 = vmatpush1.bf16.msra.mxu0 0
        %4722 = vmatprep.subr.bf16.mxu0 0
        %4723 = vmatpush1.bf16.msra.mxu0 0
        %4724 = vmatprep.mubr.bf16.mxu0 0
        %4725 = vmatmul.mubr.bf16.gmra.mrb[0].mxu0 %v4690
        %v4726 = vpop.f32.mrb[0].mxu0
        %v4727 = vadd.f32 %v4664, %v4726
        %v4728 = vpop.f32.mrb[0].mxu0
        %v4729 = vpop.f32.mrb[0].mxu0
        %v4730 = vpop.f32.mrb[0].mxu0
        %4731 = vdwg.mxu0
        %v4732 = vadd.f32 %v3977, %v4727
        %v4733 = vsel %vm1916, %v4732, 0.0
        %4734 = vadd.xlane.f32.xlu0 %v4733
        %v4735 = vpop.xlane.xlu0 %4734
        %v4736 = vmul.f32 %v4735, %v3289
        %v4737 = vsub.f32 %v4732, %v4736
        %v4738 = vmul.f32 %v4737, %v4737
        %v4739 = vsel %vm1916, %v4738, 0.0
        %4740 = vadd.xlane.f32.xlu0 %v4739
        %v4741 = vpop.xlane.xlu0 %4740
        %v4742 = vmul.f32 %v4741, %v3289
        %v4743 = vadd.f32 %v4742, 1e-05
        %v4744 = vrsqrt.pop %v4743
        %v4745 = vmul.f32 %v4737, %v4744
        %v4746 = vlaneseq
        %v4747 = vshrl.u32 %v4746, 7
        %v4748 = vsub.s32 2, %v4747
        %v4749 = vrot.slane %v3311, %v4748
        %v4750 = vmul.f32 %v4745, %v4749
        %v4751 = vlaneseq
        %v4752 = vshrl.u32 %v4751, 7
        %v4753 = vsub.s32 3, %v4752
        %v4754 = vrot.slane %v3311, %v4753
        %v4755 = vadd.f32 %v4750, %v4754
        %v4756 = vpack.c.bf16 %v4755, %v4755
        %v4757 = vld [vmem:[%s19] sm:$0xf]
        %v4758 = vld [vmem:[%s19 + $0x4] sm:$0xf]
        %v4759 = vld [vmem:[%s19 + $0x8] sm:$0xf]
        %v4760 = vld [vmem:[%s19 + $0xc] sm:$0xf]
        %v4761 = vld [vmem:[%s19 + $0x10] sm:$0xf]
        %v4762 = vld [vmem:[%s19 + $0x14] sm:$0xf]
        %v4763 = vld [vmem:[%s19 + $0x18] sm:$0xf]
        %v4764 = vld [vmem:[%s19 + $0x1c] sm:$0xf]
        %v4765 = vld [vmem:[%s20] sm:$0x1]
        %v4766 = vld [vmem:[%s21] sm:$0xf]
        %v4767 = vld [vmem:[%s21 + $0x4] sm:$0xf]
        %v4768 = vld [vmem:[%s21 + $0x8] sm:$0xf]
        %v4769 = vld [vmem:[%s21 + $0xc] sm:$0xf]
        %v4770 = vld [vmem:[%s21 + $0x10] sm:$0xf]
        %v4771 = vld [vmem:[%s21 + $0x14] sm:$0xf]
        %v4772 = vld [vmem:[%s21 + $0x18] sm:$0xf]
        %v4773 = vld [vmem:[%s21 + $0x1c] sm:$0xf]
        %v4774 = vld [vmem:[%s21 + $0x20] sm:$0xf]
        %v4775 = vld [vmem:[%s21 + $0x24] sm:$0xf]
        %v4776 = vld [vmem:[%s21 + $0x28] sm:$0xf]
        %v4777 = vld [vmem:[%s21 + $0x2c] sm:$0xf]
        %v4778 = vld [vmem:[%s21 + $0x30] sm:$0xf]
        %v4779 = vld [vmem:[%s21 + $0x34] sm:$0xf]
        %v4780 = vld [vmem:[%s21 + $0x38] sm:$0xf]
        %v4781 = vld [vmem:[%s21 + $0x3c] sm:$0xf]
        %v4783 = vlaneseq
        %v4784 = vshrl.u32 %v4783, 7
        %v4785 = vsub.s32 0, %v4784
        %v4786 = vrot.slane %v4765, %v4785
        %v4796 = vunpack.c.l.b16 %v4757
        %v4797 = vunpack.c.l.b16 %v4758
        %v4798 = vunpack.c.l.b16 %v4759
        %v4799 = vunpack.c.l.b16 %v4760
        %v4800 = vunpack.c.l.b16 %v4761
        %v4801 = vunpack.c.l.b16 %v4762
        %v4802 = vunpack.c.l.b16 %v4763
        %v4803 = vunpack.c.l.b16 %v4764
        %v4804 = vpack.c.b16 %v4797, %v4796
        %v4805 = vpack.c.b16 %v4799, %v4798
        %v4806 = vpack.c.b16 %v4801, %v4800
        %v4807 = vpack.c.b16 %v4803, %v4802
        %v4813 = vsel %vm1916, %v4756, 0
        %4815 = vmatprep.subr.bf16.mxu0 0
        %4816 = vmatpush1.bf16.msra.mxu0 %v4804
        %4817 = vmatprep.subr.bf16.mxu0 0
        %4818 = vmatpush1.bf16.msra.mxu0 %v4805
        %4819 = vmatprep.subr.bf16.mxu0 0
        %4820 = vmatpush1.bf16.msra.mxu0 %v4806
        %4821 = vmatprep.subr.bf16.mxu0 0
        %4822 = vmatpush1.bf16.msra.mxu0 %v4807
        %4823 = vmatprep.subr.bf16.mxu0 0
        %4824 = vmatpush1.bf16.msra.mxu0 0
        %4825 = vmatprep.subr.bf16.mxu0 0
        %4826 = vmatpush1.bf16.msra.mxu0 0
        %4827 = vmatprep.subr.bf16.mxu0 0
        %4828 = vmatpush1.bf16.msra.mxu0 0
        %4829 = vmatprep.subr.bf16.mxu0 0
        %4830 = vmatpush1.bf16.msra.mxu0 0
        %4831 = vmatprep.subr.bf16.mxu0 0
        %4832 = vmatpush1.bf16.msra.mxu0 0
        %4833 = vmatprep.subr.bf16.mxu0 0
        %4834 = vmatpush1.bf16.msra.mxu0 0
        %4835 = vmatprep.subr.bf16.mxu0 0
        %4836 = vmatpush1.bf16.msra.mxu0 0
        %4837 = vmatprep.subr.bf16.mxu0 0
        %4838 = vmatpush1.bf16.msra.mxu0 0
        %4839 = vmatprep.subr.bf16.mxu0 0
        %4840 = vmatpush1.bf16.msra.mxu0 0
        %4841 = vmatprep.subr.bf16.mxu0 0
        %4842 = vmatpush1.bf16.msra.mxu0 0
        %4843 = vmatprep.subr.bf16.mxu0 0
        %4844 = vmatpush1.bf16.msra.mxu0 0
        %4845 = vmatprep.subr.bf16.mxu0 0
        %4846 = vmatpush1.bf16.msra.mxu0 0
        %4847 = vmatprep.mubr.bf16.mxu0 0
        %4848 = vmatmul.mubr.bf16.gmra.mrb[0].mxu0 %v4813
        %v4849 = vpop.f32.mrb[0].mxu0
        %v4850 = vadd.f32 %v4786, %v4849
        %v4851 = vpop.f32.mrb[0].mxu0
        %v4852 = vpop.f32.mrb[0].mxu0
        %v4853 = vpop.f32.mrb[0].mxu0
        %4854 = vdwg.mxu0
        %v4855 = vmul.f32 %v4850, %v4850
        %v4856 = vmul.f32 %v4850, %v4855
        %v4857 = vmul.f32 %v4856, 0.044715
        %v4858 = vadd.f32 %v4850, %v4857
        %v4859 = vmul.f32 %v4858, 0.7978846
        %v4860 = vtanh.pop %v4859
        %v4861 = vadd.f32 %v4860, 1.0
        %v4862 = vmul.f32 %v4861, 0.5
        %v4863 = vmul.f32 %v4850, %v4862
        %v4864 = vpack.c.bf16 %v4863, %v4863
        %v4865 = vlaneseq
        %v4866 = vshrl.u32 %v4865, 7
        %v4867 = vsub.s32 0, %v4866
        %v4868 = vrot.slane %v3312, %v4867
        %v4885 = vunpack.c.l.b16 %v4766
        %v4886 = vunpack.c.l.b16 %v4767
        %v4887 = vunpack.c.l.b16 %v4768
        %v4888 = vunpack.c.l.b16 %v4769
        %v4889 = vunpack.c.l.b16 %v4770
        %v4890 = vunpack.c.l.b16 %v4771
        %v4891 = vunpack.c.l.b16 %v4772
        %v4892 = vunpack.c.l.b16 %v4773
        %v4893 = vunpack.c.l.b16 %v4774
        %v4894 = vunpack.c.l.b16 %v4775
        %v4895 = vunpack.c.l.b16 %v4776
        %v4896 = vunpack.c.l.b16 %v4777
        %v4897 = vunpack.c.l.b16 %v4778
        %v4898 = vunpack.c.l.b16 %v4779
        %v4899 = vunpack.c.l.b16 %v4780
        %v4900 = vunpack.c.l.b16 %v4781
        %v4901 = vpack.c.b16 %v4886, %v4885
        %v4902 = vpack.c.b16 %v4888, %v4887
        %v4903 = vpack.c.b16 %v4890, %v4889
        %v4904 = vpack.c.b16 %v4892, %v4891
        %v4905 = vpack.c.b16 %v4894, %v4893
        %v4906 = vpack.c.b16 %v4896, %v4895
        %v4907 = vpack.c.b16 %v4898, %v4897
        %v4908 = vpack.c.b16 %v4900, %v4899
        %4917 = vmatprep.subr.bf16.mxu0 0
        %4918 = vmatpush1.bf16.msra.mxu0 %v4901
        %4919 = vmatprep.subr.bf16.mxu0 0
        %4920 = vmatpush1.bf16.msra.mxu0 %v4902
        %4921 = vmatprep.subr.bf16.mxu0 0
        %4922 = vmatpush1.bf16.msra.mxu0 %v4903
        %4923 = vmatprep.subr.bf16.mxu0 0
        %4924 = vmatpush1.bf16.msra.mxu0 %v4904
        %4925 = vmatprep.subr.bf16.mxu0 0
        %4926 = vmatpush1.bf16.msra.mxu0 %v4905
        %4927 = vmatprep.subr.bf16.mxu0 0
        %4928 = vmatpush1.bf16.msra.mxu0 %v4906
        %4929 = vmatprep.subr.bf16.mxu0 0
        %4930 = vmatpush1.bf16.msra.mxu0 %v4907
        %4931 = vmatprep.subr.bf16.mxu0 0
        %4932 = vmatpush1.bf16.msra.mxu0 %v4908
        %4933 = vmatprep.subr.bf16.mxu0 0
        %4934 = vmatpush1.bf16.msra.mxu0 0
        %4935 = vmatprep.subr.bf16.mxu0 0
        %4936 = vmatpush1.bf16.msra.mxu0 0
        %4937 = vmatprep.subr.bf16.mxu0 0
        %4938 = vmatpush1.bf16.msra.mxu0 0
        %4939 = vmatprep.subr.bf16.mxu0 0
        %4940 = vmatpush1.bf16.msra.mxu0 0
        %4941 = vmatprep.subr.bf16.mxu0 0
        %4942 = vmatpush1.bf16.msra.mxu0 0
        %4943 = vmatprep.subr.bf16.mxu0 0
        %4944 = vmatpush1.bf16.msra.mxu0 0
        %4945 = vmatprep.subr.bf16.mxu0 0
        %4946 = vmatpush1.bf16.msra.mxu0 0
        %4947 = vmatprep.subr.bf16.mxu0 0
        %4948 = vmatpush1.bf16.msra.mxu0 0
        %4949 = vmatprep.mubr.bf16.mxu0 0
        %4950 = vmatmul.mubr.bf16.gmra.mrb[0].mxu0 %v4864
        %v4951 = vpop.f32.mrb[0].mxu0
        %v4952 = vadd.f32 %v4868, %v4951
        %v4953 = vpop.f32.mrb[0].mxu0
        %v4954 = vpop.f32.mrb[0].mxu0
        %v4955 = vpop.f32.mrb[0].mxu0
        %4956 = vdwg.mxu0
        %v4957 = vadd.f32 %v4755, %v4952
        %v4958 = vsel %vm1916, %v4957, 0.0
        %4959 = vadd.xlane.f32.xlu0 %v4958
        %v4960 = vpop.xlane.xlu0 %4959
        %v4961 = vmul.f32 %v4960, %v3289
        %v4962 = vsub.f32 %v4957, %v4961
        %v4963 = vmul.f32 %v4962, %v4962
        %v4964 = vsel %vm1916, %v4963, 0.0
        %4965 = vadd.xlane.f32.xlu0 %v4964
        %v4966 = vpop.xlane.xlu0 %4965
        %v4967 = vmul.f32 %v4966, %v3289
        %v4968 = vadd.f32 %v4967, 1e-05
        %v4969 = vrsqrt.pop %v4968
        %v4970 = vmul.f32 %v4962, %v4969
        %v4971 = vlaneseq
        %v4972 = vshrl.u32 %v4971, 7
        %v4973 = vsub.s32 4, %v4972
        %v4974 = vrot.slane %v3311, %v4973
        %v4975 = vmul.f32 %v4970, %v4974
        %v4976 = vlaneseq
        %v4977 = vshrl.u32 %v4976, 7
        %v4978 = vsub.s32 5, %v4977
        %v4979 = vrot.slane %v3311, %v4978
        %v4980 = vadd.f32 %v4975, %v4979
        %s4981 = scalar_lea.vmem %s15, 16
        %v4982 = vld [vmem:[%s4981] sm:$0xff]
        %v4983 = vld [vmem:[%s4981 + $0x8] sm:$0x1]
        %v4984 = vpack.c.bf16 %v4980, %v4980
        %s4985 = scalar_lea.vmem %s16, 128
        %v4986 = vld [vmem:[%s4985] sm:$0xff]
        %v4987 = vld [vmem:[%s4985 + $0x8] sm:$0xff]
        %v4988 = vld [vmem:[%s4985 + $0x10] sm:$0xff]
        %v4989 = vld [vmem:[%s4985 + $0x18] sm:$0xff]
        %v4990 = vld [vmem:[%s4985 + $0x20] sm:$0xff]
        %v4991 = vld [vmem:[%s4985 + $0x28] sm:$0xff]
        %v4992 = vld [vmem:[%s4985 + $0x30] sm:$0xff]
        %v4993 = vld [vmem:[%s4985 + $0x38] sm:$0xff]
        %s4994 = scalar_lea.vmem %s17, 4
        %v4995 = vld [vmem:[%s4994] sm:$0x3]
        %s4996 = scalar_lea.vmem %s18, 64
        %v4997 = vld [vmem:[%s4996] sm:$0xf]
        %v4998 = vld [vmem:[%s4996 + $0x4] sm:$0xf]
        %v4999 = vld [vmem:[%s4996 + $0x8] sm:$0xf]
        %v5000 = vld [vmem:[%s4996 + $0xc] sm:$0xf]
        %v5001 = vld [vmem:[%s4996 + $0x10] sm:$0xf]
        %v5002 = vld [vmem:[%s4996 + $0x14] sm:$0xf]
        %v5003 = vld [vmem:[%s4996 + $0x18] sm:$0xf]
        %v5004 = vld [vmem:[%s4996 + $0x1c] sm:$0xf]
        %v5006 = vlaneseq
        %v5007 = vshrl.u32 %v5006, 7
        %v5008 = vsub.s32 0, %v5007
        %v5009 = vrot.slane %v4995, %v5008
        %v5010 = vlaneseq
        %v5011 = vshrl.u32 %v5010, 7
        %v5012 = vsub.s32 1, %v5011
        %v5013 = vrot.slane %v4995, %v5012
        %v5024 = vunpack.c.l.b16 %v4986
        %v5025 = vunpack.c.h.b16 %v4986
        %v5026 = vunpack.c.l.b16 %v4987
        %v5027 = vunpack.c.h.b16 %v4987
        %v5028 = vunpack.c.l.b16 %v4988
        %v5029 = vunpack.c.h.b16 %v4988
        %v5030 = vunpack.c.l.b16 %v4989
        %v5031 = vunpack.c.h.b16 %v4989
        %v5032 = vunpack.c.l.b16 %v4990
        %v5033 = vunpack.c.h.b16 %v4990
        %v5034 = vunpack.c.l.b16 %v4991
        %v5035 = vunpack.c.h.b16 %v4991
        %v5036 = vunpack.c.l.b16 %v4992
        %v5037 = vunpack.c.h.b16 %v4992
        %v5038 = vunpack.c.l.b16 %v4993
        %v5039 = vunpack.c.h.b16 %v4993
        %v5040 = vpack.c.b16 %v5026, %v5024
        %v5041 = vpack.c.b16 %v5027, %v5025
        %v5042 = vpack.c.b16 %v5030, %v5028
        %v5043 = vpack.c.b16 %v5031, %v5029
        %v5044 = vpack.c.b16 %v5034, %v5032
        %v5045 = vpack.c.b16 %v5035, %v5033
        %v5046 = vpack.c.b16 %v5038, %v5036
        %v5047 = vpack.c.b16 %v5039, %v5037
        %v5057 = vsel %vm1916, %v4984, 0
        %5059 = vmatprep.subr.bf16.mxu0 %v5041
        %5060 = vmatpush1.bf16.msra.mxu0 %v5040
        %5061 = vmatprep.subr.bf16.mxu0 %v5043
        %5062 = vmatpush1.bf16.msra.mxu0 %v5042
        %5063 = vmatprep.subr.bf16.mxu0 %v5045
        %5064 = vmatpush1.bf16.msra.mxu0 %v5044
        %5065 = vmatprep.subr.bf16.mxu0 %v5047
        %5066 = vmatpush1.bf16.msra.mxu0 %v5046
        %5067 = vmatprep.subr.bf16.mxu0 0
        %5068 = vmatpush1.bf16.msra.mxu0 0
        %5069 = vmatprep.subr.bf16.mxu0 0
        %5070 = vmatpush1.bf16.msra.mxu0 0
        %5071 = vmatprep.subr.bf16.mxu0 0
        %5072 = vmatpush1.bf16.msra.mxu0 0
        %5073 = vmatprep.subr.bf16.mxu0 0
        %5074 = vmatpush1.bf16.msra.mxu0 0
        %5075 = vmatprep.subr.bf16.mxu0 0
        %5076 = vmatpush1.bf16.msra.mxu0 0
        %5077 = vmatprep.subr.bf16.mxu0 0
        %5078 = vmatpush1.bf16.msra.mxu0 0
        %5079 = vmatprep.subr.bf16.mxu0 0
        %5080 = vmatpush1.bf16.msra.mxu0 0
        %5081 = vmatprep.subr.bf16.mxu0 0
        %5082 = vmatpush1.bf16.msra.mxu0 0
        %5083 = vmatprep.subr.bf16.mxu0 0
        %5084 = vmatpush1.bf16.msra.mxu0 0
        %5085 = vmatprep.subr.bf16.mxu0 0
        %5086 = vmatpush1.bf16.msra.mxu0 0
        %5087 = vmatprep.subr.bf16.mxu0 0
        %5088 = vmatpush1.bf16.msra.mxu0 0
        %5089 = vmatprep.subr.bf16.mxu0 0
        %5090 = vmatpush1.bf16.msra.mxu0 0
        %5091 = vmatprep.mubr.bf16.mxu0 0
        %5092 = vmatmul.mubr.bf16.gmra.mrb[0].mxu0 %v5057
        %v5093 = vpop.f32.mrb[0].mxu0
        %v5094 = vadd.f32 %v5009, %v5093
        %v5095 = vpop.f32.mrb[0].mxu0
        %v5096 = vadd.f32 %v5013, %v5095
        %v5097 = vpop.f32.mrb[0].mxu0
        %v5098 = vpop.f32.mrb[0].mxu0
        %5099 = vdwg.mxu0
        %v5100 = vpack.c.bf16 %v5094, %v5094
        %v5101 = vpack.c.bf16 %v5096, %v5096
        %5103 = vrot.lane.b32.xlu0 %v5100, 64
        %v5104 = vpop.permute.xlu0 %5103
        %v5106 = vsel %vm1636, %v5100, 0
        %v5109 = vsel %vm1636, %v5104, 0
        %5111 = vmatprep.subr.bf16.mxu0 0
        %5112 = vmatpush1.bf16.xpose.msra.mxu0 %v5109
        %5113 = vmatprep.subr.bf16.mxu0 0
        %5114 = vmatpush1.bf16.xpose.msra.mxu0 0
        %5115 = vmatprep.subr.bf16.mxu0 0
        %5116 = vmatpush1.bf16.xpose.msra.mxu0 0
        %5117 = vmatprep.subr.bf16.mxu0 0
        %5118 = vmatpush1.bf16.xpose.msra.mxu0 0
        %5119 = vmatprep.subr.bf16.mxu0 0
        %5120 = vmatpush1.bf16.xpose.msra.mxu0 0
        %5121 = vmatprep.subr.bf16.mxu0 0
        %5122 = vmatpush1.bf16.xpose.msra.mxu0 0
        %5123 = vmatprep.subr.bf16.mxu0 0
        %5124 = vmatpush1.bf16.xpose.msra.mxu0 0
        %5125 = vmatprep.subr.bf16.mxu0 0
        %5126 = vmatpush1.bf16.xpose.msra.mxu0 0
        %5127 = vmatprep.subr.bf16.mxu0 0
        %5128 = vmatpush1.bf16.xpose.msra.mxu0 0
        %5129 = vmatprep.subr.bf16.mxu0 0
        %5130 = vmatpush1.bf16.xpose.msra.mxu0 0
        %5131 = vmatprep.subr.bf16.mxu0 0
        %5132 = vmatpush1.bf16.xpose.msra.mxu0 0
        %5133 = vmatprep.subr.bf16.mxu0 0
        %5134 = vmatpush1.bf16.xpose.msra.mxu0 0
        %5135 = vmatprep.subr.bf16.mxu0 0
        %5136 = vmatpush1.bf16.xpose.msra.mxu0 0
        %5137 = vmatprep.subr.bf16.mxu0 0
        %5138 = vmatpush1.bf16.xpose.msra.mxu0 0
        %5139 = vmatprep.subr.bf16.mxu0 0
        %5140 = vmatpush1.bf16.xpose.msra.mxu0 0
        %5141 = vmatprep.subr.bf16.mxu0 0
        %5142 = vmatpush1.bf16.xpose.msra.mxu0 0
        %5143 = vmatprep.mubr.bf16.mxu0 0
        %5144 = vmatmul.mubr.bf16.gmra.mrb[0].mxu0 %v5106
        %v5145 = vpop.f32.mrb[0].mxu0
        %v5146 = vadd.f32 %v3310, %v5145
        %v5147 = vpop.f32.mrb[0].mxu0
        %v5148 = vpop.f32.mrb[0].mxu0
        %v5149 = vpop.f32.mrb[0].mxu0
        %5150 = vdwg.mxu0
        %v5151 = vsel %vm941, %v5146, -inf
        %5152 = vmax.xlane.f32.xlu0 %v5151
        %v5153 = vpop.xlane.xlu0 %5152
        %v5154 = vsub.f32 %v5146, %v5153
        %v5155 = vmul.f32 %v5154, 1.442695
        %v5156 = vpow.pop %v5155
        %v5157 = vsel %vm941, %v5156, 0.0
        %5158 = vadd.xlane.f32.xlu0 %v5157
        %v5159 = vpop.xlane.xlu0 %5158
        %v5160 = vrcp.pop %v5159
        %v5161 = vmul.f32 %v5156, %v5160
        %v5162 = vpack.c.bf16 %v5161, %v5161
        %v5164 = vsel %vm941, %v5162, 0
        %v5167 = vsel %vm3492, %v5101, 0
        %5169 = vmatprep.subr.bf16.mxu0 0
        %5170 = vmatpush1.bf16.msra.mxu0 %v5167
        %5171 = vmatprep.subr.bf16.mxu0 0
        %5172 = vmatpush1.bf16.msra.mxu0 0
        %5173 = vmatprep.subr.bf16.mxu0 0
        %5174 = vmatpush1.bf16.msra.mxu0 0
        %5175 = vmatprep.subr.bf16.mxu0 0
        %5176 = vmatpush1.bf16.msra.mxu0 0
        %5177 = vmatprep.subr.bf16.mxu0 0
        %5178 = vmatpush1.bf16.msra.mxu0 0
        %5179 = vmatprep.subr.bf16.mxu0 0
        %5180 = vmatpush1.bf16.msra.mxu0 0
        %5181 = vmatprep.subr.bf16.mxu0 0
        %5182 = vmatpush1.bf16.msra.mxu0 0
        %5183 = vmatprep.subr.bf16.mxu0 0
        %5184 = vmatpush1.bf16.msra.mxu0 0
        %5185 = vmatprep.subr.bf16.mxu0 0
        %5186 = vmatpush1.bf16.msra.mxu0 0
        %5187 = vmatprep.subr.bf16.mxu0 0
        %5188 = vmatpush1.bf16.msra.mxu0 0
        %5189 = vmatprep.subr.bf16.mxu0 0
        %5190 = vmatpush1.bf16.msra.mxu0 0
        %5191 = vmatprep.subr.bf16.mxu0 0
        %5192 = vmatpush1.bf16.msra.mxu0 0
        %5193 = vmatprep.subr.bf16.mxu0 0
        %5194 = vmatpush1.bf16.msra.mxu0 0
        %5195 = vmatprep.subr.bf16.mxu0 0
        %5196 = vmatpush1.bf16.msra.mxu0 0
        %5197 = vmatprep.subr.bf16.mxu0 0
        %5198 = vmatpush1.bf16.msra.mxu0 0
        %5199 = vmatprep.subr.bf16.mxu0 0
        %5200 = vmatpush1.bf16.msra.mxu0 0
        %5201 = vmatprep.mubr.bf16.mxu0 0
        %5202 = vmatmul.mubr.bf16.gmra.mrb[0].mxu0 %v5164
        %v5203 = vpop.f32.mrb[0].mxu0
        %v5204 = vadd.f32 0.0, %v5203
        %v5205 = vpop.f32.mrb[0].mxu0
        %v5206 = vpop.f32.mrb[0].mxu0
        %v5207 = vpop.f32.mrb[0].mxu0
        %5208 = vdwg.mxu0
        %5209 = vrot.lane.b32.xlu0 %v5100, 112
        %v5210 = vpop.permute.xlu0 %5209
        %5211 = vrot.lane.b32.xlu0 %v5100, 48
        %v5212 = vpop.permute.xlu0 %5211
        %v5214 = vsel %vm1636, %v5210, 0
        %v5217 = vsel %vm1636, %v5212, 0
        %5219 = vmatprep.subr.bf16.mxu0 0
        %5220 = vmatpush1.bf16.xpose.msra.mxu0 %v5217
        %5221 = vmatprep.subr.bf16.mxu0 0
        %5222 = vmatpush1.bf16.xpose.msra.mxu0 0
        %5223 = vmatprep.subr.bf16.mxu0 0
        %5224 = vmatpush1.bf16.xpose.msra.mxu0 0
        %5225 = vmatprep.subr.bf16.mxu0 0
        %5226 = vmatpush1.bf16.xpose.msra.mxu0 0
        %5227 = vmatprep.subr.bf16.mxu0 0
        %5228 = vmatpush1.bf16.xpose.msra.mxu0 0
        %5229 = vmatprep.subr.bf16.mxu0 0
        %5230 = vmatpush1.bf16.xpose.msra.mxu0 0
        %5231 = vmatprep.subr.bf16.mxu0 0
        %5232 = vmatpush1.bf16.xpose.msra.mxu0 0
        %5233 = vmatprep.subr.bf16.mxu0 0
        %5234 = vmatpush1.bf16.xpose.msra.mxu0 0
        %5235 = vmatprep.subr.bf16.mxu0 0
        %5236 = vmatpush1.bf16.xpose.msra.mxu0 0
        %5237 = vmatprep.subr.bf16.mxu0 0
        %5238 = vmatpush1.bf16.xpose.msra.mxu0 0
        %5239 = vmatprep.subr.bf16.mxu0 0
        %5240 = vmatpush1.bf16.xpose.msra.mxu0 0
        %5241 = vmatprep.subr.bf16.mxu0 0
        %5242 = vmatpush1.bf16.xpose.msra.mxu0 0
        %5243 = vmatprep.subr.bf16.mxu0 0
        %5244 = vmatpush1.bf16.xpose.msra.mxu0 0
        %5245 = vmatprep.subr.bf16.mxu0 0
        %5246 = vmatpush1.bf16.xpose.msra.mxu0 0
        %5247 = vmatprep.subr.bf16.mxu0 0
        %5248 = vmatpush1.bf16.xpose.msra.mxu0 0
        %5249 = vmatprep.subr.bf16.mxu0 0
        %5250 = vmatpush1.bf16.xpose.msra.mxu0 0
        %5251 = vmatprep.mubr.bf16.mxu0 0
        %5252 = vmatmul.mubr.bf16.gmra.mrb[0].mxu0 %v5214
        %v5253 = vpop.f32.mrb[0].mxu0
        %v5254 = vadd.f32 %v3310, %v5253
        %v5255 = vpop.f32.mrb[0].mxu0
        %v5256 = vpop.f32.mrb[0].mxu0
        %v5257 = vpop.f32.mrb[0].mxu0
        %5258 = vdwg.mxu0
        %v5259 = vsel %vm941, %v5254, -inf
        %5260 = vmax.xlane.f32.xlu0 %v5259
        %v5261 = vpop.xlane.xlu0 %5260
        %v5262 = vsub.f32 %v5254, %v5261
        %v5263 = vmul.f32 %v5262, 1.442695
        %v5264 = vpow.pop %v5263
        %v5265 = vsel %vm941, %v5264, 0.0
        %5266 = vadd.xlane.f32.xlu0 %v5265
        %v5267 = vpop.xlane.xlu0 %5266
        %v5268 = vrcp.pop %v5267
        %v5269 = vmul.f32 %v5264, %v5268
        %v5270 = vpack.c.bf16 %v5269, %v5269
        %5272 = vrot.lane.b32.xlu0 %v5101, 112
        %v5273 = vpop.permute.xlu0 %5272
        %v5275 = vsel %vm941, %v5270, 0
        %v5278 = vsel %vm3492, %v5273, 0
        %5280 = vmatprep.subr.bf16.mxu0 0
        %5281 = vmatpush1.bf16.msra.mxu0 %v5278
        %5282 = vmatprep.subr.bf16.mxu0 0
        %5283 = vmatpush1.bf16.msra.mxu0 0
        %5284 = vmatprep.subr.bf16.mxu0 0
        %5285 = vmatpush1.bf16.msra.mxu0 0
        %5286 = vmatprep.subr.bf16.mxu0 0
        %5287 = vmatpush1.bf16.msra.mxu0 0
        %5288 = vmatprep.subr.bf16.mxu0 0
        %5289 = vmatpush1.bf16.msra.mxu0 0
        %5290 = vmatprep.subr.bf16.mxu0 0
        %5291 = vmatpush1.bf16.msra.mxu0 0
        %5292 = vmatprep.subr.bf16.mxu0 0
        %5293 = vmatpush1.bf16.msra.mxu0 0
        %5294 = vmatprep.subr.bf16.mxu0 0
        %5295 = vmatpush1.bf16.msra.mxu0 0
        %5296 = vmatprep.subr.bf16.mxu0 0
        %5297 = vmatpush1.bf16.msra.mxu0 0
        %5298 = vmatprep.subr.bf16.mxu0 0
        %5299 = vmatpush1.bf16.msra.mxu0 0
        %5300 = vmatprep.subr.bf16.mxu0 0
        %5301 = vmatpush1.bf16.msra.mxu0 0
        %5302 = vmatprep.subr.bf16.mxu0 0
        %5303 = vmatpush1.bf16.msra.mxu0 0
        %5304 = vmatprep.subr.bf16.mxu0 0
        %5305 = vmatpush1.bf16.msra.mxu0 0
        %5306 = vmatprep.subr.bf16.mxu0 0
        %5307 = vmatpush1.bf16.msra.mxu0 0
        %5308 = vmatprep.subr.bf16.mxu0 0
        %5309 = vmatpush1.bf16.msra.mxu0 0
        %5310 = vmatprep.subr.bf16.mxu0 0
        %5311 = vmatpush1.bf16.msra.mxu0 0
        %5312 = vmatprep.mubr.bf16.mxu0 0
        %5313 = vmatmul.mubr.bf16.gmra.mrb[0].mxu0 %v5275
        %v5314 = vpop.f32.mrb[0].mxu0
        %v5315 = vadd.f32 0.0, %v5314
        %v5316 = vpop.f32.mrb[0].mxu0
        %v5317 = vpop.f32.mrb[0].mxu0
        %v5318 = vpop.f32.mrb[0].mxu0
        %5319 = vdwg.mxu0
        %5320 = vrot.lane.b32.xlu0 %v5100, 96
        %v5321 = vpop.permute.xlu0 %5320
        %5322 = vrot.lane.b32.xlu0 %v5100, 32
        %v5323 = vpop.permute.xlu0 %5322
        %v5325 = vsel %vm1636, %v5321, 0
        %v5328 = vsel %vm1636, %v5323, 0
        %5330 = vmatprep.subr.bf16.mxu0 0
        %5331 = vmatpush1.bf16.xpose.msra.mxu0 %v5328
        %5332 = vmatprep.subr.bf16.mxu0 0
        %5333 = vmatpush1.bf16.xpose.msra.mxu0 0
        %5334 = vmatprep.subr.bf16.mxu0 0
        %5335 = vmatpush1.bf16.xpose.msra.mxu0 0
        %5336 = vmatprep.subr.bf16.mxu0 0
        %5337 = vmatpush1.bf16.xpose.msra.mxu0 0
        %5338 = vmatprep.subr.bf16.mxu0 0
        %5339 = vmatpush1.bf16.xpose.msra.mxu0 0
        %5340 = vmatprep.subr.bf16.mxu0 0
        %5341 = vmatpush1.bf16.xpose.msra.mxu0 0
        %5342 = vmatprep.subr.bf16.mxu0 0
        %5343 = vmatpush1.bf16.xpose.msra.mxu0 0
        %5344 = vmatprep.subr.bf16.mxu0 0
        %5345 = vmatpush1.bf16.xpose.msra.mxu0 0
        %5346 = vmatprep.subr.bf16.mxu0 0
        %5347 = vmatpush1.bf16.xpose.msra.mxu0 0
        %5348 = vmatprep.subr.bf16.mxu0 0
        %5349 = vmatpush1.bf16.xpose.msra.mxu0 0
        %5350 = vmatprep.subr.bf16.mxu0 0
        %5351 = vmatpush1.bf16.xpose.msra.mxu0 0
        %5352 = vmatprep.subr.bf16.mxu0 0
        %5353 = vmatpush1.bf16.xpose.msra.mxu0 0
        %5354 = vmatprep.subr.bf16.mxu0 0
        %5355 = vmatpush1.bf16.xpose.msra.mxu0 0
        %5356 = vmatprep.subr.bf16.mxu0 0
        %5357 = vmatpush1.bf16.xpose.msra.mxu0 0
        %5358 = vmatprep.subr.bf16.mxu0 0
        %5359 = vmatpush1.bf16.xpose.msra.mxu0 0
        %5360 = vmatprep.subr.bf16.mxu0 0
        %5361 = vmatpush1.bf16.xpose.msra.mxu0 0
        %5362 = vmatprep.mubr.bf16.mxu0 0
        %5363 = vmatmul.mubr.bf16.gmra.mrb[0].mxu0 %v5325
        %v5364 = vpop.f32.mrb[0].mxu0
        %v5365 = vadd.f32 %v3310, %v5364
        %v5366 = vpop.f32.mrb[0].mxu0
        %v5367 = vpop.f32.mrb[0].mxu0
        %v5368 = vpop.f32.mrb[0].mxu0
        %5369 = vdwg.mxu0
        %v5370 = vsel %vm941, %v5365, -inf
        %5371 = vmax.xlane.f32.xlu0 %v5370
        %v5372 = vpop.xlane.xlu0 %5371
        %v5373 = vsub.f32 %v5365, %v5372
        %v5374 = vmul.f32 %v5373, 1.442695
        %v5375 = vpow.pop %v5374
        %v5376 = vsel %vm941, %v5375, 0.0
        %5377 = vadd.xlane.f32.xlu0 %v5376
        %v5378 = vpop.xlane.xlu0 %5377
        %v5379 = vrcp.pop %v5378
        %v5380 = vmul.f32 %v5375, %v5379
        %v5381 = vpack.c.bf16 %v5380, %v5380
        %5382 = vrot.lane.b32.xlu0 %v5101, 96
        %v5383 = vpop.permute.xlu0 %5382
        %v5385 = vsel %vm941, %v5381, 0
        %v5388 = vsel %vm3492, %v5383, 0
        %5390 = vmatprep.subr.bf16.mxu0 0
        %5391 = vmatpush1.bf16.msra.mxu0 %v5388
        %5392 = vmatprep.subr.bf16.mxu0 0
        %5393 = vmatpush1.bf16.msra.mxu0 0
        %5394 = vmatprep.subr.bf16.mxu0 0
        %5395 = vmatpush1.bf16.msra.mxu0 0
        %5396 = vmatprep.subr.bf16.mxu0 0
        %5397 = vmatpush1.bf16.msra.mxu0 0
        %5398 = vmatprep.subr.bf16.mxu0 0
        %5399 = vmatpush1.bf16.msra.mxu0 0
        %5400 = vmatprep.subr.bf16.mxu0 0
        %5401 = vmatpush1.bf16.msra.mxu0 0
        %5402 = vmatprep.subr.bf16.mxu0 0
        %5403 = vmatpush1.bf16.msra.mxu0 0
        %5404 = vmatprep.subr.bf16.mxu0 0
        %5405 = vmatpush1.bf16.msra.mxu0 0
        %5406 = vmatprep.subr.bf16.mxu0 0
        %5407 = vmatpush1.bf16.msra.mxu0 0
        %5408 = vmatprep.subr.bf16.mxu0 0
        %5409 = vmatpush1.bf16.msra.mxu0 0
        %5410 = vmatprep.subr.bf16.mxu0 0
        %5411 = vmatpush1.bf16.msra.mxu0 0
        %5412 = vmatprep.subr.bf16.mxu0 0
        %5413 = vmatpush1.bf16.msra.mxu0 0
        %5414 = vmatprep.subr.bf16.mxu0 0
        %5415 = vmatpush1.bf16.msra.mxu0 0
        %5416 = vmatprep.subr.bf16.mxu0 0
        %5417 = vmatpush1.bf16.msra.mxu0 0
        %5418 = vmatprep.subr.bf16.mxu0 0
        %5419 = vmatpush1.bf16.msra.mxu0 0
        %5420 = vmatprep.subr.bf16.mxu0 0
        %5421 = vmatpush1.bf16.msra.mxu0 0
        %5422 = vmatprep.mubr.bf16.mxu0 0
        %5423 = vmatmul.mubr.bf16.gmra.mrb[0].mxu0 %v5385
        %v5424 = vpop.f32.mrb[0].mxu0
        %v5425 = vadd.f32 0.0, %v5424
        %v5426 = vpop.f32.mrb[0].mxu0
        %v5427 = vpop.f32.mrb[0].mxu0
        %v5428 = vpop.f32.mrb[0].mxu0
        %5429 = vdwg.mxu0
        %5430 = vrot.lane.b32.xlu0 %v5100, 80
        %v5431 = vpop.permute.xlu0 %5430
        %5432 = vrot.lane.b32.xlu0 %v5100, 16
        %v5433 = vpop.permute.xlu0 %5432
        %v5435 = vsel %vm1636, %v5431, 0
        %v5438 = vsel %vm1636, %v5433, 0
        %5440 = vmatprep.subr.bf16.mxu0 0
        %5441 = vmatpush1.bf16.xpose.msra.mxu0 %v5438
        %5442 = vmatprep.subr.bf16.mxu0 0
        %5443 = vmatpush1.bf16.xpose.msra.mxu0 0
        %5444 = vmatprep.subr.bf16.mxu0 0
        %5445 = vmatpush1.bf16.xpose.msra.mxu0 0
        %5446 = vmatprep.subr.bf16.mxu0 0
        %5447 = vmatpush1.bf16.xpose.msra.mxu0 0
        %5448 = vmatprep.subr.bf16.mxu0 0
        %5449 = vmatpush1.bf16.xpose.msra.mxu0 0
        %5450 = vmatprep.subr.bf16.mxu0 0
        %5451 = vmatpush1.bf16.xpose.msra.mxu0 0
        %5452 = vmatprep.subr.bf16.mxu0 0
        %5453 = vmatpush1.bf16.xpose.msra.mxu0 0
        %5454 = vmatprep.subr.bf16.mxu0 0
        %5455 = vmatpush1.bf16.xpose.msra.mxu0 0
        %5456 = vmatprep.subr.bf16.mxu0 0
        %5457 = vmatpush1.bf16.xpose.msra.mxu0 0
        %5458 = vmatprep.subr.bf16.mxu0 0
        %5459 = vmatpush1.bf16.xpose.msra.mxu0 0
        %5460 = vmatprep.subr.bf16.mxu0 0
        %5461 = vmatpush1.bf16.xpose.msra.mxu0 0
        %5462 = vmatprep.subr.bf16.mxu0 0
        %5463 = vmatpush1.bf16.xpose.msra.mxu0 0
        %5464 = vmatprep.subr.bf16.mxu0 0
        %5465 = vmatpush1.bf16.xpose.msra.mxu0 0
        %5466 = vmatprep.subr.bf16.mxu0 0
        %5467 = vmatpush1.bf16.xpose.msra.mxu0 0
        %5468 = vmatprep.subr.bf16.mxu0 0
        %5469 = vmatpush1.bf16.xpose.msra.mxu0 0
        %5470 = vmatprep.subr.bf16.mxu0 0
        %5471 = vmatpush1.bf16.xpose.msra.mxu0 0
        %5472 = vmatprep.mubr.bf16.mxu0 0
        %5473 = vmatmul.mubr.bf16.gmra.mrb[0].mxu0 %v5435
        %v5474 = vpop.f32.mrb[0].mxu0
        %v5475 = vadd.f32 %v3310, %v5474
        %v5476 = vpop.f32.mrb[0].mxu0
        %v5477 = vpop.f32.mrb[0].mxu0
        %v5478 = vpop.f32.mrb[0].mxu0
        %5479 = vdwg.mxu0
        %v5480 = vsel %vm941, %v5475, -inf
        %5481 = vmax.xlane.f32.xlu0 %v5480
        %v5482 = vpop.xlane.xlu0 %5481
        %v5483 = vsub.f32 %v5475, %v5482
        %v5484 = vmul.f32 %v5483, 1.442695
        %v5485 = vpow.pop %v5484
        %v5486 = vsel %vm941, %v5485, 0.0
        %5487 = vadd.xlane.f32.xlu0 %v5486
        %v5488 = vpop.xlane.xlu0 %5487
        %v5489 = vrcp.pop %v5488
        %v5490 = vmul.f32 %v5485, %v5489
        %v5491 = vpack.c.bf16 %v5490, %v5490
        %5492 = vrot.lane.b32.xlu0 %v5101, 80
        %v5493 = vpop.permute.xlu0 %5492
        %v5495 = vsel %vm941, %v5491, 0
        %v5498 = vsel %vm3492, %v5493, 0
        %5500 = vmatprep.subr.bf16.mxu0 0
        %5501 = vmatpush1.bf16.msra.mxu0 %v5498
        %5502 = vmatprep.subr.bf16.mxu0 0
        %5503 = vmatpush1.bf16.msra.mxu0 0
        %5504 = vmatprep.subr.bf16.mxu0 0
        %5505 = vmatpush1.bf16.msra.mxu0 0
        %5506 = vmatprep.subr.bf16.mxu0 0
        %5507 = vmatpush1.bf16.msra.mxu0 0
        %5508 = vmatprep.subr.bf16.mxu0 0
        %5509 = vmatpush1.bf16.msra.mxu0 0
        %5510 = vmatprep.subr.bf16.mxu0 0
        %5511 = vmatpush1.bf16.msra.mxu0 0
        %5512 = vmatprep.subr.bf16.mxu0 0
        %5513 = vmatpush1.bf16.msra.mxu0 0
        %5514 = vmatprep.subr.bf16.mxu0 0
        %5515 = vmatpush1.bf16.msra.mxu0 0
        %5516 = vmatprep.subr.bf16.mxu0 0
        %5517 = vmatpush1.bf16.msra.mxu0 0
        %5518 = vmatprep.subr.bf16.mxu0 0
        %5519 = vmatpush1.bf16.msra.mxu0 0
        %5520 = vmatprep.subr.bf16.mxu0 0
        %5521 = vmatpush1.bf16.msra.mxu0 0
        %5522 = vmatprep.subr.bf16.mxu0 0
        %5523 = vmatpush1.bf16.msra.mxu0 0
        %5524 = vmatprep.subr.bf16.mxu0 0
        %5525 = vmatpush1.bf16.msra.mxu0 0
        %5526 = vmatprep.subr.bf16.mxu0 0
        %5527 = vmatpush1.bf16.msra.mxu0 0
        %5528 = vmatprep.subr.bf16.mxu0 0
        %5529 = vmatpush1.bf16.msra.mxu0 0
        %5530 = vmatprep.subr.bf16.mxu0 0
        %5531 = vmatpush1.bf16.msra.mxu0 0
        %5532 = vmatprep.mubr.bf16.mxu0 0
        %5533 = vmatmul.mubr.bf16.gmra.mrb[0].mxu0 %v5495
        %v5534 = vpop.f32.mrb[0].mxu0
        %v5535 = vadd.f32 0.0, %v5534
        %v5536 = vpop.f32.mrb[0].mxu0
        %v5537 = vpop.f32.mrb[0].mxu0
        %v5538 = vpop.f32.mrb[0].mxu0
        %5539 = vdwg.mxu0
        %5541 = vrot.lane.b32.xlu0 %v5315, 16
        %v5542 = vpop.permute.xlu0 %5541
        %5545 = vrot.lane.b32.xlu0 %v5425, 32
        %v5546 = vpop.permute.xlu0 %5545
        %5549 = vrot.lane.b32.xlu0 %v5535, 48
        %v5550 = vpop.permute.xlu0 %5549
        %v5552 = vsel %vm1636, %v5204, %v5542
        %v5553 = vsel %vm794, %v5552, %v5546
        %v5554 = vsel %vm738, %v5553, %v5550
        %v5555 = vpack.c.bf16 %v5554, %v5554
        %v5556 = vlaneseq
        %v5557 = vshrl.u32 %v5556, 7
        %v5558 = vsub.s32 6, %v5557
        %v5559 = vrot.slane %v4982, %v5558
        %v5568 = vunpack.c.l.b16 %v4997
        %v5569 = vunpack.c.l.b16 %v4998
        %v5570 = vunpack.c.l.b16 %v4999
        %v5571 = vunpack.c.l.b16 %v5000
        %v5572 = vunpack.c.l.b16 %v5001
        %v5573 = vunpack.c.l.b16 %v5002
        %v5574 = vunpack.c.l.b16 %v5003
        %v5575 = vunpack.c.l.b16 %v5004
        %v5576 = vpack.c.b16 %v5569, %v5568
        %v5577 = vpack.c.b16 %v5571, %v5570
        %v5578 = vpack.c.b16 %v5573, %v5572
        %v5579 = vpack.c.b16 %v5575, %v5574
        %v5585 = vsel %vm1916, %v5555, 0
        %5587 = vmatprep.subr.bf16.mxu0 0
        %5588 = vmatpush1.bf16.msra.mxu0 %v5576
        %5589 = vmatprep.subr.bf16.mxu0 0
        %5590 = vmatpush1.bf16.msra.mxu0 %v5577
        %5591 = vmatprep.subr.bf16.mxu0 0
        %5592 = vmatpush1.bf16.msra.mxu0 %v5578
        %5593 = vmatprep.subr.bf16.mxu0 0
        %5594 = vmatpush1.bf16.msra.mxu0 %v5579
        %5595 = vmatprep.subr.bf16.mxu0 0
        %5596 = vmatpush1.bf16.msra.mxu0 0
        %5597 = vmatprep.subr.bf16.mxu0 0
        %5598 = vmatpush1.bf16.msra.mxu0 0
        %5599 = vmatprep.subr.bf16.mxu0 0
        %5600 = vmatpush1.bf16.msra.mxu0 0
        %5601 = vmatprep.subr.bf16.mxu0 0
        %5602 = vmatpush1.bf16.msra.mxu0 0
        %5603 = vmatprep.subr.bf16.mxu0 0
        %5604 = vmatpush1.bf16.msra.mxu0 0
        %5605 = vmatprep.subr.bf16.mxu0 0
        %5606 = vmatpush1.bf16.msra.mxu0 0
        %5607 = vmatprep.subr.bf16.mxu0 0
        %5608 = vmatpush1.bf16.msra.mxu0 0
        %5609 = vmatprep.subr.bf16.mxu0 0
        %5610 = vmatpush1.bf16.msra.mxu0 0
        %5611 = vmatprep.subr.bf16.mxu0 0
        %5612 = vmatpush1.bf16.msra.mxu0 0
        %5613 = vmatprep.subr.bf16.mxu0 0
        %5614 = vmatpush1.bf16.msra.mxu0 0
        %5615 = vmatprep.subr.bf16.mxu0 0
        %5616 = vmatpush1.bf16.msra.mxu0 0
        %5617 = vmatprep.subr.bf16.mxu0 0
        %5618 = vmatpush1.bf16.msra.mxu0 0
        %5619 = vmatprep.mubr.bf16.mxu0 0
        %5620 = vmatmul.mubr.bf16.gmra.mrb[0].mxu0 %v5585
        %v5621 = vpop.f32.mrb[0].mxu0
        %v5622 = vadd.f32 %v5559, %v5621
        %v5623 = vpop.f32.mrb[0].mxu0
        %v5624 = vpop.f32.mrb[0].mxu0
        %v5625 = vpop.f32.mrb[0].mxu0
        %5626 = vdwg.mxu0
        %v5627 = vadd.f32 %v4980, %v5622
        %v5628 = vsel %vm1916, %v5627, 0.0
        %5629 = vadd.xlane.f32.xlu0 %v5628
        %v5630 = vpop.xlane.xlu0 %5629
        %v5631 = vmul.f32 %v5630, %v3289
        %v5632 = vsub.f32 %v5627, %v5631
        %v5633 = vmul.f32 %v5632, %v5632
        %v5634 = vsel %vm1916, %v5633, 0.0
        %5635 = vadd.xlane.f32.xlu0 %v5634
        %v5636 = vpop.xlane.xlu0 %5635
        %v5637 = vmul.f32 %v5636, %v3289
        %v5638 = vadd.f32 %v5637, 1e-05
        %v5639 = vrsqrt.pop %v5638
        %v5640 = vmul.f32 %v5632, %v5639
        %v5641 = vlaneseq
        %v5642 = vshrl.u32 %v5641, 7
        %v5643 = vsub.s32 0, %v5642
        %v5644 = vrot.slane %v4982, %v5643
        %v5645 = vmul.f32 %v5640, %v5644
        %v5646 = vlaneseq
        %v5647 = vshrl.u32 %v5646, 7
        %v5648 = vsub.s32 1, %v5647
        %v5649 = vrot.slane %v4982, %v5648
        %v5650 = vadd.f32 %v5645, %v5649
        %v5651 = vpack.c.bf16 %v5650, %v5650
        %s5652 = scalar_lea.vmem %s16, 192
        %v5653 = vld [vmem:[%s5652] sm:$0xff]
        %v5654 = vld [vmem:[%s5652 + $0x8] sm:$0xff]
        %v5655 = vld [vmem:[%s5652 + $0x10] sm:$0xff]
        %v5656 = vld [vmem:[%s5652 + $0x18] sm:$0xff]
        %v5657 = vld [vmem:[%s5652 + $0x20] sm:$0xff]
        %v5658 = vld [vmem:[%s5652 + $0x28] sm:$0xff]
        %v5659 = vld [vmem:[%s5652 + $0x30] sm:$0xff]
        %v5660 = vld [vmem:[%s5652 + $0x38] sm:$0xff]
        %s5661 = scalar_lea.vmem %s17, 6
        %v5662 = vld [vmem:[%s5661] sm:$0x3]
        %s5663 = scalar_lea.vmem %s18, 96
        %v5664 = vld [vmem:[%s5663] sm:$0xf]
        %v5665 = vld [vmem:[%s5663 + $0x4] sm:$0xf]
        %v5666 = vld [vmem:[%s5663 + $0x8] sm:$0xf]
        %v5667 = vld [vmem:[%s5663 + $0xc] sm:$0xf]
        %v5668 = vld [vmem:[%s5663 + $0x10] sm:$0xf]
        %v5669 = vld [vmem:[%s5663 + $0x14] sm:$0xf]
        %v5670 = vld [vmem:[%s5663 + $0x18] sm:$0xf]
        %v5671 = vld [vmem:[%s5663 + $0x1c] sm:$0xf]
        %v5673 = vlaneseq
        %v5674 = vshrl.u32 %v5673, 7
        %v5675 = vsub.s32 0, %v5674
        %v5676 = vrot.slane %v5662, %v5675
        %v5686 = vunpack.c.l.b16 %v5653
        %v5687 = vunpack.c.l.b16 %v5654
        %v5688 = vunpack.c.l.b16 %v5655
        %v5689 = vunpack.c.l.b16 %v5656
        %v5690 = vunpack.c.l.b16 %v5657
        %v5691 = vunpack.c.l.b16 %v5658
        %v5692 = vunpack.c.l.b16 %v5659
        %v5693 = vunpack.c.l.b16 %v5660
        %v5694 = vpack.c.b16 %v5687, %v5686
        %v5695 = vpack.c.b16 %v5689, %v5688
        %v5696 = vpack.c.b16 %v5691, %v5690
        %v5697 = vpack.c.b16 %v5693, %v5692
        %v5703 = vsel %vm1916, %v5651, 0
        %5705 = vmatprep.subr.bf16.mxu0 0
        %5706 = vmatpush1.bf16.msra.mxu0 %v5694
        %5707 = vmatprep.subr.bf16.mxu0 0
        %5708 = vmatpush1.bf16.msra.mxu0 %v5695
        %5709 = vmatprep.subr.bf16.mxu0 0
        %5710 = vmatpush1.bf16.msra.mxu0 %v5696
        %5711 = vmatprep.subr.bf16.mxu0 0
        %5712 = vmatpush1.bf16.msra.mxu0 %v5697
        %5713 = vmatprep.subr.bf16.mxu0 0
        %5714 = vmatpush1.bf16.msra.mxu0 0
        %5715 = vmatprep.subr.bf16.mxu0 0
        %5716 = vmatpush1.bf16.msra.mxu0 0
        %5717 = vmatprep.subr.bf16.mxu0 0
        %5718 = vmatpush1.bf16.msra.mxu0 0
        %5719 = vmatprep.subr.bf16.mxu0 0
        %5720 = vmatpush1.bf16.msra.mxu0 0
        %5721 = vmatprep.subr.bf16.mxu0 0
        %5722 = vmatpush1.bf16.msra.mxu0 0
        %5723 = vmatprep.subr.bf16.mxu0 0
        %5724 = vmatpush1.bf16.msra.mxu0 0
        %5725 = vmatprep.subr.bf16.mxu0 0
        %5726 = vmatpush1.bf16.msra.mxu0 0
        %5727 = vmatprep.subr.bf16.mxu0 0
        %5728 = vmatpush1.bf16.msra.mxu0 0
        %5729 = vmatprep.subr.bf16.mxu0 0
        %5730 = vmatpush1.bf16.msra.mxu0 0
        %5731 = vmatprep.subr.bf16.mxu0 0
        %5732 = vmatpush1.bf16.msra.mxu0 0
        %5733 = vmatprep.subr.bf16.mxu0 0
        %5734 = vmatpush1.bf16.msra.mxu0 0
        %5735 = vmatprep.subr.bf16.mxu0 0
        %5736 = vmatpush1.bf16.msra.mxu0 0
        %5737 = vmatprep.mubr.bf16.mxu0 0
        %5738 = vmatmul.mubr.bf16.gmra.mrb[0].mxu0 %v5703
        %v5739 = vpop.f32.mrb[0].mxu0
        %v5740 = vadd.f32 %v5676, %v5739
        %v5741 = vpop.f32.mrb[0].mxu0
        %v5742 = vpop.f32.mrb[0].mxu0
        %v5743 = vpop.f32.mrb[0].mxu0
        %5744 = vdwg.mxu0
        %v5745 = vlaneseq
        %v5746 = vshrl.u32 %v5745, 7
        %v5747 = vsub.s32 1, %v5746
        %v5748 = vrot.slane %v5662, %v5747
        %v5749 = vunpack.c.h.b16 %v5653
        %v5750 = vunpack.c.h.b16 %v5654
        %v5751 = vunpack.c.h.b16 %v5655
        %v5752 = vunpack.c.h.b16 %v5656
        %v5753 = vunpack.c.h.b16 %v5657
        %v5754 = vunpack.c.h.b16 %v5658
        %v5755 = vunpack.c.h.b16 %v5659
        %v5756 = vunpack.c.h.b16 %v5660
        %v5757 = vpack.c.b16 %v5750, %v5749
        %v5758 = vpack.c.b16 %v5752, %v5751
        %v5759 = vpack.c.b16 %v5754, %v5753
        %v5760 = vpack.c.b16 %v5756, %v5755
        %5761 = vrot.lane.b32.xlu0 %v5694, 64
        %v5762 = vpop.permute.xlu0 %5761
        %5763 = vrot.lane.b32.xlu0 %v5757, 64
        %v5764 = vpop.permute.xlu0 %5763
        %5765 = vrot.lane.b32.xlu0 %v5695, 64
        %v5766 = vpop.permute.xlu0 %5765
        %5767 = vrot.lane.b32.xlu0 %v5758, 64
        %v5768 = vpop.permute.xlu0 %5767
        %5769 = vrot.lane.b32.xlu0 %v5696, 64
        %v5770 = vpop.permute.xlu0 %5769
        %5771 = vrot.lane.b32.xlu0 %v5759, 64
        %v5772 = vpop.permute.xlu0 %5771
        %5773 = vrot.lane.b32.xlu0 %v5697, 64
        %v5774 = vpop.permute.xlu0 %5773
        %5775 = vrot.lane.b32.xlu0 %v5760, 64
        %v5776 = vpop.permute.xlu0 %5775
        %v5777 = vsel %vm4104, %v5762, %v5764
        %v5778 = vsel %vm4104, %v5766, %v5768
        %v5779 = vsel %vm4104, %v5770, %v5772
        %v5780 = vsel %vm4104, %v5774, %v5776
        %5785 = vrot.lane.b32.xlu0 %v5676, 64
        %v5786 = vpop.permute.xlu0 %5785
        %5787 = vrot.lane.b32.xlu0 %v5748, 64
        %v5788 = vpop.permute.xlu0 %5787
        %v5789 = vsel %vm1916, %v5786, %v5788
        %5791 = vmatprep.subr.bf16.mxu0 0
        %5792 = vmatpush1.bf16.msra.mxu0 %v5777
        %5793 = vmatprep.subr.bf16.mxu0 0
        %5794 = vmatpush1.bf16.msra.mxu0 %v5778
        %5795 = vmatprep.subr.bf16.mxu0 0
        %5796 = vmatpush1.bf16.msra.mxu0 %v5779
        %5797 = vmatprep.subr.bf16.mxu0 0
        %5798 = vmatpush1.bf16.msra.mxu0 %v5780
        %5799 = vmatprep.subr.bf16.mxu0 0
        %5800 = vmatpush1.bf16.msra.mxu0 0
        %5801 = vmatprep.subr.bf16.mxu0 0
        %5802 = vmatpush1.bf16.msra.mxu0 0
        %5803 = vmatprep.subr.bf16.mxu0 0
        %5804 = vmatpush1.bf16.msra.mxu0 0
        %5805 = vmatprep.subr.bf16.mxu0 0
        %5806 = vmatpush1.bf16.msra.mxu0 0
        %5807 = vmatprep.subr.bf16.mxu0 0
        %5808 = vmatpush1.bf16.msra.mxu0 0
        %5809 = vmatprep.subr.bf16.mxu0 0
        %5810 = vmatpush1.bf16.msra.mxu0 0
        %5811 = vmatprep.subr.bf16.mxu0 0
        %5812 = vmatpush1.bf16.msra.mxu0 0
        %5813 = vmatprep.subr.bf16.mxu0 0
        %5814 = vmatpush1.bf16.msra.mxu0 0
        %5815 = vmatprep.subr.bf16.mxu0 0
        %5816 = vmatpush1.bf16.msra.mxu0 0
        %5817 = vmatprep.subr.bf16.mxu0 0
        %5818 = vmatpush1.bf16.msra.mxu0 0
        %5819 = vmatprep.subr.bf16.mxu0 0
        %5820 = vmatpush1.bf16.msra.mxu0 0
        %5821 = vmatprep.subr.bf16.mxu0 0
        %5822 = vmatpush1.bf16.msra.mxu0 0
        %5823 = vmatprep.mubr.bf16.mxu0 0
        %5824 = vmatmul.mubr.bf16.gmra.mrb[0].mxu0 %v4120
        %v5825 = vpop.f32.mrb[0].mxu0
        %v5826 = vadd.f32 %v5789, %v5825
        %v5827 = vpop.f32.mrb[0].mxu0
        %v5828 = vpop.f32.mrb[0].mxu0
        %v5829 = vadd.f32 %v5789, %v5828
        %v5830 = vpop.f32.mrb[0].mxu0
        %5831 = vmatprep.mubr.bf16.mxu0 0
        %5832 = vmatmul.mubr.bf16.gmra.mrb[0].mxu0 %v4123
        %v5833 = vpop.f32.mrb[0].mxu0
        %v5834 = vadd.f32 %v5789, %v5833
        %v5835 = vpop.f32.mrb[0].mxu0
        %v5836 = vpop.f32.mrb[0].mxu0
        %v5837 = vpop.f32.mrb[0].mxu0
        %5838 = vdwg.mxu0
        %v5839 = vpack.c.bf16 %v5740, %v5740
        %v5840 = vpack.c.bf16 %v5829, %v5826
        %v5841 = vpack.c.bf16 %v5834, %v5834
        %v5843 = vsel %vm1636, %v5839, 0
        %v5846 = vsel %vm1636, %v5840, 0
        %v5849 = vsel %vm1636, %v5841, 0
        %5851 = vmatprep.subr.bf16.mxu0 0
        %5852 = vmatpush1.bf16.xpose.msra.mxu0 %v5846
        %5853 = vmatprep.subr.bf16.mxu0 0
        %5854 = vmatpush1.bf16.xpose.msra.mxu0 %v5849
        %5855 = vmatprep.subr.bf16.mxu0 0
        %5856 = vmatpush1.bf16.xpose.msra.mxu0 0
        %5857 = vmatprep.subr.bf16.mxu0 0
        %5858 = vmatpush1.bf16.xpose.msra.mxu0 0
        %5859 = vmatprep.subr.bf16.mxu0 0
        %5860 = vmatpush1.bf16.xpose.msra.mxu0 0
        %5861 = vmatprep.subr.bf16.mxu0 0
        %5862 = vmatpush1.bf16.xpose.msra.mxu0 0
        %5863 = vmatprep.subr.bf16.mxu0 0
        %5864 = vmatpush1.bf16.xpose.msra.mxu0 0
        %5865 = vmatprep.subr.bf16.mxu0 0
        %5866 = vmatpush1.bf16.xpose.msra.mxu0 0
        %5867 = vmatprep.subr.bf16.mxu0 0
        %5868 = vmatpush1.bf16.xpose.msra.mxu0 0
        %5869 = vmatprep.subr.bf16.mxu0 0
        %5870 = vmatpush1.bf16.xpose.msra.mxu0 0
        %5871 = vmatprep.subr.bf16.mxu0 0
        %5872 = vmatpush1.bf16.xpose.msra.mxu0 0
        %5873 = vmatprep.subr.bf16.mxu0 0
        %5874 = vmatpush1.bf16.xpose.msra.mxu0 0
        %5875 = vmatprep.subr.bf16.mxu0 0
        %5876 = vmatpush1.bf16.xpose.msra.mxu0 0
        %5877 = vmatprep.subr.bf16.mxu0 0
        %5878 = vmatpush1.bf16.xpose.msra.mxu0 0
        %5879 = vmatprep.subr.bf16.mxu0 0
        %5880 = vmatpush1.bf16.xpose.msra.mxu0 0
        %5881 = vmatprep.subr.bf16.mxu0 0
        %5882 = vmatpush1.bf16.xpose.msra.mxu0 0
        %5883 = vmatprep.mubr.bf16.mxu0 0
        %5884 = vmatmul.mubr.bf16.gmra.mrb[0].mxu0 %v5843
        %v5885 = vpop.f32.mrb[0].mxu0
        %v5886 = vadd.f32 0.0, %v5885
        %v5887 = vpop.f32.mrb[0].mxu0
        %v5888 = vpop.f32.mrb[0].mxu0
        %v5889 = vpop.f32.mrb[0].mxu0
        %5890 = vdwg.mxu0
        %v5891 = vsel %vm1002, %v5886, -inf
        %5892 = vmax.xlane.f32.xlu0 %v5891
        %v5893 = vpop.xlane.xlu0 %5892
        %v5894 = vsub.f32 %v5886, %v5893
        %v5895 = vmul.f32 %v5894, 1.442695
        %v5896 = vpow.pop %v5895
        %v5897 = vsel %vm1002, %v5896, 0.0
        %5898 = vadd.xlane.f32.xlu0 %v5897
        %v5899 = vpop.xlane.xlu0 %5898
        %v5900 = vrcp.pop %v5899
        %v5901 = vmul.f32 %v5896, %v5900
        %v5902 = vpack.c.bf16 %v5901, %v5901
        %5905 = vrot.lane.b32.xlu0 %v5840, 64
        %v5906 = vpop.permute.xlu0 %5905
        %5907 = vrot.lane.b32.xlu0 %v5841, 64
        %v5908 = vpop.permute.xlu0 %5907
        %v5911 = vsel %vm1002, %v5902, 0
        %v5914 = vsel %vm1050, %v5908, 0
        %5916 = vmatprep.subr.bf16.mxu0 0
        %5917 = vmatpush1.bf16.msra.mxu0 %v5906
        %5918 = vmatprep.subr.bf16.mxu0 0
        %5919 = vmatpush1.bf16.msra.mxu0 %v5914
        %5920 = vmatprep.subr.bf16.mxu0 0
        %5921 = vmatpush1.bf16.msra.mxu0 0
        %5922 = vmatprep.subr.bf16.mxu0 0
        %5923 = vmatpush1.bf16.msra.mxu0 0
        %5924 = vmatprep.subr.bf16.mxu0 0
        %5925 = vmatpush1.bf16.msra.mxu0 0
        %5926 = vmatprep.subr.bf16.mxu0 0
        %5927 = vmatpush1.bf16.msra.mxu0 0
        %5928 = vmatprep.subr.bf16.mxu0 0
        %5929 = vmatpush1.bf16.msra.mxu0 0
        %5930 = vmatprep.subr.bf16.mxu0 0
        %5931 = vmatpush1.bf16.msra.mxu0 0
        %5932 = vmatprep.subr.bf16.mxu0 0
        %5933 = vmatpush1.bf16.msra.mxu0 0
        %5934 = vmatprep.subr.bf16.mxu0 0
        %5935 = vmatpush1.bf16.msra.mxu0 0
        %5936 = vmatprep.subr.bf16.mxu0 0
        %5937 = vmatpush1.bf16.msra.mxu0 0
        %5938 = vmatprep.subr.bf16.mxu0 0
        %5939 = vmatpush1.bf16.msra.mxu0 0
        %5940 = vmatprep.subr.bf16.mxu0 0
        %5941 = vmatpush1.bf16.msra.mxu0 0
        %5942 = vmatprep.subr.bf16.mxu0 0
        %5943 = vmatpush1.bf16.msra.mxu0 0
        %5944 = vmatprep.subr.bf16.mxu0 0
        %5945 = vmatpush1.bf16.msra.mxu0 0
        %5946 = vmatprep.subr.bf16.mxu0 0
        %5947 = vmatpush1.bf16.msra.mxu0 0
        %5948 = vmatprep.mubr.bf16.mxu0 0
        %5949 = vmatmul.mubr.bf16.gmra.mrb[0].mxu0 %v5911
        %v5950 = vpop.f32.mrb[0].mxu0
        %v5951 = vadd.f32 0.0, %v5950
        %v5952 = vpop.f32.mrb[0].mxu0
        %v5953 = vpop.f32.mrb[0].mxu0
        %v5954 = vpop.f32.mrb[0].mxu0
        %5955 = vdwg.mxu0
        %5957 = vrot.lane.b32.xlu0 %v5839, 112
        %v5958 = vpop.permute.xlu0 %5957
        %5959 = vrot.lane.b32.xlu0 %v5840, 112
        %v5960 = vpop.permute.xlu0 %5959
        %5961 = vrot.lane.b32.xlu0 %v5841, 112
        %v5962 = vpop.permute.xlu0 %5961
        %v5964 = vsel %vm1636, %v5958, 0
        %v5967 = vsel %vm1636, %v5960, 0
        %v5970 = vsel %vm1636, %v5962, 0
        %5972 = vmatprep.subr.bf16.mxu0 0
        %5973 = vmatpush1.bf16.xpose.msra.mxu0 %v5967
        %5974 = vmatprep.subr.bf16.mxu0 0
        %5975 = vmatpush1.bf16.xpose.msra.mxu0 %v5970
        %5976 = vmatprep.subr.bf16.mxu0 0
        %5977 = vmatpush1.bf16.xpose.msra.mxu0 0
        %5978 = vmatprep.subr.bf16.mxu0 0
        %5979 = vmatpush1.bf16.xpose.msra.mxu0 0
        %5980 = vmatprep.subr.bf16.mxu0 0
        %5981 = vmatpush1.bf16.xpose.msra.mxu0 0
        %5982 = vmatprep.subr.bf16.mxu0 0
        %5983 = vmatpush1.bf16.xpose.msra.mxu0 0
        %5984 = vmatprep.subr.bf16.mxu0 0
        %5985 = vmatpush1.bf16.xpose.msra.mxu0 0
        %5986 = vmatprep.subr.bf16.mxu0 0
        %5987 = vmatpush1.bf16.xpose.msra.mxu0 0
        %5988 = vmatprep.subr.bf16.mxu0 0
        %5989 = vmatpush1.bf16.xpose.msra.mxu0 0
        %5990 = vmatprep.subr.bf16.mxu0 0
        %5991 = vmatpush1.bf16.xpose.msra.mxu0 0
        %5992 = vmatprep.subr.bf16.mxu0 0
        %5993 = vmatpush1.bf16.xpose.msra.mxu0 0
        %5994 = vmatprep.subr.bf16.mxu0 0
        %5995 = vmatpush1.bf16.xpose.msra.mxu0 0
        %5996 = vmatprep.subr.bf16.mxu0 0
        %5997 = vmatpush1.bf16.xpose.msra.mxu0 0
        %5998 = vmatprep.subr.bf16.mxu0 0
        %5999 = vmatpush1.bf16.xpose.msra.mxu0 0
        %6000 = vmatprep.subr.bf16.mxu0 0
        %6001 = vmatpush1.bf16.xpose.msra.mxu0 0
        %6002 = vmatprep.subr.bf16.mxu0 0
        %6003 = vmatpush1.bf16.xpose.msra.mxu0 0
        %6004 = vmatprep.mubr.bf16.mxu0 0
        %6005 = vmatmul.mubr.bf16.gmra.mrb[0].mxu0 %v5964
        %v6006 = vpop.f32.mrb[0].mxu0
        %v6007 = vadd.f32 0.0, %v6006
        %v6008 = vpop.f32.mrb[0].mxu0
        %v6009 = vpop.f32.mrb[0].mxu0
        %v6010 = vpop.f32.mrb[0].mxu0
        %6011 = vdwg.mxu0
        %v6012 = vsel %vm1002, %v6007, -inf
        %6013 = vmax.xlane.f32.xlu0 %v6012
        %v6014 = vpop.xlane.xlu0 %6013
        %v6015 = vsub.f32 %v6007, %v6014
        %v6016 = vmul.f32 %v6015, 1.442695
        %v6017 = vpow.pop %v6016
        %v6018 = vsel %vm1002, %v6017, 0.0
        %6019 = vadd.xlane.f32.xlu0 %v6018
        %v6020 = vpop.xlane.xlu0 %6019
        %v6021 = vrcp.pop %v6020
        %v6022 = vmul.f32 %v6017, %v6021
        %v6023 = vpack.c.bf16 %v6022, %v6022
        %6024 = vrot.lane.b32.xlu0 %v5840, 48
        %v6025 = vpop.permute.xlu0 %6024
        %6026 = vrot.lane.b32.xlu0 %v5841, 48
        %v6027 = vpop.permute.xlu0 %6026
        %v6030 = vsel %vm1002, %v6023, 0
        %v6033 = vsel %vm1050, %v6027, 0
        %6035 = vmatprep.subr.bf16.mxu0 0
        %6036 = vmatpush1.bf16.msra.mxu0 %v6025
        %6037 = vmatprep.subr.bf16.mxu0 0
        %6038 = vmatpush1.bf16.msra.mxu0 %v6033
        %6039 = vmatprep.subr.bf16.mxu0 0
        %6040 = vmatpush1.bf16.msra.mxu0 0
        %6041 = vmatprep.subr.bf16.mxu0 0
        %6042 = vmatpush1.bf16.msra.mxu0 0
        %6043 = vmatprep.subr.bf16.mxu0 0
        %6044 = vmatpush1.bf16.msra.mxu0 0
        %6045 = vmatprep.subr.bf16.mxu0 0
        %6046 = vmatpush1.bf16.msra.mxu0 0
        %6047 = vmatprep.subr.bf16.mxu0 0
        %6048 = vmatpush1.bf16.msra.mxu0 0
        %6049 = vmatprep.subr.bf16.mxu0 0
        %6050 = vmatpush1.bf16.msra.mxu0 0
        %6051 = vmatprep.subr.bf16.mxu0 0
        %6052 = vmatpush1.bf16.msra.mxu0 0
        %6053 = vmatprep.subr.bf16.mxu0 0
        %6054 = vmatpush1.bf16.msra.mxu0 0
        %6055 = vmatprep.subr.bf16.mxu0 0
        %6056 = vmatpush1.bf16.msra.mxu0 0
        %6057 = vmatprep.subr.bf16.mxu0 0
        %6058 = vmatpush1.bf16.msra.mxu0 0
        %6059 = vmatprep.subr.bf16.mxu0 0
        %6060 = vmatpush1.bf16.msra.mxu0 0
        %6061 = vmatprep.subr.bf16.mxu0 0
        %6062 = vmatpush1.bf16.msra.mxu0 0
        %6063 = vmatprep.subr.bf16.mxu0 0
        %6064 = vmatpush1.bf16.msra.mxu0 0
        %6065 = vmatprep.subr.bf16.mxu0 0
        %6066 = vmatpush1.bf16.msra.mxu0 0
        %6067 = vmatprep.mubr.bf16.mxu0 0
        %6068 = vmatmul.mubr.bf16.gmra.mrb[0].mxu0 %v6030
        %v6069 = vpop.f32.mrb[0].mxu0
        %v6070 = vadd.f32 0.0, %v6069
        %v6071 = vpop.f32.mrb[0].mxu0
        %v6072 = vpop.f32.mrb[0].mxu0
        %v6073 = vpop.f32.mrb[0].mxu0
        %6074 = vdwg.mxu0
        %6075 = vrot.lane.b32.xlu0 %v5839, 96
        %v6076 = vpop.permute.xlu0 %6075
        %6077 = vrot.lane.b32.xlu0 %v5840, 96
        %v6078 = vpop.permute.xlu0 %6077
        %6079 = vrot.lane.b32.xlu0 %v5841, 96
        %v6080 = vpop.permute.xlu0 %6079
        %v6082 = vsel %vm1636, %v6076, 0
        %v6085 = vsel %vm1636, %v6078, 0
        %v6088 = vsel %vm1636, %v6080, 0
        %6090 = vmatprep.subr.bf16.mxu0 0
        %6091 = vmatpush1.bf16.xpose.msra.mxu0 %v6085
        %6092 = vmatprep.subr.bf16.mxu0 0
        %6093 = vmatpush1.bf16.xpose.msra.mxu0 %v6088
        %6094 = vmatprep.subr.bf16.mxu0 0
        %6095 = vmatpush1.bf16.xpose.msra.mxu0 0
        %6096 = vmatprep.subr.bf16.mxu0 0
        %6097 = vmatpush1.bf16.xpose.msra.mxu0 0
        %6098 = vmatprep.subr.bf16.mxu0 0
        %6099 = vmatpush1.bf16.xpose.msra.mxu0 0
        %6100 = vmatprep.subr.bf16.mxu0 0
        %6101 = vmatpush1.bf16.xpose.msra.mxu0 0
        %6102 = vmatprep.subr.bf16.mxu0 0
        %6103 = vmatpush1.bf16.xpose.msra.mxu0 0
        %6104 = vmatprep.subr.bf16.mxu0 0
        %6105 = vmatpush1.bf16.xpose.msra.mxu0 0
        %6106 = vmatprep.subr.bf16.mxu0 0
        %6107 = vmatpush1.bf16.xpose.msra.mxu0 0
        %6108 = vmatprep.subr.bf16.mxu0 0
        %6109 = vmatpush1.bf16.xpose.msra.mxu0 0
        %6110 = vmatprep.subr.bf16.mxu0 0
        %6111 = vmatpush1.bf16.xpose.msra.mxu0 0
        %6112 = vmatprep.subr.bf16.mxu0 0
        %6113 = vmatpush1.bf16.xpose.msra.mxu0 0
        %6114 = vmatprep.subr.bf16.mxu0 0
        %6115 = vmatpush1.bf16.xpose.msra.mxu0 0
        %6116 = vmatprep.subr.bf16.mxu0 0
        %6117 = vmatpush1.bf16.xpose.msra.mxu0 0
        %6118 = vmatprep.subr.bf16.mxu0 0
        %6119 = vmatpush1.bf16.xpose.msra.mxu0 0
        %6120 = vmatprep.subr.bf16.mxu0 0
        %6121 = vmatpush1.bf16.xpose.msra.mxu0 0
        %6122 = vmatprep.mubr.bf16.mxu0 0
        %6123 = vmatmul.mubr.bf16.gmra.mrb[0].mxu0 %v6082
        %v6124 = vpop.f32.mrb[0].mxu0
        %v6125 = vadd.f32 0.0, %v6124
        %v6126 = vpop.f32.mrb[0].mxu0
        %v6127 = vpop.f32.mrb[0].mxu0
        %v6128 = vpop.f32.mrb[0].mxu0
        %6129 = vdwg.mxu0
        %v6130 = vsel %vm1002, %v6125, -inf
        %6131 = vmax.xlane.f32.xlu0 %v6130
        %v6132 = vpop.xlane.xlu0 %6131
        %v6133 = vsub.f32 %v6125, %v6132
        %v6134 = vmul.f32 %v6133, 1.442695
        %v6135 = vpow.pop %v6134
        %v6136 = vsel %vm1002, %v6135, 0.0
        %6137 = vadd.xlane.f32.xlu0 %v6136
        %v6138 = vpop.xlane.xlu0 %6137
        %v6139 = vrcp.pop %v6138
        %v6140 = vmul.f32 %v6135, %v6139
        %v6141 = vpack.c.bf16 %v6140, %v6140
        %6142 = vrot.lane.b32.xlu0 %v5840, 32
        %v6143 = vpop.permute.xlu0 %6142
        %6144 = vrot.lane.b32.xlu0 %v5841, 32
        %v6145 = vpop.permute.xlu0 %6144
        %v6148 = vsel %vm1002, %v6141, 0
        %v6151 = vsel %vm1050, %v6145, 0
        %6153 = vmatprep.subr.bf16.mxu0 0
        %6154 = vmatpush1.bf16.msra.mxu0 %v6143
        %6155 = vmatprep.subr.bf16.mxu0 0
        %6156 = vmatpush1.bf16.msra.mxu0 %v6151
        %6157 = vmatprep.subr.bf16.mxu0 0
        %6158 = vmatpush1.bf16.msra.mxu0 0
        %6159 = vmatprep.subr.bf16.mxu0 0
        %6160 = vmatpush1.bf16.msra.mxu0 0
        %6161 = vmatprep.subr.bf16.mxu0 0
        %6162 = vmatpush1.bf16.msra.mxu0 0
        %6163 = vmatprep.subr.bf16.mxu0 0
        %6164 = vmatpush1.bf16.msra.mxu0 0
        %6165 = vmatprep.subr.bf16.mxu0 0
        %6166 = vmatpush1.bf16.msra.mxu0 0
        %6167 = vmatprep.subr.bf16.mxu0 0
        %6168 = vmatpush1.bf16.msra.mxu0 0
        %6169 = vmatprep.subr.bf16.mxu0 0
        %6170 = vmatpush1.bf16.msra.mxu0 0
        %6171 = vmatprep.subr.bf16.mxu0 0
        %6172 = vmatpush1.bf16.msra.mxu0 0
        %6173 = vmatprep.subr.bf16.mxu0 0
        %6174 = vmatpush1.bf16.msra.mxu0 0
        %6175 = vmatprep.subr.bf16.mxu0 0
        %6176 = vmatpush1.bf16.msra.mxu0 0
        %6177 = vmatprep.subr.bf16.mxu0 0
        %6178 = vmatpush1.bf16.msra.mxu0 0
        %6179 = vmatprep.subr.bf16.mxu0 0
        %6180 = vmatpush1.bf16.msra.mxu0 0
        %6181 = vmatprep.subr.bf16.mxu0 0
        %6182 = vmatpush1.bf16.msra.mxu0 0
        %6183 = vmatprep.subr.bf16.mxu0 0
        %6184 = vmatpush1.bf16.msra.mxu0 0
        %6185 = vmatprep.mubr.bf16.mxu0 0
        %6186 = vmatmul.mubr.bf16.gmra.mrb[0].mxu0 %v6148
        %v6187 = vpop.f32.mrb[0].mxu0
        %v6188 = vadd.f32 0.0, %v6187
        %v6189 = vpop.f32.mrb[0].mxu0
        %v6190 = vpop.f32.mrb[0].mxu0
        %v6191 = vpop.f32.mrb[0].mxu0
        %6192 = vdwg.mxu0
        %6193 = vrot.lane.b32.xlu0 %v5839, 80
        %v6194 = vpop.permute.xlu0 %6193
        %6195 = vrot.lane.b32.xlu0 %v5840, 80
        %v6196 = vpop.permute.xlu0 %6195
        %6197 = vrot.lane.b32.xlu0 %v5841, 80
        %v6198 = vpop.permute.xlu0 %6197
        %v6200 = vsel %vm1636, %v6194, 0
        %v6203 = vsel %vm1636, %v6196, 0
        %v6206 = vsel %vm1636, %v6198, 0
        %6208 = vmatprep.subr.bf16.mxu0 0
        %6209 = vmatpush1.bf16.xpose.msra.mxu0 %v6203
        %6210 = vmatprep.subr.bf16.mxu0 0
        %6211 = vmatpush1.bf16.xpose.msra.mxu0 %v6206
        %6212 = vmatprep.subr.bf16.mxu0 0
        %6213 = vmatpush1.bf16.xpose.msra.mxu0 0
        %6214 = vmatprep.subr.bf16.mxu0 0
        %6215 = vmatpush1.bf16.xpose.msra.mxu0 0
        %6216 = vmatprep.subr.bf16.mxu0 0
        %6217 = vmatpush1.bf16.xpose.msra.mxu0 0
        %6218 = vmatprep.subr.bf16.mxu0 0
        %6219 = vmatpush1.bf16.xpose.msra.mxu0 0
        %6220 = vmatprep.subr.bf16.mxu0 0
        %6221 = vmatpush1.bf16.xpose.msra.mxu0 0
        %6222 = vmatprep.subr.bf16.mxu0 0
        %6223 = vmatpush1.bf16.xpose.msra.mxu0 0
        %6224 = vmatprep.subr.bf16.mxu0 0
        %6225 = vmatpush1.bf16.xpose.msra.mxu0 0
        %6226 = vmatprep.subr.bf16.mxu0 0
        %6227 = vmatpush1.bf16.xpose.msra.mxu0 0
        %6228 = vmatprep.subr.bf16.mxu0 0
        %6229 = vmatpush1.bf16.xpose.msra.mxu0 0
        %6230 = vmatprep.subr.bf16.mxu0 0
        %6231 = vmatpush1.bf16.xpose.msra.mxu0 0
        %6232 = vmatprep.subr.bf16.mxu0 0
        %6233 = vmatpush1.bf16.xpose.msra.mxu0 0
        %6234 = vmatprep.subr.bf16.mxu0 0
        %6235 = vmatpush1.bf16.xpose.msra.mxu0 0
        %6236 = vmatprep.subr.bf16.mxu0 0
        %6237 = vmatpush1.bf16.xpose.msra.mxu0 0
        %6238 = vmatprep.subr.bf16.mxu0 0
        %6239 = vmatpush1.bf16.xpose.msra.mxu0 0
        %6240 = vmatprep.mubr.bf16.mxu0 0
        %6241 = vmatmul.mubr.bf16.gmra.mrb[0].mxu0 %v6200
        %v6242 = vpop.f32.mrb[0].mxu0
        %v6243 = vadd.f32 0.0, %v6242
        %v6244 = vpop.f32.mrb[0].mxu0
        %v6245 = vpop.f32.mrb[0].mxu0
        %v6246 = vpop.f32.mrb[0].mxu0
        %6247 = vdwg.mxu0
        %v6248 = vsel %vm1002, %v6243, -inf
        %6249 = vmax.xlane.f32.xlu0 %v6248
        %v6250 = vpop.xlane.xlu0 %6249
        %v6251 = vsub.f32 %v6243, %v6250
        %v6252 = vmul.f32 %v6251, 1.442695
        %v6253 = vpow.pop %v6252
        %v6254 = vsel %vm1002, %v6253, 0.0
        %6255 = vadd.xlane.f32.xlu0 %v6254
        %v6256 = vpop.xlane.xlu0 %6255
        %v6257 = vrcp.pop %v6256
        %v6258 = vmul.f32 %v6253, %v6257
        %v6259 = vpack.c.bf16 %v6258, %v6258
        %6260 = vrot.lane.b32.xlu0 %v5840, 16
        %v6261 = vpop.permute.xlu0 %6260
        %6262 = vrot.lane.b32.xlu0 %v5841, 16
        %v6263 = vpop.permute.xlu0 %6262
        %v6266 = vsel %vm1002, %v6259, 0
        %v6269 = vsel %vm1050, %v6263, 0
        %6271 = vmatprep.subr.bf16.mxu0 0
        %6272 = vmatpush1.bf16.msra.mxu0 %v6261
        %6273 = vmatprep.subr.bf16.mxu0 0
        %6274 = vmatpush1.bf16.msra.mxu0 %v6269
        %6275 = vmatprep.subr.bf16.mxu0 0
        %6276 = vmatpush1.bf16.msra.mxu0 0
        %6277 = vmatprep.subr.bf16.mxu0 0
        %6278 = vmatpush1.bf16.msra.mxu0 0
        %6279 = vmatprep.subr.bf16.mxu0 0
        %6280 = vmatpush1.bf16.msra.mxu0 0
        %6281 = vmatprep.subr.bf16.mxu0 0
        %6282 = vmatpush1.bf16.msra.mxu0 0
        %6283 = vmatprep.subr.bf16.mxu0 0
        %6284 = vmatpush1.bf16.msra.mxu0 0
        %6285 = vmatprep.subr.bf16.mxu0 0
        %6286 = vmatpush1.bf16.msra.mxu0 0
        %6287 = vmatprep.subr.bf16.mxu0 0
        %6288 = vmatpush1.bf16.msra.mxu0 0
        %6289 = vmatprep.subr.bf16.mxu0 0
        %6290 = vmatpush1.bf16.msra.mxu0 0
        %6291 = vmatprep.subr.bf16.mxu0 0
        %6292 = vmatpush1.bf16.msra.mxu0 0
        %6293 = vmatprep.subr.bf16.mxu0 0
        %6294 = vmatpush1.bf16.msra.mxu0 0
        %6295 = vmatprep.subr.bf16.mxu0 0
        %6296 = vmatpush1.bf16.msra.mxu0 0
        %6297 = vmatprep.subr.bf16.mxu0 0
        %6298 = vmatpush1.bf16.msra.mxu0 0
        %6299 = vmatprep.subr.bf16.mxu0 0
        %6300 = vmatpush1.bf16.msra.mxu0 0
        %6301 = vmatprep.subr.bf16.mxu0 0
        %6302 = vmatpush1.bf16.msra.mxu0 0
        %6303 = vmatprep.mubr.bf16.mxu0 0
        %6304 = vmatmul.mubr.bf16.gmra.mrb[0].mxu0 %v6266
        %v6305 = vpop.f32.mrb[0].mxu0
        %v6306 = vadd.f32 0.0, %v6305
        %v6307 = vpop.f32.mrb[0].mxu0
        %v6308 = vpop.f32.mrb[0].mxu0
        %v6309 = vpop.f32.mrb[0].mxu0
        %6310 = vdwg.mxu0
        %6312 = vrot.lane.b32.xlu0 %v6070, 16
        %v6313 = vpop.permute.xlu0 %6312
        %6316 = vrot.lane.b32.xlu0 %v6188, 32
        %v6317 = vpop.permute.xlu0 %6316
        %6320 = vrot.lane.b32.xlu0 %v6306, 48
        %v6321 = vpop.permute.xlu0 %6320
        %v6323 = vsel %vm1636, %v5951, %v6313
        %v6324 = vsel %vm794, %v6323, %v6317
        %v6325 = vsel %vm738, %v6324, %v6321
        %v6326 = vpack.c.bf16 %v6325, %v6325
        %v6327 = vlaneseq
        %v6328 = vshrl.u32 %v6327, 7
        %v6329 = vsub.s32 7, %v6328
        %v6330 = vrot.slane %v4982, %v6329
        %v6339 = vunpack.c.l.b16 %v5664
        %v6340 = vunpack.c.l.b16 %v5665
        %v6341 = vunpack.c.l.b16 %v5666
        %v6342 = vunpack.c.l.b16 %v5667
        %v6343 = vunpack.c.l.b16 %v5668
        %v6344 = vunpack.c.l.b16 %v5669
        %v6345 = vunpack.c.l.b16 %v5670
        %v6346 = vunpack.c.l.b16 %v5671
        %v6347 = vpack.c.b16 %v6340, %v6339
        %v6348 = vpack.c.b16 %v6342, %v6341
        %v6349 = vpack.c.b16 %v6344, %v6343
        %v6350 = vpack.c.b16 %v6346, %v6345
        %v6356 = vsel %vm1916, %v6326, 0
        %6358 = vmatprep.subr.bf16.mxu0 0
        %6359 = vmatpush1.bf16.msra.mxu0 %v6347
        %6360 = vmatprep.subr.bf16.mxu0 0
        %6361 = vmatpush1.bf16.msra.mxu0 %v6348
        %6362 = vmatprep.subr.bf16.mxu0 0
        %6363 = vmatpush1.bf16.msra.mxu0 %v6349
        %6364 = vmatprep.subr.bf16.mxu0 0
        %6365 = vmatpush1.bf16.msra.mxu0 %v6350
        %6366 = vmatprep.subr.bf16.mxu0 0
        %6367 = vmatpush1.bf16.msra.mxu0 0
        %6368 = vmatprep.subr.bf16.mxu0 0
        %6369 = vmatpush1.bf16.msra.mxu0 0
        %6370 = vmatprep.subr.bf16.mxu0 0
        %6371 = vmatpush1.bf16.msra.mxu0 0
        %6372 = vmatprep.subr.bf16.mxu0 0
        %6373 = vmatpush1.bf16.msra.mxu0 0
        %6374 = vmatprep.subr.bf16.mxu0 0
        %6375 = vmatpush1.bf16.msra.mxu0 0
        %6376 = vmatprep.subr.bf16.mxu0 0
        %6377 = vmatpush1.bf16.msra.mxu0 0
        %6378 = vmatprep.subr.bf16.mxu0 0
        %6379 = vmatpush1.bf16.msra.mxu0 0
        %6380 = vmatprep.subr.bf16.mxu0 0
        %6381 = vmatpush1.bf16.msra.mxu0 0
        %6382 = vmatprep.subr.bf16.mxu0 0
        %6383 = vmatpush1.bf16.msra.mxu0 0
        %6384 = vmatprep.subr.bf16.mxu0 0
        %6385 = vmatpush1.bf16.msra.mxu0 0
        %6386 = vmatprep.subr.bf16.mxu0 0
        %6387 = vmatpush1.bf16.msra.mxu0 0
        %6388 = vmatprep.subr.bf16.mxu0 0
        %6389 = vmatpush1.bf16.msra.mxu0 0
        %6390 = vmatprep.mubr.bf16.mxu0 0
        %6391 = vmatmul.mubr.bf16.gmra.mrb[0].mxu0 %v6356
        %v6392 = vpop.f32.mrb[0].mxu0
        %v6393 = vadd.f32 %v6330, %v6392
        %v6394 = vpop.f32.mrb[0].mxu0
        %v6395 = vpop.f32.mrb[0].mxu0
        %v6396 = vpop.f32.mrb[0].mxu0
        %6397 = vdwg.mxu0
        %v6398 = vadd.f32 %v5650, %v6393
        %v6399 = vsel %vm1916, %v6398, 0.0
        %6400 = vadd.xlane.f32.xlu0 %v6399
        %v6401 = vpop.xlane.xlu0 %6400
        %v6402 = vmul.f32 %v6401, %v3289
        %v6403 = vsub.f32 %v6398, %v6402
        %v6404 = vmul.f32 %v6403, %v6403
        %v6405 = vsel %vm1916, %v6404, 0.0
        %6406 = vadd.xlane.f32.xlu0 %v6405
        %v6407 = vpop.xlane.xlu0 %6406
        %v6408 = vmul.f32 %v6407, %v3289
        %v6409 = vadd.f32 %v6408, 1e-05
        %v6410 = vrsqrt.pop %v6409
        %v6411 = vmul.f32 %v6403, %v6410
        %v6412 = vlaneseq
        %v6413 = vshrl.u32 %v6412, 7
        %v6414 = vsub.s32 2, %v6413
        %v6415 = vrot.slane %v4982, %v6414
        %v6416 = vmul.f32 %v6411, %v6415
        %v6417 = vlaneseq
        %v6418 = vshrl.u32 %v6417, 7
        %v6419 = vsub.s32 3, %v6418
        %v6420 = vrot.slane %v4982, %v6419
        %v6421 = vadd.f32 %v6416, %v6420
        %v6422 = vpack.c.bf16 %v6421, %v6421
        %s6423 = scalar_lea.vmem %s19, 32
        %v6424 = vld [vmem:[%s6423] sm:$0xf]
        %v6425 = vld [vmem:[%s6423 + $0x4] sm:$0xf]
        %v6426 = vld [vmem:[%s6423 + $0x8] sm:$0xf]
        %v6427 = vld [vmem:[%s6423 + $0xc] sm:$0xf]
        %v6428 = vld [vmem:[%s6423 + $0x10] sm:$0xf]
        %v6429 = vld [vmem:[%s6423 + $0x14] sm:$0xf]
        %v6430 = vld [vmem:[%s6423 + $0x18] sm:$0xf]
        %v6431 = vld [vmem:[%s6423 + $0x1c] sm:$0xf]
        %s6432 = scalar_lea.vmem %s20, 1
        %v6433 = vld [vmem:[%s6432] sm:$0x1]
        %s6434 = scalar_lea.vmem %s21, 64
        %v6435 = vld [vmem:[%s6434] sm:$0xf]
        %v6436 = vld [vmem:[%s6434 + $0x4] sm:$0xf]
        %v6437 = vld [vmem:[%s6434 + $0x8] sm:$0xf]
        %v6438 = vld [vmem:[%s6434 + $0xc] sm:$0xf]
        %v6439 = vld [vmem:[%s6434 + $0x10] sm:$0xf]
        %v6440 = vld [vmem:[%s6434 + $0x14] sm:$0xf]
        %v6441 = vld [vmem:[%s6434 + $0x18] sm:$0xf]
        %v6442 = vld [vmem:[%s6434 + $0x1c] sm:$0xf]
        %v6443 = vld [vmem:[%s6434 + $0x20] sm:$0xf]
        %v6444 = vld [vmem:[%s6434 + $0x24] sm:$0xf]
        %v6445 = vld [vmem:[%s6434 + $0x28] sm:$0xf]
        %v6446 = vld [vmem:[%s6434 + $0x2c] sm:$0xf]
        %v6447 = vld [vmem:[%s6434 + $0x30] sm:$0xf]
        %v6448 = vld [vmem:[%s6434 + $0x34] sm:$0xf]
        %v6449 = vld [vmem:[%s6434 + $0x38] sm:$0xf]
        %v6450 = vld [vmem:[%s6434 + $0x3c] sm:$0xf]
        %v6452 = vlaneseq
        %v6453 = vshrl.u32 %v6452, 7
        %v6454 = vsub.s32 0, %v6453
        %v6455 = vrot.slane %v6433, %v6454
        %v6465 = vunpack.c.l.b16 %v6424
        %v6466 = vunpack.c.l.b16 %v6425
        %v6467 = vunpack.c.l.b16 %v6426
        %v6468 = vunpack.c.l.b16 %v6427
        %v6469 = vunpack.c.l.b16 %v6428
        %v6470 = vunpack.c.l.b16 %v6429
        %v6471 = vunpack.c.l.b16 %v6430
        %v6472 = vunpack.c.l.b16 %v6431
        %v6473 = vpack.c.b16 %v6466, %v6465
        %v6474 = vpack.c.b16 %v6468, %v6467
        %v6475 = vpack.c.b16 %v6470, %v6469
        %v6476 = vpack.c.b16 %v6472, %v6471
        %v6482 = vsel %vm1916, %v6422, 0
        %6484 = vmatprep.subr.bf16.mxu0 0
        %6485 = vmatpush1.bf16.msra.mxu0 %v6473
        %6486 = vmatprep.subr.bf16.mxu0 0
        %6487 = vmatpush1.bf16.msra.mxu0 %v6474
        %6488 = vmatprep.subr.bf16.mxu0 0
        %6489 = vmatpush1.bf16.msra.mxu0 %v6475
        %6490 = vmatprep.subr.bf16.mxu0 0
        %6491 = vmatpush1.bf16.msra.mxu0 %v6476
        %6492 = vmatprep.subr.bf16.mxu0 0
        %6493 = vmatpush1.bf16.msra.mxu0 0
        %6494 = vmatprep.subr.bf16.mxu0 0
        %6495 = vmatpush1.bf16.msra.mxu0 0
        %6496 = vmatprep.subr.bf16.mxu0 0
        %6497 = vmatpush1.bf16.msra.mxu0 0
        %6498 = vmatprep.subr.bf16.mxu0 0
        %6499 = vmatpush1.bf16.msra.mxu0 0
        %6500 = vmatprep.subr.bf16.mxu0 0
        %6501 = vmatpush1.bf16.msra.mxu0 0
        %6502 = vmatprep.subr.bf16.mxu0 0
        %6503 = vmatpush1.bf16.msra.mxu0 0
        %6504 = vmatprep.subr.bf16.mxu0 0
        %6505 = vmatpush1.bf16.msra.mxu0 0
        %6506 = vmatprep.subr.bf16.mxu0 0
        %6507 = vmatpush1.bf16.msra.mxu0 0
        %6508 = vmatprep.subr.bf16.mxu0 0
        %6509 = vmatpush1.bf16.msra.mxu0 0
        %6510 = vmatprep.subr.bf16.mxu0 0
        %6511 = vmatpush1.bf16.msra.mxu0 0
        %6512 = vmatprep.subr.bf16.mxu0 0
        %6513 = vmatpush1.bf16.msra.mxu0 0
        %6514 = vmatprep.subr.bf16.mxu0 0
        %6515 = vmatpush1.bf16.msra.mxu0 0
        %6516 = vmatprep.mubr.bf16.mxu0 0
        %6517 = vmatmul.mubr.bf16.gmra.mrb[0].mxu0 %v6482
        %v6518 = vpop.f32.mrb[0].mxu0
        %v6519 = vadd.f32 %v6455, %v6518
        %v6520 = vpop.f32.mrb[0].mxu0
        %v6521 = vpop.f32.mrb[0].mxu0
        %v6522 = vpop.f32.mrb[0].mxu0
        %6523 = vdwg.mxu0
        %v6524 = vmul.f32 %v6519, %v6519
        %v6525 = vmul.f32 %v6519, %v6524
        %v6526 = vmul.f32 %v6525, 0.044715
        %v6527 = vadd.f32 %v6519, %v6526
        %v6528 = vmul.f32 %v6527, 0.7978846
        %v6529 = vtanh.pop %v6528
        %v6530 = vadd.f32 %v6529, 1.0
        %v6531 = vmul.f32 %v6530, 0.5
        %v6532 = vmul.f32 %v6519, %v6531
        %v6533 = vpack.c.bf16 %v6532, %v6532
        %v6534 = vlaneseq
        %v6535 = vshrl.u32 %v6534, 7
        %v6536 = vsub.s32 0, %v6535
        %v6537 = vrot.slane %v4983, %v6536
        %v6554 = vunpack.c.l.b16 %v6435
        %v6555 = vunpack.c.l.b16 %v6436
        %v6556 = vunpack.c.l.b16 %v6437
        %v6557 = vunpack.c.l.b16 %v6438
        %v6558 = vunpack.c.l.b16 %v6439
        %v6559 = vunpack.c.l.b16 %v6440
        %v6560 = vunpack.c.l.b16 %v6441
        %v6561 = vunpack.c.l.b16 %v6442
        %v6562 = vunpack.c.l.b16 %v6443
        %v6563 = vunpack.c.l.b16 %v6444
        %v6564 = vunpack.c.l.b16 %v6445
        %v6565 = vunpack.c.l.b16 %v6446
        %v6566 = vunpack.c.l.b16 %v6447
        %v6567 = vunpack.c.l.b16 %v6448
        %v6568 = vunpack.c.l.b16 %v6449
        %v6569 = vunpack.c.l.b16 %v6450
        %v6570 = vpack.c.b16 %v6555, %v6554
        %v6571 = vpack.c.b16 %v6557, %v6556
        %v6572 = vpack.c.b16 %v6559, %v6558
        %v6573 = vpack.c.b16 %v6561, %v6560
        %v6574 = vpack.c.b16 %v6563, %v6562
        %v6575 = vpack.c.b16 %v6565, %v6564
        %v6576 = vpack.c.b16 %v6567, %v6566
        %v6577 = vpack.c.b16 %v6569, %v6568
        %6586 = vmatprep.subr.bf16.mxu0 0
        %6587 = vmatpush1.bf16.msra.mxu0 %v6570
        %6588 = vmatprep.subr.bf16.mxu0 0
        %6589 = vmatpush1.bf16.msra.mxu0 %v6571
        %6590 = vmatprep.subr.bf16.mxu0 0
        %6591 = vmatpush1.bf16.msra.mxu0 %v6572
        %6592 = vmatprep.subr.bf16.mxu0 0
        %6593 = vmatpush1.bf16.msra.mxu0 %v6573
        %6594 = vmatprep.subr.bf16.mxu0 0
        %6595 = vmatpush1.bf16.msra.mxu0 %v6574
        %6596 = vmatprep.subr.bf16.mxu0 0
        %6597 = vmatpush1.bf16.msra.mxu0 %v6575
        %6598 = vmatprep.subr.bf16.mxu0 0
        %6599 = vmatpush1.bf16.msra.mxu0 %v6576
        %6600 = vmatprep.subr.bf16.mxu0 0
        %6601 = vmatpush1.bf16.msra.mxu0 %v6577
        %6602 = vmatprep.subr.bf16.mxu0 0
        %6603 = vmatpush1.bf16.msra.mxu0 0
        %6604 = vmatprep.subr.bf16.mxu0 0
        %6605 = vmatpush1.bf16.msra.mxu0 0
        %6606 = vmatprep.subr.bf16.mxu0 0
        %6607 = vmatpush1.bf16.msra.mxu0 0
        %6608 = vmatprep.subr.bf16.mxu0 0
        %6609 = vmatpush1.bf16.msra.mxu0 0
        %6610 = vmatprep.subr.bf16.mxu0 0
        %6611 = vmatpush1.bf16.msra.mxu0 0
        %6612 = vmatprep.subr.bf16.mxu0 0
        %6613 = vmatpush1.bf16.msra.mxu0 0
        %6614 = vmatprep.subr.bf16.mxu0 0
        %6615 = vmatpush1.bf16.msra.mxu0 0
        %6616 = vmatprep.subr.bf16.mxu0 0
        %6617 = vmatpush1.bf16.msra.mxu0 0
        %6618 = vmatprep.mubr.bf16.mxu0 0
        %6619 = vmatmul.mubr.bf16.gmra.mrb[0].mxu0 %v6533
        %v6620 = vpop.f32.mrb[0].mxu0
        %v6621 = vadd.f32 %v6537, %v6620
        %v6622 = vpop.f32.mrb[0].mxu0
        %v6623 = vpop.f32.mrb[0].mxu0
        %v6624 = vpop.f32.mrb[0].mxu0
        %6625 = vdwg.mxu0
        %v6626 = vadd.f32 %v6421, %v6621
        %v6627 = vsel %vm1916, %v6626, 0.0
        %6628 = vadd.xlane.f32.xlu0 %v6627
        %v6629 = vpop.xlane.xlu0 %6628
        %v6630 = vmul.f32 %v6629, %v3289
        %v6631 = vsub.f32 %v6626, %v6630
        %v6632 = vmul.f32 %v6631, %v6631
        %v6633 = vsel %vm1916, %v6632, 0.0
        %6634 = vadd.xlane.f32.xlu0 %v6633
        %v6635 = vpop.xlane.xlu0 %6634
        %v6636 = vmul.f32 %v6635, %v3289
        %v6637 = vadd.f32 %v6636, 1e-05
        %v6638 = vrsqrt.pop %v6637
        %v6639 = vmul.f32 %v6631, %v6638
        %v6640 = vlaneseq
        %v6641 = vshrl.u32 %v6640, 7
        %v6642 = vsub.s32 4, %v6641
        %v6643 = vrot.slane %v4982, %v6642
        %v6644 = vmul.f32 %v6639, %v6643
        %v6645 = vlaneseq
        %v6646 = vshrl.u32 %v6645, 7
        %v6647 = vsub.s32 5, %v6646
        %v6648 = vrot.slane %v4982, %v6647
        %v6649 = vadd.f32 %v6644, %v6648
        %6650 = vst.msk [vmem:[%s689] sm:$0xff] %vm1916, %v6649
        %s6651 = sand.u32 %s516, 1
        %s6652 = scalar_lea.sflag [#allocation3], %s6651
        %s6653 = sand.u32 %s516, 1
        %s6654 = smul.addr %s6653, 8
        %s6655 = scalar_lea.vmem [#allocation2], %s6654
        // Predicated region
        $region109: #{transformer_ocr_forward.1} parent=107 // pred_check
          %p6656 = pneg %p526
        $region110: #{transformer_ocr_forward.1} parent=107 // pred_check_branch
          %6658 = sbr.rel (%p6656) target = $region112
        $region111: #{transformer_ocr_forward.1} parent=107 // pred_region
          %s6660 = ssub.s32 128, 128
          %6661 = vsyncadd %s6652, %s6660
          %s6662 = smul.addr %s36, 128
          %s6663 = scalar_lea.hbm %s22, %s6662
          %s6665 = sshll.u32 %s6655, 4
          %s6666 = int_to_ptr.vmem [resolvable:$true] %s6665
          %6668 = dma.vmem_to_hbm [thread:$0]  %s6666, 128, %s6663, %s6652
        $region112: #{transformer_ocr_forward.1} parent=107 // pred_fallthru
          _
      $region108: #{transformer_ocr_forward.1} parent=5 // pred_fallthru
        _
      %p6669 = scmp.le.s32.totalorder 2, %s31
      // Predicated region
      $region113: #{transformer_ocr_forward.1} parent=5 // pred_check
        %p6670 = pneg %p6669
      $region114: #{transformer_ocr_forward.1} parent=5 // pred_check_branch
        %6672 = sbr.rel (%p6670) target = $region116
      $region115: #{transformer_ocr_forward.1} parent=5 // pred_region
        %s6673 = ssub.s32 %s31, 2
        // Predicated region
        $region117: #{transformer_ocr_forward.1} parent=115 // pred_check
          %p6674 = pneg %p532
        $region118: #{transformer_ocr_forward.1} parent=115 // pred_check_branch
          %6676 = sbr.rel (%p6674) target = $region120
        $region119: #{transformer_ocr_forward.1} parent=115 // pred_region
          %s6677 = sand.u32 %s517, 1
          %s6678 = scalar_lea.sflag [#allocation3], %s6677
          %s6679 = sand.u32 %s517, 1
          %s6680 = smul.addr %s6679, 8
          %s6681 = scalar_lea.vmem [#allocation2], %s6680
          %6682 = dma.done %s6678, 128
        $region120: #{transformer_ocr_forward.1} parent=115 // pred_fallthru
          _
      $region116: #{transformer_ocr_forward.1} parent=5 // pred_fallthru
        _
    $region6: #{transformer_ocr_forward.1} parent=1 // loop_footer
      %s35 = sadd.s32 1, %s31
    $region7: #{transformer_ocr_forward.1} parent=1 // loop_footer_branch
      %30 = sbr.rel target = $region3
    $region8: #{transformer_ocr_forward.1} parent=1 // loop_exit
      _
    %6683 = vsyncpa [#allocation3], 1
    %s6684 = scalar_lea.sflag [#allocation3], 1
    %6685 = vsyncpa %s6684, 1

</llo_original>
